<compile_context>
chip_gen: v7x
topology: tpu7x:2x2x1
jax: 0.10.0
libtpu: 0.0.40
codegen_flags: <defaults>
</compile_context>

<pallas_src>
import functools

import jax
import jax.numpy as jnp
from jax.experimental import pallas as pl
from jax.experimental.pallas import tpu as pltpu


# ----------------------------------------------------------------------------
# Pallas kernel: LinkPredictor forward for Gblk instances (one grid step)
# ----------------------------------------------------------------------------
def link_predictor_kernel(
    # scalar prefetch (SMEM)
    t_sm,
    # per-step streamed inputs
    x_ref, a_ref, sd_ref,
    # resident (grid-constant) weights
    wx1_ref, w32_ref, wgt_ref, wo1_ref, bo1_ref, wo2_ref, wp2_ref, vec_ref,
    # output
    out_ref,
    # scratch
    hcat_ref,
    *, n_nodes, gblk,
):
    f32, bf16 = jnp.float32, jnp.bfloat16
    relu = lambda v: jnp.maximum(v, 0.0)
    # bf16 operands on the MXU, f32 accumulation.
    dot = lambda a, b: jnp.dot(a.astype(bf16), b.astype(bf16),
                               preferred_element_type=f32)

    Hx = w32_ref.shape[2]
    Ht = wgt_ref.shape[0]
    L = w32_ref.shape[0] - 3
    HE = wo2_ref.shape[1]
    Nb = x_ref.shape[1]            # gblk * n_nodes rows per step
    GB = sd_ref.shape[1] // 2      # gblk * B edges per step

    step = pl.program_id(0)

    # packed (1, W) vectors (f32); row layout defined in the wrapper
    wt1 = vec_ref[0:1, :Ht]
    bt1 = vec_ref[1:2, :Ht]
    bt2 = vec_ref[2:3, :Ht]
    bx1 = vec_ref[3:4, :Hx]
    bx2 = vec_ref[4:5, :Hx]
    bo2 = vec_ref[5:6, :HE]
    bp1 = vec_ref[6:7, :HE]
    bp2 = vec_ref[7:8, :]          # padded to the full (lane-dense) out width

    # --- expand per-instance scalar t (SMEM) to a per-row column (Nb, 1) ----
    row = jax.lax.broadcasted_iota(jnp.int32, (Nb, 1), 0)
    t_exp = jnp.zeros((Nb, 1), f32)
    for i in range(gblk):                          # static, tiny select chain
        in_blk = (row >= i * n_nodes) & (row < (i + 1) * n_nodes)
        t_exp = jnp.where(in_blk, t_sm[step * gblk + i], t_exp)

    # --- mlp_in_t : rows duplicated per node (identical within an instance) --
    h_t = relu(t_exp * wt1 + bt1)                  # Linear(1, Ht) + ReLU
    h_t = relu(dot(h_t, w32_ref[0]) + bt2)         # Linear(Ht, Ht) + ReLU

    # hoisted h_t contribution for ALL GNN layers in one matmul: (Nb, L*Hx)
    zt_all = dot(h_t, wgt_ref[...])

    # --- mlp_in_X : (Nb, in_X) -> (Nb, Hx) ------------------------------------
    h = relu(dot(x_ref[0], wx1_ref[...]) + bx1)
    h = relu(dot(h, w32_ref[1]) + bx2)

    a = a_ref[0]                                   # (Nb, Nb) block-diag bf16

    # concat scratch layout: [h_0 | h_1 | ... | h_L | h_t]  (bf16, Nb x hidden_cat)
    # Full lane coverage is asserted in the wrapper ((L+1)*Hx + Ht == hidden_cat).
    hcat_ref[:, 0:Hx] = h.astype(bf16)
    hcat_ref[:, (L + 1) * Hx:(L + 1) * Hx + Ht] = h_t.astype(bf16)

    # --- GNN layers: Linear(cat) + ReLU + LayerNorm (Dropout = eval identity)
    for l in range(L):
        b_eff = zt_all[:, l * Hx:(l + 1) * Hx] + vec_ref[8 + l:9 + l, :Hx]
        h_aggr = dot(a, h)                         # block-diag A @ h_X
        z = relu(dot(h_aggr, w32_ref[3 + l]) + b_eff)
        mu = jnp.mean(z, axis=-1, keepdims=True)   # LayerNorm stats in f32
        var = jnp.mean((z - mu) ** 2, axis=-1, keepdims=True)
        h = (z - mu) * jax.lax.rsqrt(var + 1e-5) \
            * vec_ref[8 + L + l:9 + L + l, :Hx] \
            + vec_ref[8 + 2 * L + l:9 + 2 * L + l, :Hx]
        hcat_ref[:, (l + 1) * Hx:(l + 2) * Hx] = h.astype(bf16)

    # --- GNNTower.mlp_out : single K = hidden_cat matmul -----------------
    z = relu(dot(hcat_ref[...], wo1_ref[...]) + bo1_ref[...])
    h_e = dot(z, wo2_ref[...]) + bo2               # (Nb, HE)

    # --- fused src/dst gather: one-hot built in-kernel from int32 indices ---
    cols = jax.lax.broadcasted_iota(jnp.int32, (2 * GB, Nb), 1)
    sel = (cols == sd_ref[0]).astype(bf16)         # (2GB, Nb) one-hot
    g = dot(sel, h_e)                              # (2GB, HE)
    he = g[:GB, :] * g[GB:, :]                     # h_e[src] * h_e[dst]
    he = relu(dot(he, w32_ref[2]) + bp1)
    out_ref[0] = dot(he, wp2_ref[...]) + bp2       # lane-dense (GB, 128) store


# ----------------------------------------------------------------------------
# Wrapper: pack params, batch Gblk instances per grid step
# ----------------------------------------------------------------------------
def link_predictor_forward(t_all, X_all, A_all, src_all, dst_all, params,
                           gblk=None, target_rows=256):
    """t_all:(G,1,1) f32, X_all:(G,N,in_X), A_all:(G,N,N), src/dst:(G,B) int.
    Returns (G, B, num_classes_E) f32 logits.

    target_rows: desired M per matmul (256 fills a v6e/v7x MXU pass; use 128
    on v5e)."""
    f32, bf16 = jnp.float32, jnp.bfloat16
    G, N, in_X = X_all.shape
    B = src_all.shape[1]

    Ht = params["wt1"].shape[1]
    Hx = params["wx1"].shape[1]
    HE = params["wo2"].shape[1]
    C = params["wp2"].shape[1]
    L = params["wg"].shape[0]
    hidden_cat = params["wo1"].shape[0]
    # hcat scratch lanes are fully overwritten every step (no stale reads).
    assert hidden_cat == (L + 1) * Hx + Ht
    # square-weight stacking assumes equal hidden widths (true for this config)
    assert Ht == Hx == HE

    # --- choose instances per grid step: M ~= target_rows, keep >=2 steps ----
    if gblk is None:
        gblk = 1
        for cand in range(1, G + 1):
            if G % cand == 0 and cand * N <= target_rows and G // cand >= 2:
                gblk = cand
    assert G % gblk == 0
    gsteps = G // gblk
    Nb = gblk * N                 # stacked node rows per step
    GB = gblk * B                 # stacked edges per step
    C_pad = 128                   # lane-dense output width

    # --- per-step streamed inputs --------------------------------------------
    t_flat = t_all.reshape(G).astype(f32)                        # SMEM prefetch
    x_b = X_all.astype(bf16).reshape(gsteps, Nb, in_X)           # exact in bf16
    # block-diagonal adjacency (Gsteps, Nb, Nb); off-diagonal blocks are zero
    a_g = A_all.astype(bf16).reshape(gsteps, gblk, N, N)
    eye = jnp.eye(gblk, dtype=bf16)
    a_b = jnp.einsum("ij,sinm->sinjm", eye, a_g).reshape(gsteps, Nb, Nb)
    # src/dst indices, offset by (instance-within-step)*N; srcs first, dsts after
    offs = (jnp.arange(gblk, dtype=jnp.int32) * N)[None, :, None]
    src_o = (src_all.astype(jnp.int32).reshape(gsteps, gblk, B) + offs)
    dst_o = (dst_all.astype(jnp.int32).reshape(gsteps, gblk, B) + offs)
    sd = jnp.concatenate([src_o.reshape(gsteps, GB),
                          dst_o.reshape(gsteps, GB)], axis=1)[..., None]

    # --- packed resident weights ----------------------------------------------
    # square 32x32 matrices stacked: [wt2, wx2, wp1, wg_x[0], ..., wg_x[L-1]]
    w32 = jnp.stack([params["wt2"], params["wx2"], params["wp1"]]
                    + [params["wg"][l, :Hx, :] for l in range(L)]).astype(bf16)
    # h_t part of every GNN layer, flattened to (Ht, L*Hx) for one hoisted dot
    wgt = jnp.transpose(params["wg"][:, Hx:, :], (1, 0, 2)).reshape(Ht, L * Hx)
    wgt = wgt.astype(bf16)
    wx1 = params["wx1"].astype(bf16)
    wo1 = params["wo1"].astype(bf16)
    wo2 = params["wo2"].astype(bf16)
    wp2 = jnp.pad(params["wp2"], ((0, 0), (0, C_pad - C))).astype(bf16)
    bo1 = params["bo1"].astype(f32)

    # all tiny (1, H) vectors packed into one (8 + 3L, 128) f32 array
    W = C_pad
    pad = lambda v: jnp.pad(v.astype(f32), ((0, 0), (0, W - v.shape[1])))
    vec = jnp.concatenate(
        [pad(params[k]) for k in ("wt1", "bt1", "bt2", "bx1", "bx2",
                                  "bo2", "bp1", "bp2")]
        + [pad(params["bg"][l]) for l in range(L)]
        + [pad(params["lng"][l]) for l in range(L)]
        + [pad(params["lnb"][l]) for l in range(L)], axis=0)

    def per_step(shape):
        return pl.BlockSpec((1,) + shape,
                            lambda g, t_sm: (g,) + (0,) * len(shape))

    def resident(arr):
        zeros = (0,) * arr.ndim
        return pl.BlockSpec(arr.shape, lambda g, t_sm, _z=zeros: _z)

    weights = (wx1, w32, wgt, wo1, bo1, wo2, wp2, vec)
    grid_spec = pltpu.PrefetchScalarGridSpec(
        num_scalar_prefetch=1,                       # t lives in SMEM
        grid=(gsteps,),
        in_specs=[per_step((Nb, in_X)), per_step((Nb, Nb)),
                  per_step((2 * GB, 1))] + [resident(w) for w in weights],
        out_specs=pl.BlockSpec((1, GB, C_pad), lambda g, t_sm: (g, 0, 0)),
        scratch_shapes=[pltpu.VMEM((Nb, hidden_cat), bf16)],
    )

    kernel = functools.partial(link_predictor_kernel, n_nodes=N, gblk=gblk)
    out = pl.pallas_call(
        kernel,
        out_shape=jax.ShapeDtypeStruct((gsteps, GB, C_pad), f32),
        grid_spec=grid_spec,
        compiler_params=pltpu.CompilerParams(
            dimension_semantics=("parallel",),       # shard steps across TCs
        ),
    )(t_flat, x_b, a_b, sd, *weights)

    return out.reshape(G, B, C_pad)[..., :C]


# ----------------------------------------------------------------------------
# Deterministic parameter init (synthetic weights; no checkpoint load)
# ----------------------------------------------------------------------------
def init_params(key, num_attrs_X, num_classes_X, num_classes_E,
                hidden_t, hidden_X, hidden_E, num_gnn_layers):
    in_X = num_attrs_X * num_classes_X
    hidden_cat = (num_gnn_layers + 1) * hidden_X + hidden_t
    keys = iter(jax.random.split(key, 64))

    def linear(fan_in, fan_out):
        w = jax.random.normal(next(keys), (fan_in, fan_out), jnp.float32)
        w = w / jnp.sqrt(jnp.float32(fan_in))
        b = 0.01 * jax.random.normal(next(keys), (1, fan_out), jnp.float32)
        return w, b

    p = {}
    p["wt1"], p["bt1"] = linear(1, hidden_t)
    p["wt2"], p["bt2"] = linear(hidden_t, hidden_t)
    p["wx1"], p["bx1"] = linear(in_X, hidden_X)
    p["wx2"], p["bx2"] = linear(hidden_X, hidden_X)

    wg, bg, lng, lnb = [], [], [], []
    for _ in range(num_gnn_layers):
        w, b = linear(hidden_X + hidden_t, hidden_X)
        wg.append(w); bg.append(b)
        lng.append(jnp.ones((1, hidden_X), jnp.float32))
        lnb.append(jnp.zeros((1, hidden_X), jnp.float32))
    p["wg"] = jnp.stack(wg)      # (L, Hx+Ht, Hx)
    p["bg"] = jnp.stack(bg)      # (L, 1, Hx)
    p["lng"] = jnp.stack(lng)    # (L, 1, Hx)
    p["lnb"] = jnp.stack(lnb)    # (L, 1, Hx)

    p["wo1"], p["bo1"] = linear(hidden_cat, hidden_cat)
    p["wo2"], p["bo2"] = linear(hidden_cat, hidden_E)
    p["wp1"], p["bp1"] = linear(hidden_E, hidden_E)
    p["wp2"], p["bp2"] = linear(hidden_E, num_classes_E)
    return p


# ----------------------------------------------------------------------------
# Pure-JAX reference (eval mode). matmul_dtype=bf16 mirrors kernel numerics.
# ----------------------------------------------------------------------------
def reference_forward(t_float, X, A, src, dst, p, matmul_dtype=jnp.float32):
    f32 = jnp.float32
    relu = lambda v: jnp.maximum(v, 0.0)
    mm = lambda a, b: jnp.dot(a.astype(matmul_dtype), b.astype(matmul_dtype),
                              preferred_element_type=f32)
    h_t = relu(t_float * p["wt1"] + p["bt1"])
    h_t = relu(mm(h_t, p["wt2"]) + p["bt2"])
    h = relu(mm(X, p["wx1"]) + p["bx1"])
    h = relu(mm(h, p["wx2"]) + p["bx2"])
    N = X.shape[0]
    h_t_exp = jnp.broadcast_to(h_t, (N, h_t.shape[1]))
    h_list = [h]
    for l in range(p["wg"].shape[0]):
        h_aggr = mm(A, h)
        z = jnp.concatenate([h_aggr, h_t_exp], axis=1)
        z = relu(mm(z, p["wg"][l]) + p["bg"][l])
        mu = z.mean(-1, keepdims=True)
        var = ((z - mu) ** 2).mean(-1, keepdims=True)
        h = (z - mu) * jax.lax.rsqrt(var + 1e-5) * p["lng"][l] + p["lnb"][l]
        h_list.append(h)
    h_cat = jnp.concatenate(h_list + [h_t_exp], axis=1)
    z = relu(mm(h_cat, p["wo1"]) + p["bo1"])
    h_e = mm(z, p["wo2"]) + p["bo2"]
    if matmul_dtype != f32:                      # gather operates on bf16 h_e
        h_e = h_e.astype(matmul_dtype).astype(f32)
    he = h_e[src] * h_e[dst]
    he = relu(mm(he, p["wp1"]) + p["bp1"])
    return mm(he, p["wp2"]) + p["bp2"]


# ----------------------------------------------------------------------------
if __name__ == "__main__":
    num_attrs_X, num_classes_X = 2, 4          # in_X = 8
    num_classes_E = 2
    hidden_t = hidden_X = hidden_E = 32
    num_gnn_layers = 2
    N, B, G = 16, 8, 64    # 64 instances -> 4 grid steps of 16 (256 rows each)

    key = jax.random.PRNGKey(0)
    k_p, k_t, k_x, k_a, k_s, k_d = jax.random.split(key, 6)
    params = init_params(k_p, num_attrs_X, num_classes_X, num_classes_E,
                         hidden_t, hidden_X, hidden_E, num_gnn_layers)

    t_all = jax.random.uniform(k_t, (G, 1, 1), jnp.float32)
    ids = jax.random.randint(k_x, (G, N, num_attrs_X), 0, num_classes_X)
    X_all = jax.nn.one_hot(ids, num_classes_X, dtype=jnp.float32)
    X_all = X_all.reshape(G, N, num_attrs_X * num_classes_X)
    A_all = (jax.random.uniform(k_a, (G, N, N)) < 0.3).astype(jnp.float32)
    src_all = jax.random.randint(k_s, (G, B), 0, N)
    dst_all = jax.random.randint(k_d, (G, B), 0, N)

    logits = jax.block_until_ready(
        link_predictor_forward(t_all, X_all, A_all, src_all, dst_all, params))
    assert logits.shape == (G, B, num_classes_E)

    def ref_all(dt):
        return jax.vmap(lambda t, X, A, s, d:
                        reference_forward(t, X, A, s, d, params, dt))(
                            t_all, X_all, A_all, src_all, dst_all)

    ref_bf16 = jax.block_until_ready(ref_all(jnp.bfloat16))   # mirrors kernel numerics
    ref_f32 = jax.block_until_ready(ref_all(jnp.float32))     # exact module semantics

    err_struct = float(jnp.max(jnp.abs(logits - ref_bf16)))
    err_full = float(jnp.max(jnp.abs(logits - ref_f32)))
    assert err_struct < 2e-3, f"structural mismatch vs bf16 reference: {err_struct}"
    assert err_full < 1e-1, f"mismatch vs f32 reference: {err_full}"
    print("KERNEL_OK")
</pallas_src>

<mosaic_0001>
module attributes {stable_mosaic.version = 11 : i64} {
  func.func @link_predictor_kernel(%arg0: i32, %arg1: memref<64xf32, #tpu.memory_space<smem>>, %arg2: memref<1x256x8xbf16, #tpu.memory_space<vmem>>, %arg3: memref<1x256x256xbf16, #tpu.memory_space<vmem>>, %arg4: memref<1x256x1xi32, #tpu.memory_space<vmem>>, %arg5: memref<8x32xbf16, #tpu.memory_space<vmem>>, %arg6: memref<5x32x32xbf16, #tpu.memory_space<vmem>>, %arg7: memref<32x64xbf16, #tpu.memory_space<vmem>>, %arg8: memref<128x128xbf16, #tpu.memory_space<vmem>>, %arg9: memref<1x128xf32, #tpu.memory_space<vmem>>, %arg10: memref<128x32xbf16, #tpu.memory_space<vmem>>, %arg11: memref<32x128xbf16, #tpu.memory_space<vmem>>, %arg12: memref<14x128xf32, #tpu.memory_space<vmem>>, %arg13: memref<1x128x128xf32, #tpu.memory_space<vmem>>, %arg14: memref<256x128xbf16, #tpu.memory_space<vmem>>) attributes {dimension_semantics = [#tpu.dimension_semantics<parallel>], iteration_bounds = array<i64: 4>, scalar_prefetch = 1 : i64, scratch_operands = 1 : i64, tpu.core_type = #tpu.core_type<tc>, window_params = [{transform_indices = @transform_0, window_bounds = array<i64: 1, 256, 8>}, {transform_indices = @transform_1, window_bounds = array<i64: 1, 256, 256>}, {transform_indices = @transform_2, window_bounds = array<i64: 1, 256, 1>}, {pipeline_mode = #tpu.pipeline_mode<synchronous>, transform_indices = @transform_3, window_bounds = array<i64: 8, 32>}, {pipeline_mode = #tpu.pipeline_mode<synchronous>, transform_indices = @transform_4, window_bounds = array<i64: 5, 32, 32>}, {pipeline_mode = #tpu.pipeline_mode<synchronous>, transform_indices = @transform_5, window_bounds = array<i64: 32, 64>}, {pipeline_mode = #tpu.pipeline_mode<synchronous>, transform_indices = @transform_6, window_bounds = array<i64: 128, 128>}, {pipeline_mode = #tpu.pipeline_mode<synchronous>, transform_indices = @transform_7, window_bounds = array<i64: 1, 128>}, {pipeline_mode = #tpu.pipeline_mode<synchronous>, transform_indices = @transform_8, window_bounds = array<i64: 128, 32>}, {pipeline_mode = #tpu.pipeline_mode<synchronous>, transform_indices = @transform_9, window_bounds = array<i64: 32, 128>}, {pipeline_mode = #tpu.pipeline_mode<synchronous>, transform_indices = @transform_10, window_bounds = array<i64: 14, 128>}, {transform_indices = @transform_11, window_bounds = array<i64: 1, 128, 128>}]} {
    %c0 = arith.constant 0 : index
    %c0_0 = arith.constant 0 : index
    %0 = vector.load %arg12[%c0, %c0_0] : memref<14x128xf32, #tpu.memory_space<vmem>>, vector<1x32xf32>
    %c1 = arith.constant 1 : index
    %c0_1 = arith.constant 0 : index
    %1 = vector.load %arg12[%c1, %c0_1] : memref<14x128xf32, #tpu.memory_space<vmem>>, vector<1x32xf32>
    %c2 = arith.constant 2 : index
    %c0_2 = arith.constant 0 : index
    %2 = vector.load %arg12[%c2, %c0_2] : memref<14x128xf32, #tpu.memory_space<vmem>>, vector<1x32xf32>
    %c3 = arith.constant 3 : index
    %c0_3 = arith.constant 0 : index
    %3 = vector.load %arg12[%c3, %c0_3] : memref<14x128xf32, #tpu.memory_space<vmem>>, vector<1x32xf32>
    %c4 = arith.constant 4 : index
    %c0_4 = arith.constant 0 : index
    %4 = vector.load %arg12[%c4, %c0_4] : memref<14x128xf32, #tpu.memory_space<vmem>>, vector<1x32xf32>
    %c5 = arith.constant 5 : index
    %c0_5 = arith.constant 0 : index
    %5 = vector.load %arg12[%c5, %c0_5] : memref<14x128xf32, #tpu.memory_space<vmem>>, vector<1x32xf32>
    %c6 = arith.constant 6 : index
    %c0_6 = arith.constant 0 : index
    %6 = vector.load %arg12[%c6, %c0_6] : memref<14x128xf32, #tpu.memory_space<vmem>>, vector<1x32xf32>
    %c7 = arith.constant 7 : index
    %c0_7 = arith.constant 0 : index
    %7 = vector.load %arg12[%c7, %c0_7] : memref<14x128xf32, #tpu.memory_space<vmem>>, vector<1x128xf32>
    %8 = tpu.iota {dimensions = array<i32: 0>} : vector<256x1xi32>
    %cst = arith.constant 0.000000e+00 : f32
    %9 = vector.broadcast %cst : f32 to vector<256x1xf32>
    %c0_i32 = arith.constant 0 : i32
    %10 = vector.broadcast %c0_i32 : i32 to vector<256x1xi32>
    %11 = arith.cmpi sge, %8, %10 : vector<256x1xi32>
    %c16_i32 = arith.constant 16 : i32
    %12 = vector.broadcast %c16_i32 : i32 to vector<256x1xi32>
    %13 = arith.cmpi slt, %8, %12 : vector<256x1xi32>
    %14 = arith.andi %11, %13 : vector<256x1xi1>
    %c16_i32_8 = arith.constant 16 : i32
    %15 = arith.muli %arg0, %c16_i32_8 : i32
    %c0_i32_9 = arith.constant 0 : i32
    %16 = arith.addi %15, %c0_i32_9 : i32
    %17 = arith.index_cast %16 : i32 to index
    %18 = memref.load %arg1[%17] : memref<64xf32, #tpu.memory_space<smem>>
    %19 = vector.broadcast %18 : f32 to vector<256x1xf32>
    %20 = arith.select %14, %19, %9 : vector<256x1xi1>, vector<256x1xf32>
    %c16_i32_10 = arith.constant 16 : i32
    %21 = vector.broadcast %c16_i32_10 : i32 to vector<256x1xi32>
    %22 = arith.cmpi sge, %8, %21 : vector<256x1xi32>
    %c32_i32 = arith.constant 32 : i32
    %23 = vector.broadcast %c32_i32 : i32 to vector<256x1xi32>
    %24 = arith.cmpi slt, %8, %23 : vector<256x1xi32>
    %25 = arith.andi %22, %24 : vector<256x1xi1>
    %c16_i32_11 = arith.constant 16 : i32
    %26 = arith.muli %arg0, %c16_i32_11 : i32
    %c1_i32 = arith.constant 1 : i32
    %27 = arith.addi %26, %c1_i32 : i32
    %28 = arith.index_cast %27 : i32 to index
    %29 = memref.load %arg1[%28] : memref<64xf32, #tpu.memory_space<smem>>
    %30 = vector.broadcast %29 : f32 to vector<256x1xf32>
    %31 = arith.select %25, %30, %20 : vector<256x1xi1>, vector<256x1xf32>
    %c32_i32_12 = arith.constant 32 : i32
    %32 = vector.broadcast %c32_i32_12 : i32 to vector<256x1xi32>
    %33 = arith.cmpi sge, %8, %32 : vector<256x1xi32>
    %c48_i32 = arith.constant 48 : i32
    %34 = vector.broadcast %c48_i32 : i32 to vector<256x1xi32>
    %35 = arith.cmpi slt, %8, %34 : vector<256x1xi32>
    %36 = arith.andi %33, %35 : vector<256x1xi1>
    %c16_i32_13 = arith.constant 16 : i32
    %37 = arith.muli %arg0, %c16_i32_13 : i32
    %c2_i32 = arith.constant 2 : i32
    %38 = arith.addi %37, %c2_i32 : i32
    %39 = arith.index_cast %38 : i32 to index
    %40 = memref.load %arg1[%39] : memref<64xf32, #tpu.memory_space<smem>>
    %41 = vector.broadcast %40 : f32 to vector<256x1xf32>
    %42 = arith.select %36, %41, %31 : vector<256x1xi1>, vector<256x1xf32>
    %c48_i32_14 = arith.constant 48 : i32
    %43 = vector.broadcast %c48_i32_14 : i32 to vector<256x1xi32>
    %44 = arith.cmpi sge, %8, %43 : vector<256x1xi32>
    %c64_i32 = arith.constant 64 : i32
    %45 = vector.broadcast %c64_i32 : i32 to vector<256x1xi32>
    %46 = arith.cmpi slt, %8, %45 : vector<256x1xi32>
    %47 = arith.andi %44, %46 : vector<256x1xi1>
    %c16_i32_15 = arith.constant 16 : i32
    %48 = arith.muli %arg0, %c16_i32_15 : i32
    %c3_i32 = arith.constant 3 : i32
    %49 = arith.addi %48, %c3_i32 : i32
    %50 = arith.index_cast %49 : i32 to index
    %51 = memref.load %arg1[%50] : memref<64xf32, #tpu.memory_space<smem>>
    %52 = vector.broadcast %51 : f32 to vector<256x1xf32>
    %53 = arith.select %47, %52, %42 : vector<256x1xi1>, vector<256x1xf32>
    %c64_i32_16 = arith.constant 64 : i32
    %54 = vector.broadcast %c64_i32_16 : i32 to vector<256x1xi32>
    %55 = arith.cmpi sge, %8, %54 : vector<256x1xi32>
    %c80_i32 = arith.constant 80 : i32
    %56 = vector.broadcast %c80_i32 : i32 to vector<256x1xi32>
    %57 = arith.cmpi slt, %8, %56 : vector<256x1xi32>
    %58 = arith.andi %55, %57 : vector<256x1xi1>
    %c16_i32_17 = arith.constant 16 : i32
    %59 = arith.muli %arg0, %c16_i32_17 : i32
    %c4_i32 = arith.constant 4 : i32
    %60 = arith.addi %59, %c4_i32 : i32
    %61 = arith.index_cast %60 : i32 to index
    %62 = memref.load %arg1[%61] : memref<64xf32, #tpu.memory_space<smem>>
    %63 = vector.broadcast %62 : f32 to vector<256x1xf32>
    %64 = arith.select %58, %63, %53 : vector<256x1xi1>, vector<256x1xf32>
    %c80_i32_18 = arith.constant 80 : i32
    %65 = vector.broadcast %c80_i32_18 : i32 to vector<256x1xi32>
    %66 = arith.cmpi sge, %8, %65 : vector<256x1xi32>
    %c96_i32 = arith.constant 96 : i32
    %67 = vector.broadcast %c96_i32 : i32 to vector<256x1xi32>
    %68 = arith.cmpi slt, %8, %67 : vector<256x1xi32>
    %69 = arith.andi %66, %68 : vector<256x1xi1>
    %c16_i32_19 = arith.constant 16 : i32
    %70 = arith.muli %arg0, %c16_i32_19 : i32
    %c5_i32 = arith.constant 5 : i32
    %71 = arith.addi %70, %c5_i32 : i32
    %72 = arith.index_cast %71 : i32 to index
    %73 = memref.load %arg1[%72] : memref<64xf32, #tpu.memory_space<smem>>
    %74 = vector.broadcast %73 : f32 to vector<256x1xf32>
    %75 = arith.select %69, %74, %64 : vector<256x1xi1>, vector<256x1xf32>
    %c96_i32_20 = arith.constant 96 : i32
    %76 = vector.broadcast %c96_i32_20 : i32 to vector<256x1xi32>
    %77 = arith.cmpi sge, %8, %76 : vector<256x1xi32>
    %c112_i32 = arith.constant 112 : i32
    %78 = vector.broadcast %c112_i32 : i32 to vector<256x1xi32>
    %79 = arith.cmpi slt, %8, %78 : vector<256x1xi32>
    %80 = arith.andi %77, %79 : vector<256x1xi1>
    %c16_i32_21 = arith.constant 16 : i32
    %81 = arith.muli %arg0, %c16_i32_21 : i32
    %c6_i32 = arith.constant 6 : i32
    %82 = arith.addi %81, %c6_i32 : i32
    %83 = arith.index_cast %82 : i32 to index
    %84 = memref.load %arg1[%83] : memref<64xf32, #tpu.memory_space<smem>>
    %85 = vector.broadcast %84 : f32 to vector<256x1xf32>
    %86 = arith.select %80, %85, %75 : vector<256x1xi1>, vector<256x1xf32>
    %c112_i32_22 = arith.constant 112 : i32
    %87 = vector.broadcast %c112_i32_22 : i32 to vector<256x1xi32>
    %88 = arith.cmpi sge, %8, %87 : vector<256x1xi32>
    %c128_i32 = arith.constant 128 : i32
    %89 = vector.broadcast %c128_i32 : i32 to vector<256x1xi32>
    %90 = arith.cmpi slt, %8, %89 : vector<256x1xi32>
    %91 = arith.andi %88, %90 : vector<256x1xi1>
    %c16_i32_23 = arith.constant 16 : i32
    %92 = arith.muli %arg0, %c16_i32_23 : i32
    %c7_i32 = arith.constant 7 : i32
    %93 = arith.addi %92, %c7_i32 : i32
    %94 = arith.index_cast %93 : i32 to index
    %95 = memref.load %arg1[%94] : memref<64xf32, #tpu.memory_space<smem>>
    %96 = vector.broadcast %95 : f32 to vector<256x1xf32>
    %97 = arith.select %91, %96, %86 : vector<256x1xi1>, vector<256x1xf32>
    %c128_i32_24 = arith.constant 128 : i32
    %98 = vector.broadcast %c128_i32_24 : i32 to vector<256x1xi32>
    %99 = arith.cmpi sge, %8, %98 : vector<256x1xi32>
    %c144_i32 = arith.constant 144 : i32
    %100 = vector.broadcast %c144_i32 : i32 to vector<256x1xi32>
    %101 = arith.cmpi slt, %8, %100 : vector<256x1xi32>
    %102 = arith.andi %99, %101 : vector<256x1xi1>
    %c16_i32_25 = arith.constant 16 : i32
    %103 = arith.muli %arg0, %c16_i32_25 : i32
    %c8_i32 = arith.constant 8 : i32
    %104 = arith.addi %103, %c8_i32 : i32
    %105 = arith.index_cast %104 : i32 to index
    %106 = memref.load %arg1[%105] : memref<64xf32, #tpu.memory_space<smem>>
    %107 = vector.broadcast %106 : f32 to vector<256x1xf32>
    %108 = arith.select %102, %107, %97 : vector<256x1xi1>, vector<256x1xf32>
    %c144_i32_26 = arith.constant 144 : i32
    %109 = vector.broadcast %c144_i32_26 : i32 to vector<256x1xi32>
    %110 = arith.cmpi sge, %8, %109 : vector<256x1xi32>
    %c160_i32 = arith.constant 160 : i32
    %111 = vector.broadcast %c160_i32 : i32 to vector<256x1xi32>
    %112 = arith.cmpi slt, %8, %111 : vector<256x1xi32>
    %113 = arith.andi %110, %112 : vector<256x1xi1>
    %c16_i32_27 = arith.constant 16 : i32
    %114 = arith.muli %arg0, %c16_i32_27 : i32
    %c9_i32 = arith.constant 9 : i32
    %115 = arith.addi %114, %c9_i32 : i32
    %116 = arith.index_cast %115 : i32 to index
    %117 = memref.load %arg1[%116] : memref<64xf32, #tpu.memory_space<smem>>
    %118 = vector.broadcast %117 : f32 to vector<256x1xf32>
    %119 = arith.select %113, %118, %108 : vector<256x1xi1>, vector<256x1xf32>
    %c160_i32_28 = arith.constant 160 : i32
    %120 = vector.broadcast %c160_i32_28 : i32 to vector<256x1xi32>
    %121 = arith.cmpi sge, %8, %120 : vector<256x1xi32>
    %c176_i32 = arith.constant 176 : i32
    %122 = vector.broadcast %c176_i32 : i32 to vector<256x1xi32>
    %123 = arith.cmpi slt, %8, %122 : vector<256x1xi32>
    %124 = arith.andi %121, %123 : vector<256x1xi1>
    %c16_i32_29 = arith.constant 16 : i32
    %125 = arith.muli %arg0, %c16_i32_29 : i32
    %c10_i32 = arith.constant 10 : i32
    %126 = arith.addi %125, %c10_i32 : i32
    %127 = arith.index_cast %126 : i32 to index
    %128 = memref.load %arg1[%127] : memref<64xf32, #tpu.memory_space<smem>>
    %129 = vector.broadcast %128 : f32 to vector<256x1xf32>
    %130 = arith.select %124, %129, %119 : vector<256x1xi1>, vector<256x1xf32>
    %c176_i32_30 = arith.constant 176 : i32
    %131 = vector.broadcast %c176_i32_30 : i32 to vector<256x1xi32>
    %132 = arith.cmpi sge, %8, %131 : vector<256x1xi32>
    %c192_i32 = arith.constant 192 : i32
    %133 = vector.broadcast %c192_i32 : i32 to vector<256x1xi32>
    %134 = arith.cmpi slt, %8, %133 : vector<256x1xi32>
    %135 = arith.andi %132, %134 : vector<256x1xi1>
    %c16_i32_31 = arith.constant 16 : i32
    %136 = arith.muli %arg0, %c16_i32_31 : i32
    %c11_i32 = arith.constant 11 : i32
    %137 = arith.addi %136, %c11_i32 : i32
    %138 = arith.index_cast %137 : i32 to index
    %139 = memref.load %arg1[%138] : memref<64xf32, #tpu.memory_space<smem>>
    %140 = vector.broadcast %139 : f32 to vector<256x1xf32>
    %141 = arith.select %135, %140, %130 : vector<256x1xi1>, vector<256x1xf32>
    %c192_i32_32 = arith.constant 192 : i32
    %142 = vector.broadcast %c192_i32_32 : i32 to vector<256x1xi32>
    %143 = arith.cmpi sge, %8, %142 : vector<256x1xi32>
    %c208_i32 = arith.constant 208 : i32
    %144 = vector.broadcast %c208_i32 : i32 to vector<256x1xi32>
    %145 = arith.cmpi slt, %8, %144 : vector<256x1xi32>
    %146 = arith.andi %143, %145 : vector<256x1xi1>
    %c16_i32_33 = arith.constant 16 : i32
    %147 = arith.muli %arg0, %c16_i32_33 : i32
    %c12_i32 = arith.constant 12 : i32
    %148 = arith.addi %147, %c12_i32 : i32
    %149 = arith.index_cast %148 : i32 to index
    %150 = memref.load %arg1[%149] : memref<64xf32, #tpu.memory_space<smem>>
    %151 = vector.broadcast %150 : f32 to vector<256x1xf32>
    %152 = arith.select %146, %151, %141 : vector<256x1xi1>, vector<256x1xf32>
    %c208_i32_34 = arith.constant 208 : i32
    %153 = vector.broadcast %c208_i32_34 : i32 to vector<256x1xi32>
    %154 = arith.cmpi sge, %8, %153 : vector<256x1xi32>
    %c224_i32 = arith.constant 224 : i32
    %155 = vector.broadcast %c224_i32 : i32 to vector<256x1xi32>
    %156 = arith.cmpi slt, %8, %155 : vector<256x1xi32>
    %157 = arith.andi %154, %156 : vector<256x1xi1>
    %c16_i32_35 = arith.constant 16 : i32
    %158 = arith.muli %arg0, %c16_i32_35 : i32
    %c13_i32 = arith.constant 13 : i32
    %159 = arith.addi %158, %c13_i32 : i32
    %160 = arith.index_cast %159 : i32 to index
    %161 = memref.load %arg1[%160] : memref<64xf32, #tpu.memory_space<smem>>
    %162 = vector.broadcast %161 : f32 to vector<256x1xf32>
    %163 = arith.select %157, %162, %152 : vector<256x1xi1>, vector<256x1xf32>
    %c224_i32_36 = arith.constant 224 : i32
    %164 = vector.broadcast %c224_i32_36 : i32 to vector<256x1xi32>
    %165 = arith.cmpi sge, %8, %164 : vector<256x1xi32>
    %c240_i32 = arith.constant 240 : i32
    %166 = vector.broadcast %c240_i32 : i32 to vector<256x1xi32>
    %167 = arith.cmpi slt, %8, %166 : vector<256x1xi32>
    %168 = arith.andi %165, %167 : vector<256x1xi1>
    %c16_i32_37 = arith.constant 16 : i32
    %169 = arith.muli %arg0, %c16_i32_37 : i32
    %c14_i32 = arith.constant 14 : i32
    %170 = arith.addi %169, %c14_i32 : i32
    %171 = arith.index_cast %170 : i32 to index
    %172 = memref.load %arg1[%171] : memref<64xf32, #tpu.memory_space<smem>>
    %173 = vector.broadcast %172 : f32 to vector<256x1xf32>
    %174 = arith.select %168, %173, %163 : vector<256x1xi1>, vector<256x1xf32>
    %c240_i32_38 = arith.constant 240 : i32
    %175 = vector.broadcast %c240_i32_38 : i32 to vector<256x1xi32>
    %176 = arith.cmpi sge, %8, %175 : vector<256x1xi32>
    %c256_i32 = arith.constant 256 : i32
    %177 = vector.broadcast %c256_i32 : i32 to vector<256x1xi32>
    %178 = arith.cmpi slt, %8, %177 : vector<256x1xi32>
    %179 = arith.andi %176, %178 : vector<256x1xi1>
    %c16_i32_39 = arith.constant 16 : i32
    %180 = arith.muli %arg0, %c16_i32_39 : i32
    %c15_i32 = arith.constant 15 : i32
    %181 = arith.addi %180, %c15_i32 : i32
    %182 = arith.index_cast %181 : i32 to index
    %183 = memref.load %arg1[%182] : memref<64xf32, #tpu.memory_space<smem>>
    %184 = vector.broadcast %183 : f32 to vector<256x1xf32>
    %185 = arith.select %179, %184, %174 : vector<256x1xi1>, vector<256x1xf32>
    %186 = vector.broadcast %185 : vector<256x1xf32> to vector<256x32xf32>
    %187 = vector.broadcast %0 : vector<1x32xf32> to vector<256x32xf32>
    %188 = arith.mulf %186, %187 : vector<256x32xf32>
    %189 = vector.broadcast %1 : vector<1x32xf32> to vector<256x32xf32>
    %190 = arith.addf %188, %189 : vector<256x32xf32>
    %cst_40 = arith.constant 0.000000e+00 : f32
    %191 = vector.broadcast %cst_40 : f32 to vector<256x32xf32>
    %192 = arith.maximumf %190, %191 : vector<256x32xf32>
    %c0_41 = arith.constant 0 : index
    %c0_42 = arith.constant 0 : index
    %c0_43 = arith.constant 0 : index
    %193 = vector.load %arg6[%c0_41, %c0_42, %c0_43] : memref<5x32x32xbf16, #tpu.memory_space<vmem>>, vector<1x32x32xbf16>
    %194 = vector.shape_cast %193 : vector<1x32x32xbf16> to vector<32x32xbf16>
    %195 = arith.truncf %192 : vector<256x32xf32> to vector<256x32xbf16>
    %cst_44 = arith.constant dense<0.000000e+00> : vector<256x32xf32>
    %196 = tpu.matmul %195, %194, %cst_44 {dimension_numbers = #tpu.dot_dimension_numbers<[1], [0], [0], [1], [0, 0, 1, 1], [], []>} : vector<256x32xbf16>, vector<32x32xbf16>, vector<256x32xf32> -> vector<256x32xf32>
    %197 = vector.broadcast %2 : vector<1x32xf32> to vector<256x32xf32>
    %198 = arith.addf %196, %197 : vector<256x32xf32>
    %cst_45 = arith.constant 0.000000e+00 : f32
    %199 = vector.broadcast %cst_45 : f32 to vector<256x32xf32>
    %200 = arith.maximumf %198, %199 : vector<256x32xf32>
    %c0_46 = arith.constant 0 : index
    %c0_47 = arith.constant 0 : index
    %201 = vector.load %arg7[%c0_46, %c0_47] : memref<32x64xbf16, #tpu.memory_space<vmem>>, vector<32x64xbf16>
    %202 = arith.truncf %200 : vector<256x32xf32> to vector<256x32xbf16>
    %cst_48 = arith.constant dense<0.000000e+00> : vector<256x64xf32>
    %203 = tpu.matmul %202, %201, %cst_48 {dimension_numbers = #tpu.dot_dimension_numbers<[1], [0], [0], [1], [0, 0, 1, 1], [], []>} : vector<256x32xbf16>, vector<32x64xbf16>, vector<256x64xf32> -> vector<256x64xf32>
    %c0_49 = arith.constant 0 : index
    %c0_50 = arith.constant 0 : index
    %c0_51 = arith.constant 0 : index
    %204 = vector.load %arg2[%c0_49, %c0_50, %c0_51] : memref<1x256x8xbf16, #tpu.memory_space<vmem>>, vector<1x256x8xbf16>
    %205 = vector.shape_cast %204 : vector<1x256x8xbf16> to vector<256x8xbf16>
    %c0_52 = arith.constant 0 : index
    %c0_53 = arith.constant 0 : index
    %206 = vector.load %arg5[%c0_52, %c0_53] : memref<8x32xbf16, #tpu.memory_space<vmem>>, vector<8x32xbf16>
    %cst_54 = arith.constant dense<0.000000e+00> : vector<256x32xf32>
    %207 = tpu.matmul %205, %206, %cst_54 {dimension_numbers = #tpu.dot_dimension_numbers<[1], [0], [0], [1], [0, 0, 1, 1], [], []>} : vector<256x8xbf16>, vector<8x32xbf16>, vector<256x32xf32> -> vector<256x32xf32>
    %208 = vector.broadcast %3 : vector<1x32xf32> to vector<256x32xf32>
    %209 = arith.addf %207, %208 : vector<256x32xf32>
    %cst_55 = arith.constant 0.000000e+00 : f32
    %210 = vector.broadcast %cst_55 : f32 to vector<256x32xf32>
    %211 = arith.maximumf %209, %210 : vector<256x32xf32>
    %c1_56 = arith.constant 1 : index
    %c0_57 = arith.constant 0 : index
    %c0_58 = arith.constant 0 : index
    %212 = vector.load %arg6[%c1_56, %c0_57, %c0_58] : memref<5x32x32xbf16, #tpu.memory_space<vmem>>, vector<1x32x32xbf16>
    %213 = vector.shape_cast %212 : vector<1x32x32xbf16> to vector<32x32xbf16>
    %214 = arith.truncf %211 : vector<256x32xf32> to vector<256x32xbf16>
    %cst_59 = arith.constant dense<0.000000e+00> : vector<256x32xf32>
    %215 = tpu.matmul %214, %213, %cst_59 {dimension_numbers = #tpu.dot_dimension_numbers<[1], [0], [0], [1], [0, 0, 1, 1], [], []>} : vector<256x32xbf16>, vector<32x32xbf16>, vector<256x32xf32> -> vector<256x32xf32>
    %216 = vector.broadcast %4 : vector<1x32xf32> to vector<256x32xf32>
    %217 = arith.addf %215, %216 : vector<256x32xf32>
    %cst_60 = arith.constant 0.000000e+00 : f32
    %218 = vector.broadcast %cst_60 : f32 to vector<256x32xf32>
    %219 = arith.maximumf %217, %218 : vector<256x32xf32>
    %c0_61 = arith.constant 0 : index
    %c0_62 = arith.constant 0 : index
    %c0_63 = arith.constant 0 : index
    %220 = vector.load %arg3[%c0_61, %c0_62, %c0_63] : memref<1x256x256xbf16, #tpu.memory_space<vmem>>, vector<1x256x256xbf16>
    %221 = vector.shape_cast %220 : vector<1x256x256xbf16> to vector<256x256xbf16>
    %222 = arith.truncf %219 : vector<256x32xf32> to vector<256x32xbf16>
    %c0_64 = arith.constant 0 : index
    %c0_65 = arith.constant 0 : index
    %223 = vector.load %arg14[%c0_64, %c0_65] : memref<256x128xbf16, #tpu.memory_space<vmem>>, vector<256x32xbf16>
    tpu.vector_store %arg14[%c0_64, %c0_65], %222 {strides = array<i32>} : memref<256x128xbf16, #tpu.memory_space<vmem>>, vector<256x32xbf16>,
    %224 = arith.truncf %200 : vector<256x32xf32> to vector<256x32xbf16>
    %c0_66 = arith.constant 0 : index
    %c96 = arith.constant 96 : index
    %225 = vector.load %arg14[%c0_66, %c96] : memref<256x128xbf16, #tpu.memory_space<vmem>>, vector<256x32xbf16>
    tpu.vector_store %arg14[%c0_66, %c96], %224 {strides = array<i32>} : memref<256x128xbf16, #tpu.memory_space<vmem>>, vector<256x32xbf16>,
    %226 = vector.extract_strided_slice %203 {offsets = [0, 0], sizes = [256, 32], strides = [1, 1]} : vector<256x64xf32> to vector<256x32xf32>
    %c8 = arith.constant 8 : index
    %c0_67 = arith.constant 0 : index
    %227 = vector.load %arg12[%c8, %c0_67] : memref<14x128xf32, #tpu.memory_space<vmem>>, vector<1x32xf32>
    %228 = vector.broadcast %227 : vector<1x32xf32> to vector<256x32xf32>
    %229 = arith.addf %226, %228 : vector<256x32xf32>
    %230 = arith.truncf %219 : vector<256x32xf32> to vector<256x32xbf16>
    %cst_68 = arith.constant dense<0.000000e+00> : vector<256x32xf32>
    %231 = tpu.matmul %221, %230, %cst_68 {dimension_numbers = #tpu.dot_dimension_numbers<[1], [0], [0], [1], [0, 0, 1, 1], [], []>} : vector<256x256xbf16>, vector<256x32xbf16>, vector<256x32xf32> -> vector<256x32xf32>
    %c3_69 = arith.constant 3 : index
    %c0_70 = arith.constant 0 : index
    %c0_71 = arith.constant 0 : index
    %232 = vector.load %arg6[%c3_69, %c0_70, %c0_71] : memref<5x32x32xbf16, #tpu.memory_space<vmem>>, vector<1x32x32xbf16>
    %233 = vector.shape_cast %232 : vector<1x32x32xbf16> to vector<32x32xbf16>
    %234 = arith.truncf %231 : vector<256x32xf32> to vector<256x32xbf16>
    %cst_72 = arith.constant dense<0.000000e+00> : vector<256x32xf32>
    %235 = tpu.matmul %234, %233, %cst_72 {dimension_numbers = #tpu.dot_dimension_numbers<[1], [0], [0], [1], [0, 0, 1, 1], [], []>} : vector<256x32xbf16>, vector<32x32xbf16>, vector<256x32xf32> -> vector<256x32xf32>
    %236 = arith.addf %235, %229 : vector<256x32xf32>
    %cst_73 = arith.constant 0.000000e+00 : f32
    %237 = vector.broadcast %cst_73 : f32 to vector<256x32xf32>
    %238 = arith.maximumf %236, %237 : vector<256x32xf32>
    %cst_74 = arith.constant dense<0.000000e+00> : vector<256xf32>
    %239 = vector.multi_reduction <add>, %238, %cst_74 [1] : vector<256x32xf32> to vector<256xf32>
    %240 = vector.shape_cast %239 : vector<256xf32> to vector<256x1xf32>
    %cst_75 = arith.constant 3.200000e+01 : f32
    %241 = vector.broadcast %cst_75 : f32 to vector<256x1xf32>
    %242 = arith.divf %240, %241 : vector<256x1xf32>
    %243 = vector.broadcast %242 : vector<256x1xf32> to vector<256x32xf32>
    %244 = arith.subf %238, %243 : vector<256x32xf32>
    %245 = arith.mulf %244, %244 : vector<256x32xf32>
    %cst_76 = arith.constant dense<0.000000e+00> : vector<256xf32>
    %246 = vector.multi_reduction <add>, %245, %cst_76 [1] : vector<256x32xf32> to vector<256xf32>
    %247 = vector.shape_cast %246 : vector<256xf32> to vector<256x1xf32>
    %cst_77 = arith.constant 3.200000e+01 : f32
    %248 = vector.broadcast %cst_77 : f32 to vector<256x1xf32>
    %249 = arith.divf %247, %248 : vector<256x1xf32>
    %250 = vector.broadcast %242 : vector<256x1xf32> to vector<256x32xf32>
    %251 = arith.subf %238, %250 : vector<256x32xf32>
    %cst_78 = arith.constant 9.99999974E-6 : f32
    %252 = vector.broadcast %cst_78 : f32 to vector<256x1xf32>
    %253 = arith.addf %249, %252 : vector<256x1xf32>
    %254 = math.rsqrt %253 : vector<256x1xf32>
    %255 = vector.broadcast %254 : vector<256x1xf32> to vector<256x32xf32>
    %256 = arith.mulf %251, %255 : vector<256x32xf32>
    %c10 = arith.constant 10 : index
    %c0_79 = arith.constant 0 : index
    %257 = vector.load %arg12[%c10, %c0_79] : memref<14x128xf32, #tpu.memory_space<vmem>>, vector<1x32xf32>
    %258 = vector.broadcast %257 : vector<1x32xf32> to vector<256x32xf32>
    %259 = arith.mulf %256, %258 : vector<256x32xf32>
    %c12 = arith.constant 12 : index
    %c0_80 = arith.constant 0 : index
    %260 = vector.load %arg12[%c12, %c0_80] : memref<14x128xf32, #tpu.memory_space<vmem>>, vector<1x32xf32>
    %261 = vector.broadcast %260 : vector<1x32xf32> to vector<256x32xf32>
    %262 = arith.addf %259, %261 : vector<256x32xf32>
    %263 = arith.truncf %262 : vector<256x32xf32> to vector<256x32xbf16>
    %c0_81 = arith.constant 0 : index
    %c32 = arith.constant 32 : index
    %264 = vector.load %arg14[%c0_81, %c32] : memref<256x128xbf16, #tpu.memory_space<vmem>>, vector<256x32xbf16>
    tpu.vector_store %arg14[%c0_81, %c32], %263 {strides = array<i32>} : memref<256x128xbf16, #tpu.memory_space<vmem>>, vector<256x32xbf16>,
    %265 = vector.extract_strided_slice %203 {offsets = [0, 32], sizes = [256, 32], strides = [1, 1]} : vector<256x64xf32> to vector<256x32xf32>
    %c9 = arith.constant 9 : index
    %c0_82 = arith.constant 0 : index
    %266 = vector.load %arg12[%c9, %c0_82] : memref<14x128xf32, #tpu.memory_space<vmem>>, vector<1x32xf32>
    %267 = vector.broadcast %266 : vector<1x32xf32> to vector<256x32xf32>
    %268 = arith.addf %265, %267 : vector<256x32xf32>
    %269 = arith.truncf %262 : vector<256x32xf32> to vector<256x32xbf16>
    %cst_83 = arith.constant dense<0.000000e+00> : vector<256x32xf32>
    %270 = tpu.matmul %221, %269, %cst_83 {dimension_numbers = #tpu.dot_dimension_numbers<[1], [0], [0], [1], [0, 0, 1, 1], [], []>} : vector<256x256xbf16>, vector<256x32xbf16>, vector<256x32xf32> -> vector<256x32xf32>
    %c4_84 = arith.constant 4 : index
    %c0_85 = arith.constant 0 : index
    %c0_86 = arith.constant 0 : index
    %271 = vector.load %arg6[%c4_84, %c0_85, %c0_86] : memref<5x32x32xbf16, #tpu.memory_space<vmem>>, vector<1x32x32xbf16>
    %272 = vector.shape_cast %271 : vector<1x32x32xbf16> to vector<32x32xbf16>
    %273 = arith.truncf %270 : vector<256x32xf32> to vector<256x32xbf16>
    %cst_87 = arith.constant dense<0.000000e+00> : vector<256x32xf32>
    %274 = tpu.matmul %273, %272, %cst_87 {dimension_numbers = #tpu.dot_dimension_numbers<[1], [0], [0], [1], [0, 0, 1, 1], [], []>} : vector<256x32xbf16>, vector<32x32xbf16>, vector<256x32xf32> -> vector<256x32xf32>
    %275 = arith.addf %274, %268 : vector<256x32xf32>
    %cst_88 = arith.constant 0.000000e+00 : f32
    %276 = vector.broadcast %cst_88 : f32 to vector<256x32xf32>
    %277 = arith.maximumf %275, %276 : vector<256x32xf32>
    %cst_89 = arith.constant dense<0.000000e+00> : vector<256xf32>
    %278 = vector.multi_reduction <add>, %277, %cst_89 [1] : vector<256x32xf32> to vector<256xf32>
    %279 = vector.shape_cast %278 : vector<256xf32> to vector<256x1xf32>
    %cst_90 = arith.constant 3.200000e+01 : f32
    %280 = vector.broadcast %cst_90 : f32 to vector<256x1xf32>
    %281 = arith.divf %279, %280 : vector<256x1xf32>
    %282 = vector.broadcast %281 : vector<256x1xf32> to vector<256x32xf32>
    %283 = arith.subf %277, %282 : vector<256x32xf32>
    %284 = arith.mulf %283, %283 : vector<256x32xf32>
    %cst_91 = arith.constant dense<0.000000e+00> : vector<256xf32>
    %285 = vector.multi_reduction <add>, %284, %cst_91 [1] : vector<256x32xf32> to vector<256xf32>
    %286 = vector.shape_cast %285 : vector<256xf32> to vector<256x1xf32>
    %cst_92 = arith.constant 3.200000e+01 : f32
    %287 = vector.broadcast %cst_92 : f32 to vector<256x1xf32>
    %288 = arith.divf %286, %287 : vector<256x1xf32>
    %289 = vector.broadcast %281 : vector<256x1xf32> to vector<256x32xf32>
    %290 = arith.subf %277, %289 : vector<256x32xf32>
    %cst_93 = arith.constant 9.99999974E-6 : f32
    %291 = vector.broadcast %cst_93 : f32 to vector<256x1xf32>
    %292 = arith.addf %288, %291 : vector<256x1xf32>
    %293 = math.rsqrt %292 : vector<256x1xf32>
    %294 = vector.broadcast %293 : vector<256x1xf32> to vector<256x32xf32>
    %295 = arith.mulf %290, %294 : vector<256x32xf32>
    %c11 = arith.constant 11 : index
    %c0_94 = arith.constant 0 : index
    %296 = vector.load %arg12[%c11, %c0_94] : memref<14x128xf32, #tpu.memory_space<vmem>>, vector<1x32xf32>
    %297 = vector.broadcast %296 : vector<1x32xf32> to vector<256x32xf32>
    %298 = arith.mulf %295, %297 : vector<256x32xf32>
    %c13 = arith.constant 13 : index
    %c0_95 = arith.constant 0 : index
    %299 = vector.load %arg12[%c13, %c0_95] : memref<14x128xf32, #tpu.memory_space<vmem>>, vector<1x32xf32>
    %300 = vector.broadcast %299 : vector<1x32xf32> to vector<256x32xf32>
    %301 = arith.addf %298, %300 : vector<256x32xf32>
    %302 = arith.truncf %301 : vector<256x32xf32> to vector<256x32xbf16>
    %c0_96 = arith.constant 0 : index
    %c64 = arith.constant 64 : index
    %303 = vector.load %arg14[%c0_96, %c64] : memref<256x128xbf16, #tpu.memory_space<vmem>>, vector<256x32xbf16>
    tpu.vector_store %arg14[%c0_96, %c64], %302 {strides = array<i32>} : memref<256x128xbf16, #tpu.memory_space<vmem>>, vector<256x32xbf16>,
    %c0_97 = arith.constant 0 : index
    %c0_98 = arith.constant 0 : index
    %304 = vector.load %arg14[%c0_97, %c0_98] : memref<256x128xbf16, #tpu.memory_space<vmem>>, vector<256x128xbf16>
    %c0_99 = arith.constant 0 : index
    %c0_100 = arith.constant 0 : index
    %305 = vector.load %arg8[%c0_99, %c0_100] : memref<128x128xbf16, #tpu.memory_space<vmem>>, vector<128x128xbf16>
    %cst_101 = arith.constant dense<0.000000e+00> : vector<256x128xf32>
    %306 = tpu.matmul %304, %305, %cst_101 {dimension_numbers = #tpu.dot_dimension_numbers<[1], [0], [0], [1], [0, 0, 1, 1], [], []>} : vector<256x128xbf16>, vector<128x128xbf16>, vector<256x128xf32> -> vector<256x128xf32>
    %c0_102 = arith.constant 0 : index
    %c0_103 = arith.constant 0 : index
    %307 = vector.load %arg9[%c0_102, %c0_103] : memref<1x128xf32, #tpu.memory_space<vmem>>, vector<1x128xf32>
    %308 = vector.broadcast %307 : vector<1x128xf32> to vector<256x128xf32>
    %309 = arith.addf %306, %308 : vector<256x128xf32>
    %cst_104 = arith.constant 0.000000e+00 : f32
    %310 = vector.broadcast %cst_104 : f32 to vector<256x128xf32>
    %311 = arith.maximumf %309, %310 : vector<256x128xf32>
    %c0_105 = arith.constant 0 : index
    %c0_106 = arith.constant 0 : index
    %312 = vector.load %arg10[%c0_105, %c0_106] : memref<128x32xbf16, #tpu.memory_space<vmem>>, vector<128x32xbf16>
    %313 = arith.truncf %311 : vector<256x128xf32> to vector<256x128xbf16>
    %cst_107 = arith.constant dense<0.000000e+00> : vector<256x32xf32>
    %314 = tpu.matmul %313, %312, %cst_107 {dimension_numbers = #tpu.dot_dimension_numbers<[1], [0], [0], [1], [0, 0, 1, 1], [], []>} : vector<256x128xbf16>, vector<128x32xbf16>, vector<256x32xf32> -> vector<256x32xf32>
    %315 = vector.broadcast %5 : vector<1x32xf32> to vector<256x32xf32>
    %316 = arith.addf %314, %315 : vector<256x32xf32>
    %317 = tpu.iota {dimensions = array<i32: 1>} : vector<256x256xi32>
    %c0_108 = arith.constant 0 : index
    %c0_109 = arith.constant 0 : index
    %c0_110 = arith.constant 0 : index
    %318 = vector.load %arg4[%c0_108, %c0_109, %c0_110] : memref<1x256x1xi32, #tpu.memory_space<vmem>>, vector<1x256x1xi32>
    %319 = vector.shape_cast %318 : vector<1x256x1xi32> to vector<256x1xi32>
    %320 = vector.broadcast %319 : vector<256x1xi32> to vector<256x256xi32>
    %321 = arith.cmpi eq, %317, %320 : vector<256x256xi32>
    %322 = arith.extui %321 : vector<256x256xi1> to vector<256x256xi32>
    %323 = arith.sitofp %322 : vector<256x256xi32> to vector<256x256xf32>
    %324 = arith.truncf %323 : vector<256x256xf32> to vector<256x256xbf16>
    %325 = arith.truncf %316 : vector<256x32xf32> to vector<256x32xbf16>
    %cst_111 = arith.constant dense<0.000000e+00> : vector<256x32xf32>
    %326 = tpu.matmul %324, %325, %cst_111 {dimension_numbers = #tpu.dot_dimension_numbers<[1], [0], [0], [1], [0, 0, 1, 1], [], []>} : vector<256x256xbf16>, vector<256x32xbf16>, vector<256x32xf32> -> vector<256x32xf32>
    %327 = vector.extract_strided_slice %326 {offsets = [0, 0], sizes = [128, 32], strides = [1, 1]} : vector<256x32xf32> to vector<128x32xf32>
    %328 = vector.extract_strided_slice %326 {offsets = [128, 0], sizes = [128, 32], strides = [1, 1]} : vector<256x32xf32> to vector<128x32xf32>
    %329 = arith.mulf %327, %328 : vector<128x32xf32>
    %c2_112 = arith.constant 2 : index
    %c0_113 = arith.constant 0 : index
    %c0_114 = arith.constant 0 : index
    %330 = vector.load %arg6[%c2_112, %c0_113, %c0_114] : memref<5x32x32xbf16, #tpu.memory_space<vmem>>, vector<1x32x32xbf16>
    %331 = vector.shape_cast %330 : vector<1x32x32xbf16> to vector<32x32xbf16>
    %332 = arith.truncf %329 : vector<128x32xf32> to vector<128x32xbf16>
    %cst_115 = arith.constant dense<0.000000e+00> : vector<128x32xf32>
    %333 = tpu.matmul %332, %331, %cst_115 {dimension_numbers = #tpu.dot_dimension_numbers<[1], [0], [0], [1], [0, 0, 1, 1], [], []>} : vector<128x32xbf16>, vector<32x32xbf16>, vector<128x32xf32> -> vector<128x32xf32>
    %334 = vector.broadcast %6 : vector<1x32xf32> to vector<128x32xf32>
    %335 = arith.addf %333, %334 : vector<128x32xf32>
    %cst_116 = arith.constant 0.000000e+00 : f32
    %336 = vector.broadcast %cst_116 : f32 to vector<128x32xf32>
    %337 = arith.maximumf %335, %336 : vector<128x32xf32>
    %c0_117 = arith.constant 0 : index
    %c0_118 = arith.constant 0 : index
    %338 = vector.load %arg11[%c0_117, %c0_118] : memref<32x128xbf16, #tpu.memory_space<vmem>>, vector<32x128xbf16>
    %339 = arith.truncf %337 : vector<128x32xf32> to vector<128x32xbf16>
    %cst_119 = arith.constant dense<0.000000e+00> : vector<128x128xf32>
    %340 = tpu.matmul %339, %338, %cst_119 {dimension_numbers = #tpu.dot_dimension_numbers<[1], [0], [0], [1], [0, 0, 1, 1], [], []>} : vector<128x32xbf16>, vector<32x128xbf16>, vector<128x128xf32> -> vector<128x128xf32>
    %341 = vector.broadcast %7 : vector<1x128xf32> to vector<128x128xf32>
    %342 = arith.addf %340, %341 : vector<128x128xf32>
    %c0_120 = arith.constant 0 : index
    %c0_121 = arith.constant 0 : index
    %c0_122 = arith.constant 0 : index
    %343 = vector.load %arg13[%c0_120, %c0_121, %c0_122] : memref<1x128x128xf32, #tpu.memory_space<vmem>>, vector<1x128x128xf32>
    %344 = vector.shape_cast %343 : vector<1x128x128xf32> to vector<128x128xf32>
    %345 = vector.shape_cast %342 : vector<128x128xf32> to vector<1x128x128xf32>
    tpu.vector_store %arg13[%c0_120, %c0_121, %c0_122], %345 {strides = array<i32>} : memref<1x128x128xf32, #tpu.memory_space<vmem>>, vector<1x128x128xf32>,
    return
  }
  func.func @transform_0(%arg0: i32, %arg1: memref<64xf32, #tpu.memory_space<smem>>) -> (i32, i32, i32) {
    %c0_i32 = arith.constant 0 : i32
    %c0_i32_0 = arith.constant 0 : i32
    %c0_i32_1 = arith.constant 0 : i32
    return %arg0, %c0_i32, %c0_i32_0 : i32, i32, i32
  }
  func.func @transform_1(%arg0: i32, %arg1: memref<64xf32, #tpu.memory_space<smem>>) -> (i32, i32, i32) {
    %c0_i32 = arith.constant 0 : i32
    %c0_i32_0 = arith.constant 0 : i32
    %c0_i32_1 = arith.constant 0 : i32
    return %arg0, %c0_i32, %c0_i32_0 : i32, i32, i32
  }
  func.func @transform_2(%arg0: i32, %arg1: memref<64xf32, #tpu.memory_space<smem>>) -> (i32, i32, i32) {
    %c0_i32 = arith.constant 0 : i32
    %c0_i32_0 = arith.constant 0 : i32
    %c0_i32_1 = arith.constant 0 : i32
    return %arg0, %c0_i32, %c0_i32_0 : i32, i32, i32
  }
  func.func @transform_3(%arg0: i32, %arg1: memref<64xf32, #tpu.memory_space<smem>>) -> (i32, i32) {
    %c0_i32 = arith.constant 0 : i32
    %c0_i32_0 = arith.constant 0 : i32
    %c0_i32_1 = arith.constant 0 : i32
    return %c0_i32, %c0_i32_0 : i32, i32
  }
  func.func @transform_4(%arg0: i32, %arg1: memref<64xf32, #tpu.memory_space<smem>>) -> (i32, i32, i32) {
    %c0_i32 = arith.constant 0 : i32
    %c0_i32_0 = arith.constant 0 : i32
    %c0_i32_1 = arith.constant 0 : i32
    %c0_i32_2 = arith.constant 0 : i32
    return %c0_i32, %c0_i32_0, %c0_i32_1 : i32, i32, i32
  }
  func.func @transform_5(%arg0: i32, %arg1: memref<64xf32, #tpu.memory_space<smem>>) -> (i32, i32) {
    %c0_i32 = arith.constant 0 : i32
    %c0_i32_0 = arith.constant 0 : i32
    %c0_i32_1 = arith.constant 0 : i32
    return %c0_i32, %c0_i32_0 : i32, i32
  }
  func.func @transform_6(%arg0: i32, %arg1: memref<64xf32, #tpu.memory_space<smem>>) -> (i32, i32) {
    %c0_i32 = arith.constant 0 : i32
    %c0_i32_0 = arith.constant 0 : i32
    %c0_i32_1 = arith.constant 0 : i32
    return %c0_i32, %c0_i32_0 : i32, i32
  }
  func.func @transform_7(%arg0: i32, %arg1: memref<64xf32, #tpu.memory_space<smem>>) -> (i32, i32) {
    %c0_i32 = arith.constant 0 : i32
    %c0_i32_0 = arith.constant 0 : i32
    %c0_i32_1 = arith.constant 0 : i32
    return %c0_i32, %c0_i32_0 : i32, i32
  }
  func.func @transform_8(%arg0: i32, %arg1: memref<64xf32, #tpu.memory_space<smem>>) -> (i32, i32) {
    %c0_i32 = arith.constant 0 : i32
    %c0_i32_0 = arith.constant 0 : i32
    %c0_i32_1 = arith.constant 0 : i32
    return %c0_i32, %c0_i32_0 : i32, i32
  }
  func.func @transform_9(%arg0: i32, %arg1: memref<64xf32, #tpu.memory_space<smem>>) -> (i32, i32) {
    %c0_i32 = arith.constant 0 : i32
    %c0_i32_0 = arith.constant 0 : i32
    %c0_i32_1 = arith.constant 0 : i32
    return %c0_i32, %c0_i32_0 : i32, i32
  }
  func.func @transform_10(%arg0: i32, %arg1: memref<64xf32, #tpu.memory_space<smem>>) -> (i32, i32) {
    %c0_i32 = arith.constant 0 : i32
    %c0_i32_0 = arith.constant 0 : i32
    %c0_i32_1 = arith.constant 0 : i32
    return %c0_i32, %c0_i32_0 : i32, i32
  }
  func.func @transform_11(%arg0: i32, %arg1: memref<64xf32, #tpu.memory_space<smem>>) -> (i32, i32, i32) {
    %c0_i32 = arith.constant 0 : i32
    %c0_i32_0 = arith.constant 0 : i32
    %c0_i32_1 = arith.constant 0 : i32
    return %arg0, %c0_i32, %c0_i32_0 : i32, i32, i32
  }
}

</mosaic_0001>

<llo_original>
// kernel: tpu_custom_call.1
$region0: #{tpu_custom_call.1}
  #allocation0 [shape = 'u32[]', space=smem, size = 0x4, offset = 0x4, fixed_abs, tag = 'smem constant byte address 0x4 - core index']
  #allocation1 [shape = 'u32[144,128]{1,0:T(1,128)}', space=vmem, size = 0x12000, scoped, tag = 'internal scratch']
  #allocation2 [shape = 'bf16[256,128]{1,0:T(16,128)(2,1)}', space=vmem, size = 0x10000, scoped, tag = 'scratch operand']
  #allocation3 [shape = 's32[1]{0}', space=sflag, size = 0x4, scoped, tag = 'scoped memory for tpu_custom_call.1']
  #allocation4 [shape = 'u8[512]{0}', space=smem, size = 0x200, scoped, tag = 'prefetched SMEM operand 0']
  %s0 = inlined_call_operand.vmem [shape: f32[64], index: 0, kind: input, shape index: {}]
  %s1 = inlined_call_operand.vmem [shape: bf16[4,256,8], index: 1, kind: input, shape index: {}]
  %s2 = inlined_call_operand.vmem [shape: bf16[4,256,256], index: 2, kind: input, shape index: {}]
  %s3 = inlined_call_operand.vmem [shape: s32[4,256,1], index: 3, kind: input, shape index: {}]
  %s4 = inlined_call_operand.vmem [shape: bf16[8,32], index: 4, kind: input, shape index: {}]
  %s5 = inlined_call_operand.vmem [shape: bf16[5,32,32], index: 5, kind: input, shape index: {}]
  %s6 = inlined_call_operand.vmem [shape: bf16[32,64], index: 6, kind: input, shape index: {}]
  %s7 = inlined_call_operand.vmem [shape: bf16[128,128], index: 7, kind: input, shape index: {}]
  %s8 = inlined_call_operand.vmem [shape: f32[1,128], index: 8, kind: input, shape index: {}]
  %s9 = inlined_call_operand.vmem [shape: bf16[128,32], index: 9, kind: input, shape index: {}]
  %s10 = inlined_call_operand.vmem [shape: bf16[32,128], index: 10, kind: input, shape index: {}]
  %s11 = inlined_call_operand.vmem [shape: f32[14,128], index: 11, kind: input, shape index: {}]
  %s12 = inlined_call_operand.hbm [shape: f32[4,128,128], index: 12, kind: output, shape index: {}]
  %s13 = sld [smem:[#allocation0]]
  $region77: #{tpu_custom_call.1} parent=0
    _
  %s15 = ssub.s32 1, %s13
  %s16 = scalar_select 0, %s15, %s13
  %s17 = sshll.u32 %s0, 4
  %s18 = int_to_ptr.vmem [resolvable:$true] %s17
  %20 = dma.vmem_to_smem %s18, 16, [#allocation4], [#allocation3]
  %21 = dma.done [#allocation3], 16
  %22 = sfence
  $region1: #{tpu_custom_call.1} parent=0
    #allocation5 [shape = 'u8[131072]{0}', space=vmem, size = 0x20000, scoped, tag = 'output window, operand 0']
    #allocation6 [shape = 's32[2]{0}', space=sflag, size = 0x8, scoped, tag = 'scoped memory for tpu_custom_call.1']
    %23 = vsyncpa [#allocation6], 0
    %s24 = scalar_lea.sflag [#allocation6], 1
    %25 = vsyncpa %s24, 0
    loop: start=0, step=1, limit=6
    $region2: #{tpu_custom_call.1} parent=1 // loop_pre_header
      _
    $region3: #{tpu_custom_call.1} parent=1 // loop_header
      %s27 = sphi 0, %s31
      %p28 = scmp.ge.s32.totalorder %s27, 6
      %s37 = sphi 0, %s39
      %s40 = sphi 0, %s37
      %s41 = sphi 0, %s40
      %s57 = sphi 0, %s41
      %s63 = sphi 0, %s65
      %s66 = sphi 0, %s63
      %s67 = sphi 0, %s66
      %s83 = sphi 0, %s67
      %s89 = sphi 0, %s91
      %s92 = sphi 0, %s89
      %s93 = sphi 0, %s92
      %s109 = sphi 0, %s93
      %s113 = sphi 0, %s113
      %s115 = sphi 0, %s113
      %s116 = sphi 0, %s115
      %s130 = sphi 0, %s116
      %s134 = sphi 0, %s134
      %s136 = sphi 0, %s134
      %s137 = sphi 0, %s136
      %s151 = sphi 0, %s137
      %s155 = sphi 0, %s155
      %s157 = sphi 0, %s155
      %s158 = sphi 0, %s157
      %s172 = sphi 0, %s158
      %s176 = sphi 0, %s176
      %s178 = sphi 0, %s176
      %s179 = sphi 0, %s178
      %s193 = sphi 0, %s179
      %s197 = sphi 0, %s197
      %s199 = sphi 0, %s197
      %s200 = sphi 0, %s199
      %s214 = sphi 0, %s200
      %s218 = sphi 0, %s218
      %s220 = sphi 0, %s218
      %s221 = sphi 0, %s220
      %s235 = sphi 0, %s221
      %s239 = sphi 0, %s239
      %s241 = sphi 0, %s239
      %s242 = sphi 0, %s241
      %s256 = sphi 0, %s242
      %s260 = sphi 0, %s260
      %s262 = sphi 0, %s260
      %s263 = sphi 0, %s262
      %s277 = sphi 0, %s263
      %s283 = sphi 0, %s285
      %s286 = sphi 0, %s283
      %s287 = sphi 0, %s286
      %s303 = sphi 0, %s287
    $region4: #{tpu_custom_call.1} parent=1 // loop_header_branch
      %30 = sbr.rel (%p28) target = $region8
    $region5: #{tpu_custom_call.1} parent=1 // loop_body
      %s32 = ssub.s32 %s27, 1
      %s33 = ssub.s32 %s27, 2
      %s34 = sadd.s32 %s27, 1
      %s35 = ssub.s32 %s27, %s34
      %p36 = scmp.eq.s32.totalorder %s35, 0
      %s38 = sadd.s32 %s37, 1
      %s39 = scalar_select %p36, %s37, %s38
      %p42 = pneg %p36
      %p43 = scmp.eq.s32.totalorder %s27, 3
      %p44 = por %p42, %p43
      %p45 = scmp.ne.s32.totalorder %s37, %s40
      %p46 = scmp.eq.s32.totalorder %s27, 0
      %p47 = por %p45, %p46
      %p48 = scmp.ne.s32.totalorder %s37, %s40
      %p49 = scmp.eq.s32.totalorder %s32, 3
      %p50 = por %p48, %p49
      %p51 = scmp.ne.s32.totalorder %s40, %s41
      %p52 = scmp.eq.s32.totalorder %s32, 0
      %p53 = por %p51, %p52
      %p54 = scmp.ne.s32.totalorder %s40, %s41
      %p55 = scmp.eq.s32.totalorder %s33, 3
      %p56 = por %p54, %p55
      %p58 = scmp.ne.s32.totalorder %s41, %s57
      %p59 = scmp.eq.s32.totalorder %s33, 0
      %p60 = por %p58, %p59
      %s61 = ssub.s32 %s27, %s34
      %p62 = scmp.eq.s32.totalorder %s61, 0
      %s64 = sadd.s32 %s63, 1
      %s65 = scalar_select %p62, %s63, %s64
      %p68 = pneg %p62
      %p69 = scmp.eq.s32.totalorder %s27, 3
      %p70 = por %p68, %p69
      %p71 = scmp.ne.s32.totalorder %s63, %s66
      %p72 = scmp.eq.s32.totalorder %s27, 0
      %p73 = por %p71, %p72
      %p74 = scmp.ne.s32.totalorder %s63, %s66
      %p75 = scmp.eq.s32.totalorder %s32, 3
      %p76 = por %p74, %p75
      %p77 = scmp.ne.s32.totalorder %s66, %s67
      %p78 = scmp.eq.s32.totalorder %s32, 0
      %p79 = por %p77, %p78
      %p80 = scmp.ne.s32.totalorder %s66, %s67
      %p81 = scmp.eq.s32.totalorder %s33, 3
      %p82 = por %p80, %p81
      %p84 = scmp.ne.s32.totalorder %s67, %s83
      %p85 = scmp.eq.s32.totalorder %s33, 0
      %p86 = por %p84, %p85
      %s87 = ssub.s32 %s27, %s34
      %p88 = scmp.eq.s32.totalorder %s87, 0
      %s90 = sadd.s32 %s89, 1
      %s91 = scalar_select %p88, %s89, %s90
      %p94 = pneg %p88
      %p95 = scmp.eq.s32.totalorder %s27, 3
      %p96 = por %p94, %p95
      %p97 = scmp.ne.s32.totalorder %s89, %s92
      %p98 = scmp.eq.s32.totalorder %s27, 0
      %p99 = por %p97, %p98
      %p100 = scmp.ne.s32.totalorder %s89, %s92
      %p101 = scmp.eq.s32.totalorder %s32, 3
      %p102 = por %p100, %p101
      %p103 = scmp.ne.s32.totalorder %s92, %s93
      %p104 = scmp.eq.s32.totalorder %s32, 0
      %p105 = por %p103, %p104
      %p106 = scmp.ne.s32.totalorder %s92, %s93
      %p107 = scmp.eq.s32.totalorder %s33, 3
      %p108 = por %p106, %p107
      %p110 = scmp.ne.s32.totalorder %s93, %s109
      %p111 = scmp.eq.s32.totalorder %s33, 0
      %p112 = por %p110, %p111
      %s114 = sadd.s32 %s113, 1
      %p117 = scmp.eq.s32.totalorder %s27, 3
      %p118 = scmp.ne.s32.totalorder %s113, %s115
      %p119 = scmp.eq.s32.totalorder %s27, 0
      %p120 = por %p118, %p119
      %p121 = scmp.ne.s32.totalorder %s113, %s115
      %p122 = scmp.eq.s32.totalorder %s32, 3
      %p123 = por %p121, %p122
      %p124 = scmp.ne.s32.totalorder %s115, %s116
      %p125 = scmp.eq.s32.totalorder %s32, 0
      %p126 = por %p124, %p125
      %p127 = scmp.ne.s32.totalorder %s115, %s116
      %p128 = scmp.eq.s32.totalorder %s33, 3
      %p129 = por %p127, %p128
      %p131 = scmp.ne.s32.totalorder %s116, %s130
      %p132 = scmp.eq.s32.totalorder %s33, 0
      %p133 = por %p131, %p132
      %s135 = sadd.s32 %s134, 1
      %p138 = scmp.eq.s32.totalorder %s27, 3
      %p139 = scmp.ne.s32.totalorder %s134, %s136
      %p140 = scmp.eq.s32.totalorder %s27, 0
      %p141 = por %p139, %p140
      %p142 = scmp.ne.s32.totalorder %s134, %s136
      %p143 = scmp.eq.s32.totalorder %s32, 3
      %p144 = por %p142, %p143
      %p145 = scmp.ne.s32.totalorder %s136, %s137
      %p146 = scmp.eq.s32.totalorder %s32, 0
      %p147 = por %p145, %p146
      %p148 = scmp.ne.s32.totalorder %s136, %s137
      %p149 = scmp.eq.s32.totalorder %s33, 3
      %p150 = por %p148, %p149
      %p152 = scmp.ne.s32.totalorder %s137, %s151
      %p153 = scmp.eq.s32.totalorder %s33, 0
      %p154 = por %p152, %p153
      %s156 = sadd.s32 %s155, 1
      %p159 = scmp.eq.s32.totalorder %s27, 3
      %p160 = scmp.ne.s32.totalorder %s155, %s157
      %p161 = scmp.eq.s32.totalorder %s27, 0
      %p162 = por %p160, %p161
      %p163 = scmp.ne.s32.totalorder %s155, %s157
      %p164 = scmp.eq.s32.totalorder %s32, 3
      %p165 = por %p163, %p164
      %p166 = scmp.ne.s32.totalorder %s157, %s158
      %p167 = scmp.eq.s32.totalorder %s32, 0
      %p168 = por %p166, %p167
      %p169 = scmp.ne.s32.totalorder %s157, %s158
      %p170 = scmp.eq.s32.totalorder %s33, 3
      %p171 = por %p169, %p170
      %p173 = scmp.ne.s32.totalorder %s158, %s172
      %p174 = scmp.eq.s32.totalorder %s33, 0
      %p175 = por %p173, %p174
      %s177 = sadd.s32 %s176, 1
      %p180 = scmp.eq.s32.totalorder %s27, 3
      %p181 = scmp.ne.s32.totalorder %s176, %s178
      %p182 = scmp.eq.s32.totalorder %s27, 0
      %p183 = por %p181, %p182
      %p184 = scmp.ne.s32.totalorder %s176, %s178
      %p185 = scmp.eq.s32.totalorder %s32, 3
      %p186 = por %p184, %p185
      %p187 = scmp.ne.s32.totalorder %s178, %s179
      %p188 = scmp.eq.s32.totalorder %s32, 0
      %p189 = por %p187, %p188
      %p190 = scmp.ne.s32.totalorder %s178, %s179
      %p191 = scmp.eq.s32.totalorder %s33, 3
      %p192 = por %p190, %p191
      %p194 = scmp.ne.s32.totalorder %s179, %s193
      %p195 = scmp.eq.s32.totalorder %s33, 0
      %p196 = por %p194, %p195
      %s198 = sadd.s32 %s197, 1
      %p201 = scmp.eq.s32.totalorder %s27, 3
      %p202 = scmp.ne.s32.totalorder %s197, %s199
      %p203 = scmp.eq.s32.totalorder %s27, 0
      %p204 = por %p202, %p203
      %p205 = scmp.ne.s32.totalorder %s197, %s199
      %p206 = scmp.eq.s32.totalorder %s32, 3
      %p207 = por %p205, %p206
      %p208 = scmp.ne.s32.totalorder %s199, %s200
      %p209 = scmp.eq.s32.totalorder %s32, 0
      %p210 = por %p208, %p209
      %p211 = scmp.ne.s32.totalorder %s199, %s200
      %p212 = scmp.eq.s32.totalorder %s33, 3
      %p213 = por %p211, %p212
      %p215 = scmp.ne.s32.totalorder %s200, %s214
      %p216 = scmp.eq.s32.totalorder %s33, 0
      %p217 = por %p215, %p216
      %s219 = sadd.s32 %s218, 1
      %p222 = scmp.eq.s32.totalorder %s27, 3
      %p223 = scmp.ne.s32.totalorder %s218, %s220
      %p224 = scmp.eq.s32.totalorder %s27, 0
      %p225 = por %p223, %p224
      %p226 = scmp.ne.s32.totalorder %s218, %s220
      %p227 = scmp.eq.s32.totalorder %s32, 3
      %p228 = por %p226, %p227
      %p229 = scmp.ne.s32.totalorder %s220, %s221
      %p230 = scmp.eq.s32.totalorder %s32, 0
      %p231 = por %p229, %p230
      %p232 = scmp.ne.s32.totalorder %s220, %s221
      %p233 = scmp.eq.s32.totalorder %s33, 3
      %p234 = por %p232, %p233
      %p236 = scmp.ne.s32.totalorder %s221, %s235
      %p237 = scmp.eq.s32.totalorder %s33, 0
      %p238 = por %p236, %p237
      %s240 = sadd.s32 %s239, 1
      %p243 = scmp.eq.s32.totalorder %s27, 3
      %p244 = scmp.ne.s32.totalorder %s239, %s241
      %p245 = scmp.eq.s32.totalorder %s27, 0
      %p246 = por %p244, %p245
      %p247 = scmp.ne.s32.totalorder %s239, %s241
      %p248 = scmp.eq.s32.totalorder %s32, 3
      %p249 = por %p247, %p248
      %p250 = scmp.ne.s32.totalorder %s241, %s242
      %p251 = scmp.eq.s32.totalorder %s32, 0
      %p252 = por %p250, %p251
      %p253 = scmp.ne.s32.totalorder %s241, %s242
      %p254 = scmp.eq.s32.totalorder %s33, 3
      %p255 = por %p253, %p254
      %p257 = scmp.ne.s32.totalorder %s242, %s256
      %p258 = scmp.eq.s32.totalorder %s33, 0
      %p259 = por %p257, %p258
      %s261 = sadd.s32 %s260, 1
      %p264 = scmp.eq.s32.totalorder %s27, 3
      %p265 = scmp.ne.s32.totalorder %s260, %s262
      %p266 = scmp.eq.s32.totalorder %s27, 0
      %p267 = por %p265, %p266
      %p268 = scmp.ne.s32.totalorder %s260, %s262
      %p269 = scmp.eq.s32.totalorder %s32, 3
      %p270 = por %p268, %p269
      %p271 = scmp.ne.s32.totalorder %s262, %s263
      %p272 = scmp.eq.s32.totalorder %s32, 0
      %p273 = por %p271, %p272
      %p274 = scmp.ne.s32.totalorder %s262, %s263
      %p275 = scmp.eq.s32.totalorder %s33, 3
      %p276 = por %p274, %p275
      %p278 = scmp.ne.s32.totalorder %s263, %s277
      %p279 = scmp.eq.s32.totalorder %s33, 0
      %p280 = por %p278, %p279
      %s281 = ssub.s32 %s27, %s34
      %p282 = scmp.eq.s32.totalorder %s281, 0
      %s284 = sadd.s32 %s283, 1
      %s285 = scalar_select %p282, %s283, %s284
      %p288 = pneg %p282
      %p289 = scmp.eq.s32.totalorder %s27, 3
      %p290 = por %p288, %p289
      %p291 = scmp.ne.s32.totalorder %s283, %s286
      %p292 = scmp.eq.s32.totalorder %s27, 0
      %p293 = por %p291, %p292
      %p294 = scmp.ne.s32.totalorder %s283, %s286
      %p295 = scmp.eq.s32.totalorder %s32, 3
      %p296 = por %p294, %p295
      %p297 = scmp.ne.s32.totalorder %s286, %s287
      %p298 = scmp.eq.s32.totalorder %s32, 0
      %p299 = por %p297, %p298
      %p300 = scmp.ne.s32.totalorder %s286, %s287
      %p301 = scmp.eq.s32.totalorder %s33, 3
      %p302 = por %p300, %p301
      %p304 = scmp.ne.s32.totalorder %s287, %s303
      %p305 = scmp.eq.s32.totalorder %s33, 0
      %p306 = por %p304, %p305
      %p307 = scmp.le.s32.totalorder 1, %s27
      %p308 = scmp.lt.s32.totalorder %s27, 5
      %p309 = pnand %p307, %p308
      %p310 = pneg %p309
      // Predicated region
      $region9: #{tpu_custom_call.1} parent=5 // pred_check
        _
      $region10: #{tpu_custom_call.1} parent=5 // pred_check_branch
        %312 = sbr.rel (%p309) target = $region12
      $region11: #{tpu_custom_call.1} parent=5 // pred_region
        %s313 = ssub.s32 %s27, 1
        // Predicated region
        $region13: #{tpu_custom_call.1} parent=11 // pred_check
          %p314 = pneg %p126
        $region14: #{tpu_custom_call.1} parent=11 // pred_check_branch
          %316 = sbr.rel (%p314) target = $region16
        $region15: #{tpu_custom_call.1} parent=11 // pred_region
          _
        $region16: #{tpu_custom_call.1} parent=11 // pred_fallthru
          _
        // Predicated region
        $region17: #{tpu_custom_call.1} parent=11 // pred_check
          %p317 = pneg %p147
        $region18: #{tpu_custom_call.1} parent=11 // pred_check_branch
          %319 = sbr.rel (%p317) target = $region20
        $region19: #{tpu_custom_call.1} parent=11 // pred_region
          _
        $region20: #{tpu_custom_call.1} parent=11 // pred_fallthru
          _
        // Predicated region
        $region21: #{tpu_custom_call.1} parent=11 // pred_check
          %p320 = pneg %p168
        $region22: #{tpu_custom_call.1} parent=11 // pred_check_branch
          %322 = sbr.rel (%p320) target = $region24
        $region23: #{tpu_custom_call.1} parent=11 // pred_region
          _
        $region24: #{tpu_custom_call.1} parent=11 // pred_fallthru
          _
        // Predicated region
        $region25: #{tpu_custom_call.1} parent=11 // pred_check
          %p323 = pneg %p189
        $region26: #{tpu_custom_call.1} parent=11 // pred_check_branch
          %325 = sbr.rel (%p323) target = $region28
        $region27: #{tpu_custom_call.1} parent=11 // pred_region
          _
        $region28: #{tpu_custom_call.1} parent=11 // pred_fallthru
          _
        // Predicated region
        $region29: #{tpu_custom_call.1} parent=11 // pred_check
          %p326 = pneg %p210
        $region30: #{tpu_custom_call.1} parent=11 // pred_check_branch
          %328 = sbr.rel (%p326) target = $region32
        $region31: #{tpu_custom_call.1} parent=11 // pred_region
          _
        $region32: #{tpu_custom_call.1} parent=11 // pred_fallthru
          _
        // Predicated region
        $region33: #{tpu_custom_call.1} parent=11 // pred_check
          %p329 = pneg %p231
        $region34: #{tpu_custom_call.1} parent=11 // pred_check_branch
          %331 = sbr.rel (%p329) target = $region36
        $region35: #{tpu_custom_call.1} parent=11 // pred_region
          _
        $region36: #{tpu_custom_call.1} parent=11 // pred_fallthru
          _
        // Predicated region
        $region37: #{tpu_custom_call.1} parent=11 // pred_check
          %p332 = pneg %p252
        $region38: #{tpu_custom_call.1} parent=11 // pred_check_branch
          %334 = sbr.rel (%p332) target = $region40
        $region39: #{tpu_custom_call.1} parent=11 // pred_region
          _
        $region40: #{tpu_custom_call.1} parent=11 // pred_fallthru
          _
        // Predicated region
        $region41: #{tpu_custom_call.1} parent=11 // pred_check
          %p335 = pneg %p273
        $region42: #{tpu_custom_call.1} parent=11 // pred_check_branch
          %337 = sbr.rel (%p335) target = $region44
        $region43: #{tpu_custom_call.1} parent=11 // pred_region
          _
        $region44: #{tpu_custom_call.1} parent=11 // pred_fallthru
          _
      $region12: #{tpu_custom_call.1} parent=5 // pred_fallthru
        _
      %p338 = scmp.lt.s32.totalorder %s27, 4
      // Predicated region
      $region45: #{tpu_custom_call.1} parent=5 // pred_check
        %p339 = pneg %p338
      $region46: #{tpu_custom_call.1} parent=5 // pred_check_branch
        %341 = sbr.rel (%p339) target = $region48
      $region47: #{tpu_custom_call.1} parent=5 // pred_region
        // Predicated region
        $region49: #{tpu_custom_call.1} parent=47 // pred_check
          %p342 = pneg %p47
        $region50: #{tpu_custom_call.1} parent=47 // pred_check_branch
          %344 = sbr.rel (%p342) target = $region52
        $region51: #{tpu_custom_call.1} parent=47 // pred_region
          %p345 = scmp.lt.s32.totalorder %s27, 3
          %s346 = scalar_select %p345, %s27, 3
          %s347 = smul.addr %s346, 32
          %s348 = smul.addr %s347, 4
          %s349 = scalar_lea.vmem %s1, %s348
        $region52: #{tpu_custom_call.1} parent=47 // pred_fallthru
          _
        // Predicated region
        $region53: #{tpu_custom_call.1} parent=47 // pred_check
          %p350 = pneg %p73
        $region54: #{tpu_custom_call.1} parent=47 // pred_check_branch
          %352 = sbr.rel (%p350) target = $region56
        $region55: #{tpu_custom_call.1} parent=47 // pred_region
          %p353 = scmp.lt.s32.totalorder %s27, 3
          %s354 = scalar_select %p353, %s27, 3
          %s355 = smul.addr %s354, 64
          %s356 = smul.addr %s355, 4
          %s357 = scalar_lea.vmem %s2, %s356
        $region56: #{tpu_custom_call.1} parent=47 // pred_fallthru
          _
        // Predicated region
        $region57: #{tpu_custom_call.1} parent=47 // pred_check
          %p358 = pneg %p99
        $region58: #{tpu_custom_call.1} parent=47 // pred_check_branch
          %360 = sbr.rel (%p358) target = $region60
        $region59: #{tpu_custom_call.1} parent=47 // pred_region
          %p361 = scmp.lt.s32.totalorder %s27, 3
          %s362 = scalar_select %p361, %s27, 3
          %s363 = smul.addr %s362, 32
          %s364 = smul.addr %s363, 8
          %s365 = scalar_lea.vmem %s3, %s364
        $region60: #{tpu_custom_call.1} parent=47 // pred_fallthru
          _
      $region48: #{tpu_custom_call.1} parent=5 // pred_fallthru
        _
      %p366 = scmp.le.s32.totalorder 1, %s27
      %p367 = scmp.lt.s32.totalorder %s27, 5
      %p368 = pnand %p366, %p367
      %p369 = pneg %p368
      // Predicated region
      $region61: #{tpu_custom_call.1} parent=5 // pred_check
        _
      $region62: #{tpu_custom_call.1} parent=5 // pred_check_branch
        %371 = sbr.rel (%p368) target = $region64
      $region63: #{tpu_custom_call.1} parent=5 // pred_region
        %s372 = ssub.s32 %s27, 1
        %p373 = scmp.lt.s32.totalorder %s32, 3
        %s374 = scalar_select %p373, %s32, 3
        %s375 = smul.addr %s374, 32
        %s376 = smul.addr %s375, 4
        %s377 = scalar_lea.vmem %s1, %s376
        %p378 = pneg %p53
        %p379 = pneg %p50
        %p380 = scmp.lt.s32.totalorder %s32, 3
        %s381 = scalar_select %p380, %s32, 3
        %s382 = smul.addr %s381, 64
        %s383 = smul.addr %s382, 4
        %s384 = scalar_lea.vmem %s2, %s383
        %p385 = pneg %p79
        %p386 = pneg %p76
        %p387 = scmp.lt.s32.totalorder %s32, 3
        %s388 = scalar_select %p387, %s32, 3
        %s389 = smul.addr %s388, 32
        %s390 = smul.addr %s389, 8
        %s391 = scalar_lea.vmem %s3, %s390
        %p392 = pneg %p105
        %p393 = pneg %p102
        %p394 = pneg %p126
        %p395 = pneg %p123
        %p396 = pneg %p147
        %p397 = pneg %p144
        %p398 = pneg %p168
        %p399 = pneg %p165
        %p400 = pneg %p189
        %p401 = pneg %p186
        %p402 = pneg %p210
        %p403 = pneg %p207
        %p404 = pneg %p231
        %p405 = pneg %p228
        %p406 = pneg %p252
        %p407 = pneg %p249
        %p408 = pneg %p273
        %p409 = pneg %p270
        %p410 = pneg %p299
        %p411 = pneg %p296
        %s412 = sand.u32 %s286, 1
        %s413 = scalar_lea.sflag [#allocation6], %s412
        %s414 = sand.u32 %s286, 1
        %s415 = smul.addr %s414, 128
        %s416 = scalar_lea.vmem [#allocation5], %s415
        %p417 = scmp.lt.s32.totalorder %s32, 3
        %s418 = scalar_select %p417, %s32, 3
        %s419 = smul.addr %s418, 32
        %s420 = smul.addr %s419, 4
        %s421 = scalar_lea.vmem %s1, %s420
        %p422 = scmp.lt.s32.totalorder %s32, 3
        %s423 = scalar_select %p422, %s32, 3
        %s424 = smul.addr %s423, 64
        %s425 = smul.addr %s424, 4
        %s426 = scalar_lea.vmem %s2, %s425
        %p427 = scmp.lt.s32.totalorder %s32, 3
        %s428 = scalar_select %p427, %s32, 3
        %s429 = smul.addr %s428, 32
        %s430 = smul.addr %s429, 8
        %s431 = scalar_lea.vmem %s3, %s430
        %v433 = vld [vmem:[%s11] sm:$0x1]
        %v434 = vld [vmem:[%s11 + $0x1] sm:$0x1]
        %v435 = vld [vmem:[%s11 + $0x2] sm:$0x1]
        %v436 = vld [vmem:[%s11 + $0x3] sm:$0x1]
        %v437 = vld [vmem:[%s11 + $0x4] sm:$0x1]
        %v438 = vld [vmem:[%s11 + $0x5] sm:$0x1]
        %v439 = vld [vmem:[%s11 + $0x6] sm:$0x1]
        %v440 = vld [vmem:[%s11 + $0x7] sm:$0x1]
        %v441 = vlaneseq
        %v442 = vshrl.u32 %v441, 7
        %v443 = vadd.s32 %v442, 8
        %v444 = vadd.s32 %v442, 16
        %v445 = vadd.s32 %v442, 24
        %v446 = vadd.s32 %v442, 32
        %v447 = vadd.s32 %v442, 40
        %v448 = vadd.s32 %v442, 48
        %v449 = vadd.s32 %v442, 56
        %v450 = vadd.s32 %v442, 64
        %v451 = vadd.s32 %v442, 72
        %v452 = vadd.s32 %v442, 80
        %v453 = vadd.s32 %v442, 88
        %v454 = vadd.s32 %v442, 96
        %v455 = vadd.s32 %v442, 104
        %v456 = vadd.s32 %v442, 112
        %v457 = vadd.s32 %v442, 120
        %v458 = vadd.s32 %v442, 128
        %v459 = vadd.s32 %v442, 136
        %v460 = vadd.s32 %v442, 144
        %v461 = vadd.s32 %v442, 152
        %v462 = vadd.s32 %v442, 160
        %v463 = vadd.s32 %v442, 168
        %v464 = vadd.s32 %v442, 176
        %v465 = vadd.s32 %v442, 184
        %v466 = vadd.s32 %v442, 192
        %v467 = vadd.s32 %v442, 200
        %v468 = vadd.s32 %v442, 208
        %v469 = vadd.s32 %v442, 216
        %v470 = vadd.s32 %v442, 224
        %v471 = vadd.s32 %v442, 232
        %v472 = vadd.s32 %v442, 240
        %v473 = vadd.s32 %v442, 248
        %vm474 = vcmp.ge.s32.totalorder %v442, 0
        %vm475 = vcmp.ge.s32.totalorder %v443, 0
        %vm476 = vcmp.ge.s32.totalorder %v444, 0
        %vm477 = vcmp.ge.s32.totalorder %v445, 0
        %vm478 = vcmp.ge.s32.totalorder %v446, 0
        %vm479 = vcmp.ge.s32.totalorder %v447, 0
        %vm480 = vcmp.ge.s32.totalorder %v448, 0
        %vm481 = vcmp.ge.s32.totalorder %v449, 0
        %vm482 = vcmp.ge.s32.totalorder %v450, 0
        %vm483 = vcmp.ge.s32.totalorder %v451, 0
        %vm484 = vcmp.ge.s32.totalorder %v452, 0
        %vm485 = vcmp.ge.s32.totalorder %v453, 0
        %vm486 = vcmp.ge.s32.totalorder %v454, 0
        %vm487 = vcmp.ge.s32.totalorder %v455, 0
        %vm488 = vcmp.ge.s32.totalorder %v456, 0
        %vm489 = vcmp.ge.s32.totalorder %v457, 0
        %vm490 = vcmp.ge.s32.totalorder %v458, 0
        %vm491 = vcmp.ge.s32.totalorder %v459, 0
        %vm492 = vcmp.ge.s32.totalorder %v460, 0
        %vm493 = vcmp.ge.s32.totalorder %v461, 0
        %vm494 = vcmp.ge.s32.totalorder %v462, 0
        %vm495 = vcmp.ge.s32.totalorder %v463, 0
        %vm496 = vcmp.ge.s32.totalorder %v464, 0
        %vm497 = vcmp.ge.s32.totalorder %v465, 0
        %vm498 = vcmp.ge.s32.totalorder %v466, 0
        %vm499 = vcmp.ge.s32.totalorder %v467, 0
        %vm500 = vcmp.ge.s32.totalorder %v468, 0
        %vm501 = vcmp.ge.s32.totalorder %v469, 0
        %vm502 = vcmp.ge.s32.totalorder %v470, 0
        %vm503 = vcmp.ge.s32.totalorder %v471, 0
        %vm504 = vcmp.ge.s32.totalorder %v472, 0
        %vm505 = vcmp.ge.s32.totalorder %v473, 0
        %vm506 = vcmp.lt.s32.totalorder %v442, 16
        %vm507 = vcmp.lt.s32.totalorder %v443, 16
        %vm508 = vcmp.lt.s32.totalorder %v444, 16
        %vm509 = vcmp.lt.s32.totalorder %v445, 16
        %vm510 = vcmp.lt.s32.totalorder %v446, 16
        %vm511 = vcmp.lt.s32.totalorder %v447, 16
        %vm512 = vcmp.lt.s32.totalorder %v448, 16
        %vm513 = vcmp.lt.s32.totalorder %v449, 16
        %vm514 = vcmp.lt.s32.totalorder %v450, 16
        %vm515 = vcmp.lt.s32.totalorder %v451, 16
        %vm516 = vcmp.lt.s32.totalorder %v452, 16
        %vm517 = vcmp.lt.s32.totalorder %v453, 16
        %vm518 = vcmp.lt.s32.totalorder %v454, 16
        %vm519 = vcmp.lt.s32.totalorder %v455, 16
        %vm520 = vcmp.lt.s32.totalorder %v456, 16
        %vm521 = vcmp.lt.s32.totalorder %v457, 16
        %vm522 = vcmp.lt.s32.totalorder %v458, 16
        %vm523 = vcmp.lt.s32.totalorder %v459, 16
        %vm524 = vcmp.lt.s32.totalorder %v460, 16
        %vm525 = vcmp.lt.s32.totalorder %v461, 16
        %vm526 = vcmp.lt.s32.totalorder %v462, 16
        %vm527 = vcmp.lt.s32.totalorder %v463, 16
        %vm528 = vcmp.lt.s32.totalorder %v464, 16
        %vm529 = vcmp.lt.s32.totalorder %v465, 16
        %vm530 = vcmp.lt.s32.totalorder %v466, 16
        %vm531 = vcmp.lt.s32.totalorder %v467, 16
        %vm532 = vcmp.lt.s32.totalorder %v468, 16
        %vm533 = vcmp.lt.s32.totalorder %v469, 16
        %vm534 = vcmp.lt.s32.totalorder %v470, 16
        %vm535 = vcmp.lt.s32.totalorder %v471, 16
        %vm536 = vcmp.lt.s32.totalorder %v472, 16
        %vm537 = vcmp.lt.s32.totalorder %v473, 16
        %vm538 = vmand %vm474, %vm506
        %vm539 = vmand %vm475, %vm507
        %vm540 = vmand %vm476, %vm508
        %vm541 = vmand %vm477, %vm509
        %vm542 = vmand %vm478, %vm510
        %vm543 = vmand %vm479, %vm511
        %vm544 = vmand %vm480, %vm512
        %vm545 = vmand %vm481, %vm513
        %vm546 = vmand %vm482, %vm514
        %vm547 = vmand %vm483, %vm515
        %vm548 = vmand %vm484, %vm516
        %vm549 = vmand %vm485, %vm517
        %vm550 = vmand %vm486, %vm518
        %vm551 = vmand %vm487, %vm519
        %vm552 = vmand %vm488, %vm520
        %vm553 = vmand %vm489, %vm521
        %vm554 = vmand %vm490, %vm522
        %vm555 = vmand %vm491, %vm523
        %vm556 = vmand %vm492, %vm524
        %vm557 = vmand %vm493, %vm525
        %vm558 = vmand %vm494, %vm526
        %vm559 = vmand %vm495, %vm527
        %vm560 = vmand %vm496, %vm528
        %vm561 = vmand %vm497, %vm529
        %vm562 = vmand %vm498, %vm530
        %vm563 = vmand %vm499, %vm531
        %vm564 = vmand %vm500, %vm532
        %vm565 = vmand %vm501, %vm533
        %vm566 = vmand %vm502, %vm534
        %vm567 = vmand %vm503, %vm535
        %vm568 = vmand %vm504, %vm536
        %vm569 = vmand %vm505, %vm537
        %s570 = smul.u32 %s32, 16
        %s571 = sld [smem:[#allocation4 + %s570]]
        %v572 = vstv %s571
        %v573 = vsel %vm538, %v572, 0.0
        %v574 = vsel %vm539, %v572, 0.0
        %v575 = vsel %vm540, %v572, 0.0
        %v576 = vsel %vm541, %v572, 0.0
        %v577 = vsel %vm542, %v572, 0.0
        %v578 = vsel %vm543, %v572, 0.0
        %v579 = vsel %vm544, %v572, 0.0
        %v580 = vsel %vm545, %v572, 0.0
        %v581 = vsel %vm546, %v572, 0.0
        %v582 = vsel %vm547, %v572, 0.0
        %v583 = vsel %vm548, %v572, 0.0
        %v584 = vsel %vm549, %v572, 0.0
        %v585 = vsel %vm550, %v572, 0.0
        %v586 = vsel %vm551, %v572, 0.0
        %v587 = vsel %vm552, %v572, 0.0
        %v588 = vsel %vm553, %v572, 0.0
        %v589 = vsel %vm554, %v572, 0.0
        %v590 = vsel %vm555, %v572, 0.0
        %v591 = vsel %vm556, %v572, 0.0
        %v592 = vsel %vm557, %v572, 0.0
        %v593 = vsel %vm558, %v572, 0.0
        %v594 = vsel %vm559, %v572, 0.0
        %v595 = vsel %vm560, %v572, 0.0
        %v596 = vsel %vm561, %v572, 0.0
        %v597 = vsel %vm562, %v572, 0.0
        %v598 = vsel %vm563, %v572, 0.0
        %v599 = vsel %vm564, %v572, 0.0
        %v600 = vsel %vm565, %v572, 0.0
        %v601 = vsel %vm566, %v572, 0.0
        %v602 = vsel %vm567, %v572, 0.0
        %v603 = vsel %vm568, %v572, 0.0
        %v604 = vsel %vm569, %v572, 0.0
        %vm605 = vcmp.ge.s32.totalorder %v442, 16
        %vm606 = vcmp.ge.s32.totalorder %v443, 16
        %vm607 = vcmp.ge.s32.totalorder %v444, 16
        %vm608 = vcmp.ge.s32.totalorder %v445, 16
        %vm609 = vcmp.ge.s32.totalorder %v446, 16
        %vm610 = vcmp.ge.s32.totalorder %v447, 16
        %vm611 = vcmp.ge.s32.totalorder %v448, 16
        %vm612 = vcmp.ge.s32.totalorder %v449, 16
        %vm613 = vcmp.ge.s32.totalorder %v450, 16
        %vm614 = vcmp.ge.s32.totalorder %v451, 16
        %vm615 = vcmp.ge.s32.totalorder %v452, 16
        %vm616 = vcmp.ge.s32.totalorder %v453, 16
        %vm617 = vcmp.ge.s32.totalorder %v454, 16
        %vm618 = vcmp.ge.s32.totalorder %v455, 16
        %vm619 = vcmp.ge.s32.totalorder %v456, 16
        %vm620 = vcmp.ge.s32.totalorder %v457, 16
        %vm621 = vcmp.ge.s32.totalorder %v458, 16
        %vm622 = vcmp.ge.s32.totalorder %v459, 16
        %vm623 = vcmp.ge.s32.totalorder %v460, 16
        %vm624 = vcmp.ge.s32.totalorder %v461, 16
        %vm625 = vcmp.ge.s32.totalorder %v462, 16
        %vm626 = vcmp.ge.s32.totalorder %v463, 16
        %vm627 = vcmp.ge.s32.totalorder %v464, 16
        %vm628 = vcmp.ge.s32.totalorder %v465, 16
        %vm629 = vcmp.ge.s32.totalorder %v466, 16
        %vm630 = vcmp.ge.s32.totalorder %v467, 16
        %vm631 = vcmp.ge.s32.totalorder %v468, 16
        %vm632 = vcmp.ge.s32.totalorder %v469, 16
        %vm633 = vcmp.ge.s32.totalorder %v470, 16
        %vm634 = vcmp.ge.s32.totalorder %v471, 16
        %vm635 = vcmp.ge.s32.totalorder %v472, 16
        %vm636 = vcmp.ge.s32.totalorder %v473, 16
        %vm637 = vcmp.lt.s32.totalorder %v442, 32
        %vm638 = vcmp.lt.s32.totalorder %v443, 32
        %vm639 = vcmp.lt.s32.totalorder %v444, 32
        %vm640 = vcmp.lt.s32.totalorder %v445, 32
        %vm641 = vcmp.lt.s32.totalorder %v446, 32
        %vm642 = vcmp.lt.s32.totalorder %v447, 32
        %vm643 = vcmp.lt.s32.totalorder %v448, 32
        %vm644 = vcmp.lt.s32.totalorder %v449, 32
        %vm645 = vcmp.lt.s32.totalorder %v450, 32
        %vm646 = vcmp.lt.s32.totalorder %v451, 32
        %vm647 = vcmp.lt.s32.totalorder %v452, 32
        %vm648 = vcmp.lt.s32.totalorder %v453, 32
        %vm649 = vcmp.lt.s32.totalorder %v454, 32
        %vm650 = vcmp.lt.s32.totalorder %v455, 32
        %vm651 = vcmp.lt.s32.totalorder %v456, 32
        %vm652 = vcmp.lt.s32.totalorder %v457, 32
        %vm653 = vcmp.lt.s32.totalorder %v458, 32
        %vm654 = vcmp.lt.s32.totalorder %v459, 32
        %vm655 = vcmp.lt.s32.totalorder %v460, 32
        %vm656 = vcmp.lt.s32.totalorder %v461, 32
        %vm657 = vcmp.lt.s32.totalorder %v462, 32
        %vm658 = vcmp.lt.s32.totalorder %v463, 32
        %vm659 = vcmp.lt.s32.totalorder %v464, 32
        %vm660 = vcmp.lt.s32.totalorder %v465, 32
        %vm661 = vcmp.lt.s32.totalorder %v466, 32
        %vm662 = vcmp.lt.s32.totalorder %v467, 32
        %vm663 = vcmp.lt.s32.totalorder %v468, 32
        %vm664 = vcmp.lt.s32.totalorder %v469, 32
        %vm665 = vcmp.lt.s32.totalorder %v470, 32
        %vm666 = vcmp.lt.s32.totalorder %v471, 32
        %vm667 = vcmp.lt.s32.totalorder %v472, 32
        %vm668 = vcmp.lt.s32.totalorder %v473, 32
        %vm669 = vmand %vm605, %vm637
        %vm670 = vmand %vm606, %vm638
        %vm671 = vmand %vm607, %vm639
        %vm672 = vmand %vm608, %vm640
        %vm673 = vmand %vm609, %vm641
        %vm674 = vmand %vm610, %vm642
        %vm675 = vmand %vm611, %vm643
        %vm676 = vmand %vm612, %vm644
        %vm677 = vmand %vm613, %vm645
        %vm678 = vmand %vm614, %vm646
        %vm679 = vmand %vm615, %vm647
        %vm680 = vmand %vm616, %vm648
        %vm681 = vmand %vm617, %vm649
        %vm682 = vmand %vm618, %vm650
        %vm683 = vmand %vm619, %vm651
        %vm684 = vmand %vm620, %vm652
        %vm685 = vmand %vm621, %vm653
        %vm686 = vmand %vm622, %vm654
        %vm687 = vmand %vm623, %vm655
        %vm688 = vmand %vm624, %vm656
        %vm689 = vmand %vm625, %vm657
        %vm690 = vmand %vm626, %vm658
        %vm691 = vmand %vm627, %vm659
        %vm692 = vmand %vm628, %vm660
        %vm693 = vmand %vm629, %vm661
        %vm694 = vmand %vm630, %vm662
        %vm695 = vmand %vm631, %vm663
        %vm696 = vmand %vm632, %vm664
        %vm697 = vmand %vm633, %vm665
        %vm698 = vmand %vm634, %vm666
        %vm699 = vmand %vm635, %vm667
        %vm700 = vmand %vm636, %vm668
        %s701 = sadd.s32 %s570, 1
        %s702 = sld [smem:[#allocation4 + %s701]]
        %v703 = vstv %s702
        %v704 = vsel %vm669, %v703, %v573
        %v705 = vsel %vm670, %v703, %v574
        %v706 = vsel %vm671, %v703, %v575
        %v707 = vsel %vm672, %v703, %v576
        %v708 = vsel %vm673, %v703, %v577
        %v709 = vsel %vm674, %v703, %v578
        %v710 = vsel %vm675, %v703, %v579
        %v711 = vsel %vm676, %v703, %v580
        %v712 = vsel %vm677, %v703, %v581
        %v713 = vsel %vm678, %v703, %v582
        %v714 = vsel %vm679, %v703, %v583
        %v715 = vsel %vm680, %v703, %v584
        %v716 = vsel %vm681, %v703, %v585
        %v717 = vsel %vm682, %v703, %v586
        %v718 = vsel %vm683, %v703, %v587
        %v719 = vsel %vm684, %v703, %v588
        %v720 = vsel %vm685, %v703, %v589
        %v721 = vsel %vm686, %v703, %v590
        %v722 = vsel %vm687, %v703, %v591
        %v723 = vsel %vm688, %v703, %v592
        %v724 = vsel %vm689, %v703, %v593
        %v725 = vsel %vm690, %v703, %v594
        %v726 = vsel %vm691, %v703, %v595
        %v727 = vsel %vm692, %v703, %v596
        %v728 = vsel %vm693, %v703, %v597
        %v729 = vsel %vm694, %v703, %v598
        %v730 = vsel %vm695, %v703, %v599
        %v731 = vsel %vm696, %v703, %v600
        %v732 = vsel %vm697, %v703, %v601
        %v733 = vsel %vm698, %v703, %v602
        %v734 = vsel %vm699, %v703, %v603
        %v735 = vsel %vm700, %v703, %v604
        %vm736 = vcmp.ge.s32.totalorder %v442, 32
        %vm737 = vcmp.ge.s32.totalorder %v443, 32
        %vm738 = vcmp.ge.s32.totalorder %v444, 32
        %vm739 = vcmp.ge.s32.totalorder %v445, 32
        %vm740 = vcmp.ge.s32.totalorder %v446, 32
        %vm741 = vcmp.ge.s32.totalorder %v447, 32
        %vm742 = vcmp.ge.s32.totalorder %v448, 32
        %vm743 = vcmp.ge.s32.totalorder %v449, 32
        %vm744 = vcmp.ge.s32.totalorder %v450, 32
        %vm745 = vcmp.ge.s32.totalorder %v451, 32
        %vm746 = vcmp.ge.s32.totalorder %v452, 32
        %vm747 = vcmp.ge.s32.totalorder %v453, 32
        %vm748 = vcmp.ge.s32.totalorder %v454, 32
        %vm749 = vcmp.ge.s32.totalorder %v455, 32
        %vm750 = vcmp.ge.s32.totalorder %v456, 32
        %vm751 = vcmp.ge.s32.totalorder %v457, 32
        %vm752 = vcmp.ge.s32.totalorder %v458, 32
        %vm753 = vcmp.ge.s32.totalorder %v459, 32
        %vm754 = vcmp.ge.s32.totalorder %v460, 32
        %vm755 = vcmp.ge.s32.totalorder %v461, 32
        %vm756 = vcmp.ge.s32.totalorder %v462, 32
        %vm757 = vcmp.ge.s32.totalorder %v463, 32
        %vm758 = vcmp.ge.s32.totalorder %v464, 32
        %vm759 = vcmp.ge.s32.totalorder %v465, 32
        %vm760 = vcmp.ge.s32.totalorder %v466, 32
        %vm761 = vcmp.ge.s32.totalorder %v467, 32
        %vm762 = vcmp.ge.s32.totalorder %v468, 32
        %vm763 = vcmp.ge.s32.totalorder %v469, 32
        %vm764 = vcmp.ge.s32.totalorder %v470, 32
        %vm765 = vcmp.ge.s32.totalorder %v471, 32
        %vm766 = vcmp.ge.s32.totalorder %v472, 32
        %vm767 = vcmp.ge.s32.totalorder %v473, 32
        %vm768 = vcmp.lt.s32.totalorder %v442, 48
        %vm769 = vcmp.lt.s32.totalorder %v443, 48
        %vm770 = vcmp.lt.s32.totalorder %v444, 48
        %vm771 = vcmp.lt.s32.totalorder %v445, 48
        %vm772 = vcmp.lt.s32.totalorder %v446, 48
        %vm773 = vcmp.lt.s32.totalorder %v447, 48
        %vm774 = vcmp.lt.s32.totalorder %v448, 48
        %vm775 = vcmp.lt.s32.totalorder %v449, 48
        %vm776 = vcmp.lt.s32.totalorder %v450, 48
        %vm777 = vcmp.lt.s32.totalorder %v451, 48
        %vm778 = vcmp.lt.s32.totalorder %v452, 48
        %vm779 = vcmp.lt.s32.totalorder %v453, 48
        %vm780 = vcmp.lt.s32.totalorder %v454, 48
        %vm781 = vcmp.lt.s32.totalorder %v455, 48
        %vm782 = vcmp.lt.s32.totalorder %v456, 48
        %vm783 = vcmp.lt.s32.totalorder %v457, 48
        %vm784 = vcmp.lt.s32.totalorder %v458, 48
        %vm785 = vcmp.lt.s32.totalorder %v459, 48
        %vm786 = vcmp.lt.s32.totalorder %v460, 48
        %vm787 = vcmp.lt.s32.totalorder %v461, 48
        %vm788 = vcmp.lt.s32.totalorder %v462, 48
        %vm789 = vcmp.lt.s32.totalorder %v463, 48
        %vm790 = vcmp.lt.s32.totalorder %v464, 48
        %vm791 = vcmp.lt.s32.totalorder %v465, 48
        %vm792 = vcmp.lt.s32.totalorder %v466, 48
        %vm793 = vcmp.lt.s32.totalorder %v467, 48
        %vm794 = vcmp.lt.s32.totalorder %v468, 48
        %vm795 = vcmp.lt.s32.totalorder %v469, 48
        %vm796 = vcmp.lt.s32.totalorder %v470, 48
        %vm797 = vcmp.lt.s32.totalorder %v471, 48
        %vm798 = vcmp.lt.s32.totalorder %v472, 48
        %vm799 = vcmp.lt.s32.totalorder %v473, 48
        %vm800 = vmand %vm736, %vm768
        %vm801 = vmand %vm737, %vm769
        %vm802 = vmand %vm738, %vm770
        %vm803 = vmand %vm739, %vm771
        %vm804 = vmand %vm740, %vm772
        %vm805 = vmand %vm741, %vm773
        %vm806 = vmand %vm742, %vm774
        %vm807 = vmand %vm743, %vm775
        %vm808 = vmand %vm744, %vm776
        %vm809 = vmand %vm745, %vm777
        %vm810 = vmand %vm746, %vm778
        %vm811 = vmand %vm747, %vm779
        %vm812 = vmand %vm748, %vm780
        %vm813 = vmand %vm749, %vm781
        %vm814 = vmand %vm750, %vm782
        %vm815 = vmand %vm751, %vm783
        %vm816 = vmand %vm752, %vm784
        %vm817 = vmand %vm753, %vm785
        %vm818 = vmand %vm754, %vm786
        %vm819 = vmand %vm755, %vm787
        %vm820 = vmand %vm756, %vm788
        %vm821 = vmand %vm757, %vm789
        %vm822 = vmand %vm758, %vm790
        %vm823 = vmand %vm759, %vm791
        %vm824 = vmand %vm760, %vm792
        %vm825 = vmand %vm761, %vm793
        %vm826 = vmand %vm762, %vm794
        %vm827 = vmand %vm763, %vm795
        %vm828 = vmand %vm764, %vm796
        %vm829 = vmand %vm765, %vm797
        %vm830 = vmand %vm766, %vm798
        %vm831 = vmand %vm767, %vm799
        %s832 = sadd.s32 %s570, 2
        %s833 = sld [smem:[#allocation4 + %s832]]
        %v834 = vstv %s833
        %v835 = vsel %vm800, %v834, %v704
        %v836 = vsel %vm801, %v834, %v705
        %v837 = vsel %vm802, %v834, %v706
        %v838 = vsel %vm803, %v834, %v707
        %v839 = vsel %vm804, %v834, %v708
        %v840 = vsel %vm805, %v834, %v709
        %v841 = vsel %vm806, %v834, %v710
        %v842 = vsel %vm807, %v834, %v711
        %v843 = vsel %vm808, %v834, %v712
        %v844 = vsel %vm809, %v834, %v713
        %v845 = vsel %vm810, %v834, %v714
        %v846 = vsel %vm811, %v834, %v715
        %v847 = vsel %vm812, %v834, %v716
        %v848 = vsel %vm813, %v834, %v717
        %v849 = vsel %vm814, %v834, %v718
        %v850 = vsel %vm815, %v834, %v719
        %v851 = vsel %vm816, %v834, %v720
        %v852 = vsel %vm817, %v834, %v721
        %v853 = vsel %vm818, %v834, %v722
        %v854 = vsel %vm819, %v834, %v723
        %v855 = vsel %vm820, %v834, %v724
        %v856 = vsel %vm821, %v834, %v725
        %v857 = vsel %vm822, %v834, %v726
        %v858 = vsel %vm823, %v834, %v727
        %v859 = vsel %vm824, %v834, %v728
        %v860 = vsel %vm825, %v834, %v729
        %v861 = vsel %vm826, %v834, %v730
        %v862 = vsel %vm827, %v834, %v731
        %v863 = vsel %vm828, %v834, %v732
        %v864 = vsel %vm829, %v834, %v733
        %v865 = vsel %vm830, %v834, %v734
        %v866 = vsel %vm831, %v834, %v735
        %vm867 = vcmp.ge.s32.totalorder %v442, 48
        %vm868 = vcmp.ge.s32.totalorder %v443, 48
        %vm869 = vcmp.ge.s32.totalorder %v444, 48
        %vm870 = vcmp.ge.s32.totalorder %v445, 48
        %vm871 = vcmp.ge.s32.totalorder %v446, 48
        %vm872 = vcmp.ge.s32.totalorder %v447, 48
        %vm873 = vcmp.ge.s32.totalorder %v448, 48
        %vm874 = vcmp.ge.s32.totalorder %v449, 48
        %vm875 = vcmp.ge.s32.totalorder %v450, 48
        %vm876 = vcmp.ge.s32.totalorder %v451, 48
        %vm877 = vcmp.ge.s32.totalorder %v452, 48
        %vm878 = vcmp.ge.s32.totalorder %v453, 48
        %vm879 = vcmp.ge.s32.totalorder %v454, 48
        %vm880 = vcmp.ge.s32.totalorder %v455, 48
        %vm881 = vcmp.ge.s32.totalorder %v456, 48
        %vm882 = vcmp.ge.s32.totalorder %v457, 48
        %vm883 = vcmp.ge.s32.totalorder %v458, 48
        %vm884 = vcmp.ge.s32.totalorder %v459, 48
        %vm885 = vcmp.ge.s32.totalorder %v460, 48
        %vm886 = vcmp.ge.s32.totalorder %v461, 48
        %vm887 = vcmp.ge.s32.totalorder %v462, 48
        %vm888 = vcmp.ge.s32.totalorder %v463, 48
        %vm889 = vcmp.ge.s32.totalorder %v464, 48
        %vm890 = vcmp.ge.s32.totalorder %v465, 48
        %vm891 = vcmp.ge.s32.totalorder %v466, 48
        %vm892 = vcmp.ge.s32.totalorder %v467, 48
        %vm893 = vcmp.ge.s32.totalorder %v468, 48
        %vm894 = vcmp.ge.s32.totalorder %v469, 48
        %vm895 = vcmp.ge.s32.totalorder %v470, 48
        %vm896 = vcmp.ge.s32.totalorder %v471, 48
        %vm897 = vcmp.ge.s32.totalorder %v472, 48
        %vm898 = vcmp.ge.s32.totalorder %v473, 48
        %vm899 = vcmp.lt.s32.totalorder %v442, 64
        %vm900 = vcmp.lt.s32.totalorder %v443, 64
        %vm901 = vcmp.lt.s32.totalorder %v444, 64
        %vm902 = vcmp.lt.s32.totalorder %v445, 64
        %vm903 = vcmp.lt.s32.totalorder %v446, 64
        %vm904 = vcmp.lt.s32.totalorder %v447, 64
        %vm905 = vcmp.lt.s32.totalorder %v448, 64
        %vm906 = vcmp.lt.s32.totalorder %v449, 64
        %vm907 = vcmp.lt.s32.totalorder %v450, 64
        %vm908 = vcmp.lt.s32.totalorder %v451, 64
        %vm909 = vcmp.lt.s32.totalorder %v452, 64
        %vm910 = vcmp.lt.s32.totalorder %v453, 64
        %vm911 = vcmp.lt.s32.totalorder %v454, 64
        %vm912 = vcmp.lt.s32.totalorder %v455, 64
        %vm913 = vcmp.lt.s32.totalorder %v456, 64
        %vm914 = vcmp.lt.s32.totalorder %v457, 64
        %vm915 = vcmp.lt.s32.totalorder %v458, 64
        %vm916 = vcmp.lt.s32.totalorder %v459, 64
        %vm917 = vcmp.lt.s32.totalorder %v460, 64
        %vm918 = vcmp.lt.s32.totalorder %v461, 64
        %vm919 = vcmp.lt.s32.totalorder %v462, 64
        %vm920 = vcmp.lt.s32.totalorder %v463, 64
        %vm921 = vcmp.lt.s32.totalorder %v464, 64
        %vm922 = vcmp.lt.s32.totalorder %v465, 64
        %vm923 = vcmp.lt.s32.totalorder %v466, 64
        %vm924 = vcmp.lt.s32.totalorder %v467, 64
        %vm925 = vcmp.lt.s32.totalorder %v468, 64
        %vm926 = vcmp.lt.s32.totalorder %v469, 64
        %vm927 = vcmp.lt.s32.totalorder %v470, 64
        %vm928 = vcmp.lt.s32.totalorder %v471, 64
        %vm929 = vcmp.lt.s32.totalorder %v472, 64
        %vm930 = vcmp.lt.s32.totalorder %v473, 64
        %vm931 = vmand %vm867, %vm899
        %vm932 = vmand %vm868, %vm900
        %vm933 = vmand %vm869, %vm901
        %vm934 = vmand %vm870, %vm902
        %vm935 = vmand %vm871, %vm903
        %vm936 = vmand %vm872, %vm904
        %vm937 = vmand %vm873, %vm905
        %vm938 = vmand %vm874, %vm906
        %vm939 = vmand %vm875, %vm907
        %vm940 = vmand %vm876, %vm908
        %vm941 = vmand %vm877, %vm909
        %vm942 = vmand %vm878, %vm910
        %vm943 = vmand %vm879, %vm911
        %vm944 = vmand %vm880, %vm912
        %vm945 = vmand %vm881, %vm913
        %vm946 = vmand %vm882, %vm914
        %vm947 = vmand %vm883, %vm915
        %vm948 = vmand %vm884, %vm916
        %vm949 = vmand %vm885, %vm917
        %vm950 = vmand %vm886, %vm918
        %vm951 = vmand %vm887, %vm919
        %vm952 = vmand %vm888, %vm920
        %vm953 = vmand %vm889, %vm921
        %vm954 = vmand %vm890, %vm922
        %vm955 = vmand %vm891, %vm923
        %vm956 = vmand %vm892, %vm924
        %vm957 = vmand %vm893, %vm925
        %vm958 = vmand %vm894, %vm926
        %vm959 = vmand %vm895, %vm927
        %vm960 = vmand %vm896, %vm928
        %vm961 = vmand %vm897, %vm929
        %vm962 = vmand %vm898, %vm930
        %s963 = sadd.s32 %s570, 3
        %s964 = sld [smem:[#allocation4 + %s963]]
        %v965 = vstv %s964
        %v966 = vsel %vm931, %v965, %v835
        %v967 = vsel %vm932, %v965, %v836
        %v968 = vsel %vm933, %v965, %v837
        %v969 = vsel %vm934, %v965, %v838
        %v970 = vsel %vm935, %v965, %v839
        %v971 = vsel %vm936, %v965, %v840
        %v972 = vsel %vm937, %v965, %v841
        %v973 = vsel %vm938, %v965, %v842
        %v974 = vsel %vm939, %v965, %v843
        %v975 = vsel %vm940, %v965, %v844
        %v976 = vsel %vm941, %v965, %v845
        %v977 = vsel %vm942, %v965, %v846
        %v978 = vsel %vm943, %v965, %v847
        %v979 = vsel %vm944, %v965, %v848
        %v980 = vsel %vm945, %v965, %v849
        %v981 = vsel %vm946, %v965, %v850
        %v982 = vsel %vm947, %v965, %v851
        %v983 = vsel %vm948, %v965, %v852
        %v984 = vsel %vm949, %v965, %v853
        %v985 = vsel %vm950, %v965, %v854
        %v986 = vsel %vm951, %v965, %v855
        %v987 = vsel %vm952, %v965, %v856
        %v988 = vsel %vm953, %v965, %v857
        %v989 = vsel %vm954, %v965, %v858
        %v990 = vsel %vm955, %v965, %v859
        %v991 = vsel %vm956, %v965, %v860
        %v992 = vsel %vm957, %v965, %v861
        %v993 = vsel %vm958, %v965, %v862
        %v994 = vsel %vm959, %v965, %v863
        %v995 = vsel %vm960, %v965, %v864
        %v996 = vsel %vm961, %v965, %v865
        %v997 = vsel %vm962, %v965, %v866
        %vm998 = vcmp.ge.s32.totalorder %v442, 64
        %vm999 = vcmp.ge.s32.totalorder %v443, 64
        %vm1000 = vcmp.ge.s32.totalorder %v444, 64
        %vm1001 = vcmp.ge.s32.totalorder %v445, 64
        %vm1002 = vcmp.ge.s32.totalorder %v446, 64
        %vm1003 = vcmp.ge.s32.totalorder %v447, 64
        %vm1004 = vcmp.ge.s32.totalorder %v448, 64
        %vm1005 = vcmp.ge.s32.totalorder %v449, 64
        %vm1006 = vcmp.ge.s32.totalorder %v450, 64
        %vm1007 = vcmp.ge.s32.totalorder %v451, 64
        %vm1008 = vcmp.ge.s32.totalorder %v452, 64
        %vm1009 = vcmp.ge.s32.totalorder %v453, 64
        %vm1010 = vcmp.ge.s32.totalorder %v454, 64
        %vm1011 = vcmp.ge.s32.totalorder %v455, 64
        %vm1012 = vcmp.ge.s32.totalorder %v456, 64
        %vm1013 = vcmp.ge.s32.totalorder %v457, 64
        %vm1014 = vcmp.ge.s32.totalorder %v458, 64
        %vm1015 = vcmp.ge.s32.totalorder %v459, 64
        %vm1016 = vcmp.ge.s32.totalorder %v460, 64
        %vm1017 = vcmp.ge.s32.totalorder %v461, 64
        %vm1018 = vcmp.ge.s32.totalorder %v462, 64
        %vm1019 = vcmp.ge.s32.totalorder %v463, 64
        %vm1020 = vcmp.ge.s32.totalorder %v464, 64
        %vm1021 = vcmp.ge.s32.totalorder %v465, 64
        %vm1022 = vcmp.ge.s32.totalorder %v466, 64
        %vm1023 = vcmp.ge.s32.totalorder %v467, 64
        %vm1024 = vcmp.ge.s32.totalorder %v468, 64
        %vm1025 = vcmp.ge.s32.totalorder %v469, 64
        %vm1026 = vcmp.ge.s32.totalorder %v470, 64
        %vm1027 = vcmp.ge.s32.totalorder %v471, 64
        %vm1028 = vcmp.ge.s32.totalorder %v472, 64
        %vm1029 = vcmp.ge.s32.totalorder %v473, 64
        %vm1030 = vcmp.lt.s32.totalorder %v442, 80
        %vm1031 = vcmp.lt.s32.totalorder %v443, 80
        %vm1032 = vcmp.lt.s32.totalorder %v444, 80
        %vm1033 = vcmp.lt.s32.totalorder %v445, 80
        %vm1034 = vcmp.lt.s32.totalorder %v446, 80
        %vm1035 = vcmp.lt.s32.totalorder %v447, 80
        %vm1036 = vcmp.lt.s32.totalorder %v448, 80
        %vm1037 = vcmp.lt.s32.totalorder %v449, 80
        %vm1038 = vcmp.lt.s32.totalorder %v450, 80
        %vm1039 = vcmp.lt.s32.totalorder %v451, 80
        %vm1040 = vcmp.lt.s32.totalorder %v452, 80
        %vm1041 = vcmp.lt.s32.totalorder %v453, 80
        %vm1042 = vcmp.lt.s32.totalorder %v454, 80
        %vm1043 = vcmp.lt.s32.totalorder %v455, 80
        %vm1044 = vcmp.lt.s32.totalorder %v456, 80
        %vm1045 = vcmp.lt.s32.totalorder %v457, 80
        %vm1046 = vcmp.lt.s32.totalorder %v458, 80
        %vm1047 = vcmp.lt.s32.totalorder %v459, 80
        %vm1048 = vcmp.lt.s32.totalorder %v460, 80
        %vm1049 = vcmp.lt.s32.totalorder %v461, 80
        %vm1050 = vcmp.lt.s32.totalorder %v462, 80
        %vm1051 = vcmp.lt.s32.totalorder %v463, 80
        %vm1052 = vcmp.lt.s32.totalorder %v464, 80
        %vm1053 = vcmp.lt.s32.totalorder %v465, 80
        %vm1054 = vcmp.lt.s32.totalorder %v466, 80
        %vm1055 = vcmp.lt.s32.totalorder %v467, 80
        %vm1056 = vcmp.lt.s32.totalorder %v468, 80
        %vm1057 = vcmp.lt.s32.totalorder %v469, 80
        %vm1058 = vcmp.lt.s32.totalorder %v470, 80
        %vm1059 = vcmp.lt.s32.totalorder %v471, 80
        %vm1060 = vcmp.lt.s32.totalorder %v472, 80
        %vm1061 = vcmp.lt.s32.totalorder %v473, 80
        %vm1062 = vmand %vm998, %vm1030
        %vm1063 = vmand %vm999, %vm1031
        %vm1064 = vmand %vm1000, %vm1032
        %vm1065 = vmand %vm1001, %vm1033
        %vm1066 = vmand %vm1002, %vm1034
        %vm1067 = vmand %vm1003, %vm1035
        %vm1068 = vmand %vm1004, %vm1036
        %vm1069 = vmand %vm1005, %vm1037
        %vm1070 = vmand %vm1006, %vm1038
        %vm1071 = vmand %vm1007, %vm1039
        %vm1072 = vmand %vm1008, %vm1040
        %vm1073 = vmand %vm1009, %vm1041
        %vm1074 = vmand %vm1010, %vm1042
        %vm1075 = vmand %vm1011, %vm1043
        %vm1076 = vmand %vm1012, %vm1044
        %vm1077 = vmand %vm1013, %vm1045
        %vm1078 = vmand %vm1014, %vm1046
        %vm1079 = vmand %vm1015, %vm1047
        %vm1080 = vmand %vm1016, %vm1048
        %vm1081 = vmand %vm1017, %vm1049
        %vm1082 = vmand %vm1018, %vm1050
        %vm1083 = vmand %vm1019, %vm1051
        %vm1084 = vmand %vm1020, %vm1052
        %vm1085 = vmand %vm1021, %vm1053
        %vm1086 = vmand %vm1022, %vm1054
        %vm1087 = vmand %vm1023, %vm1055
        %vm1088 = vmand %vm1024, %vm1056
        %vm1089 = vmand %vm1025, %vm1057
        %vm1090 = vmand %vm1026, %vm1058
        %vm1091 = vmand %vm1027, %vm1059
        %vm1092 = vmand %vm1028, %vm1060
        %vm1093 = vmand %vm1029, %vm1061
        %s1094 = sadd.s32 %s570, 4
        %s1095 = sld [smem:[#allocation4 + %s1094]]
        %v1096 = vstv %s1095
        %v1097 = vsel %vm1062, %v1096, %v966
        %v1098 = vsel %vm1063, %v1096, %v967
        %v1099 = vsel %vm1064, %v1096, %v968
        %v1100 = vsel %vm1065, %v1096, %v969
        %v1101 = vsel %vm1066, %v1096, %v970
        %v1102 = vsel %vm1067, %v1096, %v971
        %v1103 = vsel %vm1068, %v1096, %v972
        %v1104 = vsel %vm1069, %v1096, %v973
        %v1105 = vsel %vm1070, %v1096, %v974
        %v1106 = vsel %vm1071, %v1096, %v975
        %v1107 = vsel %vm1072, %v1096, %v976
        %v1108 = vsel %vm1073, %v1096, %v977
        %v1109 = vsel %vm1074, %v1096, %v978
        %v1110 = vsel %vm1075, %v1096, %v979
        %v1111 = vsel %vm1076, %v1096, %v980
        %v1112 = vsel %vm1077, %v1096, %v981
        %v1113 = vsel %vm1078, %v1096, %v982
        %v1114 = vsel %vm1079, %v1096, %v983
        %v1115 = vsel %vm1080, %v1096, %v984
        %v1116 = vsel %vm1081, %v1096, %v985
        %v1117 = vsel %vm1082, %v1096, %v986
        %v1118 = vsel %vm1083, %v1096, %v987
        %v1119 = vsel %vm1084, %v1096, %v988
        %v1120 = vsel %vm1085, %v1096, %v989
        %v1121 = vsel %vm1086, %v1096, %v990
        %v1122 = vsel %vm1087, %v1096, %v991
        %v1123 = vsel %vm1088, %v1096, %v992
        %v1124 = vsel %vm1089, %v1096, %v993
        %v1125 = vsel %vm1090, %v1096, %v994
        %v1126 = vsel %vm1091, %v1096, %v995
        %v1127 = vsel %vm1092, %v1096, %v996
        %v1128 = vsel %vm1093, %v1096, %v997
        %vm1129 = vcmp.ge.s32.totalorder %v442, 80
        %vm1130 = vcmp.ge.s32.totalorder %v443, 80
        %vm1131 = vcmp.ge.s32.totalorder %v444, 80
        %vm1132 = vcmp.ge.s32.totalorder %v445, 80
        %vm1133 = vcmp.ge.s32.totalorder %v446, 80
        %vm1134 = vcmp.ge.s32.totalorder %v447, 80
        %vm1135 = vcmp.ge.s32.totalorder %v448, 80
        %vm1136 = vcmp.ge.s32.totalorder %v449, 80
        %vm1137 = vcmp.ge.s32.totalorder %v450, 80
        %vm1138 = vcmp.ge.s32.totalorder %v451, 80
        %vm1139 = vcmp.ge.s32.totalorder %v452, 80
        %vm1140 = vcmp.ge.s32.totalorder %v453, 80
        %vm1141 = vcmp.ge.s32.totalorder %v454, 80
        %vm1142 = vcmp.ge.s32.totalorder %v455, 80
        %vm1143 = vcmp.ge.s32.totalorder %v456, 80
        %vm1144 = vcmp.ge.s32.totalorder %v457, 80
        %vm1145 = vcmp.ge.s32.totalorder %v458, 80
        %vm1146 = vcmp.ge.s32.totalorder %v459, 80
        %vm1147 = vcmp.ge.s32.totalorder %v460, 80
        %vm1148 = vcmp.ge.s32.totalorder %v461, 80
        %vm1149 = vcmp.ge.s32.totalorder %v462, 80
        %vm1150 = vcmp.ge.s32.totalorder %v463, 80
        %vm1151 = vcmp.ge.s32.totalorder %v464, 80
        %vm1152 = vcmp.ge.s32.totalorder %v465, 80
        %vm1153 = vcmp.ge.s32.totalorder %v466, 80
        %vm1154 = vcmp.ge.s32.totalorder %v467, 80
        %vm1155 = vcmp.ge.s32.totalorder %v468, 80
        %vm1156 = vcmp.ge.s32.totalorder %v469, 80
        %vm1157 = vcmp.ge.s32.totalorder %v470, 80
        %vm1158 = vcmp.ge.s32.totalorder %v471, 80
        %vm1159 = vcmp.ge.s32.totalorder %v472, 80
        %vm1160 = vcmp.ge.s32.totalorder %v473, 80
        %vm1161 = vcmp.lt.s32.totalorder %v442, 96
        %vm1162 = vcmp.lt.s32.totalorder %v443, 96
        %vm1163 = vcmp.lt.s32.totalorder %v444, 96
        %vm1164 = vcmp.lt.s32.totalorder %v445, 96
        %vm1165 = vcmp.lt.s32.totalorder %v446, 96
        %vm1166 = vcmp.lt.s32.totalorder %v447, 96
        %vm1167 = vcmp.lt.s32.totalorder %v448, 96
        %vm1168 = vcmp.lt.s32.totalorder %v449, 96
        %vm1169 = vcmp.lt.s32.totalorder %v450, 96
        %vm1170 = vcmp.lt.s32.totalorder %v451, 96
        %vm1171 = vcmp.lt.s32.totalorder %v452, 96
        %vm1172 = vcmp.lt.s32.totalorder %v453, 96
        %vm1173 = vcmp.lt.s32.totalorder %v454, 96
        %vm1174 = vcmp.lt.s32.totalorder %v455, 96
        %vm1175 = vcmp.lt.s32.totalorder %v456, 96
        %vm1176 = vcmp.lt.s32.totalorder %v457, 96
        %vm1177 = vcmp.lt.s32.totalorder %v458, 96
        %vm1178 = vcmp.lt.s32.totalorder %v459, 96
        %vm1179 = vcmp.lt.s32.totalorder %v460, 96
        %vm1180 = vcmp.lt.s32.totalorder %v461, 96
        %vm1181 = vcmp.lt.s32.totalorder %v462, 96
        %vm1182 = vcmp.lt.s32.totalorder %v463, 96
        %vm1183 = vcmp.lt.s32.totalorder %v464, 96
        %vm1184 = vcmp.lt.s32.totalorder %v465, 96
        %vm1185 = vcmp.lt.s32.totalorder %v466, 96
        %vm1186 = vcmp.lt.s32.totalorder %v467, 96
        %vm1187 = vcmp.lt.s32.totalorder %v468, 96
        %vm1188 = vcmp.lt.s32.totalorder %v469, 96
        %vm1189 = vcmp.lt.s32.totalorder %v470, 96
        %vm1190 = vcmp.lt.s32.totalorder %v471, 96
        %vm1191 = vcmp.lt.s32.totalorder %v472, 96
        %vm1192 = vcmp.lt.s32.totalorder %v473, 96
        %vm1193 = vmand %vm1129, %vm1161
        %vm1194 = vmand %vm1130, %vm1162
        %vm1195 = vmand %vm1131, %vm1163
        %vm1196 = vmand %vm1132, %vm1164
        %vm1197 = vmand %vm1133, %vm1165
        %vm1198 = vmand %vm1134, %vm1166
        %vm1199 = vmand %vm1135, %vm1167
        %vm1200 = vmand %vm1136, %vm1168
        %vm1201 = vmand %vm1137, %vm1169
        %vm1202 = vmand %vm1138, %vm1170
        %vm1203 = vmand %vm1139, %vm1171
        %vm1204 = vmand %vm1140, %vm1172
        %vm1205 = vmand %vm1141, %vm1173
        %vm1206 = vmand %vm1142, %vm1174
        %vm1207 = vmand %vm1143, %vm1175
        %vm1208 = vmand %vm1144, %vm1176
        %vm1209 = vmand %vm1145, %vm1177
        %vm1210 = vmand %vm1146, %vm1178
        %vm1211 = vmand %vm1147, %vm1179
        %vm1212 = vmand %vm1148, %vm1180
        %vm1213 = vmand %vm1149, %vm1181
        %vm1214 = vmand %vm1150, %vm1182
        %vm1215 = vmand %vm1151, %vm1183
        %vm1216 = vmand %vm1152, %vm1184
        %vm1217 = vmand %vm1153, %vm1185
        %vm1218 = vmand %vm1154, %vm1186
        %vm1219 = vmand %vm1155, %vm1187
        %vm1220 = vmand %vm1156, %vm1188
        %vm1221 = vmand %vm1157, %vm1189
        %vm1222 = vmand %vm1158, %vm1190
        %vm1223 = vmand %vm1159, %vm1191
        %vm1224 = vmand %vm1160, %vm1192
        %s1225 = sadd.s32 %s570, 5
        %s1226 = sld [smem:[#allocation4 + %s1225]]
        %v1227 = vstv %s1226
        %v1228 = vsel %vm1193, %v1227, %v1097
        %v1229 = vsel %vm1194, %v1227, %v1098
        %v1230 = vsel %vm1195, %v1227, %v1099
        %v1231 = vsel %vm1196, %v1227, %v1100
        %v1232 = vsel %vm1197, %v1227, %v1101
        %v1233 = vsel %vm1198, %v1227, %v1102
        %v1234 = vsel %vm1199, %v1227, %v1103
        %v1235 = vsel %vm1200, %v1227, %v1104
        %v1236 = vsel %vm1201, %v1227, %v1105
        %v1237 = vsel %vm1202, %v1227, %v1106
        %v1238 = vsel %vm1203, %v1227, %v1107
        %v1239 = vsel %vm1204, %v1227, %v1108
        %v1240 = vsel %vm1205, %v1227, %v1109
        %v1241 = vsel %vm1206, %v1227, %v1110
        %v1242 = vsel %vm1207, %v1227, %v1111
        %v1243 = vsel %vm1208, %v1227, %v1112
        %v1244 = vsel %vm1209, %v1227, %v1113
        %v1245 = vsel %vm1210, %v1227, %v1114
        %v1246 = vsel %vm1211, %v1227, %v1115
        %v1247 = vsel %vm1212, %v1227, %v1116
        %v1248 = vsel %vm1213, %v1227, %v1117
        %v1249 = vsel %vm1214, %v1227, %v1118
        %v1250 = vsel %vm1215, %v1227, %v1119
        %v1251 = vsel %vm1216, %v1227, %v1120
        %v1252 = vsel %vm1217, %v1227, %v1121
        %v1253 = vsel %vm1218, %v1227, %v1122
        %v1254 = vsel %vm1219, %v1227, %v1123
        %v1255 = vsel %vm1220, %v1227, %v1124
        %v1256 = vsel %vm1221, %v1227, %v1125
        %v1257 = vsel %vm1222, %v1227, %v1126
        %v1258 = vsel %vm1223, %v1227, %v1127
        %v1259 = vsel %vm1224, %v1227, %v1128
        %vm1260 = vcmp.ge.s32.totalorder %v442, 96
        %vm1261 = vcmp.ge.s32.totalorder %v443, 96
        %vm1262 = vcmp.ge.s32.totalorder %v444, 96
        %vm1263 = vcmp.ge.s32.totalorder %v445, 96
        %vm1264 = vcmp.ge.s32.totalorder %v446, 96
        %vm1265 = vcmp.ge.s32.totalorder %v447, 96
        %vm1266 = vcmp.ge.s32.totalorder %v448, 96
        %vm1267 = vcmp.ge.s32.totalorder %v449, 96
        %vm1268 = vcmp.ge.s32.totalorder %v450, 96
        %vm1269 = vcmp.ge.s32.totalorder %v451, 96
        %vm1270 = vcmp.ge.s32.totalorder %v452, 96
        %vm1271 = vcmp.ge.s32.totalorder %v453, 96
        %vm1272 = vcmp.ge.s32.totalorder %v454, 96
        %vm1273 = vcmp.ge.s32.totalorder %v455, 96
        %vm1274 = vcmp.ge.s32.totalorder %v456, 96
        %vm1275 = vcmp.ge.s32.totalorder %v457, 96
        %vm1276 = vcmp.ge.s32.totalorder %v458, 96
        %vm1277 = vcmp.ge.s32.totalorder %v459, 96
        %vm1278 = vcmp.ge.s32.totalorder %v460, 96
        %vm1279 = vcmp.ge.s32.totalorder %v461, 96
        %vm1280 = vcmp.ge.s32.totalorder %v462, 96
        %vm1281 = vcmp.ge.s32.totalorder %v463, 96
        %vm1282 = vcmp.ge.s32.totalorder %v464, 96
        %vm1283 = vcmp.ge.s32.totalorder %v465, 96
        %vm1284 = vcmp.ge.s32.totalorder %v466, 96
        %vm1285 = vcmp.ge.s32.totalorder %v467, 96
        %vm1286 = vcmp.ge.s32.totalorder %v468, 96
        %vm1287 = vcmp.ge.s32.totalorder %v469, 96
        %vm1288 = vcmp.ge.s32.totalorder %v470, 96
        %vm1289 = vcmp.ge.s32.totalorder %v471, 96
        %vm1290 = vcmp.ge.s32.totalorder %v472, 96
        %vm1291 = vcmp.ge.s32.totalorder %v473, 96
        %vm1292 = vcmp.lt.s32.totalorder %v442, 112
        %vm1293 = vcmp.lt.s32.totalorder %v443, 112
        %vm1294 = vcmp.lt.s32.totalorder %v444, 112
        %vm1295 = vcmp.lt.s32.totalorder %v445, 112
        %vm1296 = vcmp.lt.s32.totalorder %v446, 112
        %vm1297 = vcmp.lt.s32.totalorder %v447, 112
        %vm1298 = vcmp.lt.s32.totalorder %v448, 112
        %vm1299 = vcmp.lt.s32.totalorder %v449, 112
        %vm1300 = vcmp.lt.s32.totalorder %v450, 112
        %vm1301 = vcmp.lt.s32.totalorder %v451, 112
        %vm1302 = vcmp.lt.s32.totalorder %v452, 112
        %vm1303 = vcmp.lt.s32.totalorder %v453, 112
        %vm1304 = vcmp.lt.s32.totalorder %v454, 112
        %vm1305 = vcmp.lt.s32.totalorder %v455, 112
        %vm1306 = vcmp.lt.s32.totalorder %v456, 112
        %vm1307 = vcmp.lt.s32.totalorder %v457, 112
        %vm1308 = vcmp.lt.s32.totalorder %v458, 112
        %vm1309 = vcmp.lt.s32.totalorder %v459, 112
        %vm1310 = vcmp.lt.s32.totalorder %v460, 112
        %vm1311 = vcmp.lt.s32.totalorder %v461, 112
        %vm1312 = vcmp.lt.s32.totalorder %v462, 112
        %vm1313 = vcmp.lt.s32.totalorder %v463, 112
        %vm1314 = vcmp.lt.s32.totalorder %v464, 112
        %vm1315 = vcmp.lt.s32.totalorder %v465, 112
        %vm1316 = vcmp.lt.s32.totalorder %v466, 112
        %vm1317 = vcmp.lt.s32.totalorder %v467, 112
        %vm1318 = vcmp.lt.s32.totalorder %v468, 112
        %vm1319 = vcmp.lt.s32.totalorder %v469, 112
        %vm1320 = vcmp.lt.s32.totalorder %v470, 112
        %vm1321 = vcmp.lt.s32.totalorder %v471, 112
        %vm1322 = vcmp.lt.s32.totalorder %v472, 112
        %vm1323 = vcmp.lt.s32.totalorder %v473, 112
        %vm1324 = vmand %vm1260, %vm1292
        %vm1325 = vmand %vm1261, %vm1293
        %vm1326 = vmand %vm1262, %vm1294
        %vm1327 = vmand %vm1263, %vm1295
        %vm1328 = vmand %vm1264, %vm1296
        %vm1329 = vmand %vm1265, %vm1297
        %vm1330 = vmand %vm1266, %vm1298
        %vm1331 = vmand %vm1267, %vm1299
        %vm1332 = vmand %vm1268, %vm1300
        %vm1333 = vmand %vm1269, %vm1301
        %vm1334 = vmand %vm1270, %vm1302
        %vm1335 = vmand %vm1271, %vm1303
        %vm1336 = vmand %vm1272, %vm1304
        %vm1337 = vmand %vm1273, %vm1305
        %vm1338 = vmand %vm1274, %vm1306
        %vm1339 = vmand %vm1275, %vm1307
        %vm1340 = vmand %vm1276, %vm1308
        %vm1341 = vmand %vm1277, %vm1309
        %vm1342 = vmand %vm1278, %vm1310
        %vm1343 = vmand %vm1279, %vm1311
        %vm1344 = vmand %vm1280, %vm1312
        %vm1345 = vmand %vm1281, %vm1313
        %vm1346 = vmand %vm1282, %vm1314
        %vm1347 = vmand %vm1283, %vm1315
        %vm1348 = vmand %vm1284, %vm1316
        %vm1349 = vmand %vm1285, %vm1317
        %vm1350 = vmand %vm1286, %vm1318
        %vm1351 = vmand %vm1287, %vm1319
        %vm1352 = vmand %vm1288, %vm1320
        %vm1353 = vmand %vm1289, %vm1321
        %vm1354 = vmand %vm1290, %vm1322
        %vm1355 = vmand %vm1291, %vm1323
        %s1356 = sadd.s32 %s570, 6
        %s1357 = sld [smem:[#allocation4 + %s1356]]
        %v1358 = vstv %s1357
        %v1359 = vsel %vm1324, %v1358, %v1228
        %v1360 = vsel %vm1325, %v1358, %v1229
        %v1361 = vsel %vm1326, %v1358, %v1230
        %v1362 = vsel %vm1327, %v1358, %v1231
        %v1363 = vsel %vm1328, %v1358, %v1232
        %v1364 = vsel %vm1329, %v1358, %v1233
        %v1365 = vsel %vm1330, %v1358, %v1234
        %v1366 = vsel %vm1331, %v1358, %v1235
        %v1367 = vsel %vm1332, %v1358, %v1236
        %v1368 = vsel %vm1333, %v1358, %v1237
        %v1369 = vsel %vm1334, %v1358, %v1238
        %v1370 = vsel %vm1335, %v1358, %v1239
        %v1371 = vsel %vm1336, %v1358, %v1240
        %v1372 = vsel %vm1337, %v1358, %v1241
        %v1373 = vsel %vm1338, %v1358, %v1242
        %v1374 = vsel %vm1339, %v1358, %v1243
        %v1375 = vsel %vm1340, %v1358, %v1244
        %v1376 = vsel %vm1341, %v1358, %v1245
        %v1377 = vsel %vm1342, %v1358, %v1246
        %v1378 = vsel %vm1343, %v1358, %v1247
        %v1379 = vsel %vm1344, %v1358, %v1248
        %v1380 = vsel %vm1345, %v1358, %v1249
        %v1381 = vsel %vm1346, %v1358, %v1250
        %v1382 = vsel %vm1347, %v1358, %v1251
        %v1383 = vsel %vm1348, %v1358, %v1252
        %v1384 = vsel %vm1349, %v1358, %v1253
        %v1385 = vsel %vm1350, %v1358, %v1254
        %v1386 = vsel %vm1351, %v1358, %v1255
        %v1387 = vsel %vm1352, %v1358, %v1256
        %v1388 = vsel %vm1353, %v1358, %v1257
        %v1389 = vsel %vm1354, %v1358, %v1258
        %v1390 = vsel %vm1355, %v1358, %v1259
        %vm1391 = vcmp.ge.s32.totalorder %v442, 112
        %vm1392 = vcmp.ge.s32.totalorder %v443, 112
        %vm1393 = vcmp.ge.s32.totalorder %v444, 112
        %vm1394 = vcmp.ge.s32.totalorder %v445, 112
        %vm1395 = vcmp.ge.s32.totalorder %v446, 112
        %vm1396 = vcmp.ge.s32.totalorder %v447, 112
        %vm1397 = vcmp.ge.s32.totalorder %v448, 112
        %vm1398 = vcmp.ge.s32.totalorder %v449, 112
        %vm1399 = vcmp.ge.s32.totalorder %v450, 112
        %vm1400 = vcmp.ge.s32.totalorder %v451, 112
        %vm1401 = vcmp.ge.s32.totalorder %v452, 112
        %vm1402 = vcmp.ge.s32.totalorder %v453, 112
        %vm1403 = vcmp.ge.s32.totalorder %v454, 112
        %vm1404 = vcmp.ge.s32.totalorder %v455, 112
        %vm1405 = vcmp.ge.s32.totalorder %v456, 112
        %vm1406 = vcmp.ge.s32.totalorder %v457, 112
        %vm1407 = vcmp.ge.s32.totalorder %v458, 112
        %vm1408 = vcmp.ge.s32.totalorder %v459, 112
        %vm1409 = vcmp.ge.s32.totalorder %v460, 112
        %vm1410 = vcmp.ge.s32.totalorder %v461, 112
        %vm1411 = vcmp.ge.s32.totalorder %v462, 112
        %vm1412 = vcmp.ge.s32.totalorder %v463, 112
        %vm1413 = vcmp.ge.s32.totalorder %v464, 112
        %vm1414 = vcmp.ge.s32.totalorder %v465, 112
        %vm1415 = vcmp.ge.s32.totalorder %v466, 112
        %vm1416 = vcmp.ge.s32.totalorder %v467, 112
        %vm1417 = vcmp.ge.s32.totalorder %v468, 112
        %vm1418 = vcmp.ge.s32.totalorder %v469, 112
        %vm1419 = vcmp.ge.s32.totalorder %v470, 112
        %vm1420 = vcmp.ge.s32.totalorder %v471, 112
        %vm1421 = vcmp.ge.s32.totalorder %v472, 112
        %vm1422 = vcmp.ge.s32.totalorder %v473, 112
        %vm1423 = vcmp.lt.s32.totalorder %v442, 128
        %vm1424 = vcmp.lt.s32.totalorder %v443, 128
        %vm1425 = vcmp.lt.s32.totalorder %v444, 128
        %vm1426 = vcmp.lt.s32.totalorder %v445, 128
        %vm1427 = vcmp.lt.s32.totalorder %v446, 128
        %vm1428 = vcmp.lt.s32.totalorder %v447, 128
        %vm1429 = vcmp.lt.s32.totalorder %v448, 128
        %vm1430 = vcmp.lt.s32.totalorder %v449, 128
        %vm1431 = vcmp.lt.s32.totalorder %v450, 128
        %vm1432 = vcmp.lt.s32.totalorder %v451, 128
        %vm1433 = vcmp.lt.s32.totalorder %v452, 128
        %vm1434 = vcmp.lt.s32.totalorder %v453, 128
        %vm1435 = vcmp.lt.s32.totalorder %v454, 128
        %vm1436 = vcmp.lt.s32.totalorder %v455, 128
        %vm1437 = vcmp.lt.s32.totalorder %v456, 128
        %vm1438 = vcmp.lt.s32.totalorder %v457, 128
        %vm1439 = vcmp.lt.s32.totalorder %v458, 128
        %vm1440 = vcmp.lt.s32.totalorder %v459, 128
        %vm1441 = vcmp.lt.s32.totalorder %v460, 128
        %vm1442 = vcmp.lt.s32.totalorder %v461, 128
        %vm1443 = vcmp.lt.s32.totalorder %v462, 128
        %vm1444 = vcmp.lt.s32.totalorder %v463, 128
        %vm1445 = vcmp.lt.s32.totalorder %v464, 128
        %vm1446 = vcmp.lt.s32.totalorder %v465, 128
        %vm1447 = vcmp.lt.s32.totalorder %v466, 128
        %vm1448 = vcmp.lt.s32.totalorder %v467, 128
        %vm1449 = vcmp.lt.s32.totalorder %v468, 128
        %vm1450 = vcmp.lt.s32.totalorder %v469, 128
        %vm1451 = vcmp.lt.s32.totalorder %v470, 128
        %vm1452 = vcmp.lt.s32.totalorder %v471, 128
        %vm1453 = vcmp.lt.s32.totalorder %v472, 128
        %vm1454 = vcmp.lt.s32.totalorder %v473, 128
        %vm1455 = vmand %vm1391, %vm1423
        %vm1456 = vmand %vm1392, %vm1424
        %vm1457 = vmand %vm1393, %vm1425
        %vm1458 = vmand %vm1394, %vm1426
        %vm1459 = vmand %vm1395, %vm1427
        %vm1460 = vmand %vm1396, %vm1428
        %vm1461 = vmand %vm1397, %vm1429
        %vm1462 = vmand %vm1398, %vm1430
        %vm1463 = vmand %vm1399, %vm1431
        %vm1464 = vmand %vm1400, %vm1432
        %vm1465 = vmand %vm1401, %vm1433
        %vm1466 = vmand %vm1402, %vm1434
        %vm1467 = vmand %vm1403, %vm1435
        %vm1468 = vmand %vm1404, %vm1436
        %vm1469 = vmand %vm1405, %vm1437
        %vm1470 = vmand %vm1406, %vm1438
        %vm1471 = vmand %vm1407, %vm1439
        %vm1472 = vmand %vm1408, %vm1440
        %vm1473 = vmand %vm1409, %vm1441
        %vm1474 = vmand %vm1410, %vm1442
        %vm1475 = vmand %vm1411, %vm1443
        %vm1476 = vmand %vm1412, %vm1444
        %vm1477 = vmand %vm1413, %vm1445
        %vm1478 = vmand %vm1414, %vm1446
        %vm1479 = vmand %vm1415, %vm1447
        %vm1480 = vmand %vm1416, %vm1448
        %vm1481 = vmand %vm1417, %vm1449
        %vm1482 = vmand %vm1418, %vm1450
        %vm1483 = vmand %vm1419, %vm1451
        %vm1484 = vmand %vm1420, %vm1452
        %vm1485 = vmand %vm1421, %vm1453
        %vm1486 = vmand %vm1422, %vm1454
        %s1487 = sadd.s32 %s570, 7
        %s1488 = sld [smem:[#allocation4 + %s1487]]
        %v1489 = vstv %s1488
        %v1490 = vsel %vm1455, %v1489, %v1359
        %v1491 = vsel %vm1456, %v1489, %v1360
        %v1492 = vsel %vm1457, %v1489, %v1361
        %v1493 = vsel %vm1458, %v1489, %v1362
        %v1494 = vsel %vm1459, %v1489, %v1363
        %v1495 = vsel %vm1460, %v1489, %v1364
        %v1496 = vsel %vm1461, %v1489, %v1365
        %v1497 = vsel %vm1462, %v1489, %v1366
        %v1498 = vsel %vm1463, %v1489, %v1367
        %v1499 = vsel %vm1464, %v1489, %v1368
        %v1500 = vsel %vm1465, %v1489, %v1369
        %v1501 = vsel %vm1466, %v1489, %v1370
        %v1502 = vsel %vm1467, %v1489, %v1371
        %v1503 = vsel %vm1468, %v1489, %v1372
        %v1504 = vsel %vm1469, %v1489, %v1373
        %v1505 = vsel %vm1470, %v1489, %v1374
        %v1506 = vsel %vm1471, %v1489, %v1375
        %v1507 = vsel %vm1472, %v1489, %v1376
        %v1508 = vsel %vm1473, %v1489, %v1377
        %v1509 = vsel %vm1474, %v1489, %v1378
        %v1510 = vsel %vm1475, %v1489, %v1379
        %v1511 = vsel %vm1476, %v1489, %v1380
        %v1512 = vsel %vm1477, %v1489, %v1381
        %v1513 = vsel %vm1478, %v1489, %v1382
        %v1514 = vsel %vm1479, %v1489, %v1383
        %v1515 = vsel %vm1480, %v1489, %v1384
        %v1516 = vsel %vm1481, %v1489, %v1385
        %v1517 = vsel %vm1482, %v1489, %v1386
        %v1518 = vsel %vm1483, %v1489, %v1387
        %v1519 = vsel %vm1484, %v1489, %v1388
        %v1520 = vsel %vm1485, %v1489, %v1389
        %v1521 = vsel %vm1486, %v1489, %v1390
        %vm1522 = vcmp.ge.s32.totalorder %v442, 128
        %vm1523 = vcmp.ge.s32.totalorder %v443, 128
        %vm1524 = vcmp.ge.s32.totalorder %v444, 128
        %vm1525 = vcmp.ge.s32.totalorder %v445, 128
        %vm1526 = vcmp.ge.s32.totalorder %v446, 128
        %vm1527 = vcmp.ge.s32.totalorder %v447, 128
        %vm1528 = vcmp.ge.s32.totalorder %v448, 128
        %vm1529 = vcmp.ge.s32.totalorder %v449, 128
        %vm1530 = vcmp.ge.s32.totalorder %v450, 128
        %vm1531 = vcmp.ge.s32.totalorder %v451, 128
        %vm1532 = vcmp.ge.s32.totalorder %v452, 128
        %vm1533 = vcmp.ge.s32.totalorder %v453, 128
        %vm1534 = vcmp.ge.s32.totalorder %v454, 128
        %vm1535 = vcmp.ge.s32.totalorder %v455, 128
        %vm1536 = vcmp.ge.s32.totalorder %v456, 128
        %vm1537 = vcmp.ge.s32.totalorder %v457, 128
        %vm1538 = vcmp.ge.s32.totalorder %v458, 128
        %vm1539 = vcmp.ge.s32.totalorder %v459, 128
        %vm1540 = vcmp.ge.s32.totalorder %v460, 128
        %vm1541 = vcmp.ge.s32.totalorder %v461, 128
        %vm1542 = vcmp.ge.s32.totalorder %v462, 128
        %vm1543 = vcmp.ge.s32.totalorder %v463, 128
        %vm1544 = vcmp.ge.s32.totalorder %v464, 128
        %vm1545 = vcmp.ge.s32.totalorder %v465, 128
        %vm1546 = vcmp.ge.s32.totalorder %v466, 128
        %vm1547 = vcmp.ge.s32.totalorder %v467, 128
        %vm1548 = vcmp.ge.s32.totalorder %v468, 128
        %vm1549 = vcmp.ge.s32.totalorder %v469, 128
        %vm1550 = vcmp.ge.s32.totalorder %v470, 128
        %vm1551 = vcmp.ge.s32.totalorder %v471, 128
        %vm1552 = vcmp.ge.s32.totalorder %v472, 128
        %vm1553 = vcmp.ge.s32.totalorder %v473, 128
        %vm1554 = vcmp.lt.s32.totalorder %v442, 144
        %vm1555 = vcmp.lt.s32.totalorder %v443, 144
        %vm1556 = vcmp.lt.s32.totalorder %v444, 144
        %vm1557 = vcmp.lt.s32.totalorder %v445, 144
        %vm1558 = vcmp.lt.s32.totalorder %v446, 144
        %vm1559 = vcmp.lt.s32.totalorder %v447, 144
        %vm1560 = vcmp.lt.s32.totalorder %v448, 144
        %vm1561 = vcmp.lt.s32.totalorder %v449, 144
        %vm1562 = vcmp.lt.s32.totalorder %v450, 144
        %vm1563 = vcmp.lt.s32.totalorder %v451, 144
        %vm1564 = vcmp.lt.s32.totalorder %v452, 144
        %vm1565 = vcmp.lt.s32.totalorder %v453, 144
        %vm1566 = vcmp.lt.s32.totalorder %v454, 144
        %vm1567 = vcmp.lt.s32.totalorder %v455, 144
        %vm1568 = vcmp.lt.s32.totalorder %v456, 144
        %vm1569 = vcmp.lt.s32.totalorder %v457, 144
        %vm1570 = vcmp.lt.s32.totalorder %v458, 144
        %vm1571 = vcmp.lt.s32.totalorder %v459, 144
        %vm1572 = vcmp.lt.s32.totalorder %v460, 144
        %vm1573 = vcmp.lt.s32.totalorder %v461, 144
        %vm1574 = vcmp.lt.s32.totalorder %v462, 144
        %vm1575 = vcmp.lt.s32.totalorder %v463, 144
        %vm1576 = vcmp.lt.s32.totalorder %v464, 144
        %vm1577 = vcmp.lt.s32.totalorder %v465, 144
        %vm1578 = vcmp.lt.s32.totalorder %v466, 144
        %vm1579 = vcmp.lt.s32.totalorder %v467, 144
        %vm1580 = vcmp.lt.s32.totalorder %v468, 144
        %vm1581 = vcmp.lt.s32.totalorder %v469, 144
        %vm1582 = vcmp.lt.s32.totalorder %v470, 144
        %vm1583 = vcmp.lt.s32.totalorder %v471, 144
        %vm1584 = vcmp.lt.s32.totalorder %v472, 144
        %vm1585 = vcmp.lt.s32.totalorder %v473, 144
        %vm1586 = vmand %vm1522, %vm1554
        %vm1587 = vmand %vm1523, %vm1555
        %vm1588 = vmand %vm1524, %vm1556
        %vm1589 = vmand %vm1525, %vm1557
        %vm1590 = vmand %vm1526, %vm1558
        %vm1591 = vmand %vm1527, %vm1559
        %vm1592 = vmand %vm1528, %vm1560
        %vm1593 = vmand %vm1529, %vm1561
        %vm1594 = vmand %vm1530, %vm1562
        %vm1595 = vmand %vm1531, %vm1563
        %vm1596 = vmand %vm1532, %vm1564
        %vm1597 = vmand %vm1533, %vm1565
        %vm1598 = vmand %vm1534, %vm1566
        %vm1599 = vmand %vm1535, %vm1567
        %vm1600 = vmand %vm1536, %vm1568
        %vm1601 = vmand %vm1537, %vm1569
        %vm1602 = vmand %vm1538, %vm1570
        %vm1603 = vmand %vm1539, %vm1571
        %vm1604 = vmand %vm1540, %vm1572
        %vm1605 = vmand %vm1541, %vm1573
        %vm1606 = vmand %vm1542, %vm1574
        %vm1607 = vmand %vm1543, %vm1575
        %vm1608 = vmand %vm1544, %vm1576
        %vm1609 = vmand %vm1545, %vm1577
        %vm1610 = vmand %vm1546, %vm1578
        %vm1611 = vmand %vm1547, %vm1579
        %vm1612 = vmand %vm1548, %vm1580
        %vm1613 = vmand %vm1549, %vm1581
        %vm1614 = vmand %vm1550, %vm1582
        %vm1615 = vmand %vm1551, %vm1583
        %vm1616 = vmand %vm1552, %vm1584
        %vm1617 = vmand %vm1553, %vm1585
        %s1618 = sadd.s32 %s570, 8
        %s1619 = sld [smem:[#allocation4 + %s1618]]
        %v1620 = vstv %s1619
        %v1621 = vsel %vm1586, %v1620, %v1490
        %v1622 = vsel %vm1587, %v1620, %v1491
        %v1623 = vsel %vm1588, %v1620, %v1492
        %v1624 = vsel %vm1589, %v1620, %v1493
        %v1625 = vsel %vm1590, %v1620, %v1494
        %v1626 = vsel %vm1591, %v1620, %v1495
        %v1627 = vsel %vm1592, %v1620, %v1496
        %v1628 = vsel %vm1593, %v1620, %v1497
        %v1629 = vsel %vm1594, %v1620, %v1498
        %v1630 = vsel %vm1595, %v1620, %v1499
        %v1631 = vsel %vm1596, %v1620, %v1500
        %v1632 = vsel %vm1597, %v1620, %v1501
        %v1633 = vsel %vm1598, %v1620, %v1502
        %v1634 = vsel %vm1599, %v1620, %v1503
        %v1635 = vsel %vm1600, %v1620, %v1504
        %v1636 = vsel %vm1601, %v1620, %v1505
        %v1637 = vsel %vm1602, %v1620, %v1506
        %v1638 = vsel %vm1603, %v1620, %v1507
        %v1639 = vsel %vm1604, %v1620, %v1508
        %v1640 = vsel %vm1605, %v1620, %v1509
        %v1641 = vsel %vm1606, %v1620, %v1510
        %v1642 = vsel %vm1607, %v1620, %v1511
        %v1643 = vsel %vm1608, %v1620, %v1512
        %v1644 = vsel %vm1609, %v1620, %v1513
        %v1645 = vsel %vm1610, %v1620, %v1514
        %v1646 = vsel %vm1611, %v1620, %v1515
        %v1647 = vsel %vm1612, %v1620, %v1516
        %v1648 = vsel %vm1613, %v1620, %v1517
        %v1649 = vsel %vm1614, %v1620, %v1518
        %v1650 = vsel %vm1615, %v1620, %v1519
        %v1651 = vsel %vm1616, %v1620, %v1520
        %v1652 = vsel %vm1617, %v1620, %v1521
        %vm1653 = vcmp.ge.s32.totalorder %v442, 144
        %vm1654 = vcmp.ge.s32.totalorder %v443, 144
        %vm1655 = vcmp.ge.s32.totalorder %v444, 144
        %vm1656 = vcmp.ge.s32.totalorder %v445, 144
        %vm1657 = vcmp.ge.s32.totalorder %v446, 144
        %vm1658 = vcmp.ge.s32.totalorder %v447, 144
        %vm1659 = vcmp.ge.s32.totalorder %v448, 144
        %vm1660 = vcmp.ge.s32.totalorder %v449, 144
        %vm1661 = vcmp.ge.s32.totalorder %v450, 144
        %vm1662 = vcmp.ge.s32.totalorder %v451, 144
        %vm1663 = vcmp.ge.s32.totalorder %v452, 144
        %vm1664 = vcmp.ge.s32.totalorder %v453, 144
        %vm1665 = vcmp.ge.s32.totalorder %v454, 144
        %vm1666 = vcmp.ge.s32.totalorder %v455, 144
        %vm1667 = vcmp.ge.s32.totalorder %v456, 144
        %vm1668 = vcmp.ge.s32.totalorder %v457, 144
        %vm1669 = vcmp.ge.s32.totalorder %v458, 144
        %vm1670 = vcmp.ge.s32.totalorder %v459, 144
        %vm1671 = vcmp.ge.s32.totalorder %v460, 144
        %vm1672 = vcmp.ge.s32.totalorder %v461, 144
        %vm1673 = vcmp.ge.s32.totalorder %v462, 144
        %vm1674 = vcmp.ge.s32.totalorder %v463, 144
        %vm1675 = vcmp.ge.s32.totalorder %v464, 144
        %vm1676 = vcmp.ge.s32.totalorder %v465, 144
        %vm1677 = vcmp.ge.s32.totalorder %v466, 144
        %vm1678 = vcmp.ge.s32.totalorder %v467, 144
        %vm1679 = vcmp.ge.s32.totalorder %v468, 144
        %vm1680 = vcmp.ge.s32.totalorder %v469, 144
        %vm1681 = vcmp.ge.s32.totalorder %v470, 144
        %vm1682 = vcmp.ge.s32.totalorder %v471, 144
        %vm1683 = vcmp.ge.s32.totalorder %v472, 144
        %vm1684 = vcmp.ge.s32.totalorder %v473, 144
        %vm1685 = vcmp.lt.s32.totalorder %v442, 160
        %vm1686 = vcmp.lt.s32.totalorder %v443, 160
        %vm1687 = vcmp.lt.s32.totalorder %v444, 160
        %vm1688 = vcmp.lt.s32.totalorder %v445, 160
        %vm1689 = vcmp.lt.s32.totalorder %v446, 160
        %vm1690 = vcmp.lt.s32.totalorder %v447, 160
        %vm1691 = vcmp.lt.s32.totalorder %v448, 160
        %vm1692 = vcmp.lt.s32.totalorder %v449, 160
        %vm1693 = vcmp.lt.s32.totalorder %v450, 160
        %vm1694 = vcmp.lt.s32.totalorder %v451, 160
        %vm1695 = vcmp.lt.s32.totalorder %v452, 160
        %vm1696 = vcmp.lt.s32.totalorder %v453, 160
        %vm1697 = vcmp.lt.s32.totalorder %v454, 160
        %vm1698 = vcmp.lt.s32.totalorder %v455, 160
        %vm1699 = vcmp.lt.s32.totalorder %v456, 160
        %vm1700 = vcmp.lt.s32.totalorder %v457, 160
        %vm1701 = vcmp.lt.s32.totalorder %v458, 160
        %vm1702 = vcmp.lt.s32.totalorder %v459, 160
        %vm1703 = vcmp.lt.s32.totalorder %v460, 160
        %vm1704 = vcmp.lt.s32.totalorder %v461, 160
        %vm1705 = vcmp.lt.s32.totalorder %v462, 160
        %vm1706 = vcmp.lt.s32.totalorder %v463, 160
        %vm1707 = vcmp.lt.s32.totalorder %v464, 160
        %vm1708 = vcmp.lt.s32.totalorder %v465, 160
        %vm1709 = vcmp.lt.s32.totalorder %v466, 160
        %vm1710 = vcmp.lt.s32.totalorder %v467, 160
        %vm1711 = vcmp.lt.s32.totalorder %v468, 160
        %vm1712 = vcmp.lt.s32.totalorder %v469, 160
        %vm1713 = vcmp.lt.s32.totalorder %v470, 160
        %vm1714 = vcmp.lt.s32.totalorder %v471, 160
        %vm1715 = vcmp.lt.s32.totalorder %v472, 160
        %vm1716 = vcmp.lt.s32.totalorder %v473, 160
        %vm1717 = vmand %vm1653, %vm1685
        %vm1718 = vmand %vm1654, %vm1686
        %vm1719 = vmand %vm1655, %vm1687
        %vm1720 = vmand %vm1656, %vm1688
        %vm1721 = vmand %vm1657, %vm1689
        %vm1722 = vmand %vm1658, %vm1690
        %vm1723 = vmand %vm1659, %vm1691
        %vm1724 = vmand %vm1660, %vm1692
        %vm1725 = vmand %vm1661, %vm1693
        %vm1726 = vmand %vm1662, %vm1694
        %vm1727 = vmand %vm1663, %vm1695
        %vm1728 = vmand %vm1664, %vm1696
        %vm1729 = vmand %vm1665, %vm1697
        %vm1730 = vmand %vm1666, %vm1698
        %vm1731 = vmand %vm1667, %vm1699
        %vm1732 = vmand %vm1668, %vm1700
        %vm1733 = vmand %vm1669, %vm1701
        %vm1734 = vmand %vm1670, %vm1702
        %vm1735 = vmand %vm1671, %vm1703
        %vm1736 = vmand %vm1672, %vm1704
        %vm1737 = vmand %vm1673, %vm1705
        %vm1738 = vmand %vm1674, %vm1706
        %vm1739 = vmand %vm1675, %vm1707
        %vm1740 = vmand %vm1676, %vm1708
        %vm1741 = vmand %vm1677, %vm1709
        %vm1742 = vmand %vm1678, %vm1710
        %vm1743 = vmand %vm1679, %vm1711
        %vm1744 = vmand %vm1680, %vm1712
        %vm1745 = vmand %vm1681, %vm1713
        %vm1746 = vmand %vm1682, %vm1714
        %vm1747 = vmand %vm1683, %vm1715
        %vm1748 = vmand %vm1684, %vm1716
        %s1749 = sadd.s32 %s570, 9
        %s1750 = sld [smem:[#allocation4 + %s1749]]
        %v1751 = vstv %s1750
        %v1752 = vsel %vm1717, %v1751, %v1621
        %v1753 = vsel %vm1718, %v1751, %v1622
        %v1754 = vsel %vm1719, %v1751, %v1623
        %v1755 = vsel %vm1720, %v1751, %v1624
        %v1756 = vsel %vm1721, %v1751, %v1625
        %v1757 = vsel %vm1722, %v1751, %v1626
        %v1758 = vsel %vm1723, %v1751, %v1627
        %v1759 = vsel %vm1724, %v1751, %v1628
        %v1760 = vsel %vm1725, %v1751, %v1629
        %v1761 = vsel %vm1726, %v1751, %v1630
        %v1762 = vsel %vm1727, %v1751, %v1631
        %v1763 = vsel %vm1728, %v1751, %v1632
        %v1764 = vsel %vm1729, %v1751, %v1633
        %v1765 = vsel %vm1730, %v1751, %v1634
        %v1766 = vsel %vm1731, %v1751, %v1635
        %v1767 = vsel %vm1732, %v1751, %v1636
        %v1768 = vsel %vm1733, %v1751, %v1637
        %v1769 = vsel %vm1734, %v1751, %v1638
        %v1770 = vsel %vm1735, %v1751, %v1639
        %v1771 = vsel %vm1736, %v1751, %v1640
        %v1772 = vsel %vm1737, %v1751, %v1641
        %v1773 = vsel %vm1738, %v1751, %v1642
        %v1774 = vsel %vm1739, %v1751, %v1643
        %v1775 = vsel %vm1740, %v1751, %v1644
        %v1776 = vsel %vm1741, %v1751, %v1645
        %v1777 = vsel %vm1742, %v1751, %v1646
        %v1778 = vsel %vm1743, %v1751, %v1647
        %v1779 = vsel %vm1744, %v1751, %v1648
        %v1780 = vsel %vm1745, %v1751, %v1649
        %v1781 = vsel %vm1746, %v1751, %v1650
        %v1782 = vsel %vm1747, %v1751, %v1651
        %v1783 = vsel %vm1748, %v1751, %v1652
        %vm1784 = vcmp.ge.s32.totalorder %v442, 160
        %vm1785 = vcmp.ge.s32.totalorder %v443, 160
        %vm1786 = vcmp.ge.s32.totalorder %v444, 160
        %vm1787 = vcmp.ge.s32.totalorder %v445, 160
        %vm1788 = vcmp.ge.s32.totalorder %v446, 160
        %vm1789 = vcmp.ge.s32.totalorder %v447, 160
        %vm1790 = vcmp.ge.s32.totalorder %v448, 160
        %vm1791 = vcmp.ge.s32.totalorder %v449, 160
        %vm1792 = vcmp.ge.s32.totalorder %v450, 160
        %vm1793 = vcmp.ge.s32.totalorder %v451, 160
        %vm1794 = vcmp.ge.s32.totalorder %v452, 160
        %vm1795 = vcmp.ge.s32.totalorder %v453, 160
        %vm1796 = vcmp.ge.s32.totalorder %v454, 160
        %vm1797 = vcmp.ge.s32.totalorder %v455, 160
        %vm1798 = vcmp.ge.s32.totalorder %v456, 160
        %vm1799 = vcmp.ge.s32.totalorder %v457, 160
        %vm1800 = vcmp.ge.s32.totalorder %v458, 160
        %vm1801 = vcmp.ge.s32.totalorder %v459, 160
        %vm1802 = vcmp.ge.s32.totalorder %v460, 160
        %vm1803 = vcmp.ge.s32.totalorder %v461, 160
        %vm1804 = vcmp.ge.s32.totalorder %v462, 160
        %vm1805 = vcmp.ge.s32.totalorder %v463, 160
        %vm1806 = vcmp.ge.s32.totalorder %v464, 160
        %vm1807 = vcmp.ge.s32.totalorder %v465, 160
        %vm1808 = vcmp.ge.s32.totalorder %v466, 160
        %vm1809 = vcmp.ge.s32.totalorder %v467, 160
        %vm1810 = vcmp.ge.s32.totalorder %v468, 160
        %vm1811 = vcmp.ge.s32.totalorder %v469, 160
        %vm1812 = vcmp.ge.s32.totalorder %v470, 160
        %vm1813 = vcmp.ge.s32.totalorder %v471, 160
        %vm1814 = vcmp.ge.s32.totalorder %v472, 160
        %vm1815 = vcmp.ge.s32.totalorder %v473, 160
        %vm1816 = vcmp.lt.s32.totalorder %v442, 176
        %vm1817 = vcmp.lt.s32.totalorder %v443, 176
        %vm1818 = vcmp.lt.s32.totalorder %v444, 176
        %vm1819 = vcmp.lt.s32.totalorder %v445, 176
        %vm1820 = vcmp.lt.s32.totalorder %v446, 176
        %vm1821 = vcmp.lt.s32.totalorder %v447, 176
        %vm1822 = vcmp.lt.s32.totalorder %v448, 176
        %vm1823 = vcmp.lt.s32.totalorder %v449, 176
        %vm1824 = vcmp.lt.s32.totalorder %v450, 176
        %vm1825 = vcmp.lt.s32.totalorder %v451, 176
        %vm1826 = vcmp.lt.s32.totalorder %v452, 176
        %vm1827 = vcmp.lt.s32.totalorder %v453, 176
        %vm1828 = vcmp.lt.s32.totalorder %v454, 176
        %vm1829 = vcmp.lt.s32.totalorder %v455, 176
        %vm1830 = vcmp.lt.s32.totalorder %v456, 176
        %vm1831 = vcmp.lt.s32.totalorder %v457, 176
        %vm1832 = vcmp.lt.s32.totalorder %v458, 176
        %vm1833 = vcmp.lt.s32.totalorder %v459, 176
        %vm1834 = vcmp.lt.s32.totalorder %v460, 176
        %vm1835 = vcmp.lt.s32.totalorder %v461, 176
        %vm1836 = vcmp.lt.s32.totalorder %v462, 176
        %vm1837 = vcmp.lt.s32.totalorder %v463, 176
        %vm1838 = vcmp.lt.s32.totalorder %v464, 176
        %vm1839 = vcmp.lt.s32.totalorder %v465, 176
        %vm1840 = vcmp.lt.s32.totalorder %v466, 176
        %vm1841 = vcmp.lt.s32.totalorder %v467, 176
        %vm1842 = vcmp.lt.s32.totalorder %v468, 176
        %vm1843 = vcmp.lt.s32.totalorder %v469, 176
        %vm1844 = vcmp.lt.s32.totalorder %v470, 176
        %vm1845 = vcmp.lt.s32.totalorder %v471, 176
        %vm1846 = vcmp.lt.s32.totalorder %v472, 176
        %vm1847 = vcmp.lt.s32.totalorder %v473, 176
        %vm1848 = vmand %vm1784, %vm1816
        %vm1849 = vmand %vm1785, %vm1817
        %vm1850 = vmand %vm1786, %vm1818
        %vm1851 = vmand %vm1787, %vm1819
        %vm1852 = vmand %vm1788, %vm1820
        %vm1853 = vmand %vm1789, %vm1821
        %vm1854 = vmand %vm1790, %vm1822
        %vm1855 = vmand %vm1791, %vm1823
        %vm1856 = vmand %vm1792, %vm1824
        %vm1857 = vmand %vm1793, %vm1825
        %vm1858 = vmand %vm1794, %vm1826
        %vm1859 = vmand %vm1795, %vm1827
        %vm1860 = vmand %vm1796, %vm1828
        %vm1861 = vmand %vm1797, %vm1829
        %vm1862 = vmand %vm1798, %vm1830
        %vm1863 = vmand %vm1799, %vm1831
        %vm1864 = vmand %vm1800, %vm1832
        %vm1865 = vmand %vm1801, %vm1833
        %vm1866 = vmand %vm1802, %vm1834
        %vm1867 = vmand %vm1803, %vm1835
        %vm1868 = vmand %vm1804, %vm1836
        %vm1869 = vmand %vm1805, %vm1837
        %vm1870 = vmand %vm1806, %vm1838
        %vm1871 = vmand %vm1807, %vm1839
        %vm1872 = vmand %vm1808, %vm1840
        %vm1873 = vmand %vm1809, %vm1841
        %vm1874 = vmand %vm1810, %vm1842
        %vm1875 = vmand %vm1811, %vm1843
        %vm1876 = vmand %vm1812, %vm1844
        %vm1877 = vmand %vm1813, %vm1845
        %vm1878 = vmand %vm1814, %vm1846
        %vm1879 = vmand %vm1815, %vm1847
        %s1880 = sadd.s32 %s570, 10
        %s1881 = sld [smem:[#allocation4 + %s1880]]
        %v1882 = vstv %s1881
        %v1883 = vsel %vm1848, %v1882, %v1752
        %v1884 = vsel %vm1849, %v1882, %v1753
        %v1885 = vsel %vm1850, %v1882, %v1754
        %v1886 = vsel %vm1851, %v1882, %v1755
        %v1887 = vsel %vm1852, %v1882, %v1756
        %v1888 = vsel %vm1853, %v1882, %v1757
        %v1889 = vsel %vm1854, %v1882, %v1758
        %v1890 = vsel %vm1855, %v1882, %v1759
        %v1891 = vsel %vm1856, %v1882, %v1760
        %v1892 = vsel %vm1857, %v1882, %v1761
        %v1893 = vsel %vm1858, %v1882, %v1762
        %v1894 = vsel %vm1859, %v1882, %v1763
        %v1895 = vsel %vm1860, %v1882, %v1764
        %v1896 = vsel %vm1861, %v1882, %v1765
        %v1897 = vsel %vm1862, %v1882, %v1766
        %v1898 = vsel %vm1863, %v1882, %v1767
        %v1899 = vsel %vm1864, %v1882, %v1768
        %v1900 = vsel %vm1865, %v1882, %v1769
        %v1901 = vsel %vm1866, %v1882, %v1770
        %v1902 = vsel %vm1867, %v1882, %v1771
        %v1903 = vsel %vm1868, %v1882, %v1772
        %v1904 = vsel %vm1869, %v1882, %v1773
        %v1905 = vsel %vm1870, %v1882, %v1774
        %v1906 = vsel %vm1871, %v1882, %v1775
        %v1907 = vsel %vm1872, %v1882, %v1776
        %v1908 = vsel %vm1873, %v1882, %v1777
        %v1909 = vsel %vm1874, %v1882, %v1778
        %v1910 = vsel %vm1875, %v1882, %v1779
        %v1911 = vsel %vm1876, %v1882, %v1780
        %v1912 = vsel %vm1877, %v1882, %v1781
        %v1913 = vsel %vm1878, %v1882, %v1782
        %v1914 = vsel %vm1879, %v1882, %v1783
        %vm1915 = vcmp.ge.s32.totalorder %v442, 176
        %vm1916 = vcmp.ge.s32.totalorder %v443, 176
        %vm1917 = vcmp.ge.s32.totalorder %v444, 176
        %vm1918 = vcmp.ge.s32.totalorder %v445, 176
        %vm1919 = vcmp.ge.s32.totalorder %v446, 176
        %vm1920 = vcmp.ge.s32.totalorder %v447, 176
        %vm1921 = vcmp.ge.s32.totalorder %v448, 176
        %vm1922 = vcmp.ge.s32.totalorder %v449, 176
        %vm1923 = vcmp.ge.s32.totalorder %v450, 176
        %vm1924 = vcmp.ge.s32.totalorder %v451, 176
        %vm1925 = vcmp.ge.s32.totalorder %v452, 176
        %vm1926 = vcmp.ge.s32.totalorder %v453, 176
        %vm1927 = vcmp.ge.s32.totalorder %v454, 176
        %vm1928 = vcmp.ge.s32.totalorder %v455, 176
        %vm1929 = vcmp.ge.s32.totalorder %v456, 176
        %vm1930 = vcmp.ge.s32.totalorder %v457, 176
        %vm1931 = vcmp.ge.s32.totalorder %v458, 176
        %vm1932 = vcmp.ge.s32.totalorder %v459, 176
        %vm1933 = vcmp.ge.s32.totalorder %v460, 176
        %vm1934 = vcmp.ge.s32.totalorder %v461, 176
        %vm1935 = vcmp.ge.s32.totalorder %v462, 176
        %vm1936 = vcmp.ge.s32.totalorder %v463, 176
        %vm1937 = vcmp.ge.s32.totalorder %v464, 176
        %vm1938 = vcmp.ge.s32.totalorder %v465, 176
        %vm1939 = vcmp.ge.s32.totalorder %v466, 176
        %vm1940 = vcmp.ge.s32.totalorder %v467, 176
        %vm1941 = vcmp.ge.s32.totalorder %v468, 176
        %vm1942 = vcmp.ge.s32.totalorder %v469, 176
        %vm1943 = vcmp.ge.s32.totalorder %v470, 176
        %vm1944 = vcmp.ge.s32.totalorder %v471, 176
        %vm1945 = vcmp.ge.s32.totalorder %v472, 176
        %vm1946 = vcmp.ge.s32.totalorder %v473, 176
        %vm1947 = vcmp.lt.s32.totalorder %v442, 192
        %vm1948 = vcmp.lt.s32.totalorder %v443, 192
        %vm1949 = vcmp.lt.s32.totalorder %v444, 192
        %vm1950 = vcmp.lt.s32.totalorder %v445, 192
        %vm1951 = vcmp.lt.s32.totalorder %v446, 192
        %vm1952 = vcmp.lt.s32.totalorder %v447, 192
        %vm1953 = vcmp.lt.s32.totalorder %v448, 192
        %vm1954 = vcmp.lt.s32.totalorder %v449, 192
        %vm1955 = vcmp.lt.s32.totalorder %v450, 192
        %vm1956 = vcmp.lt.s32.totalorder %v451, 192
        %vm1957 = vcmp.lt.s32.totalorder %v452, 192
        %vm1958 = vcmp.lt.s32.totalorder %v453, 192
        %vm1959 = vcmp.lt.s32.totalorder %v454, 192
        %vm1960 = vcmp.lt.s32.totalorder %v455, 192
        %vm1961 = vcmp.lt.s32.totalorder %v456, 192
        %vm1962 = vcmp.lt.s32.totalorder %v457, 192
        %vm1963 = vcmp.lt.s32.totalorder %v458, 192
        %vm1964 = vcmp.lt.s32.totalorder %v459, 192
        %vm1965 = vcmp.lt.s32.totalorder %v460, 192
        %vm1966 = vcmp.lt.s32.totalorder %v461, 192
        %vm1967 = vcmp.lt.s32.totalorder %v462, 192
        %vm1968 = vcmp.lt.s32.totalorder %v463, 192
        %vm1969 = vcmp.lt.s32.totalorder %v464, 192
        %vm1970 = vcmp.lt.s32.totalorder %v465, 192
        %vm1971 = vcmp.lt.s32.totalorder %v466, 192
        %vm1972 = vcmp.lt.s32.totalorder %v467, 192
        %vm1973 = vcmp.lt.s32.totalorder %v468, 192
        %vm1974 = vcmp.lt.s32.totalorder %v469, 192
        %vm1975 = vcmp.lt.s32.totalorder %v470, 192
        %vm1976 = vcmp.lt.s32.totalorder %v471, 192
        %vm1977 = vcmp.lt.s32.totalorder %v472, 192
        %vm1978 = vcmp.lt.s32.totalorder %v473, 192
        %vm1979 = vmand %vm1915, %vm1947
        %vm1980 = vmand %vm1916, %vm1948
        %vm1981 = vmand %vm1917, %vm1949
        %vm1982 = vmand %vm1918, %vm1950
        %vm1983 = vmand %vm1919, %vm1951
        %vm1984 = vmand %vm1920, %vm1952
        %vm1985 = vmand %vm1921, %vm1953
        %vm1986 = vmand %vm1922, %vm1954
        %vm1987 = vmand %vm1923, %vm1955
        %vm1988 = vmand %vm1924, %vm1956
        %vm1989 = vmand %vm1925, %vm1957
        %vm1990 = vmand %vm1926, %vm1958
        %vm1991 = vmand %vm1927, %vm1959
        %vm1992 = vmand %vm1928, %vm1960
        %vm1993 = vmand %vm1929, %vm1961
        %vm1994 = vmand %vm1930, %vm1962
        %vm1995 = vmand %vm1931, %vm1963
        %vm1996 = vmand %vm1932, %vm1964
        %vm1997 = vmand %vm1933, %vm1965
        %vm1998 = vmand %vm1934, %vm1966
        %vm1999 = vmand %vm1935, %vm1967
        %vm2000 = vmand %vm1936, %vm1968
        %vm2001 = vmand %vm1937, %vm1969
        %vm2002 = vmand %vm1938, %vm1970
        %vm2003 = vmand %vm1939, %vm1971
        %vm2004 = vmand %vm1940, %vm1972
        %vm2005 = vmand %vm1941, %vm1973
        %vm2006 = vmand %vm1942, %vm1974
        %vm2007 = vmand %vm1943, %vm1975
        %vm2008 = vmand %vm1944, %vm1976
        %vm2009 = vmand %vm1945, %vm1977
        %vm2010 = vmand %vm1946, %vm1978
        %s2011 = sadd.s32 %s570, 11
        %s2012 = sld [smem:[#allocation4 + %s2011]]
        %v2013 = vstv %s2012
        %v2014 = vsel %vm1979, %v2013, %v1883
        %v2015 = vsel %vm1980, %v2013, %v1884
        %v2016 = vsel %vm1981, %v2013, %v1885
        %v2017 = vsel %vm1982, %v2013, %v1886
        %v2018 = vsel %vm1983, %v2013, %v1887
        %v2019 = vsel %vm1984, %v2013, %v1888
        %v2020 = vsel %vm1985, %v2013, %v1889
        %v2021 = vsel %vm1986, %v2013, %v1890
        %v2022 = vsel %vm1987, %v2013, %v1891
        %v2023 = vsel %vm1988, %v2013, %v1892
        %v2024 = vsel %vm1989, %v2013, %v1893
        %v2025 = vsel %vm1990, %v2013, %v1894
        %v2026 = vsel %vm1991, %v2013, %v1895
        %v2027 = vsel %vm1992, %v2013, %v1896
        %v2028 = vsel %vm1993, %v2013, %v1897
        %v2029 = vsel %vm1994, %v2013, %v1898
        %v2030 = vsel %vm1995, %v2013, %v1899
        %v2031 = vsel %vm1996, %v2013, %v1900
        %v2032 = vsel %vm1997, %v2013, %v1901
        %v2033 = vsel %vm1998, %v2013, %v1902
        %v2034 = vsel %vm1999, %v2013, %v1903
        %v2035 = vsel %vm2000, %v2013, %v1904
        %v2036 = vsel %vm2001, %v2013, %v1905
        %v2037 = vsel %vm2002, %v2013, %v1906
        %v2038 = vsel %vm2003, %v2013, %v1907
        %v2039 = vsel %vm2004, %v2013, %v1908
        %v2040 = vsel %vm2005, %v2013, %v1909
        %v2041 = vsel %vm2006, %v2013, %v1910
        %v2042 = vsel %vm2007, %v2013, %v1911
        %v2043 = vsel %vm2008, %v2013, %v1912
        %v2044 = vsel %vm2009, %v2013, %v1913
        %v2045 = vsel %vm2010, %v2013, %v1914
        %vm2046 = vcmp.ge.s32.totalorder %v442, 192
        %vm2047 = vcmp.ge.s32.totalorder %v443, 192
        %vm2048 = vcmp.ge.s32.totalorder %v444, 192
        %vm2049 = vcmp.ge.s32.totalorder %v445, 192
        %vm2050 = vcmp.ge.s32.totalorder %v446, 192
        %vm2051 = vcmp.ge.s32.totalorder %v447, 192
        %vm2052 = vcmp.ge.s32.totalorder %v448, 192
        %vm2053 = vcmp.ge.s32.totalorder %v449, 192
        %vm2054 = vcmp.ge.s32.totalorder %v450, 192
        %vm2055 = vcmp.ge.s32.totalorder %v451, 192
        %vm2056 = vcmp.ge.s32.totalorder %v452, 192
        %vm2057 = vcmp.ge.s32.totalorder %v453, 192
        %vm2058 = vcmp.ge.s32.totalorder %v454, 192
        %vm2059 = vcmp.ge.s32.totalorder %v455, 192
        %vm2060 = vcmp.ge.s32.totalorder %v456, 192
        %vm2061 = vcmp.ge.s32.totalorder %v457, 192
        %vm2062 = vcmp.ge.s32.totalorder %v458, 192
        %vm2063 = vcmp.ge.s32.totalorder %v459, 192
        %vm2064 = vcmp.ge.s32.totalorder %v460, 192
        %vm2065 = vcmp.ge.s32.totalorder %v461, 192
        %vm2066 = vcmp.ge.s32.totalorder %v462, 192
        %vm2067 = vcmp.ge.s32.totalorder %v463, 192
        %vm2068 = vcmp.ge.s32.totalorder %v464, 192
        %vm2069 = vcmp.ge.s32.totalorder %v465, 192
        %vm2070 = vcmp.ge.s32.totalorder %v466, 192
        %vm2071 = vcmp.ge.s32.totalorder %v467, 192
        %vm2072 = vcmp.ge.s32.totalorder %v468, 192
        %vm2073 = vcmp.ge.s32.totalorder %v469, 192
        %vm2074 = vcmp.ge.s32.totalorder %v470, 192
        %vm2075 = vcmp.ge.s32.totalorder %v471, 192
        %vm2076 = vcmp.ge.s32.totalorder %v472, 192
        %vm2077 = vcmp.ge.s32.totalorder %v473, 192
        %vm2078 = vcmp.lt.s32.totalorder %v442, 208
        %vm2079 = vcmp.lt.s32.totalorder %v443, 208
        %vm2080 = vcmp.lt.s32.totalorder %v444, 208
        %vm2081 = vcmp.lt.s32.totalorder %v445, 208
        %vm2082 = vcmp.lt.s32.totalorder %v446, 208
        %vm2083 = vcmp.lt.s32.totalorder %v447, 208
        %vm2084 = vcmp.lt.s32.totalorder %v448, 208
        %vm2085 = vcmp.lt.s32.totalorder %v449, 208
        %vm2086 = vcmp.lt.s32.totalorder %v450, 208
        %vm2087 = vcmp.lt.s32.totalorder %v451, 208
        %vm2088 = vcmp.lt.s32.totalorder %v452, 208
        %vm2089 = vcmp.lt.s32.totalorder %v453, 208
        %vm2090 = vcmp.lt.s32.totalorder %v454, 208
        %vm2091 = vcmp.lt.s32.totalorder %v455, 208
        %vm2092 = vcmp.lt.s32.totalorder %v456, 208
        %vm2093 = vcmp.lt.s32.totalorder %v457, 208
        %vm2094 = vcmp.lt.s32.totalorder %v458, 208
        %vm2095 = vcmp.lt.s32.totalorder %v459, 208
        %vm2096 = vcmp.lt.s32.totalorder %v460, 208
        %vm2097 = vcmp.lt.s32.totalorder %v461, 208
        %vm2098 = vcmp.lt.s32.totalorder %v462, 208
        %vm2099 = vcmp.lt.s32.totalorder %v463, 208
        %vm2100 = vcmp.lt.s32.totalorder %v464, 208
        %vm2101 = vcmp.lt.s32.totalorder %v465, 208
        %vm2102 = vcmp.lt.s32.totalorder %v466, 208
        %vm2103 = vcmp.lt.s32.totalorder %v467, 208
        %vm2104 = vcmp.lt.s32.totalorder %v468, 208
        %vm2105 = vcmp.lt.s32.totalorder %v469, 208
        %vm2106 = vcmp.lt.s32.totalorder %v470, 208
        %vm2107 = vcmp.lt.s32.totalorder %v471, 208
        %vm2108 = vcmp.lt.s32.totalorder %v472, 208
        %vm2109 = vcmp.lt.s32.totalorder %v473, 208
        %vm2110 = vmand %vm2046, %vm2078
        %vm2111 = vmand %vm2047, %vm2079
        %vm2112 = vmand %vm2048, %vm2080
        %vm2113 = vmand %vm2049, %vm2081
        %vm2114 = vmand %vm2050, %vm2082
        %vm2115 = vmand %vm2051, %vm2083
        %vm2116 = vmand %vm2052, %vm2084
        %vm2117 = vmand %vm2053, %vm2085
        %vm2118 = vmand %vm2054, %vm2086
        %vm2119 = vmand %vm2055, %vm2087
        %vm2120 = vmand %vm2056, %vm2088
        %vm2121 = vmand %vm2057, %vm2089
        %vm2122 = vmand %vm2058, %vm2090
        %vm2123 = vmand %vm2059, %vm2091
        %vm2124 = vmand %vm2060, %vm2092
        %vm2125 = vmand %vm2061, %vm2093
        %vm2126 = vmand %vm2062, %vm2094
        %vm2127 = vmand %vm2063, %vm2095
        %vm2128 = vmand %vm2064, %vm2096
        %vm2129 = vmand %vm2065, %vm2097
        %vm2130 = vmand %vm2066, %vm2098
        %vm2131 = vmand %vm2067, %vm2099
        %vm2132 = vmand %vm2068, %vm2100
        %vm2133 = vmand %vm2069, %vm2101
        %vm2134 = vmand %vm2070, %vm2102
        %vm2135 = vmand %vm2071, %vm2103
        %vm2136 = vmand %vm2072, %vm2104
        %vm2137 = vmand %vm2073, %vm2105
        %vm2138 = vmand %vm2074, %vm2106
        %vm2139 = vmand %vm2075, %vm2107
        %vm2140 = vmand %vm2076, %vm2108
        %vm2141 = vmand %vm2077, %vm2109
        %s2142 = sadd.s32 %s570, 12
        %s2143 = sld [smem:[#allocation4 + %s2142]]
        %v2144 = vstv %s2143
        %v2145 = vsel %vm2110, %v2144, %v2014
        %v2146 = vsel %vm2111, %v2144, %v2015
        %v2147 = vsel %vm2112, %v2144, %v2016
        %v2148 = vsel %vm2113, %v2144, %v2017
        %v2149 = vsel %vm2114, %v2144, %v2018
        %v2150 = vsel %vm2115, %v2144, %v2019
        %v2151 = vsel %vm2116, %v2144, %v2020
        %v2152 = vsel %vm2117, %v2144, %v2021
        %v2153 = vsel %vm2118, %v2144, %v2022
        %v2154 = vsel %vm2119, %v2144, %v2023
        %v2155 = vsel %vm2120, %v2144, %v2024
        %v2156 = vsel %vm2121, %v2144, %v2025
        %v2157 = vsel %vm2122, %v2144, %v2026
        %v2158 = vsel %vm2123, %v2144, %v2027
        %v2159 = vsel %vm2124, %v2144, %v2028
        %v2160 = vsel %vm2125, %v2144, %v2029
        %v2161 = vsel %vm2126, %v2144, %v2030
        %v2162 = vsel %vm2127, %v2144, %v2031
        %v2163 = vsel %vm2128, %v2144, %v2032
        %v2164 = vsel %vm2129, %v2144, %v2033
        %v2165 = vsel %vm2130, %v2144, %v2034
        %v2166 = vsel %vm2131, %v2144, %v2035
        %v2167 = vsel %vm2132, %v2144, %v2036
        %v2168 = vsel %vm2133, %v2144, %v2037
        %v2169 = vsel %vm2134, %v2144, %v2038
        %v2170 = vsel %vm2135, %v2144, %v2039
        %v2171 = vsel %vm2136, %v2144, %v2040
        %v2172 = vsel %vm2137, %v2144, %v2041
        %v2173 = vsel %vm2138, %v2144, %v2042
        %v2174 = vsel %vm2139, %v2144, %v2043
        %v2175 = vsel %vm2140, %v2144, %v2044
        %v2176 = vsel %vm2141, %v2144, %v2045
        %vm2177 = vcmp.ge.s32.totalorder %v442, 208
        %vm2178 = vcmp.ge.s32.totalorder %v443, 208
        %vm2179 = vcmp.ge.s32.totalorder %v444, 208
        %vm2180 = vcmp.ge.s32.totalorder %v445, 208
        %vm2181 = vcmp.ge.s32.totalorder %v446, 208
        %vm2182 = vcmp.ge.s32.totalorder %v447, 208
        %vm2183 = vcmp.ge.s32.totalorder %v448, 208
        %vm2184 = vcmp.ge.s32.totalorder %v449, 208
        %vm2185 = vcmp.ge.s32.totalorder %v450, 208
        %vm2186 = vcmp.ge.s32.totalorder %v451, 208
        %vm2187 = vcmp.ge.s32.totalorder %v452, 208
        %vm2188 = vcmp.ge.s32.totalorder %v453, 208
        %vm2189 = vcmp.ge.s32.totalorder %v454, 208
        %vm2190 = vcmp.ge.s32.totalorder %v455, 208
        %vm2191 = vcmp.ge.s32.totalorder %v456, 208
        %vm2192 = vcmp.ge.s32.totalorder %v457, 208
        %vm2193 = vcmp.ge.s32.totalorder %v458, 208
        %vm2194 = vcmp.ge.s32.totalorder %v459, 208
        %vm2195 = vcmp.ge.s32.totalorder %v460, 208
        %vm2196 = vcmp.ge.s32.totalorder %v461, 208
        %vm2197 = vcmp.ge.s32.totalorder %v462, 208
        %vm2198 = vcmp.ge.s32.totalorder %v463, 208
        %vm2199 = vcmp.ge.s32.totalorder %v464, 208
        %vm2200 = vcmp.ge.s32.totalorder %v465, 208
        %vm2201 = vcmp.ge.s32.totalorder %v466, 208
        %vm2202 = vcmp.ge.s32.totalorder %v467, 208
        %vm2203 = vcmp.ge.s32.totalorder %v468, 208
        %vm2204 = vcmp.ge.s32.totalorder %v469, 208
        %vm2205 = vcmp.ge.s32.totalorder %v470, 208
        %vm2206 = vcmp.ge.s32.totalorder %v471, 208
        %vm2207 = vcmp.ge.s32.totalorder %v472, 208
        %vm2208 = vcmp.ge.s32.totalorder %v473, 208
        %vm2209 = vcmp.lt.s32.totalorder %v442, 224
        %vm2210 = vcmp.lt.s32.totalorder %v443, 224
        %vm2211 = vcmp.lt.s32.totalorder %v444, 224
        %vm2212 = vcmp.lt.s32.totalorder %v445, 224
        %vm2213 = vcmp.lt.s32.totalorder %v446, 224
        %vm2214 = vcmp.lt.s32.totalorder %v447, 224
        %vm2215 = vcmp.lt.s32.totalorder %v448, 224
        %vm2216 = vcmp.lt.s32.totalorder %v449, 224
        %vm2217 = vcmp.lt.s32.totalorder %v450, 224
        %vm2218 = vcmp.lt.s32.totalorder %v451, 224
        %vm2219 = vcmp.lt.s32.totalorder %v452, 224
        %vm2220 = vcmp.lt.s32.totalorder %v453, 224
        %vm2221 = vcmp.lt.s32.totalorder %v454, 224
        %vm2222 = vcmp.lt.s32.totalorder %v455, 224
        %vm2223 = vcmp.lt.s32.totalorder %v456, 224
        %vm2224 = vcmp.lt.s32.totalorder %v457, 224
        %vm2225 = vcmp.lt.s32.totalorder %v458, 224
        %vm2226 = vcmp.lt.s32.totalorder %v459, 224
        %vm2227 = vcmp.lt.s32.totalorder %v460, 224
        %vm2228 = vcmp.lt.s32.totalorder %v461, 224
        %vm2229 = vcmp.lt.s32.totalorder %v462, 224
        %vm2230 = vcmp.lt.s32.totalorder %v463, 224
        %vm2231 = vcmp.lt.s32.totalorder %v464, 224
        %vm2232 = vcmp.lt.s32.totalorder %v465, 224
        %vm2233 = vcmp.lt.s32.totalorder %v466, 224
        %vm2234 = vcmp.lt.s32.totalorder %v467, 224
        %vm2235 = vcmp.lt.s32.totalorder %v468, 224
        %vm2236 = vcmp.lt.s32.totalorder %v469, 224
        %vm2237 = vcmp.lt.s32.totalorder %v470, 224
        %vm2238 = vcmp.lt.s32.totalorder %v471, 224
        %vm2239 = vcmp.lt.s32.totalorder %v472, 224
        %vm2240 = vcmp.lt.s32.totalorder %v473, 224
        %vm2241 = vmand %vm2177, %vm2209
        %vm2242 = vmand %vm2178, %vm2210
        %vm2243 = vmand %vm2179, %vm2211
        %vm2244 = vmand %vm2180, %vm2212
        %vm2245 = vmand %vm2181, %vm2213
        %vm2246 = vmand %vm2182, %vm2214
        %vm2247 = vmand %vm2183, %vm2215
        %vm2248 = vmand %vm2184, %vm2216
        %vm2249 = vmand %vm2185, %vm2217
        %vm2250 = vmand %vm2186, %vm2218
        %vm2251 = vmand %vm2187, %vm2219
        %vm2252 = vmand %vm2188, %vm2220
        %vm2253 = vmand %vm2189, %vm2221
        %vm2254 = vmand %vm2190, %vm2222
        %vm2255 = vmand %vm2191, %vm2223
        %vm2256 = vmand %vm2192, %vm2224
        %vm2257 = vmand %vm2193, %vm2225
        %vm2258 = vmand %vm2194, %vm2226
        %vm2259 = vmand %vm2195, %vm2227
        %vm2260 = vmand %vm2196, %vm2228
        %vm2261 = vmand %vm2197, %vm2229
        %vm2262 = vmand %vm2198, %vm2230
        %vm2263 = vmand %vm2199, %vm2231
        %vm2264 = vmand %vm2200, %vm2232
        %vm2265 = vmand %vm2201, %vm2233
        %vm2266 = vmand %vm2202, %vm2234
        %vm2267 = vmand %vm2203, %vm2235
        %vm2268 = vmand %vm2204, %vm2236
        %vm2269 = vmand %vm2205, %vm2237
        %vm2270 = vmand %vm2206, %vm2238
        %vm2271 = vmand %vm2207, %vm2239
        %vm2272 = vmand %vm2208, %vm2240
        %s2273 = sadd.s32 %s570, 13
        %s2274 = sld [smem:[#allocation4 + %s2273]]
        %v2275 = vstv %s2274
        %v2276 = vsel %vm2241, %v2275, %v2145
        %v2277 = vsel %vm2242, %v2275, %v2146
        %v2278 = vsel %vm2243, %v2275, %v2147
        %v2279 = vsel %vm2244, %v2275, %v2148
        %v2280 = vsel %vm2245, %v2275, %v2149
        %v2281 = vsel %vm2246, %v2275, %v2150
        %v2282 = vsel %vm2247, %v2275, %v2151
        %v2283 = vsel %vm2248, %v2275, %v2152
        %v2284 = vsel %vm2249, %v2275, %v2153
        %v2285 = vsel %vm2250, %v2275, %v2154
        %v2286 = vsel %vm2251, %v2275, %v2155
        %v2287 = vsel %vm2252, %v2275, %v2156
        %v2288 = vsel %vm2253, %v2275, %v2157
        %v2289 = vsel %vm2254, %v2275, %v2158
        %v2290 = vsel %vm2255, %v2275, %v2159
        %v2291 = vsel %vm2256, %v2275, %v2160
        %v2292 = vsel %vm2257, %v2275, %v2161
        %v2293 = vsel %vm2258, %v2275, %v2162
        %v2294 = vsel %vm2259, %v2275, %v2163
        %v2295 = vsel %vm2260, %v2275, %v2164
        %v2296 = vsel %vm2261, %v2275, %v2165
        %v2297 = vsel %vm2262, %v2275, %v2166
        %v2298 = vsel %vm2263, %v2275, %v2167
        %v2299 = vsel %vm2264, %v2275, %v2168
        %v2300 = vsel %vm2265, %v2275, %v2169
        %v2301 = vsel %vm2266, %v2275, %v2170
        %v2302 = vsel %vm2267, %v2275, %v2171
        %v2303 = vsel %vm2268, %v2275, %v2172
        %v2304 = vsel %vm2269, %v2275, %v2173
        %v2305 = vsel %vm2270, %v2275, %v2174
        %v2306 = vsel %vm2271, %v2275, %v2175
        %v2307 = vsel %vm2272, %v2275, %v2176
        %vm2308 = vcmp.ge.s32.totalorder %v442, 224
        %vm2309 = vcmp.ge.s32.totalorder %v443, 224
        %vm2310 = vcmp.ge.s32.totalorder %v444, 224
        %vm2311 = vcmp.ge.s32.totalorder %v445, 224
        %vm2312 = vcmp.ge.s32.totalorder %v446, 224
        %vm2313 = vcmp.ge.s32.totalorder %v447, 224
        %vm2314 = vcmp.ge.s32.totalorder %v448, 224
        %vm2315 = vcmp.ge.s32.totalorder %v449, 224
        %vm2316 = vcmp.ge.s32.totalorder %v450, 224
        %vm2317 = vcmp.ge.s32.totalorder %v451, 224
        %vm2318 = vcmp.ge.s32.totalorder %v452, 224
        %vm2319 = vcmp.ge.s32.totalorder %v453, 224
        %vm2320 = vcmp.ge.s32.totalorder %v454, 224
        %vm2321 = vcmp.ge.s32.totalorder %v455, 224
        %vm2322 = vcmp.ge.s32.totalorder %v456, 224
        %vm2323 = vcmp.ge.s32.totalorder %v457, 224
        %vm2324 = vcmp.ge.s32.totalorder %v458, 224
        %vm2325 = vcmp.ge.s32.totalorder %v459, 224
        %vm2326 = vcmp.ge.s32.totalorder %v460, 224
        %vm2327 = vcmp.ge.s32.totalorder %v461, 224
        %vm2328 = vcmp.ge.s32.totalorder %v462, 224
        %vm2329 = vcmp.ge.s32.totalorder %v463, 224
        %vm2330 = vcmp.ge.s32.totalorder %v464, 224
        %vm2331 = vcmp.ge.s32.totalorder %v465, 224
        %vm2332 = vcmp.ge.s32.totalorder %v466, 224
        %vm2333 = vcmp.ge.s32.totalorder %v467, 224
        %vm2334 = vcmp.ge.s32.totalorder %v468, 224
        %vm2335 = vcmp.ge.s32.totalorder %v469, 224
        %vm2336 = vcmp.ge.s32.totalorder %v470, 224
        %vm2337 = vcmp.ge.s32.totalorder %v471, 224
        %vm2338 = vcmp.ge.s32.totalorder %v472, 224
        %vm2339 = vcmp.ge.s32.totalorder %v473, 224
        %vm2340 = vcmp.lt.s32.totalorder %v442, 240
        %vm2341 = vcmp.lt.s32.totalorder %v443, 240
        %vm2342 = vcmp.lt.s32.totalorder %v444, 240
        %vm2343 = vcmp.lt.s32.totalorder %v445, 240
        %vm2344 = vcmp.lt.s32.totalorder %v446, 240
        %vm2345 = vcmp.lt.s32.totalorder %v447, 240
        %vm2346 = vcmp.lt.s32.totalorder %v448, 240
        %vm2347 = vcmp.lt.s32.totalorder %v449, 240
        %vm2348 = vcmp.lt.s32.totalorder %v450, 240
        %vm2349 = vcmp.lt.s32.totalorder %v451, 240
        %vm2350 = vcmp.lt.s32.totalorder %v452, 240
        %vm2351 = vcmp.lt.s32.totalorder %v453, 240
        %vm2352 = vcmp.lt.s32.totalorder %v454, 240
        %vm2353 = vcmp.lt.s32.totalorder %v455, 240
        %vm2354 = vcmp.lt.s32.totalorder %v456, 240
        %vm2355 = vcmp.lt.s32.totalorder %v457, 240
        %vm2356 = vcmp.lt.s32.totalorder %v458, 240
        %vm2357 = vcmp.lt.s32.totalorder %v459, 240
        %vm2358 = vcmp.lt.s32.totalorder %v460, 240
        %vm2359 = vcmp.lt.s32.totalorder %v461, 240
        %vm2360 = vcmp.lt.s32.totalorder %v462, 240
        %vm2361 = vcmp.lt.s32.totalorder %v463, 240
        %vm2362 = vcmp.lt.s32.totalorder %v464, 240
        %vm2363 = vcmp.lt.s32.totalorder %v465, 240
        %vm2364 = vcmp.lt.s32.totalorder %v466, 240
        %vm2365 = vcmp.lt.s32.totalorder %v467, 240
        %vm2366 = vcmp.lt.s32.totalorder %v468, 240
        %vm2367 = vcmp.lt.s32.totalorder %v469, 240
        %vm2368 = vcmp.lt.s32.totalorder %v470, 240
        %vm2369 = vcmp.lt.s32.totalorder %v471, 240
        %vm2370 = vcmp.lt.s32.totalorder %v472, 240
        %vm2371 = vcmp.lt.s32.totalorder %v473, 240
        %vm2372 = vmand %vm2308, %vm2340
        %vm2373 = vmand %vm2309, %vm2341
        %vm2374 = vmand %vm2310, %vm2342
        %vm2375 = vmand %vm2311, %vm2343
        %vm2376 = vmand %vm2312, %vm2344
        %vm2377 = vmand %vm2313, %vm2345
        %vm2378 = vmand %vm2314, %vm2346
        %vm2379 = vmand %vm2315, %vm2347
        %vm2380 = vmand %vm2316, %vm2348
        %vm2381 = vmand %vm2317, %vm2349
        %vm2382 = vmand %vm2318, %vm2350
        %vm2383 = vmand %vm2319, %vm2351
        %vm2384 = vmand %vm2320, %vm2352
        %vm2385 = vmand %vm2321, %vm2353
        %vm2386 = vmand %vm2322, %vm2354
        %vm2387 = vmand %vm2323, %vm2355
        %vm2388 = vmand %vm2324, %vm2356
        %vm2389 = vmand %vm2325, %vm2357
        %vm2390 = vmand %vm2326, %vm2358
        %vm2391 = vmand %vm2327, %vm2359
        %vm2392 = vmand %vm2328, %vm2360
        %vm2393 = vmand %vm2329, %vm2361
        %vm2394 = vmand %vm2330, %vm2362
        %vm2395 = vmand %vm2331, %vm2363
        %vm2396 = vmand %vm2332, %vm2364
        %vm2397 = vmand %vm2333, %vm2365
        %vm2398 = vmand %vm2334, %vm2366
        %vm2399 = vmand %vm2335, %vm2367
        %vm2400 = vmand %vm2336, %vm2368
        %vm2401 = vmand %vm2337, %vm2369
        %vm2402 = vmand %vm2338, %vm2370
        %vm2403 = vmand %vm2339, %vm2371
        %s2404 = sadd.s32 %s570, 14
        %s2405 = sld [smem:[#allocation4 + %s2404]]
        %v2406 = vstv %s2405
        %v2407 = vsel %vm2372, %v2406, %v2276
        %v2408 = vsel %vm2373, %v2406, %v2277
        %v2409 = vsel %vm2374, %v2406, %v2278
        %v2410 = vsel %vm2375, %v2406, %v2279
        %v2411 = vsel %vm2376, %v2406, %v2280
        %v2412 = vsel %vm2377, %v2406, %v2281
        %v2413 = vsel %vm2378, %v2406, %v2282
        %v2414 = vsel %vm2379, %v2406, %v2283
        %v2415 = vsel %vm2380, %v2406, %v2284
        %v2416 = vsel %vm2381, %v2406, %v2285
        %v2417 = vsel %vm2382, %v2406, %v2286
        %v2418 = vsel %vm2383, %v2406, %v2287
        %v2419 = vsel %vm2384, %v2406, %v2288
        %v2420 = vsel %vm2385, %v2406, %v2289
        %v2421 = vsel %vm2386, %v2406, %v2290
        %v2422 = vsel %vm2387, %v2406, %v2291
        %v2423 = vsel %vm2388, %v2406, %v2292
        %v2424 = vsel %vm2389, %v2406, %v2293
        %v2425 = vsel %vm2390, %v2406, %v2294
        %v2426 = vsel %vm2391, %v2406, %v2295
        %v2427 = vsel %vm2392, %v2406, %v2296
        %v2428 = vsel %vm2393, %v2406, %v2297
        %v2429 = vsel %vm2394, %v2406, %v2298
        %v2430 = vsel %vm2395, %v2406, %v2299
        %v2431 = vsel %vm2396, %v2406, %v2300
        %v2432 = vsel %vm2397, %v2406, %v2301
        %v2433 = vsel %vm2398, %v2406, %v2302
        %v2434 = vsel %vm2399, %v2406, %v2303
        %v2435 = vsel %vm2400, %v2406, %v2304
        %v2436 = vsel %vm2401, %v2406, %v2305
        %v2437 = vsel %vm2402, %v2406, %v2306
        %v2438 = vsel %vm2403, %v2406, %v2307
        %vm2439 = vcmp.ge.s32.totalorder %v442, 240
        %vm2440 = vcmp.ge.s32.totalorder %v443, 240
        %vm2441 = vcmp.ge.s32.totalorder %v444, 240
        %vm2442 = vcmp.ge.s32.totalorder %v445, 240
        %vm2443 = vcmp.ge.s32.totalorder %v446, 240
        %vm2444 = vcmp.ge.s32.totalorder %v447, 240
        %vm2445 = vcmp.ge.s32.totalorder %v448, 240
        %vm2446 = vcmp.ge.s32.totalorder %v449, 240
        %vm2447 = vcmp.ge.s32.totalorder %v450, 240
        %vm2448 = vcmp.ge.s32.totalorder %v451, 240
        %vm2449 = vcmp.ge.s32.totalorder %v452, 240
        %vm2450 = vcmp.ge.s32.totalorder %v453, 240
        %vm2451 = vcmp.ge.s32.totalorder %v454, 240
        %vm2452 = vcmp.ge.s32.totalorder %v455, 240
        %vm2453 = vcmp.ge.s32.totalorder %v456, 240
        %vm2454 = vcmp.ge.s32.totalorder %v457, 240
        %vm2455 = vcmp.ge.s32.totalorder %v458, 240
        %vm2456 = vcmp.ge.s32.totalorder %v459, 240
        %vm2457 = vcmp.ge.s32.totalorder %v460, 240
        %vm2458 = vcmp.ge.s32.totalorder %v461, 240
        %vm2459 = vcmp.ge.s32.totalorder %v462, 240
        %vm2460 = vcmp.ge.s32.totalorder %v463, 240
        %vm2461 = vcmp.ge.s32.totalorder %v464, 240
        %vm2462 = vcmp.ge.s32.totalorder %v465, 240
        %vm2463 = vcmp.ge.s32.totalorder %v466, 240
        %vm2464 = vcmp.ge.s32.totalorder %v467, 240
        %vm2465 = vcmp.ge.s32.totalorder %v468, 240
        %vm2466 = vcmp.ge.s32.totalorder %v469, 240
        %vm2467 = vcmp.ge.s32.totalorder %v470, 240
        %vm2468 = vcmp.ge.s32.totalorder %v471, 240
        %vm2469 = vcmp.ge.s32.totalorder %v472, 240
        %vm2470 = vcmp.ge.s32.totalorder %v473, 240
        %vm2471 = vcmp.lt.s32.totalorder %v442, 256
        %vm2472 = vcmp.lt.s32.totalorder %v443, 256
        %vm2473 = vcmp.lt.s32.totalorder %v444, 256
        %vm2474 = vcmp.lt.s32.totalorder %v445, 256
        %vm2475 = vcmp.lt.s32.totalorder %v446, 256
        %vm2476 = vcmp.lt.s32.totalorder %v447, 256
        %vm2477 = vcmp.lt.s32.totalorder %v448, 256
        %vm2478 = vcmp.lt.s32.totalorder %v449, 256
        %vm2479 = vcmp.lt.s32.totalorder %v450, 256
        %vm2480 = vcmp.lt.s32.totalorder %v451, 256
        %vm2481 = vcmp.lt.s32.totalorder %v452, 256
        %vm2482 = vcmp.lt.s32.totalorder %v453, 256
        %vm2483 = vcmp.lt.s32.totalorder %v454, 256
        %vm2484 = vcmp.lt.s32.totalorder %v455, 256
        %vm2485 = vcmp.lt.s32.totalorder %v456, 256
        %vm2486 = vcmp.lt.s32.totalorder %v457, 256
        %vm2487 = vcmp.lt.s32.totalorder %v458, 256
        %vm2488 = vcmp.lt.s32.totalorder %v459, 256
        %vm2489 = vcmp.lt.s32.totalorder %v460, 256
        %vm2490 = vcmp.lt.s32.totalorder %v461, 256
        %vm2491 = vcmp.lt.s32.totalorder %v462, 256
        %vm2492 = vcmp.lt.s32.totalorder %v463, 256
        %vm2493 = vcmp.lt.s32.totalorder %v464, 256
        %vm2494 = vcmp.lt.s32.totalorder %v465, 256
        %vm2495 = vcmp.lt.s32.totalorder %v466, 256
        %vm2496 = vcmp.lt.s32.totalorder %v467, 256
        %vm2497 = vcmp.lt.s32.totalorder %v468, 256
        %vm2498 = vcmp.lt.s32.totalorder %v469, 256
        %vm2499 = vcmp.lt.s32.totalorder %v470, 256
        %vm2500 = vcmp.lt.s32.totalorder %v471, 256
        %vm2501 = vcmp.lt.s32.totalorder %v472, 256
        %vm2502 = vcmp.lt.s32.totalorder %v473, 256
        %vm2503 = vmand %vm2439, %vm2471
        %vm2504 = vmand %vm2440, %vm2472
        %vm2505 = vmand %vm2441, %vm2473
        %vm2506 = vmand %vm2442, %vm2474
        %vm2507 = vmand %vm2443, %vm2475
        %vm2508 = vmand %vm2444, %vm2476
        %vm2509 = vmand %vm2445, %vm2477
        %vm2510 = vmand %vm2446, %vm2478
        %vm2511 = vmand %vm2447, %vm2479
        %vm2512 = vmand %vm2448, %vm2480
        %vm2513 = vmand %vm2449, %vm2481
        %vm2514 = vmand %vm2450, %vm2482
        %vm2515 = vmand %vm2451, %vm2483
        %vm2516 = vmand %vm2452, %vm2484
        %vm2517 = vmand %vm2453, %vm2485
        %vm2518 = vmand %vm2454, %vm2486
        %vm2519 = vmand %vm2455, %vm2487
        %vm2520 = vmand %vm2456, %vm2488
        %vm2521 = vmand %vm2457, %vm2489
        %vm2522 = vmand %vm2458, %vm2490
        %vm2523 = vmand %vm2459, %vm2491
        %vm2524 = vmand %vm2460, %vm2492
        %vm2525 = vmand %vm2461, %vm2493
        %vm2526 = vmand %vm2462, %vm2494
        %vm2527 = vmand %vm2463, %vm2495
        %vm2528 = vmand %vm2464, %vm2496
        %vm2529 = vmand %vm2465, %vm2497
        %vm2530 = vmand %vm2466, %vm2498
        %vm2531 = vmand %vm2467, %vm2499
        %vm2532 = vmand %vm2468, %vm2500
        %vm2533 = vmand %vm2469, %vm2501
        %vm2534 = vmand %vm2470, %vm2502
        %s2535 = sadd.s32 %s570, 15
        %s2536 = sld [smem:[#allocation4 + %s2535]]
        %v2537 = vstv %s2536
        %v2538 = vsel %vm2503, %v2537, %v2407
        %v2539 = vsel %vm2504, %v2537, %v2408
        %v2540 = vsel %vm2505, %v2537, %v2409
        %v2541 = vsel %vm2506, %v2537, %v2410
        %v2542 = vsel %vm2507, %v2537, %v2411
        %v2543 = vsel %vm2508, %v2537, %v2412
        %v2544 = vsel %vm2509, %v2537, %v2413
        %v2545 = vsel %vm2510, %v2537, %v2414
        %v2546 = vsel %vm2511, %v2537, %v2415
        %v2547 = vsel %vm2512, %v2537, %v2416
        %v2548 = vsel %vm2513, %v2537, %v2417
        %v2549 = vsel %vm2514, %v2537, %v2418
        %v2550 = vsel %vm2515, %v2537, %v2419
        %v2551 = vsel %vm2516, %v2537, %v2420
        %v2552 = vsel %vm2517, %v2537, %v2421
        %v2553 = vsel %vm2518, %v2537, %v2422
        %v2554 = vsel %vm2519, %v2537, %v2423
        %v2555 = vsel %vm2520, %v2537, %v2424
        %v2556 = vsel %vm2521, %v2537, %v2425
        %v2557 = vsel %vm2522, %v2537, %v2426
        %v2558 = vsel %vm2523, %v2537, %v2427
        %v2559 = vsel %vm2524, %v2537, %v2428
        %v2560 = vsel %vm2525, %v2537, %v2429
        %v2561 = vsel %vm2526, %v2537, %v2430
        %v2562 = vsel %vm2527, %v2537, %v2431
        %v2563 = vsel %vm2528, %v2537, %v2432
        %v2564 = vsel %vm2529, %v2537, %v2433
        %v2565 = vsel %vm2530, %v2537, %v2434
        %v2566 = vsel %vm2531, %v2537, %v2435
        %v2567 = vsel %vm2532, %v2537, %v2436
        %v2568 = vsel %vm2533, %v2537, %v2437
        %v2569 = vsel %vm2534, %v2537, %v2438
        %v2570 = vlaneseq
        %v2571 = vshrl.u32 %v2570, 7
        %v2572 = vsub.s32 0, %v2571
        %v2573 = vrot.slane %v433, %v2572
        %v2574 = vmul.f32 %v2538, %v2573
        %v2575 = vmul.f32 %v2539, %v2573
        %v2576 = vmul.f32 %v2540, %v2573
        %v2577 = vmul.f32 %v2541, %v2573
        %v2578 = vmul.f32 %v2542, %v2573
        %v2579 = vmul.f32 %v2543, %v2573
        %v2580 = vmul.f32 %v2544, %v2573
        %v2581 = vmul.f32 %v2545, %v2573
        %v2582 = vmul.f32 %v2546, %v2573
        %v2583 = vmul.f32 %v2547, %v2573
        %v2584 = vmul.f32 %v2548, %v2573
        %v2585 = vmul.f32 %v2549, %v2573
        %v2586 = vmul.f32 %v2550, %v2573
        %v2587 = vmul.f32 %v2551, %v2573
        %v2588 = vmul.f32 %v2552, %v2573
        %v2589 = vmul.f32 %v2553, %v2573
        %v2590 = vmul.f32 %v2554, %v2573
        %v2591 = vmul.f32 %v2555, %v2573
        %v2592 = vmul.f32 %v2556, %v2573
        %v2593 = vmul.f32 %v2557, %v2573
        %v2594 = vmul.f32 %v2558, %v2573
        %v2595 = vmul.f32 %v2559, %v2573
        %v2596 = vmul.f32 %v2560, %v2573
        %v2597 = vmul.f32 %v2561, %v2573
        %v2598 = vmul.f32 %v2562, %v2573
        %v2599 = vmul.f32 %v2563, %v2573
        %v2600 = vmul.f32 %v2564, %v2573
        %v2601 = vmul.f32 %v2565, %v2573
        %v2602 = vmul.f32 %v2566, %v2573
        %v2603 = vmul.f32 %v2567, %v2573
        %v2604 = vmul.f32 %v2568, %v2573
        %v2605 = vmul.f32 %v2569, %v2573
        %v2606 = vlaneseq
        %v2607 = vshrl.u32 %v2606, 7
        %v2608 = vsub.s32 0, %v2607
        %v2609 = vrot.slane %v434, %v2608
        %v2610 = vadd.f32 %v2574, %v2609
        %v2611 = vadd.f32 %v2575, %v2609
        %v2612 = vadd.f32 %v2576, %v2609
        %v2613 = vadd.f32 %v2577, %v2609
        %v2614 = vadd.f32 %v2578, %v2609
        %v2615 = vadd.f32 %v2579, %v2609
        %v2616 = vadd.f32 %v2580, %v2609
        %v2617 = vadd.f32 %v2581, %v2609
        %v2618 = vadd.f32 %v2582, %v2609
        %v2619 = vadd.f32 %v2583, %v2609
        %v2620 = vadd.f32 %v2584, %v2609
        %v2621 = vadd.f32 %v2585, %v2609
        %v2622 = vadd.f32 %v2586, %v2609
        %v2623 = vadd.f32 %v2587, %v2609
        %v2624 = vadd.f32 %v2588, %v2609
        %v2625 = vadd.f32 %v2589, %v2609
        %v2626 = vadd.f32 %v2590, %v2609
        %v2627 = vadd.f32 %v2591, %v2609
        %v2628 = vadd.f32 %v2592, %v2609
        %v2629 = vadd.f32 %v2593, %v2609
        %v2630 = vadd.f32 %v2594, %v2609
        %v2631 = vadd.f32 %v2595, %v2609
        %v2632 = vadd.f32 %v2596, %v2609
        %v2633 = vadd.f32 %v2597, %v2609
        %v2634 = vadd.f32 %v2598, %v2609
        %v2635 = vadd.f32 %v2599, %v2609
        %v2636 = vadd.f32 %v2600, %v2609
        %v2637 = vadd.f32 %v2601, %v2609
        %v2638 = vadd.f32 %v2602, %v2609
        %v2639 = vadd.f32 %v2603, %v2609
        %v2640 = vadd.f32 %v2604, %v2609
        %v2641 = vadd.f32 %v2605, %v2609
        %v2642 = vmax.f32 %v2610, 0.0
        %v2643 = vmax.f32 %v2611, 0.0
        %v2644 = vmax.f32 %v2612, 0.0
        %v2645 = vmax.f32 %v2613, 0.0
        %v2646 = vmax.f32 %v2614, 0.0
        %v2647 = vmax.f32 %v2615, 0.0
        %v2648 = vmax.f32 %v2616, 0.0
        %v2649 = vmax.f32 %v2617, 0.0
        %v2650 = vmax.f32 %v2618, 0.0
        %v2651 = vmax.f32 %v2619, 0.0
        %v2652 = vmax.f32 %v2620, 0.0
        %v2653 = vmax.f32 %v2621, 0.0
        %v2654 = vmax.f32 %v2622, 0.0
        %v2655 = vmax.f32 %v2623, 0.0
        %v2656 = vmax.f32 %v2624, 0.0
        %v2657 = vmax.f32 %v2625, 0.0
        %v2658 = vmax.f32 %v2626, 0.0
        %v2659 = vmax.f32 %v2627, 0.0
        %v2660 = vmax.f32 %v2628, 0.0
        %v2661 = vmax.f32 %v2629, 0.0
        %v2662 = vmax.f32 %v2630, 0.0
        %v2663 = vmax.f32 %v2631, 0.0
        %v2664 = vmax.f32 %v2632, 0.0
        %v2665 = vmax.f32 %v2633, 0.0
        %v2666 = vmax.f32 %v2634, 0.0
        %v2667 = vmax.f32 %v2635, 0.0
        %v2668 = vmax.f32 %v2636, 0.0
        %v2669 = vmax.f32 %v2637, 0.0
        %v2670 = vmax.f32 %v2638, 0.0
        %v2671 = vmax.f32 %v2639, 0.0
        %v2672 = vmax.f32 %v2640, 0.0
        %v2673 = vmax.f32 %v2641, 0.0
        %v2674 = vld [vmem:[%s5] sm:$0xf]
        %v2675 = vld [vmem:[%s5 + $0x4] sm:$0xf]
        %v2676 = vld [vmem:[%s5 + $0x8] sm:$0xf]
        %v2677 = vld [vmem:[%s5 + $0xc] sm:$0xf]
        %v2678 = vpack.c.bf16 %v2643, %v2642
        %v2679 = vpack.c.bf16 %v2645, %v2644
        %v2680 = vpack.c.bf16 %v2647, %v2646
        %v2681 = vpack.c.bf16 %v2649, %v2648
        %v2682 = vpack.c.bf16 %v2651, %v2650
        %v2683 = vpack.c.bf16 %v2653, %v2652
        %v2684 = vpack.c.bf16 %v2655, %v2654
        %v2685 = vpack.c.bf16 %v2657, %v2656
        %v2686 = vpack.c.bf16 %v2659, %v2658
        %v2687 = vpack.c.bf16 %v2661, %v2660
        %v2688 = vpack.c.bf16 %v2663, %v2662
        %v2689 = vpack.c.bf16 %v2665, %v2664
        %v2690 = vpack.c.bf16 %v2667, %v2666
        %v2691 = vpack.c.bf16 %v2669, %v2668
        %v2692 = vpack.c.bf16 %v2671, %v2670
        %v2693 = vpack.c.bf16 %v2673, %v2672
        %v2694 = vlaneseq
        %v2695 = vshrl.u32 %v2694, 7
        %v2696 = vsub.s32 0, %v2695
        %v2697 = vrot.slane %v435, %v2696
        %v2702 = vunpack.c.l.b16 %v2674
        %v2703 = vunpack.c.l.b16 %v2675
        %v2704 = vunpack.c.l.b16 %v2676
        %v2705 = vunpack.c.l.b16 %v2677
        %v2706 = vpack.c.b16 %v2703, %v2702
        %v2707 = vpack.c.b16 %v2705, %v2704
        %vm2710 = vcmask 261120
        %v2712 = vsel %vm2710, %v2678, 0
        %v2715 = vsel %vm2710, %v2679, 0
        %v2718 = vsel %vm2710, %v2680, 0
        %v2721 = vsel %vm2710, %v2681, 0
        %v2724 = vsel %vm2710, %v2682, 0
        %v2727 = vsel %vm2710, %v2683, 0
        %v2730 = vsel %vm2710, %v2684, 0
        %v2733 = vsel %vm2710, %v2685, 0
        %v2736 = vsel %vm2710, %v2686, 0
        %v2739 = vsel %vm2710, %v2687, 0
        %v2742 = vsel %vm2710, %v2688, 0
        %v2745 = vsel %vm2710, %v2689, 0
        %v2748 = vsel %vm2710, %v2690, 0
        %v2751 = vsel %vm2710, %v2691, 0
        %v2754 = vsel %vm2710, %v2692, 0
        %v2757 = vsel %vm2710, %v2693, 0
        %2759 = vmatprep.subr.bf16.mxu0 0
        %2760 = vmatpush1.bf16.msra.mxu0 %v2706
        %2761 = vmatprep.subr.bf16.mxu0 0
        %2762 = vmatpush1.bf16.msra.mxu0 %v2707
        %2763 = vmatprep.subr.bf16.mxu0 0
        %2764 = vmatpush1.bf16.msra.mxu0 0
        %2765 = vmatprep.subr.bf16.mxu0 0
        %2766 = vmatpush1.bf16.msra.mxu0 0
        %2767 = vmatprep.subr.bf16.mxu0 0
        %2768 = vmatpush1.bf16.msra.mxu0 0
        %2769 = vmatprep.subr.bf16.mxu0 0
        %2770 = vmatpush1.bf16.msra.mxu0 0
        %2771 = vmatprep.subr.bf16.mxu0 0
        %2772 = vmatpush1.bf16.msra.mxu0 0
        %2773 = vmatprep.subr.bf16.mxu0 0
        %2774 = vmatpush1.bf16.msra.mxu0 0
        %2775 = vmatprep.subr.bf16.mxu0 0
        %2776 = vmatpush1.bf16.msra.mxu0 0
        %2777 = vmatprep.subr.bf16.mxu0 0
        %2778 = vmatpush1.bf16.msra.mxu0 0
        %2779 = vmatprep.subr.bf16.mxu0 0
        %2780 = vmatpush1.bf16.msra.mxu0 0
        %2781 = vmatprep.subr.bf16.mxu0 0
        %2782 = vmatpush1.bf16.msra.mxu0 0
        %2783 = vmatprep.subr.bf16.mxu0 0
        %2784 = vmatpush1.bf16.msra.mxu0 0
        %2785 = vmatprep.subr.bf16.mxu0 0
        %2786 = vmatpush1.bf16.msra.mxu0 0
        %2787 = vmatprep.subr.bf16.mxu0 0
        %2788 = vmatpush1.bf16.msra.mxu0 0
        %2789 = vmatprep.subr.bf16.mxu0 0
        %2790 = vmatpush1.bf16.msra.mxu0 0
        %2791 = vmatprep.mubr.bf16.mxu0 0
        %2792 = vmatmul.mubr.bf16.gmra.mrb[0].mxu0 %v2712
        %v2793 = vpop.f32.mrb[0].mxu0
        %v2794 = vadd.f32 %v2697, %v2793
        %v2795 = vpop.f32.mrb[0].mxu0
        %v2796 = vpop.f32.mrb[0].mxu0
        %v2797 = vadd.f32 %v2697, %v2796
        %v2798 = vpop.f32.mrb[0].mxu0
        %2799 = vmatprep.mubr.bf16.mxu0 0
        %2800 = vmatmul.mubr.bf16.gmra.mrb[0].mxu0 %v2715
        %v2801 = vpop.f32.mrb[0].mxu0
        %v2802 = vadd.f32 %v2697, %v2801
        %v2803 = vpop.f32.mrb[0].mxu0
        %v2804 = vpop.f32.mrb[0].mxu0
        %v2805 = vadd.f32 %v2697, %v2804
        %v2806 = vpop.f32.mrb[0].mxu0
        %2807 = vmatprep.mubr.bf16.mxu0 0
        %2808 = vmatmul.mubr.bf16.gmra.mrb[0].mxu0 %v2718
        %v2809 = vpop.f32.mrb[0].mxu0
        %v2810 = vadd.f32 %v2697, %v2809
        %v2811 = vpop.f32.mrb[0].mxu0
        %v2812 = vpop.f32.mrb[0].mxu0
        %v2813 = vadd.f32 %v2697, %v2812
        %v2814 = vpop.f32.mrb[0].mxu0
        %2815 = vmatprep.mubr.bf16.mxu0 0
        %2816 = vmatmul.mubr.bf16.gmra.mrb[0].mxu0 %v2721
        %v2817 = vpop.f32.mrb[0].mxu0
        %v2818 = vadd.f32 %v2697, %v2817
        %v2819 = vpop.f32.mrb[0].mxu0
        %v2820 = vpop.f32.mrb[0].mxu0
        %v2821 = vadd.f32 %v2697, %v2820
        %v2822 = vpop.f32.mrb[0].mxu0
        %2823 = vmatprep.mubr.bf16.mxu0 0
        %2824 = vmatmul.mubr.bf16.gmra.mrb[0].mxu0 %v2724
        %v2825 = vpop.f32.mrb[0].mxu0
        %v2826 = vadd.f32 %v2697, %v2825
        %v2827 = vpop.f32.mrb[0].mxu0
        %v2828 = vpop.f32.mrb[0].mxu0
        %v2829 = vadd.f32 %v2697, %v2828
        %v2830 = vpop.f32.mrb[0].mxu0
        %2831 = vmatprep.mubr.bf16.mxu0 0
        %2832 = vmatmul.mubr.bf16.gmra.mrb[0].mxu0 %v2727
        %v2833 = vpop.f32.mrb[0].mxu0
        %v2834 = vadd.f32 %v2697, %v2833
        %v2835 = vpop.f32.mrb[0].mxu0
        %v2836 = vpop.f32.mrb[0].mxu0
        %v2837 = vadd.f32 %v2697, %v2836
        %v2838 = vpop.f32.mrb[0].mxu0
        %2839 = vmatprep.mubr.bf16.mxu0 0
        %2840 = vmatmul.mubr.bf16.gmra.mrb[0].mxu0 %v2730
        %v2841 = vpop.f32.mrb[0].mxu0
        %v2842 = vadd.f32 %v2697, %v2841
        %v2843 = vpop.f32.mrb[0].mxu0
        %v2844 = vpop.f32.mrb[0].mxu0
        %v2845 = vadd.f32 %v2697, %v2844
        %v2846 = vpop.f32.mrb[0].mxu0
        %2847 = vmatprep.mubr.bf16.mxu0 0
        %2848 = vmatmul.mubr.bf16.gmra.mrb[0].mxu0 %v2733
        %v2849 = vpop.f32.mrb[0].mxu0
        %v2850 = vadd.f32 %v2697, %v2849
        %v2851 = vpop.f32.mrb[0].mxu0
        %v2852 = vpop.f32.mrb[0].mxu0
        %v2853 = vadd.f32 %v2697, %v2852
        %v2854 = vpop.f32.mrb[0].mxu0
        %2855 = vmatprep.mubr.bf16.mxu0 0
        %2856 = vmatmul.mubr.bf16.gmra.mrb[0].mxu0 %v2736
        %v2857 = vpop.f32.mrb[0].mxu0
        %v2858 = vadd.f32 %v2697, %v2857
        %v2859 = vpop.f32.mrb[0].mxu0
        %v2860 = vpop.f32.mrb[0].mxu0
        %v2861 = vadd.f32 %v2697, %v2860
        %v2862 = vpop.f32.mrb[0].mxu0
        %2863 = vmatprep.mubr.bf16.mxu0 0
        %2864 = vmatmul.mubr.bf16.gmra.mrb[0].mxu0 %v2739
        %v2865 = vpop.f32.mrb[0].mxu0
        %v2866 = vadd.f32 %v2697, %v2865
        %v2867 = vpop.f32.mrb[0].mxu0
        %v2868 = vpop.f32.mrb[0].mxu0
        %v2869 = vadd.f32 %v2697, %v2868
        %v2870 = vpop.f32.mrb[0].mxu0
        %2871 = vmatprep.mubr.bf16.mxu0 0
        %2872 = vmatmul.mubr.bf16.gmra.mrb[0].mxu0 %v2742
        %v2873 = vpop.f32.mrb[0].mxu0
        %v2874 = vadd.f32 %v2697, %v2873
        %v2875 = vpop.f32.mrb[0].mxu0
        %v2876 = vpop.f32.mrb[0].mxu0
        %v2877 = vadd.f32 %v2697, %v2876
        %v2878 = vpop.f32.mrb[0].mxu0
        %2879 = vmatprep.mubr.bf16.mxu0 0
        %2880 = vmatmul.mubr.bf16.gmra.mrb[0].mxu0 %v2745
        %v2881 = vpop.f32.mrb[0].mxu0
        %v2882 = vadd.f32 %v2697, %v2881
        %v2883 = vpop.f32.mrb[0].mxu0
        %v2884 = vpop.f32.mrb[0].mxu0
        %v2885 = vadd.f32 %v2697, %v2884
        %v2886 = vpop.f32.mrb[0].mxu0
        %2887 = vmatprep.mubr.bf16.mxu0 0
        %2888 = vmatmul.mubr.bf16.gmra.mrb[0].mxu0 %v2748
        %v2889 = vpop.f32.mrb[0].mxu0
        %v2890 = vadd.f32 %v2697, %v2889
        %v2891 = vpop.f32.mrb[0].mxu0
        %v2892 = vpop.f32.mrb[0].mxu0
        %v2893 = vadd.f32 %v2697, %v2892
        %v2894 = vpop.f32.mrb[0].mxu0
        %2895 = vmatprep.mubr.bf16.mxu0 0
        %2896 = vmatmul.mubr.bf16.gmra.mrb[0].mxu0 %v2751
        %v2897 = vpop.f32.mrb[0].mxu0
        %v2898 = vadd.f32 %v2697, %v2897
        %v2899 = vpop.f32.mrb[0].mxu0
        %v2900 = vpop.f32.mrb[0].mxu0
        %v2901 = vadd.f32 %v2697, %v2900
        %v2902 = vpop.f32.mrb[0].mxu0
        %2903 = vmatprep.mubr.bf16.mxu0 0
        %2904 = vmatmul.mubr.bf16.gmra.mrb[0].mxu0 %v2754
        %v2905 = vpop.f32.mrb[0].mxu0
        %v2906 = vadd.f32 %v2697, %v2905
        %v2907 = vpop.f32.mrb[0].mxu0
        %v2908 = vpop.f32.mrb[0].mxu0
        %v2909 = vadd.f32 %v2697, %v2908
        %v2910 = vpop.f32.mrb[0].mxu0
        %2911 = vmatprep.mubr.bf16.mxu0 0
        %2912 = vmatmul.mubr.bf16.gmra.mrb[0].mxu0 %v2757
        %v2913 = vpop.f32.mrb[0].mxu0
        %v2914 = vadd.f32 %v2697, %v2913
        %v2915 = vpop.f32.mrb[0].mxu0
        %v2916 = vpop.f32.mrb[0].mxu0
        %v2917 = vadd.f32 %v2697, %v2916
        %v2918 = vpop.f32.mrb[0].mxu0
        %2919 = vdwg.mxu0
        %v2920 = vmax.f32 %v2794, 0.0
        %v2921 = vmax.f32 %v2797, 0.0
        %v2922 = vmax.f32 %v2802, 0.0
        %v2923 = vmax.f32 %v2805, 0.0
        %v2924 = vmax.f32 %v2810, 0.0
        %v2925 = vmax.f32 %v2813, 0.0
        %v2926 = vmax.f32 %v2818, 0.0
        %v2927 = vmax.f32 %v2821, 0.0
        %v2928 = vmax.f32 %v2826, 0.0
        %v2929 = vmax.f32 %v2829, 0.0
        %v2930 = vmax.f32 %v2834, 0.0
        %v2931 = vmax.f32 %v2837, 0.0
        %v2932 = vmax.f32 %v2842, 0.0
        %v2933 = vmax.f32 %v2845, 0.0
        %v2934 = vmax.f32 %v2850, 0.0
        %v2935 = vmax.f32 %v2853, 0.0
        %v2936 = vmax.f32 %v2858, 0.0
        %v2937 = vmax.f32 %v2861, 0.0
        %v2938 = vmax.f32 %v2866, 0.0
        %v2939 = vmax.f32 %v2869, 0.0
        %v2940 = vmax.f32 %v2874, 0.0
        %v2941 = vmax.f32 %v2877, 0.0
        %v2942 = vmax.f32 %v2882, 0.0
        %v2943 = vmax.f32 %v2885, 0.0
        %v2944 = vmax.f32 %v2890, 0.0
        %v2945 = vmax.f32 %v2893, 0.0
        %v2946 = vmax.f32 %v2898, 0.0
        %v2947 = vmax.f32 %v2901, 0.0
        %v2948 = vmax.f32 %v2906, 0.0
        %v2949 = vmax.f32 %v2909, 0.0
        %v2950 = vmax.f32 %v2914, 0.0
        %v2951 = vmax.f32 %v2917, 0.0
        %v2952 = vld [vmem:[%s6] sm:$0xf]
        %v2953 = vld [vmem:[%s6 + $0x4] sm:$0xf]
        %v2954 = vld [vmem:[%s6 + $0x8] sm:$0xf]
        %v2955 = vld [vmem:[%s6 + $0xc] sm:$0xf]
        %v2956 = vpack.c.bf16 %v2921, %v2920
        %v2957 = vpack.c.bf16 %v2923, %v2922
        %v2958 = vpack.c.bf16 %v2925, %v2924
        %v2959 = vpack.c.bf16 %v2927, %v2926
        %v2960 = vpack.c.bf16 %v2929, %v2928
        %v2961 = vpack.c.bf16 %v2931, %v2930
        %v2962 = vpack.c.bf16 %v2933, %v2932
        %v2963 = vpack.c.bf16 %v2935, %v2934
        %v2964 = vpack.c.bf16 %v2937, %v2936
        %v2965 = vpack.c.bf16 %v2939, %v2938
        %v2966 = vpack.c.bf16 %v2941, %v2940
        %v2967 = vpack.c.bf16 %v2943, %v2942
        %v2968 = vpack.c.bf16 %v2945, %v2944
        %v2969 = vpack.c.bf16 %v2947, %v2946
        %v2970 = vpack.c.bf16 %v2949, %v2948
        %v2971 = vpack.c.bf16 %v2951, %v2950
        %v2976 = vunpack.c.l.b16 %v2952
        %v2977 = vunpack.c.l.b16 %v2953
        %v2978 = vunpack.c.l.b16 %v2954
        %v2979 = vunpack.c.l.b16 %v2955
        %v2980 = vpack.c.b16 %v2977, %v2976
        %v2981 = vpack.c.b16 %v2979, %v2978
        %v2985 = vsel %vm2710, %v2956, 0
        %v2988 = vsel %vm2710, %v2957, 0
        %v2991 = vsel %vm2710, %v2958, 0
        %v2994 = vsel %vm2710, %v2959, 0
        %v2997 = vsel %vm2710, %v2960, 0
        %v3000 = vsel %vm2710, %v2961, 0
        %v3003 = vsel %vm2710, %v2962, 0
        %v3006 = vsel %vm2710, %v2963, 0
        %v3009 = vsel %vm2710, %v2964, 0
        %v3012 = vsel %vm2710, %v2965, 0
        %v3015 = vsel %vm2710, %v2966, 0
        %v3018 = vsel %vm2710, %v2967, 0
        %v3021 = vsel %vm2710, %v2968, 0
        %v3024 = vsel %vm2710, %v2969, 0
        %v3027 = vsel %vm2710, %v2970, 0
        %v3030 = vsel %vm2710, %v2971, 0
        %3032 = vmatprep.subr.bf16.mxu0 0
        %3033 = vmatpush1.bf16.msra.mxu0 %v2980
        %3034 = vmatprep.subr.bf16.mxu0 0
        %3035 = vmatpush1.bf16.msra.mxu0 %v2981
        %3036 = vmatprep.subr.bf16.mxu0 0
        %3037 = vmatpush1.bf16.msra.mxu0 0
        %3038 = vmatprep.subr.bf16.mxu0 0
        %3039 = vmatpush1.bf16.msra.mxu0 0
        %3040 = vmatprep.subr.bf16.mxu0 0
        %3041 = vmatpush1.bf16.msra.mxu0 0
        %3042 = vmatprep.subr.bf16.mxu0 0
        %3043 = vmatpush1.bf16.msra.mxu0 0
        %3044 = vmatprep.subr.bf16.mxu0 0
        %3045 = vmatpush1.bf16.msra.mxu0 0
        %3046 = vmatprep.subr.bf16.mxu0 0
        %3047 = vmatpush1.bf16.msra.mxu0 0
        %3048 = vmatprep.subr.bf16.mxu0 0
        %3049 = vmatpush1.bf16.msra.mxu0 0
        %3050 = vmatprep.subr.bf16.mxu0 0
        %3051 = vmatpush1.bf16.msra.mxu0 0
        %3052 = vmatprep.subr.bf16.mxu0 0
        %3053 = vmatpush1.bf16.msra.mxu0 0
        %3054 = vmatprep.subr.bf16.mxu0 0
        %3055 = vmatpush1.bf16.msra.mxu0 0
        %3056 = vmatprep.subr.bf16.mxu0 0
        %3057 = vmatpush1.bf16.msra.mxu0 0
        %3058 = vmatprep.subr.bf16.mxu0 0
        %3059 = vmatpush1.bf16.msra.mxu0 0
        %3060 = vmatprep.subr.bf16.mxu0 0
        %3061 = vmatpush1.bf16.msra.mxu0 0
        %3062 = vmatprep.subr.bf16.mxu0 0
        %3063 = vmatpush1.bf16.msra.mxu0 0
        %3064 = vmatprep.mubr.bf16.mxu0 0
        %3065 = vmatmul.mubr.bf16.gmra.mrb[0].mxu0 %v2985
        %v3066 = vpop.f32.mrb[0].mxu0
        %v3067 = vadd.f32 0.0, %v3066
        %v3068 = vpop.f32.mrb[0].mxu0
        %v3069 = vpop.f32.mrb[0].mxu0
        %v3070 = vadd.f32 0.0, %v3069
        %v3071 = vpop.f32.mrb[0].mxu0
        %3072 = vmatprep.mubr.bf16.mxu0 0
        %3073 = vmatmul.mubr.bf16.gmra.mrb[0].mxu0 %v2988
        %v3074 = vpop.f32.mrb[0].mxu0
        %v3075 = vadd.f32 0.0, %v3074
        %v3076 = vpop.f32.mrb[0].mxu0
        %v3077 = vpop.f32.mrb[0].mxu0
        %v3078 = vadd.f32 0.0, %v3077
        %v3079 = vpop.f32.mrb[0].mxu0
        %3080 = vmatprep.mubr.bf16.mxu0 0
        %3081 = vmatmul.mubr.bf16.gmra.mrb[0].mxu0 %v2991
        %v3082 = vpop.f32.mrb[0].mxu0
        %v3083 = vadd.f32 0.0, %v3082
        %v3084 = vpop.f32.mrb[0].mxu0
        %v3085 = vpop.f32.mrb[0].mxu0
        %v3086 = vadd.f32 0.0, %v3085
        %v3087 = vpop.f32.mrb[0].mxu0
        %3088 = vmatprep.mubr.bf16.mxu0 0
        %3089 = vmatmul.mubr.bf16.gmra.mrb[0].mxu0 %v2994
        %v3090 = vpop.f32.mrb[0].mxu0
        %v3091 = vadd.f32 0.0, %v3090
        %v3092 = vpop.f32.mrb[0].mxu0
        %v3093 = vpop.f32.mrb[0].mxu0
        %v3094 = vadd.f32 0.0, %v3093
        %v3095 = vpop.f32.mrb[0].mxu0
        %3096 = vmatprep.mubr.bf16.mxu0 0
        %3097 = vmatmul.mubr.bf16.gmra.mrb[0].mxu0 %v2997
        %v3098 = vpop.f32.mrb[0].mxu0
        %v3099 = vadd.f32 0.0, %v3098
        %v3100 = vpop.f32.mrb[0].mxu0
        %v3101 = vpop.f32.mrb[0].mxu0
        %v3102 = vadd.f32 0.0, %v3101
        %v3103 = vpop.f32.mrb[0].mxu0
        %3104 = vmatprep.mubr.bf16.mxu0 0
        %3105 = vmatmul.mubr.bf16.gmra.mrb[0].mxu0 %v3000
        %v3106 = vpop.f32.mrb[0].mxu0
        %v3107 = vadd.f32 0.0, %v3106
        %v3108 = vpop.f32.mrb[0].mxu0
        %v3109 = vpop.f32.mrb[0].mxu0
        %v3110 = vadd.f32 0.0, %v3109
        %v3111 = vpop.f32.mrb[0].mxu0
        %3112 = vmatprep.mubr.bf16.mxu0 0
        %3113 = vmatmul.mubr.bf16.gmra.mrb[0].mxu0 %v3003
        %v3114 = vpop.f32.mrb[0].mxu0
        %v3115 = vadd.f32 0.0, %v3114
        %v3116 = vpop.f32.mrb[0].mxu0
        %v3117 = vpop.f32.mrb[0].mxu0
        %v3118 = vadd.f32 0.0, %v3117
        %v3119 = vpop.f32.mrb[0].mxu0
        %3120 = vmatprep.mubr.bf16.mxu0 0
        %3121 = vmatmul.mubr.bf16.gmra.mrb[0].mxu0 %v3006
        %v3122 = vpop.f32.mrb[0].mxu0
        %v3123 = vadd.f32 0.0, %v3122
        %v3124 = vpop.f32.mrb[0].mxu0
        %v3125 = vpop.f32.mrb[0].mxu0
        %v3126 = vadd.f32 0.0, %v3125
        %v3127 = vpop.f32.mrb[0].mxu0
        %3128 = vmatprep.mubr.bf16.mxu0 0
        %3129 = vmatmul.mubr.bf16.gmra.mrb[0].mxu0 %v3009
        %v3130 = vpop.f32.mrb[0].mxu0
        %v3131 = vadd.f32 0.0, %v3130
        %v3132 = vpop.f32.mrb[0].mxu0
        %v3133 = vpop.f32.mrb[0].mxu0
        %v3134 = vadd.f32 0.0, %v3133
        %v3135 = vpop.f32.mrb[0].mxu0
        %3136 = vmatprep.mubr.bf16.mxu0 0
        %3137 = vmatmul.mubr.bf16.gmra.mrb[0].mxu0 %v3012
        %v3138 = vpop.f32.mrb[0].mxu0
        %v3139 = vadd.f32 0.0, %v3138
        %v3140 = vpop.f32.mrb[0].mxu0
        %v3141 = vpop.f32.mrb[0].mxu0
        %v3142 = vadd.f32 0.0, %v3141
        %v3143 = vpop.f32.mrb[0].mxu0
        %3144 = vmatprep.mubr.bf16.mxu0 0
        %3145 = vmatmul.mubr.bf16.gmra.mrb[0].mxu0 %v3015
        %v3146 = vpop.f32.mrb[0].mxu0
        %v3147 = vadd.f32 0.0, %v3146
        %v3148 = vpop.f32.mrb[0].mxu0
        %v3149 = vpop.f32.mrb[0].mxu0
        %v3150 = vadd.f32 0.0, %v3149
        %v3151 = vpop.f32.mrb[0].mxu0
        %3152 = vmatprep.mubr.bf16.mxu0 0
        %3153 = vmatmul.mubr.bf16.gmra.mrb[0].mxu0 %v3018
        %v3154 = vpop.f32.mrb[0].mxu0
        %v3155 = vadd.f32 0.0, %v3154
        %v3156 = vpop.f32.mrb[0].mxu0
        %v3157 = vpop.f32.mrb[0].mxu0
        %v3158 = vadd.f32 0.0, %v3157
        %v3159 = vpop.f32.mrb[0].mxu0
        %3160 = vmatprep.mubr.bf16.mxu0 0
        %3161 = vmatmul.mubr.bf16.gmra.mrb[0].mxu0 %v3021
        %v3162 = vpop.f32.mrb[0].mxu0
        %v3163 = vadd.f32 0.0, %v3162
        %v3164 = vpop.f32.mrb[0].mxu0
        %v3165 = vpop.f32.mrb[0].mxu0
        %v3166 = vadd.f32 0.0, %v3165
        %v3167 = vpop.f32.mrb[0].mxu0
        %3168 = vmatprep.mubr.bf16.mxu0 0
        %3169 = vmatmul.mubr.bf16.gmra.mrb[0].mxu0 %v3024
        %v3170 = vpop.f32.mrb[0].mxu0
        %v3171 = vadd.f32 0.0, %v3170
        %v3172 = vpop.f32.mrb[0].mxu0
        %v3173 = vpop.f32.mrb[0].mxu0
        %v3174 = vadd.f32 0.0, %v3173
        %v3175 = vpop.f32.mrb[0].mxu0
        %3176 = vmatprep.mubr.bf16.mxu0 0
        %3177 = vmatmul.mubr.bf16.gmra.mrb[0].mxu0 %v3027
        %v3178 = vpop.f32.mrb[0].mxu0
        %v3179 = vadd.f32 0.0, %v3178
        %v3180 = vpop.f32.mrb[0].mxu0
        %v3181 = vpop.f32.mrb[0].mxu0
        %v3182 = vadd.f32 0.0, %v3181
        %v3183 = vpop.f32.mrb[0].mxu0
        %3184 = vmatprep.mubr.bf16.mxu0 0
        %3185 = vmatmul.mubr.bf16.gmra.mrb[0].mxu0 %v3030
        %v3186 = vpop.f32.mrb[0].mxu0
        %v3187 = vadd.f32 0.0, %v3186
        %v3188 = vpop.f32.mrb[0].mxu0
        %v3189 = vpop.f32.mrb[0].mxu0
        %v3190 = vadd.f32 0.0, %v3189
        %v3191 = vpop.f32.mrb[0].mxu0
        %3192 = vdwg.mxu0
        %v3193 = vld [vmem:[%s421] sm:$0xf]
        %v3194 = vld [vmem:[%s421 + $0x4] sm:$0xf]
        %v3195 = vld [vmem:[%s421 + $0x8] sm:$0xf]
        %v3196 = vld [vmem:[%s421 + $0xc] sm:$0xf]
        %v3197 = vld [vmem:[%s421 + $0x10] sm:$0xf]
        %v3198 = vld [vmem:[%s421 + $0x14] sm:$0xf]
        %v3199 = vld [vmem:[%s421 + $0x18] sm:$0xf]
        %v3200 = vld [vmem:[%s421 + $0x1c] sm:$0xf]
        %v3201 = vld [vmem:[%s421 + $0x20] sm:$0xf]
        %v3202 = vld [vmem:[%s421 + $0x24] sm:$0xf]
        %v3203 = vld [vmem:[%s421 + $0x28] sm:$0xf]
        %v3204 = vld [vmem:[%s421 + $0x2c] sm:$0xf]
        %v3205 = vld [vmem:[%s421 + $0x30] sm:$0xf]
        %v3206 = vld [vmem:[%s421 + $0x34] sm:$0xf]
        %v3207 = vld [vmem:[%s421 + $0x38] sm:$0xf]
        %v3208 = vld [vmem:[%s421 + $0x3c] sm:$0xf]
        %v3209 = vld [vmem:[%s421 + $0x40] sm:$0xf]
        %v3210 = vld [vmem:[%s421 + $0x44] sm:$0xf]
        %v3211 = vld [vmem:[%s421 + $0x48] sm:$0xf]
        %v3212 = vld [vmem:[%s421 + $0x4c] sm:$0xf]
        %v3213 = vld [vmem:[%s421 + $0x50] sm:$0xf]
        %v3214 = vld [vmem:[%s421 + $0x54] sm:$0xf]
        %v3215 = vld [vmem:[%s421 + $0x58] sm:$0xf]
        %v3216 = vld [vmem:[%s421 + $0x5c] sm:$0xf]
        %v3217 = vld [vmem:[%s421 + $0x60] sm:$0xf]
        %v3218 = vld [vmem:[%s421 + $0x64] sm:$0xf]
        %v3219 = vld [vmem:[%s421 + $0x68] sm:$0xf]
        %v3220 = vld [vmem:[%s421 + $0x6c] sm:$0xf]
        %v3221 = vld [vmem:[%s421 + $0x70] sm:$0xf]
        %v3222 = vld [vmem:[%s421 + $0x74] sm:$0xf]
        %v3223 = vld [vmem:[%s421 + $0x78] sm:$0xf]
        %v3224 = vld [vmem:[%s421 + $0x7c] sm:$0xf]
        %v3225 = vld [vmem:[%s4] sm:$0xf]
        %v3226 = vlaneseq
        %v3227 = vshrl.u32 %v3226, 7
        %v3228 = vsub.s32 0, %v3227
        %v3229 = vrot.slane %v436, %v3228
        %v3262 = vunpack.c.l.b16 %v3193
        %v3263 = vunpack.c.l.b16 %v3194
        %v3264 = vunpack.c.l.b16 %v3195
        %v3265 = vunpack.c.l.b16 %v3196
        %v3266 = vunpack.c.l.b16 %v3197
        %v3267 = vunpack.c.l.b16 %v3198
        %v3268 = vunpack.c.l.b16 %v3199
        %v3269 = vunpack.c.l.b16 %v3200
        %v3270 = vunpack.c.l.b16 %v3201
        %v3271 = vunpack.c.l.b16 %v3202
        %v3272 = vunpack.c.l.b16 %v3203
        %v3273 = vunpack.c.l.b16 %v3204
        %v3274 = vunpack.c.l.b16 %v3205
        %v3275 = vunpack.c.l.b16 %v3206
        %v3276 = vunpack.c.l.b16 %v3207
        %v3277 = vunpack.c.l.b16 %v3208
        %v3278 = vunpack.c.l.b16 %v3209
        %v3279 = vunpack.c.l.b16 %v3210
        %v3280 = vunpack.c.l.b16 %v3211
        %v3281 = vunpack.c.l.b16 %v3212
        %v3282 = vunpack.c.l.b16 %v3213
        %v3283 = vunpack.c.l.b16 %v3214
        %v3284 = vunpack.c.l.b16 %v3215
        %v3285 = vunpack.c.l.b16 %v3216
        %v3286 = vunpack.c.l.b16 %v3217
        %v3287 = vunpack.c.l.b16 %v3218
        %v3288 = vunpack.c.l.b16 %v3219
        %v3289 = vunpack.c.l.b16 %v3220
        %v3290 = vunpack.c.l.b16 %v3221
        %v3291 = vunpack.c.l.b16 %v3222
        %v3292 = vunpack.c.l.b16 %v3223
        %v3293 = vunpack.c.l.b16 %v3224
        %v3294 = vpack.c.b16 %v3263, %v3262
        %v3295 = vpack.c.b16 %v3265, %v3264
        %v3296 = vpack.c.b16 %v3267, %v3266
        %v3297 = vpack.c.b16 %v3269, %v3268
        %v3298 = vpack.c.b16 %v3271, %v3270
        %v3299 = vpack.c.b16 %v3273, %v3272
        %v3300 = vpack.c.b16 %v3275, %v3274
        %v3301 = vpack.c.b16 %v3277, %v3276
        %v3302 = vpack.c.b16 %v3279, %v3278
        %v3303 = vpack.c.b16 %v3281, %v3280
        %v3304 = vpack.c.b16 %v3283, %v3282
        %v3305 = vpack.c.b16 %v3285, %v3284
        %v3306 = vpack.c.b16 %v3287, %v3286
        %v3307 = vpack.c.b16 %v3289, %v3288
        %v3308 = vpack.c.b16 %v3291, %v3290
        %v3309 = vpack.c.b16 %v3293, %v3292
        %vm3310 = vcmask 64512
        %v3312 = vsel %vm3310, %v3294, 0
        %v3315 = vsel %vm3310, %v3295, 0
        %v3318 = vsel %vm3310, %v3296, 0
        %v3321 = vsel %vm3310, %v3297, 0
        %v3324 = vsel %vm3310, %v3298, 0
        %v3327 = vsel %vm3310, %v3299, 0
        %v3330 = vsel %vm3310, %v3300, 0
        %v3333 = vsel %vm3310, %v3301, 0
        %v3336 = vsel %vm3310, %v3302, 0
        %v3339 = vsel %vm3310, %v3303, 0
        %v3342 = vsel %vm3310, %v3304, 0
        %v3345 = vsel %vm3310, %v3305, 0
        %v3348 = vsel %vm3310, %v3306, 0
        %v3351 = vsel %vm3310, %v3307, 0
        %v3354 = vsel %vm3310, %v3308, 0
        %v3357 = vsel %vm3310, %v3309, 0
        %vm3359 = vcmask 1043456
        %v3361 = vsel %vm3359, %v3225, 0
        %3363 = vmatprep.subr.bf16.mxu0 0
        %3364 = vmatpush1.bf16.msra.mxu0 %v3361
        %3365 = vmatprep.subr.bf16.mxu0 0
        %3366 = vmatpush1.bf16.msra.mxu0 0
        %3367 = vmatprep.subr.bf16.mxu0 0
        %3368 = vmatpush1.bf16.msra.mxu0 0
        %3369 = vmatprep.subr.bf16.mxu0 0
        %3370 = vmatpush1.bf16.msra.mxu0 0
        %3371 = vmatprep.subr.bf16.mxu0 0
        %3372 = vmatpush1.bf16.msra.mxu0 0
        %3373 = vmatprep.subr.bf16.mxu0 0
        %3374 = vmatpush1.bf16.msra.mxu0 0
        %3375 = vmatprep.subr.bf16.mxu0 0
        %3376 = vmatpush1.bf16.msra.mxu0 0
        %3377 = vmatprep.subr.bf16.mxu0 0
        %3378 = vmatpush1.bf16.msra.mxu0 0
        %3379 = vmatprep.subr.bf16.mxu0 0
        %3380 = vmatpush1.bf16.msra.mxu0 0
        %3381 = vmatprep.subr.bf16.mxu0 0
        %3382 = vmatpush1.bf16.msra.mxu0 0
        %3383 = vmatprep.subr.bf16.mxu0 0
        %3384 = vmatpush1.bf16.msra.mxu0 0
        %3385 = vmatprep.subr.bf16.mxu0 0
        %3386 = vmatpush1.bf16.msra.mxu0 0
        %3387 = vmatprep.subr.bf16.mxu0 0
        %3388 = vmatpush1.bf16.msra.mxu0 0
        %3389 = vmatprep.subr.bf16.mxu0 0
        %3390 = vmatpush1.bf16.msra.mxu0 0
        %3391 = vmatprep.subr.bf16.mxu0 0
        %3392 = vmatpush1.bf16.msra.mxu0 0
        %3393 = vmatprep.subr.bf16.mxu0 0
        %3394 = vmatpush1.bf16.msra.mxu0 0
        %3395 = vmatprep.mubr.bf16.mxu0 0
        %3396 = vmatmul.mubr.bf16.gmra.mrb[0].mxu0 %v3312
        %v3397 = vpop.f32.mrb[0].mxu0
        %v3398 = vadd.f32 %v3229, %v3397
        %v3399 = vpop.f32.mrb[0].mxu0
        %v3400 = vpop.f32.mrb[0].mxu0
        %v3401 = vadd.f32 %v3229, %v3400
        %v3402 = vpop.f32.mrb[0].mxu0
        %3403 = vmatprep.mubr.bf16.mxu0 0
        %3404 = vmatmul.mubr.bf16.gmra.mrb[0].mxu0 %v3315
        %v3405 = vpop.f32.mrb[0].mxu0
        %v3406 = vadd.f32 %v3229, %v3405
        %v3407 = vpop.f32.mrb[0].mxu0
        %v3408 = vpop.f32.mrb[0].mxu0
        %v3409 = vadd.f32 %v3229, %v3408
        %v3410 = vpop.f32.mrb[0].mxu0
        %3411 = vmatprep.mubr.bf16.mxu0 0
        %3412 = vmatmul.mubr.bf16.gmra.mrb[0].mxu0 %v3318
        %v3413 = vpop.f32.mrb[0].mxu0
        %v3414 = vadd.f32 %v3229, %v3413
        %v3415 = vpop.f32.mrb[0].mxu0
        %v3416 = vpop.f32.mrb[0].mxu0
        %v3417 = vadd.f32 %v3229, %v3416
        %v3418 = vpop.f32.mrb[0].mxu0
        %3419 = vmatprep.mubr.bf16.mxu0 0
        %3420 = vmatmul.mubr.bf16.gmra.mrb[0].mxu0 %v3321
        %v3421 = vpop.f32.mrb[0].mxu0
        %v3422 = vadd.f32 %v3229, %v3421
        %v3423 = vpop.f32.mrb[0].mxu0
        %v3424 = vpop.f32.mrb[0].mxu0
        %v3425 = vadd.f32 %v3229, %v3424
        %v3426 = vpop.f32.mrb[0].mxu0
        %3427 = vmatprep.mubr.bf16.mxu0 0
        %3428 = vmatmul.mubr.bf16.gmra.mrb[0].mxu0 %v3324
        %v3429 = vpop.f32.mrb[0].mxu0
        %v3430 = vadd.f32 %v3229, %v3429
        %v3431 = vpop.f32.mrb[0].mxu0
        %v3432 = vpop.f32.mrb[0].mxu0
        %v3433 = vadd.f32 %v3229, %v3432
        %v3434 = vpop.f32.mrb[0].mxu0
        %3435 = vmatprep.mubr.bf16.mxu0 0
        %3436 = vmatmul.mubr.bf16.gmra.mrb[0].mxu0 %v3327
        %v3437 = vpop.f32.mrb[0].mxu0
        %v3438 = vadd.f32 %v3229, %v3437
        %v3439 = vpop.f32.mrb[0].mxu0
        %v3440 = vpop.f32.mrb[0].mxu0
        %v3441 = vadd.f32 %v3229, %v3440
        %v3442 = vpop.f32.mrb[0].mxu0
        %3443 = vmatprep.mubr.bf16.mxu0 0
        %3444 = vmatmul.mubr.bf16.gmra.mrb[0].mxu0 %v3330
        %v3445 = vpop.f32.mrb[0].mxu0
        %v3446 = vadd.f32 %v3229, %v3445
        %v3447 = vpop.f32.mrb[0].mxu0
        %v3448 = vpop.f32.mrb[0].mxu0
        %v3449 = vadd.f32 %v3229, %v3448
        %v3450 = vpop.f32.mrb[0].mxu0
        %3451 = vmatprep.mubr.bf16.mxu0 0
        %3452 = vmatmul.mubr.bf16.gmra.mrb[0].mxu0 %v3333
        %v3453 = vpop.f32.mrb[0].mxu0
        %v3454 = vadd.f32 %v3229, %v3453
        %v3455 = vpop.f32.mrb[0].mxu0
        %v3456 = vpop.f32.mrb[0].mxu0
        %v3457 = vadd.f32 %v3229, %v3456
        %v3458 = vpop.f32.mrb[0].mxu0
        %3459 = vmatprep.mubr.bf16.mxu0 0
        %3460 = vmatmul.mubr.bf16.gmra.mrb[0].mxu0 %v3336
        %v3461 = vpop.f32.mrb[0].mxu0
        %v3462 = vadd.f32 %v3229, %v3461
        %v3463 = vpop.f32.mrb[0].mxu0
        %v3464 = vpop.f32.mrb[0].mxu0
        %v3465 = vadd.f32 %v3229, %v3464
        %v3466 = vpop.f32.mrb[0].mxu0
        %3467 = vmatprep.mubr.bf16.mxu0 0
        %3468 = vmatmul.mubr.bf16.gmra.mrb[0].mxu0 %v3339
        %v3469 = vpop.f32.mrb[0].mxu0
        %v3470 = vadd.f32 %v3229, %v3469
        %v3471 = vpop.f32.mrb[0].mxu0
        %v3472 = vpop.f32.mrb[0].mxu0
        %v3473 = vadd.f32 %v3229, %v3472
        %v3474 = vpop.f32.mrb[0].mxu0
        %3475 = vmatprep.mubr.bf16.mxu0 0
        %3476 = vmatmul.mubr.bf16.gmra.mrb[0].mxu0 %v3342
        %v3477 = vpop.f32.mrb[0].mxu0
        %v3478 = vadd.f32 %v3229, %v3477
        %v3479 = vpop.f32.mrb[0].mxu0
        %v3480 = vpop.f32.mrb[0].mxu0
        %v3481 = vadd.f32 %v3229, %v3480
        %v3482 = vpop.f32.mrb[0].mxu0
        %3483 = vmatprep.mubr.bf16.mxu0 0
        %3484 = vmatmul.mubr.bf16.gmra.mrb[0].mxu0 %v3345
        %v3485 = vpop.f32.mrb[0].mxu0
        %v3486 = vadd.f32 %v3229, %v3485
        %v3487 = vpop.f32.mrb[0].mxu0
        %v3488 = vpop.f32.mrb[0].mxu0
        %v3489 = vadd.f32 %v3229, %v3488
        %v3490 = vpop.f32.mrb[0].mxu0
        %3491 = vmatprep.mubr.bf16.mxu0 0
        %3492 = vmatmul.mubr.bf16.gmra.mrb[0].mxu0 %v3348
        %v3493 = vpop.f32.mrb[0].mxu0
        %v3494 = vadd.f32 %v3229, %v3493
        %v3495 = vpop.f32.mrb[0].mxu0
        %v3496 = vpop.f32.mrb[0].mxu0
        %v3497 = vadd.f32 %v3229, %v3496
        %v3498 = vpop.f32.mrb[0].mxu0
        %3499 = vmatprep.mubr.bf16.mxu0 0
        %3500 = vmatmul.mubr.bf16.gmra.mrb[0].mxu0 %v3351
        %v3501 = vpop.f32.mrb[0].mxu0
        %v3502 = vadd.f32 %v3229, %v3501
        %v3503 = vpop.f32.mrb[0].mxu0
        %v3504 = vpop.f32.mrb[0].mxu0
        %v3505 = vadd.f32 %v3229, %v3504
        %v3506 = vpop.f32.mrb[0].mxu0
        %3507 = vmatprep.mubr.bf16.mxu0 0
        %3508 = vmatmul.mubr.bf16.gmra.mrb[0].mxu0 %v3354
        %v3509 = vpop.f32.mrb[0].mxu0
        %v3510 = vadd.f32 %v3229, %v3509
        %v3511 = vpop.f32.mrb[0].mxu0
        %v3512 = vpop.f32.mrb[0].mxu0
        %v3513 = vadd.f32 %v3229, %v3512
        %v3514 = vpop.f32.mrb[0].mxu0
        %3515 = vmatprep.mubr.bf16.mxu0 0
        %3516 = vmatmul.mubr.bf16.gmra.mrb[0].mxu0 %v3357
        %v3517 = vpop.f32.mrb[0].mxu0
        %v3518 = vadd.f32 %v3229, %v3517
        %v3519 = vpop.f32.mrb[0].mxu0
        %v3520 = vpop.f32.mrb[0].mxu0
        %v3521 = vadd.f32 %v3229, %v3520
        %v3522 = vpop.f32.mrb[0].mxu0
        %3523 = vdwg.mxu0
        %v3524 = vmax.f32 %v3398, 0.0
        %v3525 = vmax.f32 %v3401, 0.0
        %v3526 = vmax.f32 %v3406, 0.0
        %v3527 = vmax.f32 %v3409, 0.0
        %v3528 = vmax.f32 %v3414, 0.0
        %v3529 = vmax.f32 %v3417, 0.0
        %v3530 = vmax.f32 %v3422, 0.0
        %v3531 = vmax.f32 %v3425, 0.0
        %v3532 = vmax.f32 %v3430, 0.0
        %v3533 = vmax.f32 %v3433, 0.0
        %v3534 = vmax.f32 %v3438, 0.0
        %v3535 = vmax.f32 %v3441, 0.0
        %v3536 = vmax.f32 %v3446, 0.0
        %v3537 = vmax.f32 %v3449, 0.0
        %v3538 = vmax.f32 %v3454, 0.0
        %v3539 = vmax.f32 %v3457, 0.0
        %v3540 = vmax.f32 %v3462, 0.0
        %v3541 = vmax.f32 %v3465, 0.0
        %v3542 = vmax.f32 %v3470, 0.0
        %v3543 = vmax.f32 %v3473, 0.0
        %v3544 = vmax.f32 %v3478, 0.0
        %v3545 = vmax.f32 %v3481, 0.0
        %v3546 = vmax.f32 %v3486, 0.0
        %v3547 = vmax.f32 %v3489, 0.0
        %v3548 = vmax.f32 %v3494, 0.0
        %v3549 = vmax.f32 %v3497, 0.0
        %v3550 = vmax.f32 %v3502, 0.0
        %v3551 = vmax.f32 %v3505, 0.0
        %v3552 = vmax.f32 %v3510, 0.0
        %v3553 = vmax.f32 %v3513, 0.0
        %v3554 = vmax.f32 %v3518, 0.0
        %v3555 = vmax.f32 %v3521, 0.0
        %s3556 = scalar_lea.vmem %s5, 16
        %v3557 = vld [vmem:[%s3556] sm:$0xf]
        %v3558 = vld [vmem:[%s3556 + $0x4] sm:$0xf]
        %v3559 = vld [vmem:[%s3556 + $0x8] sm:$0xf]
        %v3560 = vld [vmem:[%s3556 + $0xc] sm:$0xf]
        %v3561 = vpack.c.bf16 %v3525, %v3524
        %v3562 = vpack.c.bf16 %v3527, %v3526
        %v3563 = vpack.c.bf16 %v3529, %v3528
        %v3564 = vpack.c.bf16 %v3531, %v3530
        %v3565 = vpack.c.bf16 %v3533, %v3532
        %v3566 = vpack.c.bf16 %v3535, %v3534
        %v3567 = vpack.c.bf16 %v3537, %v3536
        %v3568 = vpack.c.bf16 %v3539, %v3538
        %v3569 = vpack.c.bf16 %v3541, %v3540
        %v3570 = vpack.c.bf16 %v3543, %v3542
        %v3571 = vpack.c.bf16 %v3545, %v3544
        %v3572 = vpack.c.bf16 %v3547, %v3546
        %v3573 = vpack.c.bf16 %v3549, %v3548
        %v3574 = vpack.c.bf16 %v3551, %v3550
        %v3575 = vpack.c.bf16 %v3553, %v3552
        %v3576 = vpack.c.bf16 %v3555, %v3554
        %v3577 = vlaneseq
        %v3578 = vshrl.u32 %v3577, 7
        %v3579 = vsub.s32 0, %v3578
        %v3580 = vrot.slane %v437, %v3579
        %v3585 = vunpack.c.l.b16 %v3557
        %v3586 = vunpack.c.l.b16 %v3558
        %v3587 = vunpack.c.l.b16 %v3559
        %v3588 = vunpack.c.l.b16 %v3560
        %v3589 = vpack.c.b16 %v3586, %v3585
        %v3590 = vpack.c.b16 %v3588, %v3587
        %v3594 = vsel %vm2710, %v3561, 0
        %v3597 = vsel %vm2710, %v3562, 0
        %v3600 = vsel %vm2710, %v3563, 0
        %v3603 = vsel %vm2710, %v3564, 0
        %v3606 = vsel %vm2710, %v3565, 0
        %v3609 = vsel %vm2710, %v3566, 0
        %v3612 = vsel %vm2710, %v3567, 0
        %v3615 = vsel %vm2710, %v3568, 0
        %v3618 = vsel %vm2710, %v3569, 0
        %v3621 = vsel %vm2710, %v3570, 0
        %v3624 = vsel %vm2710, %v3571, 0
        %v3627 = vsel %vm2710, %v3572, 0
        %v3630 = vsel %vm2710, %v3573, 0
        %v3633 = vsel %vm2710, %v3574, 0
        %v3636 = vsel %vm2710, %v3575, 0
        %v3639 = vsel %vm2710, %v3576, 0
        %3641 = vmatprep.subr.bf16.mxu0 0
        %3642 = vmatpush1.bf16.msra.mxu0 %v3589
        %3643 = vmatprep.subr.bf16.mxu0 0
        %3644 = vmatpush1.bf16.msra.mxu0 %v3590
        %3645 = vmatprep.subr.bf16.mxu0 0
        %3646 = vmatpush1.bf16.msra.mxu0 0
        %3647 = vmatprep.subr.bf16.mxu0 0
        %3648 = vmatpush1.bf16.msra.mxu0 0
        %3649 = vmatprep.subr.bf16.mxu0 0
        %3650 = vmatpush1.bf16.msra.mxu0 0
        %3651 = vmatprep.subr.bf16.mxu0 0
        %3652 = vmatpush1.bf16.msra.mxu0 0
        %3653 = vmatprep.subr.bf16.mxu0 0
        %3654 = vmatpush1.bf16.msra.mxu0 0
        %3655 = vmatprep.subr.bf16.mxu0 0
        %3656 = vmatpush1.bf16.msra.mxu0 0
        %3657 = vmatprep.subr.bf16.mxu0 0
        %3658 = vmatpush1.bf16.msra.mxu0 0
        %3659 = vmatprep.subr.bf16.mxu0 0
        %3660 = vmatpush1.bf16.msra.mxu0 0
        %3661 = vmatprep.subr.bf16.mxu0 0
        %3662 = vmatpush1.bf16.msra.mxu0 0
        %3663 = vmatprep.subr.bf16.mxu0 0
        %3664 = vmatpush1.bf16.msra.mxu0 0
        %3665 = vmatprep.subr.bf16.mxu0 0
        %3666 = vmatpush1.bf16.msra.mxu0 0
        %3667 = vmatprep.subr.bf16.mxu0 0
        %3668 = vmatpush1.bf16.msra.mxu0 0
        %3669 = vmatprep.subr.bf16.mxu0 0
        %3670 = vmatpush1.bf16.msra.mxu0 0
        %3671 = vmatprep.subr.bf16.mxu0 0
        %3672 = vmatpush1.bf16.msra.mxu0 0
        %3673 = vmatprep.mubr.bf16.mxu0 0
        %3674 = vmatmul.mubr.bf16.gmra.mrb[0].mxu0 %v3594
        %v3675 = vpop.f32.mrb[0].mxu0
        %v3676 = vadd.f32 %v3580, %v3675
        %v3677 = vpop.f32.mrb[0].mxu0
        %v3678 = vpop.f32.mrb[0].mxu0
        %v3679 = vadd.f32 %v3580, %v3678
        %v3680 = vpop.f32.mrb[0].mxu0
        %3681 = vmatprep.mubr.bf16.mxu0 0
        %3682 = vmatmul.mubr.bf16.gmra.mrb[0].mxu0 %v3597
        %v3683 = vpop.f32.mrb[0].mxu0
        %v3684 = vadd.f32 %v3580, %v3683
        %v3685 = vpop.f32.mrb[0].mxu0
        %v3686 = vpop.f32.mrb[0].mxu0
        %v3687 = vadd.f32 %v3580, %v3686
        %v3688 = vpop.f32.mrb[0].mxu0
        %3689 = vmatprep.mubr.bf16.mxu0 0
        %3690 = vmatmul.mubr.bf16.gmra.mrb[0].mxu0 %v3600
        %v3691 = vpop.f32.mrb[0].mxu0
        %v3692 = vadd.f32 %v3580, %v3691
        %v3693 = vpop.f32.mrb[0].mxu0
        %v3694 = vpop.f32.mrb[0].mxu0
        %v3695 = vadd.f32 %v3580, %v3694
        %v3696 = vpop.f32.mrb[0].mxu0
        %3697 = vmatprep.mubr.bf16.mxu0 0
        %3698 = vmatmul.mubr.bf16.gmra.mrb[0].mxu0 %v3603
        %v3699 = vpop.f32.mrb[0].mxu0
        %v3700 = vadd.f32 %v3580, %v3699
        %v3701 = vpop.f32.mrb[0].mxu0
        %v3702 = vpop.f32.mrb[0].mxu0
        %v3703 = vadd.f32 %v3580, %v3702
        %v3704 = vpop.f32.mrb[0].mxu0
        %3705 = vmatprep.mubr.bf16.mxu0 0
        %3706 = vmatmul.mubr.bf16.gmra.mrb[0].mxu0 %v3606
        %v3707 = vpop.f32.mrb[0].mxu0
        %v3708 = vadd.f32 %v3580, %v3707
        %v3709 = vpop.f32.mrb[0].mxu0
        %v3710 = vpop.f32.mrb[0].mxu0
        %v3711 = vadd.f32 %v3580, %v3710
        %v3712 = vpop.f32.mrb[0].mxu0
        %3713 = vmatprep.mubr.bf16.mxu0 0
        %3714 = vmatmul.mubr.bf16.gmra.mrb[0].mxu0 %v3609
        %v3715 = vpop.f32.mrb[0].mxu0
        %v3716 = vadd.f32 %v3580, %v3715
        %v3717 = vpop.f32.mrb[0].mxu0
        %v3718 = vpop.f32.mrb[0].mxu0
        %v3719 = vadd.f32 %v3580, %v3718
        %v3720 = vpop.f32.mrb[0].mxu0
        %3721 = vmatprep.mubr.bf16.mxu0 0
        %3722 = vmatmul.mubr.bf16.gmra.mrb[0].mxu0 %v3612
        %v3723 = vpop.f32.mrb[0].mxu0
        %v3724 = vadd.f32 %v3580, %v3723
        %v3725 = vpop.f32.mrb[0].mxu0
        %v3726 = vpop.f32.mrb[0].mxu0
        %v3727 = vadd.f32 %v3580, %v3726
        %v3728 = vpop.f32.mrb[0].mxu0
        %3729 = vmatprep.mubr.bf16.mxu0 0
        %3730 = vmatmul.mubr.bf16.gmra.mrb[0].mxu0 %v3615
        %v3731 = vpop.f32.mrb[0].mxu0
        %v3732 = vadd.f32 %v3580, %v3731
        %v3733 = vpop.f32.mrb[0].mxu0
        %v3734 = vpop.f32.mrb[0].mxu0
        %v3735 = vadd.f32 %v3580, %v3734
        %v3736 = vpop.f32.mrb[0].mxu0
        %3737 = vmatprep.mubr.bf16.mxu0 0
        %3738 = vmatmul.mubr.bf16.gmra.mrb[0].mxu0 %v3618
        %v3739 = vpop.f32.mrb[0].mxu0
        %v3740 = vadd.f32 %v3580, %v3739
        %v3741 = vpop.f32.mrb[0].mxu0
        %v3742 = vpop.f32.mrb[0].mxu0
        %v3743 = vadd.f32 %v3580, %v3742
        %v3744 = vpop.f32.mrb[0].mxu0
        %3745 = vmatprep.mubr.bf16.mxu0 0
        %3746 = vmatmul.mubr.bf16.gmra.mrb[0].mxu0 %v3621
        %v3747 = vpop.f32.mrb[0].mxu0
        %v3748 = vadd.f32 %v3580, %v3747
        %v3749 = vpop.f32.mrb[0].mxu0
        %v3750 = vpop.f32.mrb[0].mxu0
        %v3751 = vadd.f32 %v3580, %v3750
        %v3752 = vpop.f32.mrb[0].mxu0
        %3753 = vmatprep.mubr.bf16.mxu0 0
        %3754 = vmatmul.mubr.bf16.gmra.mrb[0].mxu0 %v3624
        %v3755 = vpop.f32.mrb[0].mxu0
        %v3756 = vadd.f32 %v3580, %v3755
        %v3757 = vpop.f32.mrb[0].mxu0
        %v3758 = vpop.f32.mrb[0].mxu0
        %v3759 = vadd.f32 %v3580, %v3758
        %v3760 = vpop.f32.mrb[0].mxu0
        %3761 = vmatprep.mubr.bf16.mxu0 0
        %3762 = vmatmul.mubr.bf16.gmra.mrb[0].mxu0 %v3627
        %v3763 = vpop.f32.mrb[0].mxu0
        %v3764 = vadd.f32 %v3580, %v3763
        %v3765 = vpop.f32.mrb[0].mxu0
        %v3766 = vpop.f32.mrb[0].mxu0
        %v3767 = vadd.f32 %v3580, %v3766
        %v3768 = vpop.f32.mrb[0].mxu0
        %3769 = vmatprep.mubr.bf16.mxu0 0
        %3770 = vmatmul.mubr.bf16.gmra.mrb[0].mxu0 %v3630
        %v3771 = vpop.f32.mrb[0].mxu0
        %v3772 = vadd.f32 %v3580, %v3771
        %v3773 = vpop.f32.mrb[0].mxu0
        %v3774 = vpop.f32.mrb[0].mxu0
        %v3775 = vadd.f32 %v3580, %v3774
        %v3776 = vpop.f32.mrb[0].mxu0
        %3777 = vmatprep.mubr.bf16.mxu0 0
        %3778 = vmatmul.mubr.bf16.gmra.mrb[0].mxu0 %v3633
        %v3779 = vpop.f32.mrb[0].mxu0
        %v3780 = vadd.f32 %v3580, %v3779
        %v3781 = vpop.f32.mrb[0].mxu0
        %v3782 = vpop.f32.mrb[0].mxu0
        %v3783 = vadd.f32 %v3580, %v3782
        %v3784 = vpop.f32.mrb[0].mxu0
        %3785 = vmatprep.mubr.bf16.mxu0 0
        %3786 = vmatmul.mubr.bf16.gmra.mrb[0].mxu0 %v3636
        %v3787 = vpop.f32.mrb[0].mxu0
        %v3788 = vadd.f32 %v3580, %v3787
        %v3789 = vpop.f32.mrb[0].mxu0
        %v3790 = vpop.f32.mrb[0].mxu0
        %v3791 = vadd.f32 %v3580, %v3790
        %v3792 = vpop.f32.mrb[0].mxu0
        %3793 = vmatprep.mubr.bf16.mxu0 0
        %3794 = vmatmul.mubr.bf16.gmra.mrb[0].mxu0 %v3639
        %v3795 = vpop.f32.mrb[0].mxu0
        %v3796 = vadd.f32 %v3580, %v3795
        %v3797 = vpop.f32.mrb[0].mxu0
        %v3798 = vpop.f32.mrb[0].mxu0
        %v3799 = vadd.f32 %v3580, %v3798
        %v3800 = vpop.f32.mrb[0].mxu0
        %3801 = vdwg.mxu0
        %v3802 = vmax.f32 %v3676, 0.0
        %v3803 = vmax.f32 %v3679, 0.0
        %v3804 = vmax.f32 %v3684, 0.0
        %v3805 = vmax.f32 %v3687, 0.0
        %v3806 = vmax.f32 %v3692, 0.0
        %v3807 = vmax.f32 %v3695, 0.0
        %v3808 = vmax.f32 %v3700, 0.0
        %v3809 = vmax.f32 %v3703, 0.0
        %v3810 = vmax.f32 %v3708, 0.0
        %v3811 = vmax.f32 %v3711, 0.0
        %v3812 = vmax.f32 %v3716, 0.0
        %v3813 = vmax.f32 %v3719, 0.0
        %v3814 = vmax.f32 %v3724, 0.0
        %v3815 = vmax.f32 %v3727, 0.0
        %v3816 = vmax.f32 %v3732, 0.0
        %v3817 = vmax.f32 %v3735, 0.0
        %v3818 = vmax.f32 %v3740, 0.0
        %v3819 = vmax.f32 %v3743, 0.0
        %v3820 = vmax.f32 %v3748, 0.0
        %v3821 = vmax.f32 %v3751, 0.0
        %v3822 = vmax.f32 %v3756, 0.0
        %v3823 = vmax.f32 %v3759, 0.0
        %v3824 = vmax.f32 %v3764, 0.0
        %v3825 = vmax.f32 %v3767, 0.0
        %v3826 = vmax.f32 %v3772, 0.0
        %v3827 = vmax.f32 %v3775, 0.0
        %v3828 = vmax.f32 %v3780, 0.0
        %v3829 = vmax.f32 %v3783, 0.0
        %v3830 = vmax.f32 %v3788, 0.0
        %v3831 = vmax.f32 %v3791, 0.0
        %v3832 = vmax.f32 %v3796, 0.0
        %v3833 = vmax.f32 %v3799, 0.0
        %v3834 = vld [vmem:[%s426] sm:$0xff]
        %v3835 = vld [vmem:[%s426 + $0x8] sm:$0xff]
        %v3836 = vld [vmem:[%s426 + $0x10] sm:$0xff]
        %v3837 = vld [vmem:[%s426 + $0x18] sm:$0xff]
        %v3838 = vld [vmem:[%s426 + $0x20] sm:$0xff]
        %v3839 = vld [vmem:[%s426 + $0x28] sm:$0xff]
        %v3840 = vld [vmem:[%s426 + $0x30] sm:$0xff]
        %v3841 = vld [vmem:[%s426 + $0x38] sm:$0xff]
        %v3842 = vld [vmem:[%s426 + $0x40] sm:$0xff]
        %v3843 = vld [vmem:[%s426 + $0x48] sm:$0xff]
        %v3844 = vld [vmem:[%s426 + $0x50] sm:$0xff]
        %v3845 = vld [vmem:[%s426 + $0x58] sm:$0xff]
        %v3846 = vld [vmem:[%s426 + $0x60] sm:$0xff]
        %v3847 = vld [vmem:[%s426 + $0x68] sm:$0xff]
        %v3848 = vld [vmem:[%s426 + $0x70] sm:$0xff]
        %v3849 = vld [vmem:[%s426 + $0x78] sm:$0xff]
        %v3850 = vld [vmem:[%s426 + $0x80] sm:$0xff]
        %v3851 = vld [vmem:[%s426 + $0x88] sm:$0xff]
        %v3852 = vld [vmem:[%s426 + $0x90] sm:$0xff]
        %v3853 = vld [vmem:[%s426 + $0x98] sm:$0xff]
        %v3854 = vld [vmem:[%s426 + $0xa0] sm:$0xff]
        %v3855 = vld [vmem:[%s426 + $0xa8] sm:$0xff]
        %v3856 = vld [vmem:[%s426 + $0xb0] sm:$0xff]
        %v3857 = vld [vmem:[%s426 + $0xb8] sm:$0xff]
        %v3858 = vld [vmem:[%s426 + $0xc0] sm:$0xff]
        %v3859 = vld [vmem:[%s426 + $0xc8] sm:$0xff]
        %v3860 = vld [vmem:[%s426 + $0xd0] sm:$0xff]
        %v3861 = vld [vmem:[%s426 + $0xd8] sm:$0xff]
        %v3862 = vld [vmem:[%s426 + $0xe0] sm:$0xff]
        %v3863 = vld [vmem:[%s426 + $0xe8] sm:$0xff]
        %v3864 = vld [vmem:[%s426 + $0xf0] sm:$0xff]
        %v3865 = vld [vmem:[%s426 + $0xf8] sm:$0xff]
        %v3866 = vpack.c.bf16 %v3803, %v3802
        %v3867 = vpack.c.bf16 %v3805, %v3804
        %v3868 = vpack.c.bf16 %v3807, %v3806
        %v3869 = vpack.c.bf16 %v3809, %v3808
        %v3870 = vpack.c.bf16 %v3811, %v3810
        %v3871 = vpack.c.bf16 %v3813, %v3812
        %v3872 = vpack.c.bf16 %v3815, %v3814
        %v3873 = vpack.c.bf16 %v3817, %v3816
        %v3874 = vpack.c.bf16 %v3819, %v3818
        %v3875 = vpack.c.bf16 %v3821, %v3820
        %v3876 = vpack.c.bf16 %v3823, %v3822
        %v3877 = vpack.c.bf16 %v3825, %v3824
        %v3878 = vpack.c.bf16 %v3827, %v3826
        %v3879 = vpack.c.bf16 %v3829, %v3828
        %v3880 = vpack.c.bf16 %v3831, %v3830
        %v3881 = vpack.c.bf16 %v3833, %v3832
        %3882 = vst.msk [vmem:[#allocation2] sm:$0xff] %vm2710, %v3866
        %3883 = vst.msk [vmem:[#allocation2 + $0x8] sm:$0xff] %vm2710, %v3867
        %3884 = vst.msk [vmem:[#allocation2 + $0x10] sm:$0xff] %vm2710, %v3868
        %3885 = vst.msk [vmem:[#allocation2 + $0x18] sm:$0xff] %vm2710, %v3869
        %3886 = vst.msk [vmem:[#allocation2 + $0x20] sm:$0xff] %vm2710, %v3870
        %3887 = vst.msk [vmem:[#allocation2 + $0x28] sm:$0xff] %vm2710, %v3871
        %3888 = vst.msk [vmem:[#allocation2 + $0x30] sm:$0xff] %vm2710, %v3872
        %3889 = vst.msk [vmem:[#allocation2 + $0x38] sm:$0xff] %vm2710, %v3873
        %3890 = vst.msk [vmem:[#allocation2 + $0x40] sm:$0xff] %vm2710, %v3874
        %3891 = vst.msk [vmem:[#allocation2 + $0x48] sm:$0xff] %vm2710, %v3875
        %3892 = vst.msk [vmem:[#allocation2 + $0x50] sm:$0xff] %vm2710, %v3876
        %3893 = vst.msk [vmem:[#allocation2 + $0x58] sm:$0xff] %vm2710, %v3877
        %3894 = vst.msk [vmem:[#allocation2 + $0x60] sm:$0xff] %vm2710, %v3878
        %3895 = vst.msk [vmem:[#allocation2 + $0x68] sm:$0xff] %vm2710, %v3879
        %3896 = vst.msk [vmem:[#allocation2 + $0x70] sm:$0xff] %vm2710, %v3880
        %3897 = vst.msk [vmem:[#allocation2 + $0x78] sm:$0xff] %vm2710, %v3881
        %3914 = vrot.lane.b32.xlu0 %v2956, 96
        %v3915 = vpop.permute.xlu0 %3914
        %3916 = vrot.lane.b32.xlu0 %v2957, 96
        %v3917 = vpop.permute.xlu0 %3916
        %3918 = vrot.lane.b32.xlu0 %v2958, 96
        %v3919 = vpop.permute.xlu0 %3918
        %3920 = vrot.lane.b32.xlu0 %v2959, 96
        %v3921 = vpop.permute.xlu0 %3920
        %3922 = vrot.lane.b32.xlu0 %v2960, 96
        %v3923 = vpop.permute.xlu0 %3922
        %3924 = vrot.lane.b32.xlu0 %v2961, 96
        %v3925 = vpop.permute.xlu0 %3924
        %3926 = vrot.lane.b32.xlu0 %v2962, 96
        %v3927 = vpop.permute.xlu0 %3926
        %3928 = vrot.lane.b32.xlu0 %v2963, 96
        %v3929 = vpop.permute.xlu0 %3928
        %3930 = vrot.lane.b32.xlu0 %v2964, 96
        %v3931 = vpop.permute.xlu0 %3930
        %3932 = vrot.lane.b32.xlu0 %v2965, 96
        %v3933 = vpop.permute.xlu0 %3932
        %3934 = vrot.lane.b32.xlu0 %v2966, 96
        %v3935 = vpop.permute.xlu0 %3934
        %3936 = vrot.lane.b32.xlu0 %v2967, 96
        %v3937 = vpop.permute.xlu0 %3936
        %3938 = vrot.lane.b32.xlu0 %v2968, 96
        %v3939 = vpop.permute.xlu0 %3938
        %3940 = vrot.lane.b32.xlu0 %v2969, 96
        %v3941 = vpop.permute.xlu0 %3940
        %3942 = vrot.lane.b32.xlu0 %v2970, 96
        %v3943 = vpop.permute.xlu0 %3942
        %3944 = vrot.lane.b32.xlu0 %v2971, 96
        %v3945 = vpop.permute.xlu0 %3944
        %vm3962 = vcmask 1048320
        %3963 = vst.msk [vmem:[#allocation2] sm:$0xff] %vm3962, %v3915
        %3964 = vst.msk [vmem:[#allocation2 + $0x8] sm:$0xff] %vm3962, %v3917
        %3965 = vst.msk [vmem:[#allocation2 + $0x10] sm:$0xff] %vm3962, %v3919
        %3966 = vst.msk [vmem:[#allocation2 + $0x18] sm:$0xff] %vm3962, %v3921
        %3967 = vst.msk [vmem:[#allocation2 + $0x20] sm:$0xff] %vm3962, %v3923
        %3968 = vst.msk [vmem:[#allocation2 + $0x28] sm:$0xff] %vm3962, %v3925
        %3969 = vst.msk [vmem:[#allocation2 + $0x30] sm:$0xff] %vm3962, %v3927
        %3970 = vst.msk [vmem:[#allocation2 + $0x38] sm:$0xff] %vm3962, %v3929
        %3971 = vst.msk [vmem:[#allocation2 + $0x40] sm:$0xff] %vm3962, %v3931
        %3972 = vst.msk [vmem:[#allocation2 + $0x48] sm:$0xff] %vm3962, %v3933
        %3973 = vst.msk [vmem:[#allocation2 + $0x50] sm:$0xff] %vm3962, %v3935
        %3974 = vst.msk [vmem:[#allocation2 + $0x58] sm:$0xff] %vm3962, %v3937
        %3975 = vst.msk [vmem:[#allocation2 + $0x60] sm:$0xff] %vm3962, %v3939
        %3976 = vst.msk [vmem:[#allocation2 + $0x68] sm:$0xff] %vm3962, %v3941
        %3977 = vst.msk [vmem:[#allocation2 + $0x70] sm:$0xff] %vm3962, %v3943
        %3978 = vst.msk [vmem:[#allocation2 + $0x78] sm:$0xff] %vm3962, %v3945
        %v3979 = vld [vmem:[%s11 + $0x8] sm:$0x1]
        %v3980 = vlaneseq
        %v3981 = vshrl.u32 %v3980, 7
        %v3982 = vsub.s32 0, %v3981
        %v3983 = vrot.slane %v3979, %v3982
        %v3984 = vadd.f32 %v3067, %v3983
        %v3985 = vadd.f32 %v3070, %v3983
        %v3986 = vadd.f32 %v3075, %v3983
        %v3987 = vadd.f32 %v3078, %v3983
        %v3988 = vadd.f32 %v3083, %v3983
        %v3989 = vadd.f32 %v3086, %v3983
        %v3990 = vadd.f32 %v3091, %v3983
        %v3991 = vadd.f32 %v3094, %v3983
        %v3992 = vadd.f32 %v3099, %v3983
        %v3993 = vadd.f32 %v3102, %v3983
        %v3994 = vadd.f32 %v3107, %v3983
        %v3995 = vadd.f32 %v3110, %v3983
        %v3996 = vadd.f32 %v3115, %v3983
        %v3997 = vadd.f32 %v3118, %v3983
        %v3998 = vadd.f32 %v3123, %v3983
        %v3999 = vadd.f32 %v3126, %v3983
        %v4000 = vadd.f32 %v3131, %v3983
        %v4001 = vadd.f32 %v3134, %v3983
        %v4002 = vadd.f32 %v3139, %v3983
        %v4003 = vadd.f32 %v3142, %v3983
        %v4004 = vadd.f32 %v3147, %v3983
        %v4005 = vadd.f32 %v3150, %v3983
        %v4006 = vadd.f32 %v3155, %v3983
        %v4007 = vadd.f32 %v3158, %v3983
        %v4008 = vadd.f32 %v3163, %v3983
        %v4009 = vadd.f32 %v3166, %v3983
        %v4010 = vadd.f32 %v3171, %v3983
        %v4011 = vadd.f32 %v3174, %v3983
        %v4012 = vadd.f32 %v3179, %v3983
        %v4013 = vadd.f32 %v3182, %v3983
        %v4014 = vadd.f32 %v3187, %v3983
        %v4015 = vadd.f32 %v3190, %v3983
        %v4048 = vunpack.c.l.b16 %v3834
        %v4049 = vunpack.c.h.b16 %v3834
        %v4050 = vunpack.c.l.b16 %v3835
        %v4051 = vunpack.c.h.b16 %v3835
        %v4052 = vunpack.c.l.b16 %v3836
        %v4053 = vunpack.c.h.b16 %v3836
        %v4054 = vunpack.c.l.b16 %v3837
        %v4055 = vunpack.c.h.b16 %v3837
        %v4056 = vunpack.c.l.b16 %v3838
        %v4057 = vunpack.c.h.b16 %v3838
        %v4058 = vunpack.c.l.b16 %v3839
        %v4059 = vunpack.c.h.b16 %v3839
        %v4060 = vunpack.c.l.b16 %v3840
        %v4061 = vunpack.c.h.b16 %v3840
        %v4062 = vunpack.c.l.b16 %v3841
        %v4063 = vunpack.c.h.b16 %v3841
        %v4064 = vunpack.c.l.b16 %v3842
        %v4065 = vunpack.c.h.b16 %v3842
        %v4066 = vunpack.c.l.b16 %v3843
        %v4067 = vunpack.c.h.b16 %v3843
        %v4068 = vunpack.c.l.b16 %v3844
        %v4069 = vunpack.c.h.b16 %v3844
        %v4070 = vunpack.c.l.b16 %v3845
        %v4071 = vunpack.c.h.b16 %v3845
        %v4072 = vunpack.c.l.b16 %v3846
        %v4073 = vunpack.c.h.b16 %v3846
        %v4074 = vunpack.c.l.b16 %v3847
        %v4075 = vunpack.c.h.b16 %v3847
        %v4076 = vunpack.c.l.b16 %v3848
        %v4077 = vunpack.c.h.b16 %v3848
        %v4078 = vunpack.c.l.b16 %v3849
        %v4079 = vunpack.c.h.b16 %v3849
        %v4080 = vunpack.c.l.b16 %v3850
        %v4081 = vunpack.c.h.b16 %v3850
        %v4082 = vunpack.c.l.b16 %v3851
        %v4083 = vunpack.c.h.b16 %v3851
        %v4084 = vunpack.c.l.b16 %v3852
        %v4085 = vunpack.c.h.b16 %v3852
        %v4086 = vunpack.c.l.b16 %v3853
        %v4087 = vunpack.c.h.b16 %v3853
        %v4088 = vunpack.c.l.b16 %v3854
        %v4089 = vunpack.c.h.b16 %v3854
        %v4090 = vunpack.c.l.b16 %v3855
        %v4091 = vunpack.c.h.b16 %v3855
        %v4092 = vunpack.c.l.b16 %v3856
        %v4093 = vunpack.c.h.b16 %v3856
        %v4094 = vunpack.c.l.b16 %v3857
        %v4095 = vunpack.c.h.b16 %v3857
        %v4096 = vunpack.c.l.b16 %v3858
        %v4097 = vunpack.c.h.b16 %v3858
        %v4098 = vunpack.c.l.b16 %v3859
        %v4099 = vunpack.c.h.b16 %v3859
        %v4100 = vunpack.c.l.b16 %v3860
        %v4101 = vunpack.c.h.b16 %v3860
        %v4102 = vunpack.c.l.b16 %v3861
        %v4103 = vunpack.c.h.b16 %v3861
        %v4104 = vunpack.c.l.b16 %v3862
        %v4105 = vunpack.c.h.b16 %v3862
        %v4106 = vunpack.c.l.b16 %v3863
        %v4107 = vunpack.c.h.b16 %v3863
        %v4108 = vunpack.c.l.b16 %v3864
        %v4109 = vunpack.c.h.b16 %v3864
        %v4110 = vunpack.c.l.b16 %v3865
        %v4111 = vunpack.c.h.b16 %v3865
        %v4112 = vpack.c.b16 %v4050, %v4048
        %v4113 = vpack.c.b16 %v4051, %v4049
        %v4114 = vpack.c.b16 %v4054, %v4052
        %v4115 = vpack.c.b16 %v4055, %v4053
        %v4116 = vpack.c.b16 %v4058, %v4056
        %v4117 = vpack.c.b16 %v4059, %v4057
        %v4118 = vpack.c.b16 %v4062, %v4060
        %v4119 = vpack.c.b16 %v4063, %v4061
        %v4120 = vpack.c.b16 %v4066, %v4064
        %v4121 = vpack.c.b16 %v4067, %v4065
        %v4122 = vpack.c.b16 %v4070, %v4068
        %v4123 = vpack.c.b16 %v4071, %v4069
        %v4124 = vpack.c.b16 %v4074, %v4072
        %v4125 = vpack.c.b16 %v4075, %v4073
        %v4126 = vpack.c.b16 %v4078, %v4076
        %v4127 = vpack.c.b16 %v4079, %v4077
        %v4128 = vpack.c.b16 %v4082, %v4080
        %v4129 = vpack.c.b16 %v4083, %v4081
        %v4130 = vpack.c.b16 %v4086, %v4084
        %v4131 = vpack.c.b16 %v4087, %v4085
        %v4132 = vpack.c.b16 %v4090, %v4088
        %v4133 = vpack.c.b16 %v4091, %v4089
        %v4134 = vpack.c.b16 %v4094, %v4092
        %v4135 = vpack.c.b16 %v4095, %v4093
        %v4136 = vpack.c.b16 %v4098, %v4096
        %v4137 = vpack.c.b16 %v4099, %v4097
        %v4138 = vpack.c.b16 %v4102, %v4100
        %v4139 = vpack.c.b16 %v4103, %v4101
        %v4140 = vpack.c.b16 %v4106, %v4104
        %v4141 = vpack.c.b16 %v4107, %v4105
        %v4142 = vpack.c.b16 %v4110, %v4108
        %v4143 = vpack.c.b16 %v4111, %v4109
        %4176 = vmatprep.subr.bf16.mxu0 0
        %4177 = vmatpush1.bf16.msra.mxu0 %v3866
        %4178 = vmatprep.subr.bf16.mxu0 0
        %4179 = vmatpush1.bf16.msra.mxu0 %v3867
        %4180 = vmatprep.subr.bf16.mxu0 0
        %4181 = vmatpush1.bf16.msra.mxu0 %v3868
        %4182 = vmatprep.subr.bf16.mxu0 0
        %4183 = vmatpush1.bf16.msra.mxu0 %v3869
        %4184 = vmatprep.subr.bf16.mxu0 0
        %4185 = vmatpush1.bf16.msra.mxu0 %v3870
        %4186 = vmatprep.subr.bf16.mxu0 0
        %4187 = vmatpush1.bf16.msra.mxu0 %v3871
        %4188 = vmatprep.subr.bf16.mxu0 0
        %4189 = vmatpush1.bf16.msra.mxu0 %v3872
        %4190 = vmatprep.subr.bf16.mxu0 0
        %4191 = vmatpush1.bf16.msra.mxu0 %v3873
        %4192 = vmatprep.subr.bf16.mxu0 0
        %4193 = vmatpush1.bf16.msra.mxu0 %v3874
        %4194 = vmatprep.subr.bf16.mxu0 0
        %4195 = vmatpush1.bf16.msra.mxu0 %v3875
        %4196 = vmatprep.subr.bf16.mxu0 0
        %4197 = vmatpush1.bf16.msra.mxu0 %v3876
        %4198 = vmatprep.subr.bf16.mxu0 0
        %4199 = vmatpush1.bf16.msra.mxu0 %v3877
        %4200 = vmatprep.subr.bf16.mxu0 0
        %4201 = vmatpush1.bf16.msra.mxu0 %v3878
        %4202 = vmatprep.subr.bf16.mxu0 0
        %4203 = vmatpush1.bf16.msra.mxu0 %v3879
        %4204 = vmatprep.subr.bf16.mxu0 0
        %4205 = vmatpush1.bf16.msra.mxu0 %v3880
        %4206 = vmatprep.subr.bf16.mxu0 0
        %4207 = vmatpush1.bf16.msra.mxu0 %v3881
        %4208 = vmatprep.mubr.bf16.mxu0 %v4113
        %4209 = vmatmul.mubr.bf16.gmra.mrb[0].mxu0 %v4112
        %v4210 = vpop.f32.mrb[0].mxu0
        %v4211 = vadd.f32 0.0, %v4210
        %v4212 = vpop.f32.mrb[0].mxu0
        %v4213 = vpop.f32.mrb[0].mxu0
        %v4214 = vadd.f32 0.0, %v4213
        %v4215 = vpop.f32.mrb[0].mxu0
        %4216 = vmatprep.mubr.bf16.mxu0 %v4115
        %4217 = vmatmul.mubr.bf16.gmra.mrb[0].mxu0 %v4114
        %v4218 = vpop.f32.mrb[0].mxu0
        %v4219 = vadd.f32 0.0, %v4218
        %v4220 = vpop.f32.mrb[0].mxu0
        %v4221 = vpop.f32.mrb[0].mxu0
        %v4222 = vadd.f32 0.0, %v4221
        %v4223 = vpop.f32.mrb[0].mxu0
        %4224 = vmatprep.mubr.bf16.mxu0 %v4117
        %4225 = vmatmul.mubr.bf16.gmra.mrb[0].mxu0 %v4116
        %v4226 = vpop.f32.mrb[0].mxu0
        %v4227 = vadd.f32 0.0, %v4226
        %v4228 = vpop.f32.mrb[0].mxu0
        %v4229 = vpop.f32.mrb[0].mxu0
        %v4230 = vadd.f32 0.0, %v4229
        %v4231 = vpop.f32.mrb[0].mxu0
        %4232 = vmatprep.mubr.bf16.mxu0 %v4119
        %4233 = vmatmul.mubr.bf16.gmra.mrb[0].mxu0 %v4118
        %v4234 = vpop.f32.mrb[0].mxu0
        %v4235 = vadd.f32 0.0, %v4234
        %v4236 = vpop.f32.mrb[0].mxu0
        %v4237 = vpop.f32.mrb[0].mxu0
        %v4238 = vadd.f32 0.0, %v4237
        %v4239 = vpop.f32.mrb[0].mxu0
        %4240 = vmatprep.mubr.bf16.mxu0 %v4121
        %4241 = vmatmul.mubr.bf16.gmra.mrb[0].mxu0 %v4120
        %v4242 = vpop.f32.mrb[0].mxu0
        %v4243 = vadd.f32 0.0, %v4242
        %v4244 = vpop.f32.mrb[0].mxu0
        %v4245 = vpop.f32.mrb[0].mxu0
        %v4246 = vadd.f32 0.0, %v4245
        %v4247 = vpop.f32.mrb[0].mxu0
        %4248 = vmatprep.mubr.bf16.mxu0 %v4123
        %4249 = vmatmul.mubr.bf16.gmra.mrb[0].mxu0 %v4122
        %v4250 = vpop.f32.mrb[0].mxu0
        %v4251 = vadd.f32 0.0, %v4250
        %v4252 = vpop.f32.mrb[0].mxu0
        %v4253 = vpop.f32.mrb[0].mxu0
        %v4254 = vadd.f32 0.0, %v4253
        %v4255 = vpop.f32.mrb[0].mxu0
        %4256 = vmatprep.mubr.bf16.mxu0 %v4125
        %4257 = vmatmul.mubr.bf16.gmra.mrb[0].mxu0 %v4124
        %v4258 = vpop.f32.mrb[0].mxu0
        %v4259 = vadd.f32 0.0, %v4258
        %v4260 = vpop.f32.mrb[0].mxu0
        %v4261 = vpop.f32.mrb[0].mxu0
        %v4262 = vadd.f32 0.0, %v4261
        %v4263 = vpop.f32.mrb[0].mxu0
        %4264 = vmatprep.mubr.bf16.mxu0 %v4127
        %4265 = vmatmul.mubr.bf16.gmra.mrb[0].mxu0 %v4126
        %v4266 = vpop.f32.mrb[0].mxu0
        %v4267 = vadd.f32 0.0, %v4266
        %v4268 = vpop.f32.mrb[0].mxu0
        %v4269 = vpop.f32.mrb[0].mxu0
        %v4270 = vadd.f32 0.0, %v4269
        %v4271 = vpop.f32.mrb[0].mxu0
        %4272 = vmatprep.mubr.bf16.mxu0 %v4129
        %4273 = vmatmul.mubr.bf16.gmra.mrb[0].mxu0 %v4128
        %v4274 = vpop.f32.mrb[0].mxu0
        %v4275 = vadd.f32 0.0, %v4274
        %v4276 = vpop.f32.mrb[0].mxu0
        %v4277 = vpop.f32.mrb[0].mxu0
        %v4278 = vadd.f32 0.0, %v4277
        %v4279 = vpop.f32.mrb[0].mxu0
        %4280 = vmatprep.mubr.bf16.mxu0 %v4131
        %4281 = vmatmul.mubr.bf16.gmra.mrb[0].mxu0 %v4130
        %v4282 = vpop.f32.mrb[0].mxu0
        %v4283 = vadd.f32 0.0, %v4282
        %v4284 = vpop.f32.mrb[0].mxu0
        %v4285 = vpop.f32.mrb[0].mxu0
        %v4286 = vadd.f32 0.0, %v4285
        %v4287 = vpop.f32.mrb[0].mxu0
        %4288 = vmatprep.mubr.bf16.mxu0 %v4133
        %4289 = vmatmul.mubr.bf16.gmra.mrb[0].mxu0 %v4132
        %v4290 = vpop.f32.mrb[0].mxu0
        %v4291 = vadd.f32 0.0, %v4290
        %v4292 = vpop.f32.mrb[0].mxu0
        %v4293 = vpop.f32.mrb[0].mxu0
        %v4294 = vadd.f32 0.0, %v4293
        %v4295 = vpop.f32.mrb[0].mxu0
        %4296 = vmatprep.mubr.bf16.mxu0 %v4135
        %4297 = vmatmul.mubr.bf16.gmra.mrb[0].mxu0 %v4134
        %v4298 = vpop.f32.mrb[0].mxu0
        %v4299 = vadd.f32 0.0, %v4298
        %v4300 = vpop.f32.mrb[0].mxu0
        %v4301 = vpop.f32.mrb[0].mxu0
        %v4302 = vadd.f32 0.0, %v4301
        %v4303 = vpop.f32.mrb[0].mxu0
        %4304 = vmatprep.mubr.bf16.mxu0 %v4137
        %4305 = vmatmul.mubr.bf16.gmra.mrb[0].mxu0 %v4136
        %v4306 = vpop.f32.mrb[0].mxu0
        %v4307 = vadd.f32 0.0, %v4306
        %v4308 = vpop.f32.mrb[0].mxu0
        %v4309 = vpop.f32.mrb[0].mxu0
        %v4310 = vadd.f32 0.0, %v4309
        %v4311 = vpop.f32.mrb[0].mxu0
        %4312 = vmatprep.mubr.bf16.mxu0 %v4139
        %4313 = vmatmul.mubr.bf16.gmra.mrb[0].mxu0 %v4138
        %v4314 = vpop.f32.mrb[0].mxu0
        %v4315 = vadd.f32 0.0, %v4314
        %v4316 = vpop.f32.mrb[0].mxu0
        %v4317 = vpop.f32.mrb[0].mxu0
        %v4318 = vadd.f32 0.0, %v4317
        %v4319 = vpop.f32.mrb[0].mxu0
        %4320 = vmatprep.mubr.bf16.mxu0 %v4141
        %4321 = vmatmul.mubr.bf16.gmra.mrb[0].mxu0 %v4140
        %v4322 = vpop.f32.mrb[0].mxu0
        %v4323 = vadd.f32 0.0, %v4322
        %v4324 = vpop.f32.mrb[0].mxu0
        %v4325 = vpop.f32.mrb[0].mxu0
        %v4326 = vadd.f32 0.0, %v4325
        %v4327 = vpop.f32.mrb[0].mxu0
        %4328 = vmatprep.mubr.bf16.mxu0 %v4143
        %4329 = vmatmul.mubr.bf16.gmra.mrb[0].mxu0 %v4142
        %v4330 = vpop.f32.mrb[0].mxu0
        %v4331 = vadd.f32 0.0, %v4330
        %v4332 = vpop.f32.mrb[0].mxu0
        %v4333 = vpop.f32.mrb[0].mxu0
        %v4334 = vadd.f32 0.0, %v4333
        %v4335 = vpop.f32.mrb[0].mxu0
        %4336 = vdwg.mxu0
        %s4337 = scalar_lea.vmem %s5, 48
        %v4338 = vld [vmem:[%s4337] sm:$0xf]
        %v4339 = vld [vmem:[%s4337 + $0x4] sm:$0xf]
        %v4340 = vld [vmem:[%s4337 + $0x8] sm:$0xf]
        %v4341 = vld [vmem:[%s4337 + $0xc] sm:$0xf]
        %v4342 = vpack.c.bf16 %v4214, %v4211
        %v4343 = vpack.c.bf16 %v4222, %v4219
        %v4344 = vpack.c.bf16 %v4230, %v4227
        %v4345 = vpack.c.bf16 %v4238, %v4235
        %v4346 = vpack.c.bf16 %v4246, %v4243
        %v4347 = vpack.c.bf16 %v4254, %v4251
        %v4348 = vpack.c.bf16 %v4262, %v4259
        %v4349 = vpack.c.bf16 %v4270, %v4267
        %v4350 = vpack.c.bf16 %v4278, %v4275
        %v4351 = vpack.c.bf16 %v4286, %v4283
        %v4352 = vpack.c.bf16 %v4294, %v4291
        %v4353 = vpack.c.bf16 %v4302, %v4299
        %v4354 = vpack.c.bf16 %v4310, %v4307
        %v4355 = vpack.c.bf16 %v4318, %v4315
        %v4356 = vpack.c.bf16 %v4326, %v4323
        %v4357 = vpack.c.bf16 %v4334, %v4331
        %v4362 = vunpack.c.l.b16 %v4338
        %v4363 = vunpack.c.l.b16 %v4339
        %v4364 = vunpack.c.l.b16 %v4340
        %v4365 = vunpack.c.l.b16 %v4341
        %v4366 = vpack.c.b16 %v4363, %v4362
        %v4367 = vpack.c.b16 %v4365, %v4364
        %v4371 = vsel %vm2710, %v4342, 0
        %v4374 = vsel %vm2710, %v4343, 0
        %v4377 = vsel %vm2710, %v4344, 0
        %v4380 = vsel %vm2710, %v4345, 0
        %v4383 = vsel %vm2710, %v4346, 0
        %v4386 = vsel %vm2710, %v4347, 0
        %v4389 = vsel %vm2710, %v4348, 0
        %v4392 = vsel %vm2710, %v4349, 0
        %v4395 = vsel %vm2710, %v4350, 0
        %v4398 = vsel %vm2710, %v4351, 0
        %v4401 = vsel %vm2710, %v4352, 0
        %v4404 = vsel %vm2710, %v4353, 0
        %v4407 = vsel %vm2710, %v4354, 0
        %v4410 = vsel %vm2710, %v4355, 0
        %v4413 = vsel %vm2710, %v4356, 0
        %v4416 = vsel %vm2710, %v4357, 0
        %4418 = vmatprep.subr.bf16.mxu0 0
        %4419 = vmatpush1.bf16.msra.mxu0 %v4366
        %4420 = vmatprep.subr.bf16.mxu0 0
        %4421 = vmatpush1.bf16.msra.mxu0 %v4367
        %4422 = vmatprep.subr.bf16.mxu0 0
        %4423 = vmatpush1.bf16.msra.mxu0 0
        %4424 = vmatprep.subr.bf16.mxu0 0
        %4425 = vmatpush1.bf16.msra.mxu0 0
        %4426 = vmatprep.subr.bf16.mxu0 0
        %4427 = vmatpush1.bf16.msra.mxu0 0
        %4428 = vmatprep.subr.bf16.mxu0 0
        %4429 = vmatpush1.bf16.msra.mxu0 0
        %4430 = vmatprep.subr.bf16.mxu0 0
        %4431 = vmatpush1.bf16.msra.mxu0 0
        %4432 = vmatprep.subr.bf16.mxu0 0
        %4433 = vmatpush1.bf16.msra.mxu0 0
        %4434 = vmatprep.subr.bf16.mxu0 0
        %4435 = vmatpush1.bf16.msra.mxu0 0
        %4436 = vmatprep.subr.bf16.mxu0 0
        %4437 = vmatpush1.bf16.msra.mxu0 0
        %4438 = vmatprep.subr.bf16.mxu0 0
        %4439 = vmatpush1.bf16.msra.mxu0 0
        %4440 = vmatprep.subr.bf16.mxu0 0
        %4441 = vmatpush1.bf16.msra.mxu0 0
        %4442 = vmatprep.subr.bf16.mxu0 0
        %4443 = vmatpush1.bf16.msra.mxu0 0
        %4444 = vmatprep.subr.bf16.mxu0 0
        %4445 = vmatpush1.bf16.msra.mxu0 0
        %4446 = vmatprep.subr.bf16.mxu0 0
        %4447 = vmatpush1.bf16.msra.mxu0 0
        %4448 = vmatprep.subr.bf16.mxu0 0
        %4449 = vmatpush1.bf16.msra.mxu0 0
        %4450 = vmatprep.mubr.bf16.mxu0 0
        %4451 = vmatmul.mubr.bf16.gmra.mrb[0].mxu0 %v4371
        %v4452 = vpop.f32.mrb[0].mxu0
        %v4453 = vadd.f32 %v3984, %v4452
        %v4454 = vpop.f32.mrb[0].mxu0
        %v4455 = vpop.f32.mrb[0].mxu0
        %v4456 = vadd.f32 %v3985, %v4455
        %v4457 = vpop.f32.mrb[0].mxu0
        %4458 = vmatprep.mubr.bf16.mxu0 0
        %4459 = vmatmul.mubr.bf16.gmra.mrb[0].mxu0 %v4374
        %v4460 = vpop.f32.mrb[0].mxu0
        %v4461 = vadd.f32 %v3986, %v4460
        %v4462 = vpop.f32.mrb[0].mxu0
        %v4463 = vpop.f32.mrb[0].mxu0
        %v4464 = vadd.f32 %v3987, %v4463
        %v4465 = vpop.f32.mrb[0].mxu0
        %4466 = vmatprep.mubr.bf16.mxu0 0
        %4467 = vmatmul.mubr.bf16.gmra.mrb[0].mxu0 %v4377
        %v4468 = vpop.f32.mrb[0].mxu0
        %v4469 = vadd.f32 %v3988, %v4468
        %v4470 = vpop.f32.mrb[0].mxu0
        %v4471 = vpop.f32.mrb[0].mxu0
        %v4472 = vadd.f32 %v3989, %v4471
        %v4473 = vpop.f32.mrb[0].mxu0
        %4474 = vmatprep.mubr.bf16.mxu0 0
        %4475 = vmatmul.mubr.bf16.gmra.mrb[0].mxu0 %v4380
        %v4476 = vpop.f32.mrb[0].mxu0
        %v4477 = vadd.f32 %v3990, %v4476
        %v4478 = vpop.f32.mrb[0].mxu0
        %v4479 = vpop.f32.mrb[0].mxu0
        %v4480 = vadd.f32 %v3991, %v4479
        %v4481 = vpop.f32.mrb[0].mxu0
        %4482 = vmatprep.mubr.bf16.mxu0 0
        %4483 = vmatmul.mubr.bf16.gmra.mrb[0].mxu0 %v4383
        %v4484 = vpop.f32.mrb[0].mxu0
        %v4485 = vadd.f32 %v3992, %v4484
        %v4486 = vpop.f32.mrb[0].mxu0
        %v4487 = vpop.f32.mrb[0].mxu0
        %v4488 = vadd.f32 %v3993, %v4487
        %v4489 = vpop.f32.mrb[0].mxu0
        %4490 = vmatprep.mubr.bf16.mxu0 0
        %4491 = vmatmul.mubr.bf16.gmra.mrb[0].mxu0 %v4386
        %v4492 = vpop.f32.mrb[0].mxu0
        %v4493 = vadd.f32 %v3994, %v4492
        %v4494 = vpop.f32.mrb[0].mxu0
        %v4495 = vpop.f32.mrb[0].mxu0
        %v4496 = vadd.f32 %v3995, %v4495
        %v4497 = vpop.f32.mrb[0].mxu0
        %4498 = vmatprep.mubr.bf16.mxu0 0
        %4499 = vmatmul.mubr.bf16.gmra.mrb[0].mxu0 %v4389
        %v4500 = vpop.f32.mrb[0].mxu0
        %v4501 = vadd.f32 %v3996, %v4500
        %v4502 = vpop.f32.mrb[0].mxu0
        %v4503 = vpop.f32.mrb[0].mxu0
        %v4504 = vadd.f32 %v3997, %v4503
        %v4505 = vpop.f32.mrb[0].mxu0
        %4506 = vmatprep.mubr.bf16.mxu0 0
        %4507 = vmatmul.mubr.bf16.gmra.mrb[0].mxu0 %v4392
        %v4508 = vpop.f32.mrb[0].mxu0
        %v4509 = vadd.f32 %v3998, %v4508
        %v4510 = vpop.f32.mrb[0].mxu0
        %v4511 = vpop.f32.mrb[0].mxu0
        %v4512 = vadd.f32 %v3999, %v4511
        %v4513 = vpop.f32.mrb[0].mxu0
        %4514 = vmatprep.mubr.bf16.mxu0 0
        %4515 = vmatmul.mubr.bf16.gmra.mrb[0].mxu0 %v4395
        %v4516 = vpop.f32.mrb[0].mxu0
        %v4517 = vadd.f32 %v4000, %v4516
        %v4518 = vpop.f32.mrb[0].mxu0
        %v4519 = vpop.f32.mrb[0].mxu0
        %v4520 = vadd.f32 %v4001, %v4519
        %v4521 = vpop.f32.mrb[0].mxu0
        %4522 = vmatprep.mubr.bf16.mxu0 0
        %4523 = vmatmul.mubr.bf16.gmra.mrb[0].mxu0 %v4398
        %v4524 = vpop.f32.mrb[0].mxu0
        %v4525 = vadd.f32 %v4002, %v4524
        %v4526 = vpop.f32.mrb[0].mxu0
        %v4527 = vpop.f32.mrb[0].mxu0
        %v4528 = vadd.f32 %v4003, %v4527
        %v4529 = vpop.f32.mrb[0].mxu0
        %4530 = vmatprep.mubr.bf16.mxu0 0
        %4531 = vmatmul.mubr.bf16.gmra.mrb[0].mxu0 %v4401
        %v4532 = vpop.f32.mrb[0].mxu0
        %v4533 = vadd.f32 %v4004, %v4532
        %v4534 = vpop.f32.mrb[0].mxu0
        %v4535 = vpop.f32.mrb[0].mxu0
        %v4536 = vadd.f32 %v4005, %v4535
        %v4537 = vpop.f32.mrb[0].mxu0
        %4538 = vmatprep.mubr.bf16.mxu0 0
        %4539 = vmatmul.mubr.bf16.gmra.mrb[0].mxu0 %v4404
        %v4540 = vpop.f32.mrb[0].mxu0
        %v4541 = vadd.f32 %v4006, %v4540
        %v4542 = vpop.f32.mrb[0].mxu0
        %v4543 = vpop.f32.mrb[0].mxu0
        %v4544 = vadd.f32 %v4007, %v4543
        %v4545 = vpop.f32.mrb[0].mxu0
        %4546 = vmatprep.mubr.bf16.mxu0 0
        %4547 = vmatmul.mubr.bf16.gmra.mrb[0].mxu0 %v4407
        %v4548 = vpop.f32.mrb[0].mxu0
        %v4549 = vadd.f32 %v4008, %v4548
        %v4550 = vpop.f32.mrb[0].mxu0
        %v4551 = vpop.f32.mrb[0].mxu0
        %v4552 = vadd.f32 %v4009, %v4551
        %v4553 = vpop.f32.mrb[0].mxu0
        %4554 = vmatprep.mubr.bf16.mxu0 0
        %4555 = vmatmul.mubr.bf16.gmra.mrb[0].mxu0 %v4410
        %v4556 = vpop.f32.mrb[0].mxu0
        %v4557 = vadd.f32 %v4010, %v4556
        %v4558 = vpop.f32.mrb[0].mxu0
        %v4559 = vpop.f32.mrb[0].mxu0
        %v4560 = vadd.f32 %v4011, %v4559
        %v4561 = vpop.f32.mrb[0].mxu0
        %4562 = vmatprep.mubr.bf16.mxu0 0
        %4563 = vmatmul.mubr.bf16.gmra.mrb[0].mxu0 %v4413
        %v4564 = vpop.f32.mrb[0].mxu0
        %v4565 = vadd.f32 %v4012, %v4564
        %v4566 = vpop.f32.mrb[0].mxu0
        %v4567 = vpop.f32.mrb[0].mxu0
        %v4568 = vadd.f32 %v4013, %v4567
        %v4569 = vpop.f32.mrb[0].mxu0
        %4570 = vmatprep.mubr.bf16.mxu0 0
        %4571 = vmatmul.mubr.bf16.gmra.mrb[0].mxu0 %v4416
        %v4572 = vpop.f32.mrb[0].mxu0
        %v4573 = vadd.f32 %v4014, %v4572
        %v4574 = vpop.f32.mrb[0].mxu0
        %v4575 = vpop.f32.mrb[0].mxu0
        %v4576 = vadd.f32 %v4015, %v4575
        %v4577 = vpop.f32.mrb[0].mxu0
        %4578 = vdwg.mxu0
        %v4579 = vmax.f32 %v4453, 0.0
        %v4580 = vmax.f32 %v4456, 0.0
        %v4581 = vmax.f32 %v4461, 0.0
        %v4582 = vmax.f32 %v4464, 0.0
        %v4583 = vmax.f32 %v4469, 0.0
        %v4584 = vmax.f32 %v4472, 0.0
        %v4585 = vmax.f32 %v4477, 0.0
        %v4586 = vmax.f32 %v4480, 0.0
        %v4587 = vmax.f32 %v4485, 0.0
        %v4588 = vmax.f32 %v4488, 0.0
        %v4589 = vmax.f32 %v4493, 0.0
        %v4590 = vmax.f32 %v4496, 0.0
        %v4591 = vmax.f32 %v4501, 0.0
        %v4592 = vmax.f32 %v4504, 0.0
        %v4593 = vmax.f32 %v4509, 0.0
        %v4594 = vmax.f32 %v4512, 0.0
        %v4595 = vmax.f32 %v4517, 0.0
        %v4596 = vmax.f32 %v4520, 0.0
        %v4597 = vmax.f32 %v4525, 0.0
        %v4598 = vmax.f32 %v4528, 0.0
        %v4599 = vmax.f32 %v4533, 0.0
        %v4600 = vmax.f32 %v4536, 0.0
        %v4601 = vmax.f32 %v4541, 0.0
        %v4602 = vmax.f32 %v4544, 0.0
        %v4603 = vmax.f32 %v4549, 0.0
        %v4604 = vmax.f32 %v4552, 0.0
        %v4605 = vmax.f32 %v4557, 0.0
        %v4606 = vmax.f32 %v4560, 0.0
        %v4607 = vmax.f32 %v4565, 0.0
        %v4608 = vmax.f32 %v4568, 0.0
        %v4609 = vmax.f32 %v4573, 0.0
        %v4610 = vmax.f32 %v4576, 0.0
        %v4611 = vsel %vm2710, %v4579, 0.0
        %4612 = vadd.xlane.f32.xlu0 %v4611
        %v4613 = vpop.xlane.xlu0 %4612
        %v4614 = vsel %vm2710, %v4580, 0.0
        %4615 = vadd.xlane.f32.xlu0 %v4614
        %v4616 = vpop.xlane.xlu0 %4615
        %v4617 = vsel %vm2710, %v4581, 0.0
        %4618 = vadd.xlane.f32.xlu0 %v4617
        %v4619 = vpop.xlane.xlu0 %4618
        %v4620 = vsel %vm2710, %v4582, 0.0
        %4621 = vadd.xlane.f32.xlu0 %v4620
        %v4622 = vpop.xlane.xlu0 %4621
        %v4623 = vsel %vm2710, %v4583, 0.0
        %4624 = vadd.xlane.f32.xlu0 %v4623
        %v4625 = vpop.xlane.xlu0 %4624
        %v4626 = vsel %vm2710, %v4584, 0.0
        %4627 = vadd.xlane.f32.xlu0 %v4626
        %v4628 = vpop.xlane.xlu0 %4627
        %v4629 = vsel %vm2710, %v4585, 0.0
        %4630 = vadd.xlane.f32.xlu0 %v4629
        %v4631 = vpop.xlane.xlu0 %4630
        %v4632 = vsel %vm2710, %v4586, 0.0
        %4633 = vadd.xlane.f32.xlu0 %v4632
        %v4634 = vpop.xlane.xlu0 %4633
        %v4635 = vsel %vm2710, %v4587, 0.0
        %4636 = vadd.xlane.f32.xlu0 %v4635
        %v4637 = vpop.xlane.xlu0 %4636
        %v4638 = vsel %vm2710, %v4588, 0.0
        %4639 = vadd.xlane.f32.xlu0 %v4638
        %v4640 = vpop.xlane.xlu0 %4639
        %v4641 = vsel %vm2710, %v4589, 0.0
        %4642 = vadd.xlane.f32.xlu0 %v4641
        %v4643 = vpop.xlane.xlu0 %4642
        %v4644 = vsel %vm2710, %v4590, 0.0
        %4645 = vadd.xlane.f32.xlu0 %v4644
        %v4646 = vpop.xlane.xlu0 %4645
        %v4647 = vsel %vm2710, %v4591, 0.0
        %4648 = vadd.xlane.f32.xlu0 %v4647
        %v4649 = vpop.xlane.xlu0 %4648
        %v4650 = vsel %vm2710, %v4592, 0.0
        %4651 = vadd.xlane.f32.xlu0 %v4650
        %v4652 = vpop.xlane.xlu0 %4651
        %v4653 = vsel %vm2710, %v4593, 0.0
        %4654 = vadd.xlane.f32.xlu0 %v4653
        %v4655 = vpop.xlane.xlu0 %4654
        %v4656 = vsel %vm2710, %v4594, 0.0
        %4657 = vadd.xlane.f32.xlu0 %v4656
        %v4658 = vpop.xlane.xlu0 %4657
        %v4659 = vsel %vm2710, %v4595, 0.0
        %4660 = vadd.xlane.f32.xlu0 %v4659
        %v4661 = vpop.xlane.xlu0 %4660
        %v4662 = vsel %vm2710, %v4596, 0.0
        %4663 = vadd.xlane.f32.xlu0 %v4662
        %v4664 = vpop.xlane.xlu0 %4663
        %v4665 = vsel %vm2710, %v4597, 0.0
        %4666 = vadd.xlane.f32.xlu0 %v4665
        %v4667 = vpop.xlane.xlu0 %4666
        %v4668 = vsel %vm2710, %v4598, 0.0
        %4669 = vadd.xlane.f32.xlu0 %v4668
        %v4670 = vpop.xlane.xlu0 %4669
        %v4671 = vsel %vm2710, %v4599, 0.0
        %4672 = vadd.xlane.f32.xlu0 %v4671
        %v4673 = vpop.xlane.xlu0 %4672
        %v4674 = vsel %vm2710, %v4600, 0.0
        %4675 = vadd.xlane.f32.xlu0 %v4674
        %v4676 = vpop.xlane.xlu0 %4675
        %v4677 = vsel %vm2710, %v4601, 0.0
        %4678 = vadd.xlane.f32.xlu0 %v4677
        %v4679 = vpop.xlane.xlu0 %4678
        %v4680 = vsel %vm2710, %v4602, 0.0
        %4681 = vadd.xlane.f32.xlu0 %v4680
        %v4682 = vpop.xlane.xlu0 %4681
        %v4683 = vsel %vm2710, %v4603, 0.0
        %4684 = vadd.xlane.f32.xlu0 %v4683
        %v4685 = vpop.xlane.xlu0 %4684
        %v4686 = vsel %vm2710, %v4604, 0.0
        %4687 = vadd.xlane.f32.xlu0 %v4686
        %v4688 = vpop.xlane.xlu0 %4687
        %v4689 = vsel %vm2710, %v4605, 0.0
        %4690 = vadd.xlane.f32.xlu0 %v4689
        %v4691 = vpop.xlane.xlu0 %4690
        %v4692 = vsel %vm2710, %v4606, 0.0
        %4693 = vadd.xlane.f32.xlu0 %v4692
        %v4694 = vpop.xlane.xlu0 %4693
        %v4695 = vsel %vm2710, %v4607, 0.0
        %4696 = vadd.xlane.f32.xlu0 %v4695
        %v4697 = vpop.xlane.xlu0 %4696
        %v4698 = vsel %vm2710, %v4608, 0.0
        %4699 = vadd.xlane.f32.xlu0 %v4698
        %v4700 = vpop.xlane.xlu0 %4699
        %v4701 = vsel %vm2710, %v4609, 0.0
        %4702 = vadd.xlane.f32.xlu0 %v4701
        %v4703 = vpop.xlane.xlu0 %4702
        %v4704 = vsel %vm2710, %v4610, 0.0
        %4705 = vadd.xlane.f32.xlu0 %v4704
        %v4706 = vpop.xlane.xlu0 %4705
        %v4707 = vrcp.pop 32.0
        %v4708 = vmul.f32 %v4613, %v4707
        %v4709 = vmul.f32 %v4616, %v4707
        %v4710 = vmul.f32 %v4619, %v4707
        %v4711 = vmul.f32 %v4622, %v4707
        %v4712 = vmul.f32 %v4625, %v4707
        %v4713 = vmul.f32 %v4628, %v4707
        %v4714 = vmul.f32 %v4631, %v4707
        %v4715 = vmul.f32 %v4634, %v4707
        %v4716 = vmul.f32 %v4637, %v4707
        %v4717 = vmul.f32 %v4640, %v4707
        %v4718 = vmul.f32 %v4643, %v4707
        %v4719 = vmul.f32 %v4646, %v4707
        %v4720 = vmul.f32 %v4649, %v4707
        %v4721 = vmul.f32 %v4652, %v4707
        %v4722 = vmul.f32 %v4655, %v4707
        %v4723 = vmul.f32 %v4658, %v4707
        %v4724 = vmul.f32 %v4661, %v4707
        %v4725 = vmul.f32 %v4664, %v4707
        %v4726 = vmul.f32 %v4667, %v4707
        %v4727 = vmul.f32 %v4670, %v4707
        %v4728 = vmul.f32 %v4673, %v4707
        %v4729 = vmul.f32 %v4676, %v4707
        %v4730 = vmul.f32 %v4679, %v4707
        %v4731 = vmul.f32 %v4682, %v4707
        %v4732 = vmul.f32 %v4685, %v4707
        %v4733 = vmul.f32 %v4688, %v4707
        %v4734 = vmul.f32 %v4691, %v4707
        %v4735 = vmul.f32 %v4694, %v4707
        %v4736 = vmul.f32 %v4697, %v4707
        %v4737 = vmul.f32 %v4700, %v4707
        %v4738 = vmul.f32 %v4703, %v4707
        %v4739 = vmul.f32 %v4706, %v4707
        %v4740 = vsub.f32 %v4579, %v4708
        %v4741 = vsub.f32 %v4580, %v4709
        %v4742 = vsub.f32 %v4581, %v4710
        %v4743 = vsub.f32 %v4582, %v4711
        %v4744 = vsub.f32 %v4583, %v4712
        %v4745 = vsub.f32 %v4584, %v4713
        %v4746 = vsub.f32 %v4585, %v4714
        %v4747 = vsub.f32 %v4586, %v4715
        %v4748 = vsub.f32 %v4587, %v4716
        %v4749 = vsub.f32 %v4588, %v4717
        %v4750 = vsub.f32 %v4589, %v4718
        %v4751 = vsub.f32 %v4590, %v4719
        %v4752 = vsub.f32 %v4591, %v4720
        %v4753 = vsub.f32 %v4592, %v4721
        %v4754 = vsub.f32 %v4593, %v4722
        %v4755 = vsub.f32 %v4594, %v4723
        %v4756 = vsub.f32 %v4595, %v4724
        %v4757 = vsub.f32 %v4596, %v4725
        %v4758 = vsub.f32 %v4597, %v4726
        %v4759 = vsub.f32 %v4598, %v4727
        %v4760 = vsub.f32 %v4599, %v4728
        %v4761 = vsub.f32 %v4600, %v4729
        %v4762 = vsub.f32 %v4601, %v4730
        %v4763 = vsub.f32 %v4602, %v4731
        %v4764 = vsub.f32 %v4603, %v4732
        %v4765 = vsub.f32 %v4604, %v4733
        %v4766 = vsub.f32 %v4605, %v4734
        %v4767 = vsub.f32 %v4606, %v4735
        %v4768 = vsub.f32 %v4607, %v4736
        %v4769 = vsub.f32 %v4608, %v4737
        %v4770 = vsub.f32 %v4609, %v4738
        %v4771 = vsub.f32 %v4610, %v4739
        %v4772 = vmul.f32 %v4740, %v4740
        %v4773 = vmul.f32 %v4741, %v4741
        %v4774 = vmul.f32 %v4742, %v4742
        %v4775 = vmul.f32 %v4743, %v4743
        %v4776 = vmul.f32 %v4744, %v4744
        %v4777 = vmul.f32 %v4745, %v4745
        %v4778 = vmul.f32 %v4746, %v4746
        %v4779 = vmul.f32 %v4747, %v4747
        %v4780 = vmul.f32 %v4748, %v4748
        %v4781 = vmul.f32 %v4749, %v4749
        %v4782 = vmul.f32 %v4750, %v4750
        %v4783 = vmul.f32 %v4751, %v4751
        %v4784 = vmul.f32 %v4752, %v4752
        %v4785 = vmul.f32 %v4753, %v4753
        %v4786 = vmul.f32 %v4754, %v4754
        %v4787 = vmul.f32 %v4755, %v4755
        %v4788 = vmul.f32 %v4756, %v4756
        %v4789 = vmul.f32 %v4757, %v4757
        %v4790 = vmul.f32 %v4758, %v4758
        %v4791 = vmul.f32 %v4759, %v4759
        %v4792 = vmul.f32 %v4760, %v4760
        %v4793 = vmul.f32 %v4761, %v4761
        %v4794 = vmul.f32 %v4762, %v4762
        %v4795 = vmul.f32 %v4763, %v4763
        %v4796 = vmul.f32 %v4764, %v4764
        %v4797 = vmul.f32 %v4765, %v4765
        %v4798 = vmul.f32 %v4766, %v4766
        %v4799 = vmul.f32 %v4767, %v4767
        %v4800 = vmul.f32 %v4768, %v4768
        %v4801 = vmul.f32 %v4769, %v4769
        %v4802 = vmul.f32 %v4770, %v4770
        %v4803 = vmul.f32 %v4771, %v4771
        %v4804 = vsel %vm2710, %v4772, 0.0
        %4805 = vadd.xlane.f32.xlu0 %v4804
        %v4806 = vpop.xlane.xlu0 %4805
        %v4807 = vsel %vm2710, %v4773, 0.0
        %4808 = vadd.xlane.f32.xlu0 %v4807
        %v4809 = vpop.xlane.xlu0 %4808
        %v4810 = vsel %vm2710, %v4774, 0.0
        %4811 = vadd.xlane.f32.xlu0 %v4810
        %v4812 = vpop.xlane.xlu0 %4811
        %v4813 = vsel %vm2710, %v4775, 0.0
        %4814 = vadd.xlane.f32.xlu0 %v4813
        %v4815 = vpop.xlane.xlu0 %4814
        %v4816 = vsel %vm2710, %v4776, 0.0
        %4817 = vadd.xlane.f32.xlu0 %v4816
        %v4818 = vpop.xlane.xlu0 %4817
        %v4819 = vsel %vm2710, %v4777, 0.0
        %4820 = vadd.xlane.f32.xlu0 %v4819
        %v4821 = vpop.xlane.xlu0 %4820
        %v4822 = vsel %vm2710, %v4778, 0.0
        %4823 = vadd.xlane.f32.xlu0 %v4822
        %v4824 = vpop.xlane.xlu0 %4823
        %v4825 = vsel %vm2710, %v4779, 0.0
        %4826 = vadd.xlane.f32.xlu0 %v4825
        %v4827 = vpop.xlane.xlu0 %4826
        %v4828 = vsel %vm2710, %v4780, 0.0
        %4829 = vadd.xlane.f32.xlu0 %v4828
        %v4830 = vpop.xlane.xlu0 %4829
        %v4831 = vsel %vm2710, %v4781, 0.0
        %4832 = vadd.xlane.f32.xlu0 %v4831
        %v4833 = vpop.xlane.xlu0 %4832
        %v4834 = vsel %vm2710, %v4782, 0.0
        %4835 = vadd.xlane.f32.xlu0 %v4834
        %v4836 = vpop.xlane.xlu0 %4835
        %v4837 = vsel %vm2710, %v4783, 0.0
        %4838 = vadd.xlane.f32.xlu0 %v4837
        %v4839 = vpop.xlane.xlu0 %4838
        %v4840 = vsel %vm2710, %v4784, 0.0
        %4841 = vadd.xlane.f32.xlu0 %v4840
        %v4842 = vpop.xlane.xlu0 %4841
        %v4843 = vsel %vm2710, %v4785, 0.0
        %4844 = vadd.xlane.f32.xlu0 %v4843
        %v4845 = vpop.xlane.xlu0 %4844
        %v4846 = vsel %vm2710, %v4786, 0.0
        %4847 = vadd.xlane.f32.xlu0 %v4846
        %v4848 = vpop.xlane.xlu0 %4847
        %v4849 = vsel %vm2710, %v4787, 0.0
        %4850 = vadd.xlane.f32.xlu0 %v4849
        %v4851 = vpop.xlane.xlu0 %4850
        %v4852 = vsel %vm2710, %v4788, 0.0
        %4853 = vadd.xlane.f32.xlu0 %v4852
        %v4854 = vpop.xlane.xlu0 %4853
        %v4855 = vsel %vm2710, %v4789, 0.0
        %4856 = vadd.xlane.f32.xlu0 %v4855
        %v4857 = vpop.xlane.xlu0 %4856
        %v4858 = vsel %vm2710, %v4790, 0.0
        %4859 = vadd.xlane.f32.xlu0 %v4858
        %v4860 = vpop.xlane.xlu0 %4859
        %v4861 = vsel %vm2710, %v4791, 0.0
        %4862 = vadd.xlane.f32.xlu0 %v4861
        %v4863 = vpop.xlane.xlu0 %4862
        %v4864 = vsel %vm2710, %v4792, 0.0
        %4865 = vadd.xlane.f32.xlu0 %v4864
        %v4866 = vpop.xlane.xlu0 %4865
        %v4867 = vsel %vm2710, %v4793, 0.0
        %4868 = vadd.xlane.f32.xlu0 %v4867
        %v4869 = vpop.xlane.xlu0 %4868
        %v4870 = vsel %vm2710, %v4794, 0.0
        %4871 = vadd.xlane.f32.xlu0 %v4870
        %v4872 = vpop.xlane.xlu0 %4871
        %v4873 = vsel %vm2710, %v4795, 0.0
        %4874 = vadd.xlane.f32.xlu0 %v4873
        %v4875 = vpop.xlane.xlu0 %4874
        %v4876 = vsel %vm2710, %v4796, 0.0
        %4877 = vadd.xlane.f32.xlu0 %v4876
        %v4878 = vpop.xlane.xlu0 %4877
        %v4879 = vsel %vm2710, %v4797, 0.0
        %4880 = vadd.xlane.f32.xlu0 %v4879
        %v4881 = vpop.xlane.xlu0 %4880
        %v4882 = vsel %vm2710, %v4798, 0.0
        %4883 = vadd.xlane.f32.xlu0 %v4882
        %v4884 = vpop.xlane.xlu0 %4883
        %v4885 = vsel %vm2710, %v4799, 0.0
        %4886 = vadd.xlane.f32.xlu0 %v4885
        %v4887 = vpop.xlane.xlu0 %4886
        %v4888 = vsel %vm2710, %v4800, 0.0
        %4889 = vadd.xlane.f32.xlu0 %v4888
        %v4890 = vpop.xlane.xlu0 %4889
        %v4891 = vsel %vm2710, %v4801, 0.0
        %4892 = vadd.xlane.f32.xlu0 %v4891
        %v4893 = vpop.xlane.xlu0 %4892
        %v4894 = vsel %vm2710, %v4802, 0.0
        %4895 = vadd.xlane.f32.xlu0 %v4894
        %v4896 = vpop.xlane.xlu0 %4895
        %v4897 = vsel %vm2710, %v4803, 0.0
        %4898 = vadd.xlane.f32.xlu0 %v4897
        %v4899 = vpop.xlane.xlu0 %4898
        %v4900 = vmul.f32 %v4806, %v4707
        %v4901 = vmul.f32 %v4809, %v4707
        %v4902 = vmul.f32 %v4812, %v4707
        %v4903 = vmul.f32 %v4815, %v4707
        %v4904 = vmul.f32 %v4818, %v4707
        %v4905 = vmul.f32 %v4821, %v4707
        %v4906 = vmul.f32 %v4824, %v4707
        %v4907 = vmul.f32 %v4827, %v4707
        %v4908 = vmul.f32 %v4830, %v4707
        %v4909 = vmul.f32 %v4833, %v4707
        %v4910 = vmul.f32 %v4836, %v4707
        %v4911 = vmul.f32 %v4839, %v4707
        %v4912 = vmul.f32 %v4842, %v4707
        %v4913 = vmul.f32 %v4845, %v4707
        %v4914 = vmul.f32 %v4848, %v4707
        %v4915 = vmul.f32 %v4851, %v4707
        %v4916 = vmul.f32 %v4854, %v4707
        %v4917 = vmul.f32 %v4857, %v4707
        %v4918 = vmul.f32 %v4860, %v4707
        %v4919 = vmul.f32 %v4863, %v4707
        %v4920 = vmul.f32 %v4866, %v4707
        %v4921 = vmul.f32 %v4869, %v4707
        %v4922 = vmul.f32 %v4872, %v4707
        %v4923 = vmul.f32 %v4875, %v4707
        %v4924 = vmul.f32 %v4878, %v4707
        %v4925 = vmul.f32 %v4881, %v4707
        %v4926 = vmul.f32 %v4884, %v4707
        %v4927 = vmul.f32 %v4887, %v4707
        %v4928 = vmul.f32 %v4890, %v4707
        %v4929 = vmul.f32 %v4893, %v4707
        %v4930 = vmul.f32 %v4896, %v4707
        %v4931 = vmul.f32 %v4899, %v4707
        %v4932 = vadd.f32 %v4900, 1e-05
        %v4933 = vadd.f32 %v4901, 1e-05
        %v4934 = vadd.f32 %v4902, 1e-05
        %v4935 = vadd.f32 %v4903, 1e-05
        %v4936 = vadd.f32 %v4904, 1e-05
        %v4937 = vadd.f32 %v4905, 1e-05
        %v4938 = vadd.f32 %v4906, 1e-05
        %v4939 = vadd.f32 %v4907, 1e-05
        %v4940 = vadd.f32 %v4908, 1e-05
        %v4941 = vadd.f32 %v4909, 1e-05
        %v4942 = vadd.f32 %v4910, 1e-05
        %v4943 = vadd.f32 %v4911, 1e-05
        %v4944 = vadd.f32 %v4912, 1e-05
        %v4945 = vadd.f32 %v4913, 1e-05
        %v4946 = vadd.f32 %v4914, 1e-05
        %v4947 = vadd.f32 %v4915, 1e-05
        %v4948 = vadd.f32 %v4916, 1e-05
        %v4949 = vadd.f32 %v4917, 1e-05
        %v4950 = vadd.f32 %v4918, 1e-05
        %v4951 = vadd.f32 %v4919, 1e-05
        %v4952 = vadd.f32 %v4920, 1e-05
        %v4953 = vadd.f32 %v4921, 1e-05
        %v4954 = vadd.f32 %v4922, 1e-05
        %v4955 = vadd.f32 %v4923, 1e-05
        %v4956 = vadd.f32 %v4924, 1e-05
        %v4957 = vadd.f32 %v4925, 1e-05
        %v4958 = vadd.f32 %v4926, 1e-05
        %v4959 = vadd.f32 %v4927, 1e-05
        %v4960 = vadd.f32 %v4928, 1e-05
        %v4961 = vadd.f32 %v4929, 1e-05
        %v4962 = vadd.f32 %v4930, 1e-05
        %v4963 = vadd.f32 %v4931, 1e-05
        %v4964 = vrsqrt.pop %v4932
        %v4965 = vrsqrt.pop %v4933
        %v4966 = vrsqrt.pop %v4934
        %v4967 = vrsqrt.pop %v4935
        %v4968 = vrsqrt.pop %v4936
        %v4969 = vrsqrt.pop %v4937
        %v4970 = vrsqrt.pop %v4938
        %v4971 = vrsqrt.pop %v4939
        %v4972 = vrsqrt.pop %v4940
        %v4973 = vrsqrt.pop %v4941
        %v4974 = vrsqrt.pop %v4942
        %v4975 = vrsqrt.pop %v4943
        %v4976 = vrsqrt.pop %v4944
        %v4977 = vrsqrt.pop %v4945
        %v4978 = vrsqrt.pop %v4946
        %v4979 = vrsqrt.pop %v4947
        %v4980 = vrsqrt.pop %v4948
        %v4981 = vrsqrt.pop %v4949
        %v4982 = vrsqrt.pop %v4950
        %v4983 = vrsqrt.pop %v4951
        %v4984 = vrsqrt.pop %v4952
        %v4985 = vrsqrt.pop %v4953
        %v4986 = vrsqrt.pop %v4954
        %v4987 = vrsqrt.pop %v4955
        %v4988 = vrsqrt.pop %v4956
        %v4989 = vrsqrt.pop %v4957
        %v4990 = vrsqrt.pop %v4958
        %v4991 = vrsqrt.pop %v4959
        %v4992 = vrsqrt.pop %v4960
        %v4993 = vrsqrt.pop %v4961
        %v4994 = vrsqrt.pop %v4962
        %v4995 = vrsqrt.pop %v4963
        %v4996 = vmul.f32 %v4740, %v4964
        %v4997 = vmul.f32 %v4741, %v4965
        %v4998 = vmul.f32 %v4742, %v4966
        %v4999 = vmul.f32 %v4743, %v4967
        %v5000 = vmul.f32 %v4744, %v4968
        %v5001 = vmul.f32 %v4745, %v4969
        %v5002 = vmul.f32 %v4746, %v4970
        %v5003 = vmul.f32 %v4747, %v4971
        %v5004 = vmul.f32 %v4748, %v4972
        %v5005 = vmul.f32 %v4749, %v4973
        %v5006 = vmul.f32 %v4750, %v4974
        %v5007 = vmul.f32 %v4751, %v4975
        %v5008 = vmul.f32 %v4752, %v4976
        %v5009 = vmul.f32 %v4753, %v4977
        %v5010 = vmul.f32 %v4754, %v4978
        %v5011 = vmul.f32 %v4755, %v4979
        %v5012 = vmul.f32 %v4756, %v4980
        %v5013 = vmul.f32 %v4757, %v4981
        %v5014 = vmul.f32 %v4758, %v4982
        %v5015 = vmul.f32 %v4759, %v4983
        %v5016 = vmul.f32 %v4760, %v4984
        %v5017 = vmul.f32 %v4761, %v4985
        %v5018 = vmul.f32 %v4762, %v4986
        %v5019 = vmul.f32 %v4763, %v4987
        %v5020 = vmul.f32 %v4764, %v4988
        %v5021 = vmul.f32 %v4765, %v4989
        %v5022 = vmul.f32 %v4766, %v4990
        %v5023 = vmul.f32 %v4767, %v4991
        %v5024 = vmul.f32 %v4768, %v4992
        %v5025 = vmul.f32 %v4769, %v4993
        %v5026 = vmul.f32 %v4770, %v4994
        %v5027 = vmul.f32 %v4771, %v4995
        %v5028 = vld [vmem:[%s11 + $0xa] sm:$0x1]
        %v5029 = vlaneseq
        %v5030 = vshrl.u32 %v5029, 7
        %v5031 = vsub.s32 0, %v5030
        %v5032 = vrot.slane %v5028, %v5031
        %v5033 = vmul.f32 %v4996, %v5032
        %v5034 = vmul.f32 %v4997, %v5032
        %v5035 = vmul.f32 %v4998, %v5032
        %v5036 = vmul.f32 %v4999, %v5032
        %v5037 = vmul.f32 %v5000, %v5032
        %v5038 = vmul.f32 %v5001, %v5032
        %v5039 = vmul.f32 %v5002, %v5032
        %v5040 = vmul.f32 %v5003, %v5032
        %v5041 = vmul.f32 %v5004, %v5032
        %v5042 = vmul.f32 %v5005, %v5032
        %v5043 = vmul.f32 %v5006, %v5032
        %v5044 = vmul.f32 %v5007, %v5032
        %v5045 = vmul.f32 %v5008, %v5032
        %v5046 = vmul.f32 %v5009, %v5032
        %v5047 = vmul.f32 %v5010, %v5032
        %v5048 = vmul.f32 %v5011, %v5032
        %v5049 = vmul.f32 %v5012, %v5032
        %v5050 = vmul.f32 %v5013, %v5032
        %v5051 = vmul.f32 %v5014, %v5032
        %v5052 = vmul.f32 %v5015, %v5032
        %v5053 = vmul.f32 %v5016, %v5032
        %v5054 = vmul.f32 %v5017, %v5032
        %v5055 = vmul.f32 %v5018, %v5032
        %v5056 = vmul.f32 %v5019, %v5032
        %v5057 = vmul.f32 %v5020, %v5032
        %v5058 = vmul.f32 %v5021, %v5032
        %v5059 = vmul.f32 %v5022, %v5032
        %v5060 = vmul.f32 %v5023, %v5032
        %v5061 = vmul.f32 %v5024, %v5032
        %v5062 = vmul.f32 %v5025, %v5032
        %v5063 = vmul.f32 %v5026, %v5032
        %v5064 = vmul.f32 %v5027, %v5032
        %v5065 = vld [vmem:[%s11 + $0xc] sm:$0x1]
        %v5066 = vlaneseq
        %v5067 = vshrl.u32 %v5066, 7
        %v5068 = vsub.s32 0, %v5067
        %v5069 = vrot.slane %v5065, %v5068
        %v5070 = vadd.f32 %v5033, %v5069
        %v5071 = vadd.f32 %v5034, %v5069
        %v5072 = vadd.f32 %v5035, %v5069
        %v5073 = vadd.f32 %v5036, %v5069
        %v5074 = vadd.f32 %v5037, %v5069
        %v5075 = vadd.f32 %v5038, %v5069
        %v5076 = vadd.f32 %v5039, %v5069
        %v5077 = vadd.f32 %v5040, %v5069
        %v5078 = vadd.f32 %v5041, %v5069
        %v5079 = vadd.f32 %v5042, %v5069
        %v5080 = vadd.f32 %v5043, %v5069
        %v5081 = vadd.f32 %v5044, %v5069
        %v5082 = vadd.f32 %v5045, %v5069
        %v5083 = vadd.f32 %v5046, %v5069
        %v5084 = vadd.f32 %v5047, %v5069
        %v5085 = vadd.f32 %v5048, %v5069
        %v5086 = vadd.f32 %v5049, %v5069
        %v5087 = vadd.f32 %v5050, %v5069
        %v5088 = vadd.f32 %v5051, %v5069
        %v5089 = vadd.f32 %v5052, %v5069
        %v5090 = vadd.f32 %v5053, %v5069
        %v5091 = vadd.f32 %v5054, %v5069
        %v5092 = vadd.f32 %v5055, %v5069
        %v5093 = vadd.f32 %v5056, %v5069
        %v5094 = vadd.f32 %v5057, %v5069
        %v5095 = vadd.f32 %v5058, %v5069
        %v5096 = vadd.f32 %v5059, %v5069
        %v5097 = vadd.f32 %v5060, %v5069
        %v5098 = vadd.f32 %v5061, %v5069
        %v5099 = vadd.f32 %v5062, %v5069
        %v5100 = vadd.f32 %v5063, %v5069
        %v5101 = vadd.f32 %v5064, %v5069
        %v5102 = vpack.c.bf16 %v5071, %v5070
        %v5103 = vpack.c.bf16 %v5073, %v5072
        %v5104 = vpack.c.bf16 %v5075, %v5074
        %v5105 = vpack.c.bf16 %v5077, %v5076
        %v5106 = vpack.c.bf16 %v5079, %v5078
        %v5107 = vpack.c.bf16 %v5081, %v5080
        %v5108 = vpack.c.bf16 %v5083, %v5082
        %v5109 = vpack.c.bf16 %v5085, %v5084
        %v5110 = vpack.c.bf16 %v5087, %v5086
        %v5111 = vpack.c.bf16 %v5089, %v5088
        %v5112 = vpack.c.bf16 %v5091, %v5090
        %v5113 = vpack.c.bf16 %v5093, %v5092
        %v5114 = vpack.c.bf16 %v5095, %v5094
        %v5115 = vpack.c.bf16 %v5097, %v5096
        %v5116 = vpack.c.bf16 %v5099, %v5098
        %v5117 = vpack.c.bf16 %v5101, %v5100
        %5134 = vrot.lane.b32.xlu0 %v5102, 32
        %v5135 = vpop.permute.xlu0 %5134
        %5136 = vrot.lane.b32.xlu0 %v5103, 32
        %v5137 = vpop.permute.xlu0 %5136
        %5138 = vrot.lane.b32.xlu0 %v5104, 32
        %v5139 = vpop.permute.xlu0 %5138
        %5140 = vrot.lane.b32.xlu0 %v5105, 32
        %v5141 = vpop.permute.xlu0 %5140
        %5142 = vrot.lane.b32.xlu0 %v5106, 32
        %v5143 = vpop.permute.xlu0 %5142
        %5144 = vrot.lane.b32.xlu0 %v5107, 32
        %v5145 = vpop.permute.xlu0 %5144
        %5146 = vrot.lane.b32.xlu0 %v5108, 32
        %v5147 = vpop.permute.xlu0 %5146
        %5148 = vrot.lane.b32.xlu0 %v5109, 32
        %v5149 = vpop.permute.xlu0 %5148
        %5150 = vrot.lane.b32.xlu0 %v5110, 32
        %v5151 = vpop.permute.xlu0 %5150
        %5152 = vrot.lane.b32.xlu0 %v5111, 32
        %v5153 = vpop.permute.xlu0 %5152
        %5154 = vrot.lane.b32.xlu0 %v5112, 32
        %v5155 = vpop.permute.xlu0 %5154
        %5156 = vrot.lane.b32.xlu0 %v5113, 32
        %v5157 = vpop.permute.xlu0 %5156
        %5158 = vrot.lane.b32.xlu0 %v5114, 32
        %v5159 = vpop.permute.xlu0 %5158
        %5160 = vrot.lane.b32.xlu0 %v5115, 32
        %v5161 = vpop.permute.xlu0 %5160
        %5162 = vrot.lane.b32.xlu0 %v5116, 32
        %v5163 = vpop.permute.xlu0 %5162
        %5164 = vrot.lane.b32.xlu0 %v5117, 32
        %v5165 = vpop.permute.xlu0 %5164
        %vm5182 = vcmask 523520
        %5183 = vst.msk [vmem:[#allocation2] sm:$0xff] %vm5182, %v5135
        %5184 = vst.msk [vmem:[#allocation2 + $0x8] sm:$0xff] %vm5182, %v5137
        %5185 = vst.msk [vmem:[#allocation2 + $0x10] sm:$0xff] %vm5182, %v5139
        %5186 = vst.msk [vmem:[#allocation2 + $0x18] sm:$0xff] %vm5182, %v5141
        %5187 = vst.msk [vmem:[#allocation2 + $0x20] sm:$0xff] %vm5182, %v5143
        %5188 = vst.msk [vmem:[#allocation2 + $0x28] sm:$0xff] %vm5182, %v5145
        %5189 = vst.msk [vmem:[#allocation2 + $0x30] sm:$0xff] %vm5182, %v5147
        %5190 = vst.msk [vmem:[#allocation2 + $0x38] sm:$0xff] %vm5182, %v5149
        %5191 = vst.msk [vmem:[#allocation2 + $0x40] sm:$0xff] %vm5182, %v5151
        %5192 = vst.msk [vmem:[#allocation2 + $0x48] sm:$0xff] %vm5182, %v5153
        %5193 = vst.msk [vmem:[#allocation2 + $0x50] sm:$0xff] %vm5182, %v5155
        %5194 = vst.msk [vmem:[#allocation2 + $0x58] sm:$0xff] %vm5182, %v5157
        %5195 = vst.msk [vmem:[#allocation2 + $0x60] sm:$0xff] %vm5182, %v5159
        %5196 = vst.msk [vmem:[#allocation2 + $0x68] sm:$0xff] %vm5182, %v5161
        %5197 = vst.msk [vmem:[#allocation2 + $0x70] sm:$0xff] %vm5182, %v5163
        %5198 = vst.msk [vmem:[#allocation2 + $0x78] sm:$0xff] %vm5182, %v5165
        %v5199 = vld [vmem:[%s11 + $0x9] sm:$0x1]
        %v5200 = vlaneseq
        %v5201 = vshrl.u32 %v5200, 7
        %v5202 = vsub.s32 0, %v5201
        %v5203 = vrot.slane %v5199, %v5202
        %5205 = vrot.lane.b32.xlu0 %v5203, 32
        %v5206 = vpop.permute.xlu0 %5205
        %v5208 = vadd.f32 %v3067, %v5206
        %v5209 = vadd.f32 %v3070, %v5206
        %v5210 = vadd.f32 %v3075, %v5206
        %v5211 = vadd.f32 %v3078, %v5206
        %v5212 = vadd.f32 %v3083, %v5206
        %v5213 = vadd.f32 %v3086, %v5206
        %v5214 = vadd.f32 %v3091, %v5206
        %v5215 = vadd.f32 %v3094, %v5206
        %v5216 = vadd.f32 %v3099, %v5206
        %v5217 = vadd.f32 %v3102, %v5206
        %v5218 = vadd.f32 %v3107, %v5206
        %v5219 = vadd.f32 %v3110, %v5206
        %v5220 = vadd.f32 %v3115, %v5206
        %v5221 = vadd.f32 %v3118, %v5206
        %v5222 = vadd.f32 %v3123, %v5206
        %v5223 = vadd.f32 %v3126, %v5206
        %v5224 = vadd.f32 %v3131, %v5206
        %v5225 = vadd.f32 %v3134, %v5206
        %v5226 = vadd.f32 %v3139, %v5206
        %v5227 = vadd.f32 %v3142, %v5206
        %v5228 = vadd.f32 %v3147, %v5206
        %v5229 = vadd.f32 %v3150, %v5206
        %v5230 = vadd.f32 %v3155, %v5206
        %v5231 = vadd.f32 %v3158, %v5206
        %v5232 = vadd.f32 %v3163, %v5206
        %v5233 = vadd.f32 %v3166, %v5206
        %v5234 = vadd.f32 %v3171, %v5206
        %v5235 = vadd.f32 %v3174, %v5206
        %v5236 = vadd.f32 %v3179, %v5206
        %v5237 = vadd.f32 %v3182, %v5206
        %v5238 = vadd.f32 %v3187, %v5206
        %v5239 = vadd.f32 %v3190, %v5206
        %5240 = vmatprep.subr.bf16.mxu0 0
        %5241 = vmatpush1.bf16.msra.mxu0 %v5102
        %5242 = vmatprep.subr.bf16.mxu0 0
        %5243 = vmatpush1.bf16.msra.mxu0 %v5103
        %5244 = vmatprep.subr.bf16.mxu0 0
        %5245 = vmatpush1.bf16.msra.mxu0 %v5104
        %5246 = vmatprep.subr.bf16.mxu0 0
        %5247 = vmatpush1.bf16.msra.mxu0 %v5105
        %5248 = vmatprep.subr.bf16.mxu0 0
        %5249 = vmatpush1.bf16.msra.mxu0 %v5106
        %5250 = vmatprep.subr.bf16.mxu0 0
        %5251 = vmatpush1.bf16.msra.mxu0 %v5107
        %5252 = vmatprep.subr.bf16.mxu0 0
        %5253 = vmatpush1.bf16.msra.mxu0 %v5108
        %5254 = vmatprep.subr.bf16.mxu0 0
        %5255 = vmatpush1.bf16.msra.mxu0 %v5109
        %5256 = vmatprep.subr.bf16.mxu0 0
        %5257 = vmatpush1.bf16.msra.mxu0 %v5110
        %5258 = vmatprep.subr.bf16.mxu0 0
        %5259 = vmatpush1.bf16.msra.mxu0 %v5111
        %5260 = vmatprep.subr.bf16.mxu0 0
        %5261 = vmatpush1.bf16.msra.mxu0 %v5112
        %5262 = vmatprep.subr.bf16.mxu0 0
        %5263 = vmatpush1.bf16.msra.mxu0 %v5113
        %5264 = vmatprep.subr.bf16.mxu0 0
        %5265 = vmatpush1.bf16.msra.mxu0 %v5114
        %5266 = vmatprep.subr.bf16.mxu0 0
        %5267 = vmatpush1.bf16.msra.mxu0 %v5115
        %5268 = vmatprep.subr.bf16.mxu0 0
        %5269 = vmatpush1.bf16.msra.mxu0 %v5116
        %5270 = vmatprep.subr.bf16.mxu0 0
        %5271 = vmatpush1.bf16.msra.mxu0 %v5117
        %5272 = vmatprep.mubr.bf16.mxu0 %v4113
        %5273 = vmatmul.mubr.bf16.gmra.mrb[0].mxu0 %v4112
        %v5274 = vpop.f32.mrb[0].mxu0
        %v5275 = vadd.f32 0.0, %v5274
        %v5276 = vpop.f32.mrb[0].mxu0
        %v5277 = vpop.f32.mrb[0].mxu0
        %v5278 = vadd.f32 0.0, %v5277
        %v5279 = vpop.f32.mrb[0].mxu0
        %5280 = vmatprep.mubr.bf16.mxu0 %v4115
        %5281 = vmatmul.mubr.bf16.gmra.mrb[0].mxu0 %v4114
        %v5282 = vpop.f32.mrb[0].mxu0
        %v5283 = vadd.f32 0.0, %v5282
        %v5284 = vpop.f32.mrb[0].mxu0
        %v5285 = vpop.f32.mrb[0].mxu0
        %v5286 = vadd.f32 0.0, %v5285
        %v5287 = vpop.f32.mrb[0].mxu0
        %5288 = vmatprep.mubr.bf16.mxu0 %v4117
        %5289 = vmatmul.mubr.bf16.gmra.mrb[0].mxu0 %v4116
        %v5290 = vpop.f32.mrb[0].mxu0
        %v5291 = vadd.f32 0.0, %v5290
        %v5292 = vpop.f32.mrb[0].mxu0
        %v5293 = vpop.f32.mrb[0].mxu0
        %v5294 = vadd.f32 0.0, %v5293
        %v5295 = vpop.f32.mrb[0].mxu0
        %5296 = vmatprep.mubr.bf16.mxu0 %v4119
        %5297 = vmatmul.mubr.bf16.gmra.mrb[0].mxu0 %v4118
        %v5298 = vpop.f32.mrb[0].mxu0
        %v5299 = vadd.f32 0.0, %v5298
        %v5300 = vpop.f32.mrb[0].mxu0
        %v5301 = vpop.f32.mrb[0].mxu0
        %v5302 = vadd.f32 0.0, %v5301
        %v5303 = vpop.f32.mrb[0].mxu0
        %5304 = vmatprep.mubr.bf16.mxu0 %v4121
        %5305 = vmatmul.mubr.bf16.gmra.mrb[0].mxu0 %v4120
        %v5306 = vpop.f32.mrb[0].mxu0
        %v5307 = vadd.f32 0.0, %v5306
        %v5308 = vpop.f32.mrb[0].mxu0
        %v5309 = vpop.f32.mrb[0].mxu0
        %v5310 = vadd.f32 0.0, %v5309
        %v5311 = vpop.f32.mrb[0].mxu0
        %5312 = vmatprep.mubr.bf16.mxu0 %v4123
        %5313 = vmatmul.mubr.bf16.gmra.mrb[0].mxu0 %v4122
        %v5314 = vpop.f32.mrb[0].mxu0
        %v5315 = vadd.f32 0.0, %v5314
        %v5316 = vpop.f32.mrb[0].mxu0
        %v5317 = vpop.f32.mrb[0].mxu0
        %v5318 = vadd.f32 0.0, %v5317
        %v5319 = vpop.f32.mrb[0].mxu0
        %5320 = vmatprep.mubr.bf16.mxu0 %v4125
        %5321 = vmatmul.mubr.bf16.gmra.mrb[0].mxu0 %v4124
        %v5322 = vpop.f32.mrb[0].mxu0
        %v5323 = vadd.f32 0.0, %v5322
        %v5324 = vpop.f32.mrb[0].mxu0
        %v5325 = vpop.f32.mrb[0].mxu0
        %v5326 = vadd.f32 0.0, %v5325
        %v5327 = vpop.f32.mrb[0].mxu0
        %5328 = vmatprep.mubr.bf16.mxu0 %v4127
        %5329 = vmatmul.mubr.bf16.gmra.mrb[0].mxu0 %v4126
        %v5330 = vpop.f32.mrb[0].mxu0
        %v5331 = vadd.f32 0.0, %v5330
        %v5332 = vpop.f32.mrb[0].mxu0
        %v5333 = vpop.f32.mrb[0].mxu0
        %v5334 = vadd.f32 0.0, %v5333
        %v5335 = vpop.f32.mrb[0].mxu0
        %5336 = vmatprep.mubr.bf16.mxu0 %v4129
        %5337 = vmatmul.mubr.bf16.gmra.mrb[0].mxu0 %v4128
        %v5338 = vpop.f32.mrb[0].mxu0
        %v5339 = vadd.f32 0.0, %v5338
        %v5340 = vpop.f32.mrb[0].mxu0
        %v5341 = vpop.f32.mrb[0].mxu0
        %v5342 = vadd.f32 0.0, %v5341
        %v5343 = vpop.f32.mrb[0].mxu0
        %5344 = vmatprep.mubr.bf16.mxu0 %v4131
        %5345 = vmatmul.mubr.bf16.gmra.mrb[0].mxu0 %v4130
        %v5346 = vpop.f32.mrb[0].mxu0
        %v5347 = vadd.f32 0.0, %v5346
        %v5348 = vpop.f32.mrb[0].mxu0
        %v5349 = vpop.f32.mrb[0].mxu0
        %v5350 = vadd.f32 0.0, %v5349
        %v5351 = vpop.f32.mrb[0].mxu0
        %5352 = vmatprep.mubr.bf16.mxu0 %v4133
        %5353 = vmatmul.mubr.bf16.gmra.mrb[0].mxu0 %v4132
        %v5354 = vpop.f32.mrb[0].mxu0
        %v5355 = vadd.f32 0.0, %v5354
        %v5356 = vpop.f32.mrb[0].mxu0
        %v5357 = vpop.f32.mrb[0].mxu0
        %v5358 = vadd.f32 0.0, %v5357
        %v5359 = vpop.f32.mrb[0].mxu0
        %5360 = vmatprep.mubr.bf16.mxu0 %v4135
        %5361 = vmatmul.mubr.bf16.gmra.mrb[0].mxu0 %v4134
        %v5362 = vpop.f32.mrb[0].mxu0
        %v5363 = vadd.f32 0.0, %v5362
        %v5364 = vpop.f32.mrb[0].mxu0
        %v5365 = vpop.f32.mrb[0].mxu0
        %v5366 = vadd.f32 0.0, %v5365
        %v5367 = vpop.f32.mrb[0].mxu0
        %5368 = vmatprep.mubr.bf16.mxu0 %v4137
        %5369 = vmatmul.mubr.bf16.gmra.mrb[0].mxu0 %v4136
        %v5370 = vpop.f32.mrb[0].mxu0
        %v5371 = vadd.f32 0.0, %v5370
        %v5372 = vpop.f32.mrb[0].mxu0
        %v5373 = vpop.f32.mrb[0].mxu0
        %v5374 = vadd.f32 0.0, %v5373
        %v5375 = vpop.f32.mrb[0].mxu0
        %5376 = vmatprep.mubr.bf16.mxu0 %v4139
        %5377 = vmatmul.mubr.bf16.gmra.mrb[0].mxu0 %v4138
        %v5378 = vpop.f32.mrb[0].mxu0
        %v5379 = vadd.f32 0.0, %v5378
        %v5380 = vpop.f32.mrb[0].mxu0
        %v5381 = vpop.f32.mrb[0].mxu0
        %v5382 = vadd.f32 0.0, %v5381
        %v5383 = vpop.f32.mrb[0].mxu0
        %5384 = vmatprep.mubr.bf16.mxu0 %v4141
        %5385 = vmatmul.mubr.bf16.gmra.mrb[0].mxu0 %v4140
        %v5386 = vpop.f32.mrb[0].mxu0
        %v5387 = vadd.f32 0.0, %v5386
        %v5388 = vpop.f32.mrb[0].mxu0
        %v5389 = vpop.f32.mrb[0].mxu0
        %v5390 = vadd.f32 0.0, %v5389
        %v5391 = vpop.f32.mrb[0].mxu0
        %5392 = vmatprep.mubr.bf16.mxu0 %v4143
        %5393 = vmatmul.mubr.bf16.gmra.mrb[0].mxu0 %v4142
        %v5394 = vpop.f32.mrb[0].mxu0
        %v5395 = vadd.f32 0.0, %v5394
        %v5396 = vpop.f32.mrb[0].mxu0
        %v5397 = vpop.f32.mrb[0].mxu0
        %v5398 = vadd.f32 0.0, %v5397
        %v5399 = vpop.f32.mrb[0].mxu0
        %5400 = vdwg.mxu0
        %s5401 = scalar_lea.vmem %s5, 64
        %v5402 = vld [vmem:[%s5401] sm:$0xf]
        %v5403 = vld [vmem:[%s5401 + $0x4] sm:$0xf]
        %v5404 = vld [vmem:[%s5401 + $0x8] sm:$0xf]
        %v5405 = vld [vmem:[%s5401 + $0xc] sm:$0xf]
        %v5406 = vpack.c.bf16 %v5278, %v5275
        %v5407 = vpack.c.bf16 %v5286, %v5283
        %v5408 = vpack.c.bf16 %v5294, %v5291
        %v5409 = vpack.c.bf16 %v5302, %v5299
        %v5410 = vpack.c.bf16 %v5310, %v5307
        %v5411 = vpack.c.bf16 %v5318, %v5315
        %v5412 = vpack.c.bf16 %v5326, %v5323
        %v5413 = vpack.c.bf16 %v5334, %v5331
        %v5414 = vpack.c.bf16 %v5342, %v5339
        %v5415 = vpack.c.bf16 %v5350, %v5347
        %v5416 = vpack.c.bf16 %v5358, %v5355
        %v5417 = vpack.c.bf16 %v5366, %v5363
        %v5418 = vpack.c.bf16 %v5374, %v5371
        %v5419 = vpack.c.bf16 %v5382, %v5379
        %v5420 = vpack.c.bf16 %v5390, %v5387
        %v5421 = vpack.c.bf16 %v5398, %v5395
        %v5426 = vunpack.c.l.b16 %v5402
        %v5427 = vunpack.c.l.b16 %v5403
        %v5428 = vunpack.c.l.b16 %v5404
        %v5429 = vunpack.c.l.b16 %v5405
        %v5430 = vpack.c.b16 %v5427, %v5426
        %v5431 = vpack.c.b16 %v5429, %v5428
        %5466 = vrot.lane.b32.xlu0 %v5208, 96
        %v5467 = vpop.permute.xlu0 %5466
        %5468 = vrot.lane.b32.xlu0 %v5209, 96
        %v5469 = vpop.permute.xlu0 %5468
        %5470 = vrot.lane.b32.xlu0 %v5210, 96
        %v5471 = vpop.permute.xlu0 %5470
        %5472 = vrot.lane.b32.xlu0 %v5211, 96
        %v5473 = vpop.permute.xlu0 %5472
        %5474 = vrot.lane.b32.xlu0 %v5212, 96
        %v5475 = vpop.permute.xlu0 %5474
        %5476 = vrot.lane.b32.xlu0 %v5213, 96
        %v5477 = vpop.permute.xlu0 %5476
        %5478 = vrot.lane.b32.xlu0 %v5214, 96
        %v5479 = vpop.permute.xlu0 %5478
        %5480 = vrot.lane.b32.xlu0 %v5215, 96
        %v5481 = vpop.permute.xlu0 %5480
        %5482 = vrot.lane.b32.xlu0 %v5216, 96
        %v5483 = vpop.permute.xlu0 %5482
        %5484 = vrot.lane.b32.xlu0 %v5217, 96
        %v5485 = vpop.permute.xlu0 %5484
        %5486 = vrot.lane.b32.xlu0 %v5218, 96
        %v5487 = vpop.permute.xlu0 %5486
        %5488 = vrot.lane.b32.xlu0 %v5219, 96
        %v5489 = vpop.permute.xlu0 %5488
        %5490 = vrot.lane.b32.xlu0 %v5220, 96
        %v5491 = vpop.permute.xlu0 %5490
        %5492 = vrot.lane.b32.xlu0 %v5221, 96
        %v5493 = vpop.permute.xlu0 %5492
        %5494 = vrot.lane.b32.xlu0 %v5222, 96
        %v5495 = vpop.permute.xlu0 %5494
        %5496 = vrot.lane.b32.xlu0 %v5223, 96
        %v5497 = vpop.permute.xlu0 %5496
        %5498 = vrot.lane.b32.xlu0 %v5224, 96
        %v5499 = vpop.permute.xlu0 %5498
        %5500 = vrot.lane.b32.xlu0 %v5225, 96
        %v5501 = vpop.permute.xlu0 %5500
        %5502 = vrot.lane.b32.xlu0 %v5226, 96
        %v5503 = vpop.permute.xlu0 %5502
        %5504 = vrot.lane.b32.xlu0 %v5227, 96
        %v5505 = vpop.permute.xlu0 %5504
        %5506 = vrot.lane.b32.xlu0 %v5228, 96
        %v5507 = vpop.permute.xlu0 %5506
        %5508 = vrot.lane.b32.xlu0 %v5229, 96
        %v5509 = vpop.permute.xlu0 %5508
        %5510 = vrot.lane.b32.xlu0 %v5230, 96
        %v5511 = vpop.permute.xlu0 %5510
        %5512 = vrot.lane.b32.xlu0 %v5231, 96
        %v5513 = vpop.permute.xlu0 %5512
        %5514 = vrot.lane.b32.xlu0 %v5232, 96
        %v5515 = vpop.permute.xlu0 %5514
        %5516 = vrot.lane.b32.xlu0 %v5233, 96
        %v5517 = vpop.permute.xlu0 %5516
        %5518 = vrot.lane.b32.xlu0 %v5234, 96
        %v5519 = vpop.permute.xlu0 %5518
        %5520 = vrot.lane.b32.xlu0 %v5235, 96
        %v5521 = vpop.permute.xlu0 %5520
        %5522 = vrot.lane.b32.xlu0 %v5236, 96
        %v5523 = vpop.permute.xlu0 %5522
        %5524 = vrot.lane.b32.xlu0 %v5237, 96
        %v5525 = vpop.permute.xlu0 %5524
        %5526 = vrot.lane.b32.xlu0 %v5238, 96
        %v5527 = vpop.permute.xlu0 %5526
        %5528 = vrot.lane.b32.xlu0 %v5239, 96
        %v5529 = vpop.permute.xlu0 %5528
        %v5563 = vsel %vm2710, %v5406, 0
        %v5566 = vsel %vm2710, %v5407, 0
        %v5569 = vsel %vm2710, %v5408, 0
        %v5572 = vsel %vm2710, %v5409, 0
        %v5575 = vsel %vm2710, %v5410, 0
        %v5578 = vsel %vm2710, %v5411, 0
        %v5581 = vsel %vm2710, %v5412, 0
        %v5584 = vsel %vm2710, %v5413, 0
        %v5587 = vsel %vm2710, %v5414, 0
        %v5590 = vsel %vm2710, %v5415, 0
        %v5593 = vsel %vm2710, %v5416, 0
        %v5596 = vsel %vm2710, %v5417, 0
        %v5599 = vsel %vm2710, %v5418, 0
        %v5602 = vsel %vm2710, %v5419, 0
        %v5605 = vsel %vm2710, %v5420, 0
        %v5608 = vsel %vm2710, %v5421, 0
        %5610 = vmatprep.subr.bf16.mxu0 0
        %5611 = vmatpush1.bf16.msra.mxu0 %v5430
        %5612 = vmatprep.subr.bf16.mxu0 0
        %5613 = vmatpush1.bf16.msra.mxu0 %v5431
        %5614 = vmatprep.subr.bf16.mxu0 0
        %5615 = vmatpush1.bf16.msra.mxu0 0
        %5616 = vmatprep.subr.bf16.mxu0 0
        %5617 = vmatpush1.bf16.msra.mxu0 0
        %5618 = vmatprep.subr.bf16.mxu0 0
        %5619 = vmatpush1.bf16.msra.mxu0 0
        %5620 = vmatprep.subr.bf16.mxu0 0
        %5621 = vmatpush1.bf16.msra.mxu0 0
        %5622 = vmatprep.subr.bf16.mxu0 0
        %5623 = vmatpush1.bf16.msra.mxu0 0
        %5624 = vmatprep.subr.bf16.mxu0 0
        %5625 = vmatpush1.bf16.msra.mxu0 0
        %5626 = vmatprep.subr.bf16.mxu0 0
        %5627 = vmatpush1.bf16.msra.mxu0 0
        %5628 = vmatprep.subr.bf16.mxu0 0
        %5629 = vmatpush1.bf16.msra.mxu0 0
        %5630 = vmatprep.subr.bf16.mxu0 0
        %5631 = vmatpush1.bf16.msra.mxu0 0
        %5632 = vmatprep.subr.bf16.mxu0 0
        %5633 = vmatpush1.bf16.msra.mxu0 0
        %5634 = vmatprep.subr.bf16.mxu0 0
        %5635 = vmatpush1.bf16.msra.mxu0 0
        %5636 = vmatprep.subr.bf16.mxu0 0
        %5637 = vmatpush1.bf16.msra.mxu0 0
        %5638 = vmatprep.subr.bf16.mxu0 0
        %5639 = vmatpush1.bf16.msra.mxu0 0
        %5640 = vmatprep.subr.bf16.mxu0 0
        %5641 = vmatpush1.bf16.msra.mxu0 0
        %5642 = vmatprep.mubr.bf16.mxu0 0
        %5643 = vmatmul.mubr.bf16.gmra.mrb[0].mxu0 %v5563
        %v5644 = vpop.f32.mrb[0].mxu0
        %v5645 = vadd.f32 %v5467, %v5644
        %v5646 = vpop.f32.mrb[0].mxu0
        %v5647 = vpop.f32.mrb[0].mxu0
        %v5648 = vadd.f32 %v5469, %v5647
        %v5649 = vpop.f32.mrb[0].mxu0
        %5650 = vmatprep.mubr.bf16.mxu0 0
        %5651 = vmatmul.mubr.bf16.gmra.mrb[0].mxu0 %v5566
        %v5652 = vpop.f32.mrb[0].mxu0
        %v5653 = vadd.f32 %v5471, %v5652
        %v5654 = vpop.f32.mrb[0].mxu0
        %v5655 = vpop.f32.mrb[0].mxu0
        %v5656 = vadd.f32 %v5473, %v5655
        %v5657 = vpop.f32.mrb[0].mxu0
        %5658 = vmatprep.mubr.bf16.mxu0 0
        %5659 = vmatmul.mubr.bf16.gmra.mrb[0].mxu0 %v5569
        %v5660 = vpop.f32.mrb[0].mxu0
        %v5661 = vadd.f32 %v5475, %v5660
        %v5662 = vpop.f32.mrb[0].mxu0
        %v5663 = vpop.f32.mrb[0].mxu0
        %v5664 = vadd.f32 %v5477, %v5663
        %v5665 = vpop.f32.mrb[0].mxu0
        %5666 = vmatprep.mubr.bf16.mxu0 0
        %5667 = vmatmul.mubr.bf16.gmra.mrb[0].mxu0 %v5572
        %v5668 = vpop.f32.mrb[0].mxu0
        %v5669 = vadd.f32 %v5479, %v5668
        %v5670 = vpop.f32.mrb[0].mxu0
        %v5671 = vpop.f32.mrb[0].mxu0
        %v5672 = vadd.f32 %v5481, %v5671
        %v5673 = vpop.f32.mrb[0].mxu0
        %5674 = vmatprep.mubr.bf16.mxu0 0
        %5675 = vmatmul.mubr.bf16.gmra.mrb[0].mxu0 %v5575
        %v5676 = vpop.f32.mrb[0].mxu0
        %v5677 = vadd.f32 %v5483, %v5676
        %v5678 = vpop.f32.mrb[0].mxu0
        %v5679 = vpop.f32.mrb[0].mxu0
        %v5680 = vadd.f32 %v5485, %v5679
        %v5681 = vpop.f32.mrb[0].mxu0
        %5682 = vmatprep.mubr.bf16.mxu0 0
        %5683 = vmatmul.mubr.bf16.gmra.mrb[0].mxu0 %v5578
        %v5684 = vpop.f32.mrb[0].mxu0
        %v5685 = vadd.f32 %v5487, %v5684
        %v5686 = vpop.f32.mrb[0].mxu0
        %v5687 = vpop.f32.mrb[0].mxu0
        %v5688 = vadd.f32 %v5489, %v5687
        %v5689 = vpop.f32.mrb[0].mxu0
        %5690 = vmatprep.mubr.bf16.mxu0 0
        %5691 = vmatmul.mubr.bf16.gmra.mrb[0].mxu0 %v5581
        %v5692 = vpop.f32.mrb[0].mxu0
        %v5693 = vadd.f32 %v5491, %v5692
        %v5694 = vpop.f32.mrb[0].mxu0
        %v5695 = vpop.f32.mrb[0].mxu0
        %v5696 = vadd.f32 %v5493, %v5695
        %v5697 = vpop.f32.mrb[0].mxu0
        %5698 = vmatprep.mubr.bf16.mxu0 0
        %5699 = vmatmul.mubr.bf16.gmra.mrb[0].mxu0 %v5584
        %v5700 = vpop.f32.mrb[0].mxu0
        %v5701 = vadd.f32 %v5495, %v5700
        %v5702 = vpop.f32.mrb[0].mxu0
        %v5703 = vpop.f32.mrb[0].mxu0
        %v5704 = vadd.f32 %v5497, %v5703
        %v5705 = vpop.f32.mrb[0].mxu0
        %5706 = vmatprep.mubr.bf16.mxu0 0
        %5707 = vmatmul.mubr.bf16.gmra.mrb[0].mxu0 %v5587
        %v5708 = vpop.f32.mrb[0].mxu0
        %v5709 = vadd.f32 %v5499, %v5708
        %v5710 = vpop.f32.mrb[0].mxu0
        %v5711 = vpop.f32.mrb[0].mxu0
        %v5712 = vadd.f32 %v5501, %v5711
        %v5713 = vpop.f32.mrb[0].mxu0
        %5714 = vmatprep.mubr.bf16.mxu0 0
        %5715 = vmatmul.mubr.bf16.gmra.mrb[0].mxu0 %v5590
        %v5716 = vpop.f32.mrb[0].mxu0
        %v5717 = vadd.f32 %v5503, %v5716
        %v5718 = vpop.f32.mrb[0].mxu0
        %v5719 = vpop.f32.mrb[0].mxu0
        %v5720 = vadd.f32 %v5505, %v5719
        %v5721 = vpop.f32.mrb[0].mxu0
        %5722 = vmatprep.mubr.bf16.mxu0 0
        %5723 = vmatmul.mubr.bf16.gmra.mrb[0].mxu0 %v5593
        %v5724 = vpop.f32.mrb[0].mxu0
        %v5725 = vadd.f32 %v5507, %v5724
        %v5726 = vpop.f32.mrb[0].mxu0
        %v5727 = vpop.f32.mrb[0].mxu0
        %v5728 = vadd.f32 %v5509, %v5727
        %v5729 = vpop.f32.mrb[0].mxu0
        %5730 = vmatprep.mubr.bf16.mxu0 0
        %5731 = vmatmul.mubr.bf16.gmra.mrb[0].mxu0 %v5596
        %v5732 = vpop.f32.mrb[0].mxu0
        %v5733 = vadd.f32 %v5511, %v5732
        %v5734 = vpop.f32.mrb[0].mxu0
        %v5735 = vpop.f32.mrb[0].mxu0
        %v5736 = vadd.f32 %v5513, %v5735
        %v5737 = vpop.f32.mrb[0].mxu0
        %5738 = vmatprep.mubr.bf16.mxu0 0
        %5739 = vmatmul.mubr.bf16.gmra.mrb[0].mxu0 %v5599
        %v5740 = vpop.f32.mrb[0].mxu0
        %v5741 = vadd.f32 %v5515, %v5740
        %v5742 = vpop.f32.mrb[0].mxu0
        %v5743 = vpop.f32.mrb[0].mxu0
        %v5744 = vadd.f32 %v5517, %v5743
        %v5745 = vpop.f32.mrb[0].mxu0
        %5746 = vmatprep.mubr.bf16.mxu0 0
        %5747 = vmatmul.mubr.bf16.gmra.mrb[0].mxu0 %v5602
        %v5748 = vpop.f32.mrb[0].mxu0
        %v5749 = vadd.f32 %v5519, %v5748
        %v5750 = vpop.f32.mrb[0].mxu0
        %v5751 = vpop.f32.mrb[0].mxu0
        %v5752 = vadd.f32 %v5521, %v5751
        %v5753 = vpop.f32.mrb[0].mxu0
        %5754 = vmatprep.mubr.bf16.mxu0 0
        %5755 = vmatmul.mubr.bf16.gmra.mrb[0].mxu0 %v5605
        %v5756 = vpop.f32.mrb[0].mxu0
        %v5757 = vadd.f32 %v5523, %v5756
        %v5758 = vpop.f32.mrb[0].mxu0
        %v5759 = vpop.f32.mrb[0].mxu0
        %v5760 = vadd.f32 %v5525, %v5759
        %v5761 = vpop.f32.mrb[0].mxu0
        %5762 = vmatprep.mubr.bf16.mxu0 0
        %5763 = vmatmul.mubr.bf16.gmra.mrb[0].mxu0 %v5608
        %v5764 = vpop.f32.mrb[0].mxu0
        %v5765 = vadd.f32 %v5527, %v5764
        %v5766 = vpop.f32.mrb[0].mxu0
        %v5767 = vpop.f32.mrb[0].mxu0
        %v5768 = vadd.f32 %v5529, %v5767
        %v5769 = vpop.f32.mrb[0].mxu0
        %5770 = vdwg.mxu0
        %v5771 = vmax.f32 %v5645, 0.0
        %v5772 = vmax.f32 %v5648, 0.0
        %v5773 = vmax.f32 %v5653, 0.0
        %v5774 = vmax.f32 %v5656, 0.0
        %v5775 = vmax.f32 %v5661, 0.0
        %v5776 = vmax.f32 %v5664, 0.0
        %v5777 = vmax.f32 %v5669, 0.0
        %v5778 = vmax.f32 %v5672, 0.0
        %v5779 = vmax.f32 %v5677, 0.0
        %v5780 = vmax.f32 %v5680, 0.0
        %v5781 = vmax.f32 %v5685, 0.0
        %v5782 = vmax.f32 %v5688, 0.0
        %v5783 = vmax.f32 %v5693, 0.0
        %v5784 = vmax.f32 %v5696, 0.0
        %v5785 = vmax.f32 %v5701, 0.0
        %v5786 = vmax.f32 %v5704, 0.0
        %v5787 = vmax.f32 %v5709, 0.0
        %v5788 = vmax.f32 %v5712, 0.0
        %v5789 = vmax.f32 %v5717, 0.0
        %v5790 = vmax.f32 %v5720, 0.0
        %v5791 = vmax.f32 %v5725, 0.0
        %v5792 = vmax.f32 %v5728, 0.0
        %v5793 = vmax.f32 %v5733, 0.0
        %v5794 = vmax.f32 %v5736, 0.0
        %v5795 = vmax.f32 %v5741, 0.0
        %v5796 = vmax.f32 %v5744, 0.0
        %v5797 = vmax.f32 %v5749, 0.0
        %v5798 = vmax.f32 %v5752, 0.0
        %v5799 = vmax.f32 %v5757, 0.0
        %v5800 = vmax.f32 %v5760, 0.0
        %v5801 = vmax.f32 %v5765, 0.0
        %v5802 = vmax.f32 %v5768, 0.0
        %v5803 = vsel %vm2710, %v5771, 0.0
        %5804 = vadd.xlane.f32.xlu0 %v5803
        %v5805 = vpop.xlane.xlu0 %5804
        %v5806 = vsel %vm2710, %v5772, 0.0
        %5807 = vadd.xlane.f32.xlu0 %v5806
        %v5808 = vpop.xlane.xlu0 %5807
        %v5809 = vsel %vm2710, %v5773, 0.0
        %5810 = vadd.xlane.f32.xlu0 %v5809
        %v5811 = vpop.xlane.xlu0 %5810
        %v5812 = vsel %vm2710, %v5774, 0.0
        %5813 = vadd.xlane.f32.xlu0 %v5812
        %v5814 = vpop.xlane.xlu0 %5813
        %v5815 = vsel %vm2710, %v5775, 0.0
        %5816 = vadd.xlane.f32.xlu0 %v5815
        %v5817 = vpop.xlane.xlu0 %5816
        %v5818 = vsel %vm2710, %v5776, 0.0
        %5819 = vadd.xlane.f32.xlu0 %v5818
        %v5820 = vpop.xlane.xlu0 %5819
        %v5821 = vsel %vm2710, %v5777, 0.0
        %5822 = vadd.xlane.f32.xlu0 %v5821
        %v5823 = vpop.xlane.xlu0 %5822
        %v5824 = vsel %vm2710, %v5778, 0.0
        %5825 = vadd.xlane.f32.xlu0 %v5824
        %v5826 = vpop.xlane.xlu0 %5825
        %v5827 = vsel %vm2710, %v5779, 0.0
        %5828 = vadd.xlane.f32.xlu0 %v5827
        %v5829 = vpop.xlane.xlu0 %5828
        %v5830 = vsel %vm2710, %v5780, 0.0
        %5831 = vadd.xlane.f32.xlu0 %v5830
        %v5832 = vpop.xlane.xlu0 %5831
        %v5833 = vsel %vm2710, %v5781, 0.0
        %5834 = vadd.xlane.f32.xlu0 %v5833
        %v5835 = vpop.xlane.xlu0 %5834
        %v5836 = vsel %vm2710, %v5782, 0.0
        %5837 = vadd.xlane.f32.xlu0 %v5836
        %v5838 = vpop.xlane.xlu0 %5837
        %v5839 = vsel %vm2710, %v5783, 0.0
        %5840 = vadd.xlane.f32.xlu0 %v5839
        %v5841 = vpop.xlane.xlu0 %5840
        %v5842 = vsel %vm2710, %v5784, 0.0
        %5843 = vadd.xlane.f32.xlu0 %v5842
        %v5844 = vpop.xlane.xlu0 %5843
        %v5845 = vsel %vm2710, %v5785, 0.0
        %5846 = vadd.xlane.f32.xlu0 %v5845
        %v5847 = vpop.xlane.xlu0 %5846
        %v5848 = vsel %vm2710, %v5786, 0.0
        %5849 = vadd.xlane.f32.xlu0 %v5848
        %v5850 = vpop.xlane.xlu0 %5849
        %v5851 = vsel %vm2710, %v5787, 0.0
        %5852 = vadd.xlane.f32.xlu0 %v5851
        %v5853 = vpop.xlane.xlu0 %5852
        %v5854 = vsel %vm2710, %v5788, 0.0
        %5855 = vadd.xlane.f32.xlu0 %v5854
        %v5856 = vpop.xlane.xlu0 %5855
        %v5857 = vsel %vm2710, %v5789, 0.0
        %5858 = vadd.xlane.f32.xlu0 %v5857
        %v5859 = vpop.xlane.xlu0 %5858
        %v5860 = vsel %vm2710, %v5790, 0.0
        %5861 = vadd.xlane.f32.xlu0 %v5860
        %v5862 = vpop.xlane.xlu0 %5861
        %v5863 = vsel %vm2710, %v5791, 0.0
        %5864 = vadd.xlane.f32.xlu0 %v5863
        %v5865 = vpop.xlane.xlu0 %5864
        %v5866 = vsel %vm2710, %v5792, 0.0
        %5867 = vadd.xlane.f32.xlu0 %v5866
        %v5868 = vpop.xlane.xlu0 %5867
        %v5869 = vsel %vm2710, %v5793, 0.0
        %5870 = vadd.xlane.f32.xlu0 %v5869
        %v5871 = vpop.xlane.xlu0 %5870
        %v5872 = vsel %vm2710, %v5794, 0.0
        %5873 = vadd.xlane.f32.xlu0 %v5872
        %v5874 = vpop.xlane.xlu0 %5873
        %v5875 = vsel %vm2710, %v5795, 0.0
        %5876 = vadd.xlane.f32.xlu0 %v5875
        %v5877 = vpop.xlane.xlu0 %5876
        %v5878 = vsel %vm2710, %v5796, 0.0
        %5879 = vadd.xlane.f32.xlu0 %v5878
        %v5880 = vpop.xlane.xlu0 %5879
        %v5881 = vsel %vm2710, %v5797, 0.0
        %5882 = vadd.xlane.f32.xlu0 %v5881
        %v5883 = vpop.xlane.xlu0 %5882
        %v5884 = vsel %vm2710, %v5798, 0.0
        %5885 = vadd.xlane.f32.xlu0 %v5884
        %v5886 = vpop.xlane.xlu0 %5885
        %v5887 = vsel %vm2710, %v5799, 0.0
        %5888 = vadd.xlane.f32.xlu0 %v5887
        %v5889 = vpop.xlane.xlu0 %5888
        %v5890 = vsel %vm2710, %v5800, 0.0
        %5891 = vadd.xlane.f32.xlu0 %v5890
        %v5892 = vpop.xlane.xlu0 %5891
        %v5893 = vsel %vm2710, %v5801, 0.0
        %5894 = vadd.xlane.f32.xlu0 %v5893
        %v5895 = vpop.xlane.xlu0 %5894
        %v5896 = vsel %vm2710, %v5802, 0.0
        %5897 = vadd.xlane.f32.xlu0 %v5896
        %v5898 = vpop.xlane.xlu0 %5897
        %v5899 = vmul.f32 %v5805, %v4707
        %v5900 = vmul.f32 %v5808, %v4707
        %v5901 = vmul.f32 %v5811, %v4707
        %v5902 = vmul.f32 %v5814, %v4707
        %v5903 = vmul.f32 %v5817, %v4707
        %v5904 = vmul.f32 %v5820, %v4707
        %v5905 = vmul.f32 %v5823, %v4707
        %v5906 = vmul.f32 %v5826, %v4707
        %v5907 = vmul.f32 %v5829, %v4707
        %v5908 = vmul.f32 %v5832, %v4707
        %v5909 = vmul.f32 %v5835, %v4707
        %v5910 = vmul.f32 %v5838, %v4707
        %v5911 = vmul.f32 %v5841, %v4707
        %v5912 = vmul.f32 %v5844, %v4707
        %v5913 = vmul.f32 %v5847, %v4707
        %v5914 = vmul.f32 %v5850, %v4707
        %v5915 = vmul.f32 %v5853, %v4707
        %v5916 = vmul.f32 %v5856, %v4707
        %v5917 = vmul.f32 %v5859, %v4707
        %v5918 = vmul.f32 %v5862, %v4707
        %v5919 = vmul.f32 %v5865, %v4707
        %v5920 = vmul.f32 %v5868, %v4707
        %v5921 = vmul.f32 %v5871, %v4707
        %v5922 = vmul.f32 %v5874, %v4707
        %v5923 = vmul.f32 %v5877, %v4707
        %v5924 = vmul.f32 %v5880, %v4707
        %v5925 = vmul.f32 %v5883, %v4707
        %v5926 = vmul.f32 %v5886, %v4707
        %v5927 = vmul.f32 %v5889, %v4707
        %v5928 = vmul.f32 %v5892, %v4707
        %v5929 = vmul.f32 %v5895, %v4707
        %v5930 = vmul.f32 %v5898, %v4707
        %v5931 = vsub.f32 %v5771, %v5899
        %v5932 = vsub.f32 %v5772, %v5900
        %v5933 = vsub.f32 %v5773, %v5901
        %v5934 = vsub.f32 %v5774, %v5902
        %v5935 = vsub.f32 %v5775, %v5903
        %v5936 = vsub.f32 %v5776, %v5904
        %v5937 = vsub.f32 %v5777, %v5905
        %v5938 = vsub.f32 %v5778, %v5906
        %v5939 = vsub.f32 %v5779, %v5907
        %v5940 = vsub.f32 %v5780, %v5908
        %v5941 = vsub.f32 %v5781, %v5909
        %v5942 = vsub.f32 %v5782, %v5910
        %v5943 = vsub.f32 %v5783, %v5911
        %v5944 = vsub.f32 %v5784, %v5912
        %v5945 = vsub.f32 %v5785, %v5913
        %v5946 = vsub.f32 %v5786, %v5914
        %v5947 = vsub.f32 %v5787, %v5915
        %v5948 = vsub.f32 %v5788, %v5916
        %v5949 = vsub.f32 %v5789, %v5917
        %v5950 = vsub.f32 %v5790, %v5918
        %v5951 = vsub.f32 %v5791, %v5919
        %v5952 = vsub.f32 %v5792, %v5920
        %v5953 = vsub.f32 %v5793, %v5921
        %v5954 = vsub.f32 %v5794, %v5922
        %v5955 = vsub.f32 %v5795, %v5923
        %v5956 = vsub.f32 %v5796, %v5924
        %v5957 = vsub.f32 %v5797, %v5925
        %v5958 = vsub.f32 %v5798, %v5926
        %v5959 = vsub.f32 %v5799, %v5927
        %v5960 = vsub.f32 %v5800, %v5928
        %v5961 = vsub.f32 %v5801, %v5929
        %v5962 = vsub.f32 %v5802, %v5930
        %v5963 = vmul.f32 %v5931, %v5931
        %v5964 = vmul.f32 %v5932, %v5932
        %v5965 = vmul.f32 %v5933, %v5933
        %v5966 = vmul.f32 %v5934, %v5934
        %v5967 = vmul.f32 %v5935, %v5935
        %v5968 = vmul.f32 %v5936, %v5936
        %v5969 = vmul.f32 %v5937, %v5937
        %v5970 = vmul.f32 %v5938, %v5938
        %v5971 = vmul.f32 %v5939, %v5939
        %v5972 = vmul.f32 %v5940, %v5940
        %v5973 = vmul.f32 %v5941, %v5941
        %v5974 = vmul.f32 %v5942, %v5942
        %v5975 = vmul.f32 %v5943, %v5943
        %v5976 = vmul.f32 %v5944, %v5944
        %v5977 = vmul.f32 %v5945, %v5945
        %v5978 = vmul.f32 %v5946, %v5946
        %v5979 = vmul.f32 %v5947, %v5947
        %v5980 = vmul.f32 %v5948, %v5948
        %v5981 = vmul.f32 %v5949, %v5949
        %v5982 = vmul.f32 %v5950, %v5950
        %v5983 = vmul.f32 %v5951, %v5951
        %v5984 = vmul.f32 %v5952, %v5952
        %v5985 = vmul.f32 %v5953, %v5953
        %v5986 = vmul.f32 %v5954, %v5954
        %v5987 = vmul.f32 %v5955, %v5955
        %v5988 = vmul.f32 %v5956, %v5956
        %v5989 = vmul.f32 %v5957, %v5957
        %v5990 = vmul.f32 %v5958, %v5958
        %v5991 = vmul.f32 %v5959, %v5959
        %v5992 = vmul.f32 %v5960, %v5960
        %v5993 = vmul.f32 %v5961, %v5961
        %v5994 = vmul.f32 %v5962, %v5962
        %v5995 = vsel %vm2710, %v5963, 0.0
        %5996 = vadd.xlane.f32.xlu0 %v5995
        %v5997 = vpop.xlane.xlu0 %5996
        %v5998 = vsel %vm2710, %v5964, 0.0
        %5999 = vadd.xlane.f32.xlu0 %v5998
        %v6000 = vpop.xlane.xlu0 %5999
        %v6001 = vsel %vm2710, %v5965, 0.0
        %6002 = vadd.xlane.f32.xlu0 %v6001
        %v6003 = vpop.xlane.xlu0 %6002
        %v6004 = vsel %vm2710, %v5966, 0.0
        %6005 = vadd.xlane.f32.xlu0 %v6004
        %v6006 = vpop.xlane.xlu0 %6005
        %v6007 = vsel %vm2710, %v5967, 0.0
        %6008 = vadd.xlane.f32.xlu0 %v6007
        %v6009 = vpop.xlane.xlu0 %6008
        %v6010 = vsel %vm2710, %v5968, 0.0
        %6011 = vadd.xlane.f32.xlu0 %v6010
        %v6012 = vpop.xlane.xlu0 %6011
        %v6013 = vsel %vm2710, %v5969, 0.0
        %6014 = vadd.xlane.f32.xlu0 %v6013
        %v6015 = vpop.xlane.xlu0 %6014
        %v6016 = vsel %vm2710, %v5970, 0.0
        %6017 = vadd.xlane.f32.xlu0 %v6016
        %v6018 = vpop.xlane.xlu0 %6017
        %v6019 = vsel %vm2710, %v5971, 0.0
        %6020 = vadd.xlane.f32.xlu0 %v6019
        %v6021 = vpop.xlane.xlu0 %6020
        %v6022 = vsel %vm2710, %v5972, 0.0
        %6023 = vadd.xlane.f32.xlu0 %v6022
        %v6024 = vpop.xlane.xlu0 %6023
        %v6025 = vsel %vm2710, %v5973, 0.0
        %6026 = vadd.xlane.f32.xlu0 %v6025
        %v6027 = vpop.xlane.xlu0 %6026
        %v6028 = vsel %vm2710, %v5974, 0.0
        %6029 = vadd.xlane.f32.xlu0 %v6028
        %v6030 = vpop.xlane.xlu0 %6029
        %v6031 = vsel %vm2710, %v5975, 0.0
        %6032 = vadd.xlane.f32.xlu0 %v6031
        %v6033 = vpop.xlane.xlu0 %6032
        %v6034 = vsel %vm2710, %v5976, 0.0
        %6035 = vadd.xlane.f32.xlu0 %v6034
        %v6036 = vpop.xlane.xlu0 %6035
        %v6037 = vsel %vm2710, %v5977, 0.0
        %6038 = vadd.xlane.f32.xlu0 %v6037
        %v6039 = vpop.xlane.xlu0 %6038
        %v6040 = vsel %vm2710, %v5978, 0.0
        %6041 = vadd.xlane.f32.xlu0 %v6040
        %v6042 = vpop.xlane.xlu0 %6041
        %v6043 = vsel %vm2710, %v5979, 0.0
        %6044 = vadd.xlane.f32.xlu0 %v6043
        %v6045 = vpop.xlane.xlu0 %6044
        %v6046 = vsel %vm2710, %v5980, 0.0
        %6047 = vadd.xlane.f32.xlu0 %v6046
        %v6048 = vpop.xlane.xlu0 %6047
        %v6049 = vsel %vm2710, %v5981, 0.0
        %6050 = vadd.xlane.f32.xlu0 %v6049
        %v6051 = vpop.xlane.xlu0 %6050
        %v6052 = vsel %vm2710, %v5982, 0.0
        %6053 = vadd.xlane.f32.xlu0 %v6052
        %v6054 = vpop.xlane.xlu0 %6053
        %v6055 = vsel %vm2710, %v5983, 0.0
        %6056 = vadd.xlane.f32.xlu0 %v6055
        %v6057 = vpop.xlane.xlu0 %6056
        %v6058 = vsel %vm2710, %v5984, 0.0
        %6059 = vadd.xlane.f32.xlu0 %v6058
        %v6060 = vpop.xlane.xlu0 %6059
        %v6061 = vsel %vm2710, %v5985, 0.0
        %6062 = vadd.xlane.f32.xlu0 %v6061
        %v6063 = vpop.xlane.xlu0 %6062
        %v6064 = vsel %vm2710, %v5986, 0.0
        %6065 = vadd.xlane.f32.xlu0 %v6064
        %v6066 = vpop.xlane.xlu0 %6065
        %v6067 = vsel %vm2710, %v5987, 0.0
        %6068 = vadd.xlane.f32.xlu0 %v6067
        %v6069 = vpop.xlane.xlu0 %6068
        %v6070 = vsel %vm2710, %v5988, 0.0
        %6071 = vadd.xlane.f32.xlu0 %v6070
        %v6072 = vpop.xlane.xlu0 %6071
        %v6073 = vsel %vm2710, %v5989, 0.0
        %6074 = vadd.xlane.f32.xlu0 %v6073
        %v6075 = vpop.xlane.xlu0 %6074
        %v6076 = vsel %vm2710, %v5990, 0.0
        %6077 = vadd.xlane.f32.xlu0 %v6076
        %v6078 = vpop.xlane.xlu0 %6077
        %v6079 = vsel %vm2710, %v5991, 0.0
        %6080 = vadd.xlane.f32.xlu0 %v6079
        %v6081 = vpop.xlane.xlu0 %6080
        %v6082 = vsel %vm2710, %v5992, 0.0
        %6083 = vadd.xlane.f32.xlu0 %v6082
        %v6084 = vpop.xlane.xlu0 %6083
        %v6085 = vsel %vm2710, %v5993, 0.0
        %6086 = vadd.xlane.f32.xlu0 %v6085
        %v6087 = vpop.xlane.xlu0 %6086
        %v6088 = vsel %vm2710, %v5994, 0.0
        %6089 = vadd.xlane.f32.xlu0 %v6088
        %v6090 = vpop.xlane.xlu0 %6089
        %v6091 = vmul.f32 %v5997, %v4707
        %v6092 = vmul.f32 %v6000, %v4707
        %v6093 = vmul.f32 %v6003, %v4707
        %v6094 = vmul.f32 %v6006, %v4707
        %v6095 = vmul.f32 %v6009, %v4707
        %v6096 = vmul.f32 %v6012, %v4707
        %v6097 = vmul.f32 %v6015, %v4707
        %v6098 = vmul.f32 %v6018, %v4707
        %v6099 = vmul.f32 %v6021, %v4707
        %v6100 = vmul.f32 %v6024, %v4707
        %v6101 = vmul.f32 %v6027, %v4707
        %v6102 = vmul.f32 %v6030, %v4707
        %v6103 = vmul.f32 %v6033, %v4707
        %v6104 = vmul.f32 %v6036, %v4707
        %v6105 = vmul.f32 %v6039, %v4707
        %v6106 = vmul.f32 %v6042, %v4707
        %v6107 = vmul.f32 %v6045, %v4707
        %v6108 = vmul.f32 %v6048, %v4707
        %v6109 = vmul.f32 %v6051, %v4707
        %v6110 = vmul.f32 %v6054, %v4707
        %v6111 = vmul.f32 %v6057, %v4707
        %v6112 = vmul.f32 %v6060, %v4707
        %v6113 = vmul.f32 %v6063, %v4707
        %v6114 = vmul.f32 %v6066, %v4707
        %v6115 = vmul.f32 %v6069, %v4707
        %v6116 = vmul.f32 %v6072, %v4707
        %v6117 = vmul.f32 %v6075, %v4707
        %v6118 = vmul.f32 %v6078, %v4707
        %v6119 = vmul.f32 %v6081, %v4707
        %v6120 = vmul.f32 %v6084, %v4707
        %v6121 = vmul.f32 %v6087, %v4707
        %v6122 = vmul.f32 %v6090, %v4707
        %v6123 = vadd.f32 %v6091, 1e-05
        %v6124 = vadd.f32 %v6092, 1e-05
        %v6125 = vadd.f32 %v6093, 1e-05
        %v6126 = vadd.f32 %v6094, 1e-05
        %v6127 = vadd.f32 %v6095, 1e-05
        %v6128 = vadd.f32 %v6096, 1e-05
        %v6129 = vadd.f32 %v6097, 1e-05
        %v6130 = vadd.f32 %v6098, 1e-05
        %v6131 = vadd.f32 %v6099, 1e-05
        %v6132 = vadd.f32 %v6100, 1e-05
        %v6133 = vadd.f32 %v6101, 1e-05
        %v6134 = vadd.f32 %v6102, 1e-05
        %v6135 = vadd.f32 %v6103, 1e-05
        %v6136 = vadd.f32 %v6104, 1e-05
        %v6137 = vadd.f32 %v6105, 1e-05
        %v6138 = vadd.f32 %v6106, 1e-05
        %v6139 = vadd.f32 %v6107, 1e-05
        %v6140 = vadd.f32 %v6108, 1e-05
        %v6141 = vadd.f32 %v6109, 1e-05
        %v6142 = vadd.f32 %v6110, 1e-05
        %v6143 = vadd.f32 %v6111, 1e-05
        %v6144 = vadd.f32 %v6112, 1e-05
        %v6145 = vadd.f32 %v6113, 1e-05
        %v6146 = vadd.f32 %v6114, 1e-05
        %v6147 = vadd.f32 %v6115, 1e-05
        %v6148 = vadd.f32 %v6116, 1e-05
        %v6149 = vadd.f32 %v6117, 1e-05
        %v6150 = vadd.f32 %v6118, 1e-05
        %v6151 = vadd.f32 %v6119, 1e-05
        %v6152 = vadd.f32 %v6120, 1e-05
        %v6153 = vadd.f32 %v6121, 1e-05
        %v6154 = vadd.f32 %v6122, 1e-05
        %v6155 = vrsqrt.pop %v6123
        %v6156 = vrsqrt.pop %v6124
        %v6157 = vrsqrt.pop %v6125
        %v6158 = vrsqrt.pop %v6126
        %v6159 = vrsqrt.pop %v6127
        %v6160 = vrsqrt.pop %v6128
        %v6161 = vrsqrt.pop %v6129
        %v6162 = vrsqrt.pop %v6130
        %v6163 = vrsqrt.pop %v6131
        %v6164 = vrsqrt.pop %v6132
        %v6165 = vrsqrt.pop %v6133
        %v6166 = vrsqrt.pop %v6134
        %v6167 = vrsqrt.pop %v6135
        %v6168 = vrsqrt.pop %v6136
        %v6169 = vrsqrt.pop %v6137
        %v6170 = vrsqrt.pop %v6138
        %v6171 = vrsqrt.pop %v6139
        %v6172 = vrsqrt.pop %v6140
        %v6173 = vrsqrt.pop %v6141
        %v6174 = vrsqrt.pop %v6142
        %v6175 = vrsqrt.pop %v6143
        %v6176 = vrsqrt.pop %v6144
        %v6177 = vrsqrt.pop %v6145
        %v6178 = vrsqrt.pop %v6146
        %v6179 = vrsqrt.pop %v6147
        %v6180 = vrsqrt.pop %v6148
        %v6181 = vrsqrt.pop %v6149
        %v6182 = vrsqrt.pop %v6150
        %v6183 = vrsqrt.pop %v6151
        %v6184 = vrsqrt.pop %v6152
        %v6185 = vrsqrt.pop %v6153
        %v6186 = vrsqrt.pop %v6154
        %v6187 = vmul.f32 %v5931, %v6155
        %v6188 = vmul.f32 %v5932, %v6156
        %v6189 = vmul.f32 %v5933, %v6157
        %v6190 = vmul.f32 %v5934, %v6158
        %v6191 = vmul.f32 %v5935, %v6159
        %v6192 = vmul.f32 %v5936, %v6160
        %v6193 = vmul.f32 %v5937, %v6161
        %v6194 = vmul.f32 %v5938, %v6162
        %v6195 = vmul.f32 %v5939, %v6163
        %v6196 = vmul.f32 %v5940, %v6164
        %v6197 = vmul.f32 %v5941, %v6165
        %v6198 = vmul.f32 %v5942, %v6166
        %v6199 = vmul.f32 %v5943, %v6167
        %v6200 = vmul.f32 %v5944, %v6168
        %v6201 = vmul.f32 %v5945, %v6169
        %v6202 = vmul.f32 %v5946, %v6170
        %v6203 = vmul.f32 %v5947, %v6171
        %v6204 = vmul.f32 %v5948, %v6172
        %v6205 = vmul.f32 %v5949, %v6173
        %v6206 = vmul.f32 %v5950, %v6174
        %v6207 = vmul.f32 %v5951, %v6175
        %v6208 = vmul.f32 %v5952, %v6176
        %v6209 = vmul.f32 %v5953, %v6177
        %v6210 = vmul.f32 %v5954, %v6178
        %v6211 = vmul.f32 %v5955, %v6179
        %v6212 = vmul.f32 %v5956, %v6180
        %v6213 = vmul.f32 %v5957, %v6181
        %v6214 = vmul.f32 %v5958, %v6182
        %v6215 = vmul.f32 %v5959, %v6183
        %v6216 = vmul.f32 %v5960, %v6184
        %v6217 = vmul.f32 %v5961, %v6185
        %v6218 = vmul.f32 %v5962, %v6186
        %v6219 = vld [vmem:[%s11 + $0xb] sm:$0x1]
        %v6220 = vlaneseq
        %v6221 = vshrl.u32 %v6220, 7
        %v6222 = vsub.s32 0, %v6221
        %v6223 = vrot.slane %v6219, %v6222
        %v6224 = vmul.f32 %v6187, %v6223
        %v6225 = vmul.f32 %v6188, %v6223
        %v6226 = vmul.f32 %v6189, %v6223
        %v6227 = vmul.f32 %v6190, %v6223
        %v6228 = vmul.f32 %v6191, %v6223
        %v6229 = vmul.f32 %v6192, %v6223
        %v6230 = vmul.f32 %v6193, %v6223
        %v6231 = vmul.f32 %v6194, %v6223
        %v6232 = vmul.f32 %v6195, %v6223
        %v6233 = vmul.f32 %v6196, %v6223
        %v6234 = vmul.f32 %v6197, %v6223
        %v6235 = vmul.f32 %v6198, %v6223
        %v6236 = vmul.f32 %v6199, %v6223
        %v6237 = vmul.f32 %v6200, %v6223
        %v6238 = vmul.f32 %v6201, %v6223
        %v6239 = vmul.f32 %v6202, %v6223
        %v6240 = vmul.f32 %v6203, %v6223
        %v6241 = vmul.f32 %v6204, %v6223
        %v6242 = vmul.f32 %v6205, %v6223
        %v6243 = vmul.f32 %v6206, %v6223
        %v6244 = vmul.f32 %v6207, %v6223
        %v6245 = vmul.f32 %v6208, %v6223
        %v6246 = vmul.f32 %v6209, %v6223
        %v6247 = vmul.f32 %v6210, %v6223
        %v6248 = vmul.f32 %v6211, %v6223
        %v6249 = vmul.f32 %v6212, %v6223
        %v6250 = vmul.f32 %v6213, %v6223
        %v6251 = vmul.f32 %v6214, %v6223
        %v6252 = vmul.f32 %v6215, %v6223
        %v6253 = vmul.f32 %v6216, %v6223
        %v6254 = vmul.f32 %v6217, %v6223
        %v6255 = vmul.f32 %v6218, %v6223
        %v6256 = vld [vmem:[%s11 + $0xd] sm:$0x1]
        %v6257 = vlaneseq
        %v6258 = vshrl.u32 %v6257, 7
        %v6259 = vsub.s32 0, %v6258
        %v6260 = vrot.slane %v6256, %v6259
        %v6261 = vadd.f32 %v6224, %v6260
        %v6262 = vadd.f32 %v6225, %v6260
        %v6263 = vadd.f32 %v6226, %v6260
        %v6264 = vadd.f32 %v6227, %v6260
        %v6265 = vadd.f32 %v6228, %v6260
        %v6266 = vadd.f32 %v6229, %v6260
        %v6267 = vadd.f32 %v6230, %v6260
        %v6268 = vadd.f32 %v6231, %v6260
        %v6269 = vadd.f32 %v6232, %v6260
        %v6270 = vadd.f32 %v6233, %v6260
        %v6271 = vadd.f32 %v6234, %v6260
        %v6272 = vadd.f32 %v6235, %v6260
        %v6273 = vadd.f32 %v6236, %v6260
        %v6274 = vadd.f32 %v6237, %v6260
        %v6275 = vadd.f32 %v6238, %v6260
        %v6276 = vadd.f32 %v6239, %v6260
        %v6277 = vadd.f32 %v6240, %v6260
        %v6278 = vadd.f32 %v6241, %v6260
        %v6279 = vadd.f32 %v6242, %v6260
        %v6280 = vadd.f32 %v6243, %v6260
        %v6281 = vadd.f32 %v6244, %v6260
        %v6282 = vadd.f32 %v6245, %v6260
        %v6283 = vadd.f32 %v6246, %v6260
        %v6284 = vadd.f32 %v6247, %v6260
        %v6285 = vadd.f32 %v6248, %v6260
        %v6286 = vadd.f32 %v6249, %v6260
        %v6287 = vadd.f32 %v6250, %v6260
        %v6288 = vadd.f32 %v6251, %v6260
        %v6289 = vadd.f32 %v6252, %v6260
        %v6290 = vadd.f32 %v6253, %v6260
        %v6291 = vadd.f32 %v6254, %v6260
        %v6292 = vadd.f32 %v6255, %v6260
        %v6293 = vpack.c.bf16 %v6262, %v6261
        %v6294 = vpack.c.bf16 %v6264, %v6263
        %v6295 = vpack.c.bf16 %v6266, %v6265
        %v6296 = vpack.c.bf16 %v6268, %v6267
        %v6297 = vpack.c.bf16 %v6270, %v6269
        %v6298 = vpack.c.bf16 %v6272, %v6271
        %v6299 = vpack.c.bf16 %v6274, %v6273
        %v6300 = vpack.c.bf16 %v6276, %v6275
        %v6301 = vpack.c.bf16 %v6278, %v6277
        %v6302 = vpack.c.bf16 %v6280, %v6279
        %v6303 = vpack.c.bf16 %v6282, %v6281
        %v6304 = vpack.c.bf16 %v6284, %v6283
        %v6305 = vpack.c.bf16 %v6286, %v6285
        %v6306 = vpack.c.bf16 %v6288, %v6287
        %v6307 = vpack.c.bf16 %v6290, %v6289
        %v6308 = vpack.c.bf16 %v6292, %v6291
        %6325 = vrot.lane.b32.xlu0 %v6293, 64
        %v6326 = vpop.permute.xlu0 %6325
        %6327 = vrot.lane.b32.xlu0 %v6294, 64
        %v6328 = vpop.permute.xlu0 %6327
        %6329 = vrot.lane.b32.xlu0 %v6295, 64
        %v6330 = vpop.permute.xlu0 %6329
        %6331 = vrot.lane.b32.xlu0 %v6296, 64
        %v6332 = vpop.permute.xlu0 %6331
        %6333 = vrot.lane.b32.xlu0 %v6297, 64
        %v6334 = vpop.permute.xlu0 %6333
        %6335 = vrot.lane.b32.xlu0 %v6298, 64
        %v6336 = vpop.permute.xlu0 %6335
        %6337 = vrot.lane.b32.xlu0 %v6299, 64
        %v6338 = vpop.permute.xlu0 %6337
        %6339 = vrot.lane.b32.xlu0 %v6300, 64
        %v6340 = vpop.permute.xlu0 %6339
        %6341 = vrot.lane.b32.xlu0 %v6301, 64
        %v6342 = vpop.permute.xlu0 %6341
        %6343 = vrot.lane.b32.xlu0 %v6302, 64
        %v6344 = vpop.permute.xlu0 %6343
        %6345 = vrot.lane.b32.xlu0 %v6303, 64
        %v6346 = vpop.permute.xlu0 %6345
        %6347 = vrot.lane.b32.xlu0 %v6304, 64
        %v6348 = vpop.permute.xlu0 %6347
        %6349 = vrot.lane.b32.xlu0 %v6305, 64
        %v6350 = vpop.permute.xlu0 %6349
        %6351 = vrot.lane.b32.xlu0 %v6306, 64
        %v6352 = vpop.permute.xlu0 %6351
        %6353 = vrot.lane.b32.xlu0 %v6307, 64
        %v6354 = vpop.permute.xlu0 %6353
        %6355 = vrot.lane.b32.xlu0 %v6308, 64
        %v6356 = vpop.permute.xlu0 %6355
        %vm6373 = vcmask 785920
        %6374 = vst.msk [vmem:[#allocation2] sm:$0xff] %vm6373, %v6326
        %6375 = vst.msk [vmem:[#allocation2 + $0x8] sm:$0xff] %vm6373, %v6328
        %6376 = vst.msk [vmem:[#allocation2 + $0x10] sm:$0xff] %vm6373, %v6330
        %6377 = vst.msk [vmem:[#allocation2 + $0x18] sm:$0xff] %vm6373, %v6332
        %6378 = vst.msk [vmem:[#allocation2 + $0x20] sm:$0xff] %vm6373, %v6334
        %6379 = vst.msk [vmem:[#allocation2 + $0x28] sm:$0xff] %vm6373, %v6336
        %6380 = vst.msk [vmem:[#allocation2 + $0x30] sm:$0xff] %vm6373, %v6338
        %6381 = vst.msk [vmem:[#allocation2 + $0x38] sm:$0xff] %vm6373, %v6340
        %6382 = vst.msk [vmem:[#allocation2 + $0x40] sm:$0xff] %vm6373, %v6342
        %6383 = vst.msk [vmem:[#allocation2 + $0x48] sm:$0xff] %vm6373, %v6344
        %6384 = vst.msk [vmem:[#allocation2 + $0x50] sm:$0xff] %vm6373, %v6346
        %6385 = vst.msk [vmem:[#allocation2 + $0x58] sm:$0xff] %vm6373, %v6348
        %6386 = vst.msk [vmem:[#allocation2 + $0x60] sm:$0xff] %vm6373, %v6350
        %6387 = vst.msk [vmem:[#allocation2 + $0x68] sm:$0xff] %vm6373, %v6352
        %6388 = vst.msk [vmem:[#allocation2 + $0x70] sm:$0xff] %vm6373, %v6354
        %6389 = vst.msk [vmem:[#allocation2 + $0x78] sm:$0xff] %vm6373, %v6356
        %v6390 = vld [vmem:[#allocation2] sm:$0xff]
        %v6391 = vld [vmem:[#allocation2 + $0x8] sm:$0xff]
        %v6392 = vld [vmem:[#allocation2 + $0x10] sm:$0xff]
        %v6393 = vld [vmem:[#allocation2 + $0x18] sm:$0xff]
        %v6394 = vld [vmem:[#allocation2 + $0x20] sm:$0xff]
        %v6395 = vld [vmem:[#allocation2 + $0x28] sm:$0xff]
        %v6396 = vld [vmem:[#allocation2 + $0x30] sm:$0xff]
        %v6397 = vld [vmem:[#allocation2 + $0x38] sm:$0xff]
        %v6398 = vld [vmem:[#allocation2 + $0x40] sm:$0xff]
        %v6399 = vld [vmem:[#allocation2 + $0x48] sm:$0xff]
        %v6400 = vld [vmem:[#allocation2 + $0x50] sm:$0xff]
        %v6401 = vld [vmem:[#allocation2 + $0x58] sm:$0xff]
        %v6402 = vld [vmem:[#allocation2 + $0x60] sm:$0xff]
        %v6403 = vld [vmem:[#allocation2 + $0x68] sm:$0xff]
        %v6404 = vld [vmem:[#allocation2 + $0x70] sm:$0xff]
        %v6405 = vld [vmem:[#allocation2 + $0x78] sm:$0xff]
        %v6406 = vld [vmem:[%s7] sm:$0xf]
        %v6407 = vld [vmem:[%s7 + $0x4] sm:$0xf]
        %v6408 = vld [vmem:[%s7 + $0x8] sm:$0xf]
        %v6409 = vld [vmem:[%s7 + $0xc] sm:$0xf]
        %v6410 = vld [vmem:[%s7 + $0x10] sm:$0xf]
        %v6411 = vld [vmem:[%s7 + $0x14] sm:$0xf]
        %v6412 = vld [vmem:[%s7 + $0x18] sm:$0xf]
        %v6413 = vld [vmem:[%s7 + $0x1c] sm:$0xf]
        %v6414 = vld [vmem:[%s7 + $0x20] sm:$0xf]
        %v6415 = vld [vmem:[%s7 + $0x24] sm:$0xf]
        %v6416 = vld [vmem:[%s7 + $0x28] sm:$0xf]
        %v6417 = vld [vmem:[%s7 + $0x2c] sm:$0xf]
        %v6418 = vld [vmem:[%s7 + $0x30] sm:$0xf]
        %v6419 = vld [vmem:[%s7 + $0x34] sm:$0xf]
        %v6420 = vld [vmem:[%s7 + $0x38] sm:$0xf]
        %v6421 = vld [vmem:[%s7 + $0x3c] sm:$0xf]
        %v6422 = vld [vmem:[%s8] sm:$0x1]
        %v6424 = vlaneseq
        %v6425 = vshrl.u32 %v6424, 7
        %v6426 = vsub.s32 0, %v6425
        %v6427 = vrot.slane %v6422, %v6426
        %v6445 = vunpack.c.l.b16 %v6406
        %v6446 = vunpack.c.l.b16 %v6407
        %v6447 = vunpack.c.l.b16 %v6408
        %v6448 = vunpack.c.l.b16 %v6409
        %v6449 = vunpack.c.l.b16 %v6410
        %v6450 = vunpack.c.l.b16 %v6411
        %v6451 = vunpack.c.l.b16 %v6412
        %v6452 = vunpack.c.l.b16 %v6413
        %v6453 = vunpack.c.l.b16 %v6414
        %v6454 = vunpack.c.l.b16 %v6415
        %v6455 = vunpack.c.l.b16 %v6416
        %v6456 = vunpack.c.l.b16 %v6417
        %v6457 = vunpack.c.l.b16 %v6418
        %v6458 = vunpack.c.l.b16 %v6419
        %v6459 = vunpack.c.l.b16 %v6420
        %v6460 = vunpack.c.l.b16 %v6421
        %v6461 = vpack.c.b16 %v6446, %v6445
        %v6462 = vpack.c.b16 %v6448, %v6447
        %v6463 = vpack.c.b16 %v6450, %v6449
        %v6464 = vpack.c.b16 %v6452, %v6451
        %v6465 = vpack.c.b16 %v6454, %v6453
        %v6466 = vpack.c.b16 %v6456, %v6455
        %v6467 = vpack.c.b16 %v6458, %v6457
        %v6468 = vpack.c.b16 %v6460, %v6459
        %6477 = vmatprep.subr.bf16.mxu0 0
        %6478 = vmatpush1.bf16.msra.mxu0 %v6461
        %6479 = vmatprep.subr.bf16.mxu0 0
        %6480 = vmatpush1.bf16.msra.mxu0 %v6462
        %6481 = vmatprep.subr.bf16.mxu0 0
        %6482 = vmatpush1.bf16.msra.mxu0 %v6463
        %6483 = vmatprep.subr.bf16.mxu0 0
        %6484 = vmatpush1.bf16.msra.mxu0 %v6464
        %6485 = vmatprep.subr.bf16.mxu0 0
        %6486 = vmatpush1.bf16.msra.mxu0 %v6465
        %6487 = vmatprep.subr.bf16.mxu0 0
        %6488 = vmatpush1.bf16.msra.mxu0 %v6466
        %6489 = vmatprep.subr.bf16.mxu0 0
        %6490 = vmatpush1.bf16.msra.mxu0 %v6467
        %6491 = vmatprep.subr.bf16.mxu0 0
        %6492 = vmatpush1.bf16.msra.mxu0 %v6468
        %6493 = vmatprep.subr.bf16.mxu0 0
        %6494 = vmatpush1.bf16.msra.mxu0 0
        %6495 = vmatprep.subr.bf16.mxu0 0
        %6496 = vmatpush1.bf16.msra.mxu0 0
        %6497 = vmatprep.subr.bf16.mxu0 0
        %6498 = vmatpush1.bf16.msra.mxu0 0
        %6499 = vmatprep.subr.bf16.mxu0 0
        %6500 = vmatpush1.bf16.msra.mxu0 0
        %6501 = vmatprep.subr.bf16.mxu0 0
        %6502 = vmatpush1.bf16.msra.mxu0 0
        %6503 = vmatprep.subr.bf16.mxu0 0
        %6504 = vmatpush1.bf16.msra.mxu0 0
        %6505 = vmatprep.subr.bf16.mxu0 0
        %6506 = vmatpush1.bf16.msra.mxu0 0
        %6507 = vmatprep.subr.bf16.mxu0 0
        %6508 = vmatpush1.bf16.msra.mxu0 0
        %6509 = vmatprep.mubr.bf16.mxu0 0
        %6510 = vmatmul.mubr.bf16.gmra.mrb[0].mxu0 %v6390
        %v6511 = vpop.f32.mrb[0].mxu0
        %v6512 = vadd.f32 %v6427, %v6511
        %v6513 = vpop.f32.mrb[0].mxu0
        %v6514 = vpop.f32.mrb[0].mxu0
        %v6515 = vadd.f32 %v6427, %v6514
        %v6516 = vpop.f32.mrb[0].mxu0
        %6517 = vmatprep.mubr.bf16.mxu0 0
        %6518 = vmatmul.mubr.bf16.gmra.mrb[0].mxu0 %v6391
        %v6519 = vpop.f32.mrb[0].mxu0
        %v6520 = vadd.f32 %v6427, %v6519
        %v6521 = vpop.f32.mrb[0].mxu0
        %v6522 = vpop.f32.mrb[0].mxu0
        %v6523 = vadd.f32 %v6427, %v6522
        %v6524 = vpop.f32.mrb[0].mxu0
        %6525 = vmatprep.mubr.bf16.mxu0 0
        %6526 = vmatmul.mubr.bf16.gmra.mrb[0].mxu0 %v6392
        %v6527 = vpop.f32.mrb[0].mxu0
        %v6528 = vadd.f32 %v6427, %v6527
        %v6529 = vpop.f32.mrb[0].mxu0
        %v6530 = vpop.f32.mrb[0].mxu0
        %v6531 = vadd.f32 %v6427, %v6530
        %v6532 = vpop.f32.mrb[0].mxu0
        %6533 = vmatprep.mubr.bf16.mxu0 0
        %6534 = vmatmul.mubr.bf16.gmra.mrb[0].mxu0 %v6393
        %v6535 = vpop.f32.mrb[0].mxu0
        %v6536 = vadd.f32 %v6427, %v6535
        %v6537 = vpop.f32.mrb[0].mxu0
        %v6538 = vpop.f32.mrb[0].mxu0
        %v6539 = vadd.f32 %v6427, %v6538
        %v6540 = vpop.f32.mrb[0].mxu0
        %6541 = vmatprep.mubr.bf16.mxu0 0
        %6542 = vmatmul.mubr.bf16.gmra.mrb[0].mxu0 %v6394
        %v6543 = vpop.f32.mrb[0].mxu0
        %v6544 = vadd.f32 %v6427, %v6543
        %v6545 = vpop.f32.mrb[0].mxu0
        %v6546 = vpop.f32.mrb[0].mxu0
        %v6547 = vadd.f32 %v6427, %v6546
        %v6548 = vpop.f32.mrb[0].mxu0
        %6549 = vmatprep.mubr.bf16.mxu0 0
        %6550 = vmatmul.mubr.bf16.gmra.mrb[0].mxu0 %v6395
        %v6551 = vpop.f32.mrb[0].mxu0
        %v6552 = vadd.f32 %v6427, %v6551
        %v6553 = vpop.f32.mrb[0].mxu0
        %v6554 = vpop.f32.mrb[0].mxu0
        %v6555 = vadd.f32 %v6427, %v6554
        %v6556 = vpop.f32.mrb[0].mxu0
        %6557 = vmatprep.mubr.bf16.mxu0 0
        %6558 = vmatmul.mubr.bf16.gmra.mrb[0].mxu0 %v6396
        %v6559 = vpop.f32.mrb[0].mxu0
        %v6560 = vadd.f32 %v6427, %v6559
        %v6561 = vpop.f32.mrb[0].mxu0
        %v6562 = vpop.f32.mrb[0].mxu0
        %v6563 = vadd.f32 %v6427, %v6562
        %v6564 = vpop.f32.mrb[0].mxu0
        %6565 = vmatprep.mubr.bf16.mxu0 0
        %6566 = vmatmul.mubr.bf16.gmra.mrb[0].mxu0 %v6397
        %v6567 = vpop.f32.mrb[0].mxu0
        %v6568 = vadd.f32 %v6427, %v6567
        %v6569 = vpop.f32.mrb[0].mxu0
        %v6570 = vpop.f32.mrb[0].mxu0
        %v6571 = vadd.f32 %v6427, %v6570
        %v6572 = vpop.f32.mrb[0].mxu0
        %6573 = vmatprep.mubr.bf16.mxu0 0
        %6574 = vmatmul.mubr.bf16.gmra.mrb[0].mxu0 %v6398
        %v6575 = vpop.f32.mrb[0].mxu0
        %v6576 = vadd.f32 %v6427, %v6575
        %v6577 = vpop.f32.mrb[0].mxu0
        %v6578 = vpop.f32.mrb[0].mxu0
        %v6579 = vadd.f32 %v6427, %v6578
        %v6580 = vpop.f32.mrb[0].mxu0
        %6581 = vmatprep.mubr.bf16.mxu0 0
        %6582 = vmatmul.mubr.bf16.gmra.mrb[0].mxu0 %v6399
        %v6583 = vpop.f32.mrb[0].mxu0
        %v6584 = vadd.f32 %v6427, %v6583
        %v6585 = vpop.f32.mrb[0].mxu0
        %v6586 = vpop.f32.mrb[0].mxu0
        %v6587 = vadd.f32 %v6427, %v6586
        %v6588 = vpop.f32.mrb[0].mxu0
        %6589 = vmatprep.mubr.bf16.mxu0 0
        %6590 = vmatmul.mubr.bf16.gmra.mrb[0].mxu0 %v6400
        %v6591 = vpop.f32.mrb[0].mxu0
        %v6592 = vadd.f32 %v6427, %v6591
        %v6593 = vpop.f32.mrb[0].mxu0
        %v6594 = vpop.f32.mrb[0].mxu0
        %v6595 = vadd.f32 %v6427, %v6594
        %v6596 = vpop.f32.mrb[0].mxu0
        %6597 = vmatprep.mubr.bf16.mxu0 0
        %6598 = vmatmul.mubr.bf16.gmra.mrb[0].mxu0 %v6401
        %v6599 = vpop.f32.mrb[0].mxu0
        %v6600 = vadd.f32 %v6427, %v6599
        %v6601 = vpop.f32.mrb[0].mxu0
        %v6602 = vpop.f32.mrb[0].mxu0
        %v6603 = vadd.f32 %v6427, %v6602
        %v6604 = vpop.f32.mrb[0].mxu0
        %6605 = vmatprep.mubr.bf16.mxu0 0
        %6606 = vmatmul.mubr.bf16.gmra.mrb[0].mxu0 %v6402
        %v6607 = vpop.f32.mrb[0].mxu0
        %v6608 = vadd.f32 %v6427, %v6607
        %v6609 = vpop.f32.mrb[0].mxu0
        %v6610 = vpop.f32.mrb[0].mxu0
        %v6611 = vadd.f32 %v6427, %v6610
        %v6612 = vpop.f32.mrb[0].mxu0
        %6613 = vmatprep.mubr.bf16.mxu0 0
        %6614 = vmatmul.mubr.bf16.gmra.mrb[0].mxu0 %v6403
        %v6615 = vpop.f32.mrb[0].mxu0
        %v6616 = vadd.f32 %v6427, %v6615
        %v6617 = vpop.f32.mrb[0].mxu0
        %v6618 = vpop.f32.mrb[0].mxu0
        %v6619 = vadd.f32 %v6427, %v6618
        %v6620 = vpop.f32.mrb[0].mxu0
        %6621 = vmatprep.mubr.bf16.mxu0 0
        %6622 = vmatmul.mubr.bf16.gmra.mrb[0].mxu0 %v6404
        %v6623 = vpop.f32.mrb[0].mxu0
        %v6624 = vadd.f32 %v6427, %v6623
        %v6625 = vpop.f32.mrb[0].mxu0
        %v6626 = vpop.f32.mrb[0].mxu0
        %v6627 = vadd.f32 %v6427, %v6626
        %v6628 = vpop.f32.mrb[0].mxu0
        %6629 = vmatprep.mubr.bf16.mxu0 0
        %6630 = vmatmul.mubr.bf16.gmra.mrb[0].mxu0 %v6405
        %v6631 = vpop.f32.mrb[0].mxu0
        %v6632 = vadd.f32 %v6427, %v6631
        %v6633 = vpop.f32.mrb[0].mxu0
        %v6634 = vpop.f32.mrb[0].mxu0
        %v6635 = vadd.f32 %v6427, %v6634
        %v6636 = vpop.f32.mrb[0].mxu0
        %6637 = vdwg.mxu0
        %v6638 = vmax.f32 %v6512, 0.0
        %v6639 = vmax.f32 %v6515, 0.0
        %v6640 = vmax.f32 %v6520, 0.0
        %v6641 = vmax.f32 %v6523, 0.0
        %v6642 = vmax.f32 %v6528, 0.0
        %v6643 = vmax.f32 %v6531, 0.0
        %v6644 = vmax.f32 %v6536, 0.0
        %v6645 = vmax.f32 %v6539, 0.0
        %v6646 = vmax.f32 %v6544, 0.0
        %v6647 = vmax.f32 %v6547, 0.0
        %v6648 = vmax.f32 %v6552, 0.0
        %v6649 = vmax.f32 %v6555, 0.0
        %v6650 = vmax.f32 %v6560, 0.0
        %v6651 = vmax.f32 %v6563, 0.0
        %v6652 = vmax.f32 %v6568, 0.0
        %v6653 = vmax.f32 %v6571, 0.0
        %v6654 = vmax.f32 %v6576, 0.0
        %v6655 = vmax.f32 %v6579, 0.0
        %v6656 = vmax.f32 %v6584, 0.0
        %v6657 = vmax.f32 %v6587, 0.0
        %v6658 = vmax.f32 %v6592, 0.0
        %v6659 = vmax.f32 %v6595, 0.0
        %v6660 = vmax.f32 %v6600, 0.0
        %v6661 = vmax.f32 %v6603, 0.0
        %v6662 = vmax.f32 %v6608, 0.0
        %v6663 = vmax.f32 %v6611, 0.0
        %v6664 = vmax.f32 %v6616, 0.0
        %v6665 = vmax.f32 %v6619, 0.0
        %v6666 = vmax.f32 %v6624, 0.0
        %v6667 = vmax.f32 %v6627, 0.0
        %v6668 = vmax.f32 %v6632, 0.0
        %v6669 = vmax.f32 %v6635, 0.0
        %v6670 = vld [vmem:[%s9] sm:$0xf]
        %v6671 = vld [vmem:[%s9 + $0x4] sm:$0xf]
        %v6672 = vld [vmem:[%s9 + $0x8] sm:$0xf]
        %v6673 = vld [vmem:[%s9 + $0xc] sm:$0xf]
        %v6674 = vld [vmem:[%s9 + $0x10] sm:$0xf]
        %v6675 = vld [vmem:[%s9 + $0x14] sm:$0xf]
        %v6676 = vld [vmem:[%s9 + $0x18] sm:$0xf]
        %v6677 = vld [vmem:[%s9 + $0x1c] sm:$0xf]
        %v6678 = vld [vmem:[%s9 + $0x20] sm:$0xf]
        %v6679 = vld [vmem:[%s9 + $0x24] sm:$0xf]
        %v6680 = vld [vmem:[%s9 + $0x28] sm:$0xf]
        %v6681 = vld [vmem:[%s9 + $0x2c] sm:$0xf]
        %v6682 = vld [vmem:[%s9 + $0x30] sm:$0xf]
        %v6683 = vld [vmem:[%s9 + $0x34] sm:$0xf]
        %v6684 = vld [vmem:[%s9 + $0x38] sm:$0xf]
        %v6685 = vld [vmem:[%s9 + $0x3c] sm:$0xf]
        %v6686 = vpack.c.bf16 %v6639, %v6638
        %v6687 = vpack.c.bf16 %v6641, %v6640
        %v6688 = vpack.c.bf16 %v6643, %v6642
        %v6689 = vpack.c.bf16 %v6645, %v6644
        %v6690 = vpack.c.bf16 %v6647, %v6646
        %v6691 = vpack.c.bf16 %v6649, %v6648
        %v6692 = vpack.c.bf16 %v6651, %v6650
        %v6693 = vpack.c.bf16 %v6653, %v6652
        %v6694 = vpack.c.bf16 %v6655, %v6654
        %v6695 = vpack.c.bf16 %v6657, %v6656
        %v6696 = vpack.c.bf16 %v6659, %v6658
        %v6697 = vpack.c.bf16 %v6661, %v6660
        %v6698 = vpack.c.bf16 %v6663, %v6662
        %v6699 = vpack.c.bf16 %v6665, %v6664
        %v6700 = vpack.c.bf16 %v6667, %v6666
        %v6701 = vpack.c.bf16 %v6669, %v6668
        %v6702 = vlaneseq
        %v6703 = vshrl.u32 %v6702, 7
        %v6704 = vsub.s32 0, %v6703
        %v6705 = vrot.slane %v438, %v6704
        %v6722 = vunpack.c.l.b16 %v6670
        %v6723 = vunpack.c.l.b16 %v6671
        %v6724 = vunpack.c.l.b16 %v6672
        %v6725 = vunpack.c.l.b16 %v6673
        %v6726 = vunpack.c.l.b16 %v6674
        %v6727 = vunpack.c.l.b16 %v6675
        %v6728 = vunpack.c.l.b16 %v6676
        %v6729 = vunpack.c.l.b16 %v6677
        %v6730 = vunpack.c.l.b16 %v6678
        %v6731 = vunpack.c.l.b16 %v6679
        %v6732 = vunpack.c.l.b16 %v6680
        %v6733 = vunpack.c.l.b16 %v6681
        %v6734 = vunpack.c.l.b16 %v6682
        %v6735 = vunpack.c.l.b16 %v6683
        %v6736 = vunpack.c.l.b16 %v6684
        %v6737 = vunpack.c.l.b16 %v6685
        %v6738 = vpack.c.b16 %v6723, %v6722
        %v6739 = vpack.c.b16 %v6725, %v6724
        %v6740 = vpack.c.b16 %v6727, %v6726
        %v6741 = vpack.c.b16 %v6729, %v6728
        %v6742 = vpack.c.b16 %v6731, %v6730
        %v6743 = vpack.c.b16 %v6733, %v6732
        %v6744 = vpack.c.b16 %v6735, %v6734
        %v6745 = vpack.c.b16 %v6737, %v6736
        %6754 = vmatprep.subr.bf16.mxu0 0
        %6755 = vmatpush1.bf16.msra.mxu0 %v6738
        %6756 = vmatprep.subr.bf16.mxu0 0
        %6757 = vmatpush1.bf16.msra.mxu0 %v6739
        %6758 = vmatprep.subr.bf16.mxu0 0
        %6759 = vmatpush1.bf16.msra.mxu0 %v6740
        %6760 = vmatprep.subr.bf16.mxu0 0
        %6761 = vmatpush1.bf16.msra.mxu0 %v6741
        %6762 = vmatprep.subr.bf16.mxu0 0
        %6763 = vmatpush1.bf16.msra.mxu0 %v6742
        %6764 = vmatprep.subr.bf16.mxu0 0
        %6765 = vmatpush1.bf16.msra.mxu0 %v6743
        %6766 = vmatprep.subr.bf16.mxu0 0
        %6767 = vmatpush1.bf16.msra.mxu0 %v6744
        %6768 = vmatprep.subr.bf16.mxu0 0
        %6769 = vmatpush1.bf16.msra.mxu0 %v6745
        %6770 = vmatprep.subr.bf16.mxu0 0
        %6771 = vmatpush1.bf16.msra.mxu0 0
        %6772 = vmatprep.subr.bf16.mxu0 0
        %6773 = vmatpush1.bf16.msra.mxu0 0
        %6774 = vmatprep.subr.bf16.mxu0 0
        %6775 = vmatpush1.bf16.msra.mxu0 0
        %6776 = vmatprep.subr.bf16.mxu0 0
        %6777 = vmatpush1.bf16.msra.mxu0 0
        %6778 = vmatprep.subr.bf16.mxu0 0
        %6779 = vmatpush1.bf16.msra.mxu0 0
        %6780 = vmatprep.subr.bf16.mxu0 0
        %6781 = vmatpush1.bf16.msra.mxu0 0
        %6782 = vmatprep.subr.bf16.mxu0 0
        %6783 = vmatpush1.bf16.msra.mxu0 0
        %6784 = vmatprep.subr.bf16.mxu0 0
        %6785 = vmatpush1.bf16.msra.mxu0 0
        %6786 = vmatprep.mubr.bf16.mxu0 0
        %6787 = vmatmul.mubr.bf16.gmra.mrb[0].mxu0 %v6686
        %v6788 = vpop.f32.mrb[0].mxu0
        %v6789 = vadd.f32 %v6705, %v6788
        %v6790 = vpop.f32.mrb[0].mxu0
        %v6791 = vpop.f32.mrb[0].mxu0
        %v6792 = vadd.f32 %v6705, %v6791
        %v6793 = vpop.f32.mrb[0].mxu0
        %6794 = vmatprep.mubr.bf16.mxu0 0
        %6795 = vmatmul.mubr.bf16.gmra.mrb[0].mxu0 %v6687
        %v6796 = vpop.f32.mrb[0].mxu0
        %v6797 = vadd.f32 %v6705, %v6796
        %v6798 = vpop.f32.mrb[0].mxu0
        %v6799 = vpop.f32.mrb[0].mxu0
        %v6800 = vadd.f32 %v6705, %v6799
        %v6801 = vpop.f32.mrb[0].mxu0
        %6802 = vmatprep.mubr.bf16.mxu0 0
        %6803 = vmatmul.mubr.bf16.gmra.mrb[0].mxu0 %v6688
        %v6804 = vpop.f32.mrb[0].mxu0
        %v6805 = vadd.f32 %v6705, %v6804
        %v6806 = vpop.f32.mrb[0].mxu0
        %v6807 = vpop.f32.mrb[0].mxu0
        %v6808 = vadd.f32 %v6705, %v6807
        %v6809 = vpop.f32.mrb[0].mxu0
        %6810 = vmatprep.mubr.bf16.mxu0 0
        %6811 = vmatmul.mubr.bf16.gmra.mrb[0].mxu0 %v6689
        %v6812 = vpop.f32.mrb[0].mxu0
        %v6813 = vadd.f32 %v6705, %v6812
        %v6814 = vpop.f32.mrb[0].mxu0
        %v6815 = vpop.f32.mrb[0].mxu0
        %v6816 = vadd.f32 %v6705, %v6815
        %v6817 = vpop.f32.mrb[0].mxu0
        %6818 = vmatprep.mubr.bf16.mxu0 0
        %6819 = vmatmul.mubr.bf16.gmra.mrb[0].mxu0 %v6690
        %v6820 = vpop.f32.mrb[0].mxu0
        %v6821 = vadd.f32 %v6705, %v6820
        %v6822 = vpop.f32.mrb[0].mxu0
        %v6823 = vpop.f32.mrb[0].mxu0
        %v6824 = vadd.f32 %v6705, %v6823
        %v6825 = vpop.f32.mrb[0].mxu0
        %6826 = vmatprep.mubr.bf16.mxu0 0
        %6827 = vmatmul.mubr.bf16.gmra.mrb[0].mxu0 %v6691
        %v6828 = vpop.f32.mrb[0].mxu0
        %v6829 = vadd.f32 %v6705, %v6828
        %v6830 = vpop.f32.mrb[0].mxu0
        %v6831 = vpop.f32.mrb[0].mxu0
        %v6832 = vadd.f32 %v6705, %v6831
        %v6833 = vpop.f32.mrb[0].mxu0
        %6834 = vmatprep.mubr.bf16.mxu0 0
        %6835 = vmatmul.mubr.bf16.gmra.mrb[0].mxu0 %v6692
        %v6836 = vpop.f32.mrb[0].mxu0
        %v6837 = vadd.f32 %v6705, %v6836
        %v6838 = vpop.f32.mrb[0].mxu0
        %v6839 = vpop.f32.mrb[0].mxu0
        %v6840 = vadd.f32 %v6705, %v6839
        %v6841 = vpop.f32.mrb[0].mxu0
        %6842 = vmatprep.mubr.bf16.mxu0 0
        %6843 = vmatmul.mubr.bf16.gmra.mrb[0].mxu0 %v6693
        %v6844 = vpop.f32.mrb[0].mxu0
        %v6845 = vadd.f32 %v6705, %v6844
        %v6846 = vpop.f32.mrb[0].mxu0
        %v6847 = vpop.f32.mrb[0].mxu0
        %v6848 = vadd.f32 %v6705, %v6847
        %v6849 = vpop.f32.mrb[0].mxu0
        %6850 = vmatprep.mubr.bf16.mxu0 0
        %6851 = vmatmul.mubr.bf16.gmra.mrb[0].mxu0 %v6694
        %v6852 = vpop.f32.mrb[0].mxu0
        %v6853 = vadd.f32 %v6705, %v6852
        %v6854 = vpop.f32.mrb[0].mxu0
        %v6855 = vpop.f32.mrb[0].mxu0
        %v6856 = vadd.f32 %v6705, %v6855
        %v6857 = vpop.f32.mrb[0].mxu0
        %6858 = vmatprep.mubr.bf16.mxu0 0
        %6859 = vmatmul.mubr.bf16.gmra.mrb[0].mxu0 %v6695
        %v6860 = vpop.f32.mrb[0].mxu0
        %v6861 = vadd.f32 %v6705, %v6860
        %v6862 = vpop.f32.mrb[0].mxu0
        %v6863 = vpop.f32.mrb[0].mxu0
        %v6864 = vadd.f32 %v6705, %v6863
        %v6865 = vpop.f32.mrb[0].mxu0
        %6866 = vmatprep.mubr.bf16.mxu0 0
        %6867 = vmatmul.mubr.bf16.gmra.mrb[0].mxu0 %v6696
        %v6868 = vpop.f32.mrb[0].mxu0
        %v6869 = vadd.f32 %v6705, %v6868
        %v6870 = vpop.f32.mrb[0].mxu0
        %v6871 = vpop.f32.mrb[0].mxu0
        %v6872 = vadd.f32 %v6705, %v6871
        %v6873 = vpop.f32.mrb[0].mxu0
        %6874 = vmatprep.mubr.bf16.mxu0 0
        %6875 = vmatmul.mubr.bf16.gmra.mrb[0].mxu0 %v6697
        %v6876 = vpop.f32.mrb[0].mxu0
        %v6877 = vadd.f32 %v6705, %v6876
        %v6878 = vpop.f32.mrb[0].mxu0
        %v6879 = vpop.f32.mrb[0].mxu0
        %v6880 = vadd.f32 %v6705, %v6879
        %v6881 = vpop.f32.mrb[0].mxu0
        %6882 = vmatprep.mubr.bf16.mxu0 0
        %6883 = vmatmul.mubr.bf16.gmra.mrb[0].mxu0 %v6698
        %v6884 = vpop.f32.mrb[0].mxu0
        %v6885 = vadd.f32 %v6705, %v6884
        %v6886 = vpop.f32.mrb[0].mxu0
        %v6887 = vpop.f32.mrb[0].mxu0
        %v6888 = vadd.f32 %v6705, %v6887
        %v6889 = vpop.f32.mrb[0].mxu0
        %6890 = vmatprep.mubr.bf16.mxu0 0
        %6891 = vmatmul.mubr.bf16.gmra.mrb[0].mxu0 %v6699
        %v6892 = vpop.f32.mrb[0].mxu0
        %v6893 = vadd.f32 %v6705, %v6892
        %v6894 = vpop.f32.mrb[0].mxu0
        %v6895 = vpop.f32.mrb[0].mxu0
        %v6896 = vadd.f32 %v6705, %v6895
        %v6897 = vpop.f32.mrb[0].mxu0
        %6898 = vmatprep.mubr.bf16.mxu0 0
        %6899 = vmatmul.mubr.bf16.gmra.mrb[0].mxu0 %v6700
        %v6900 = vpop.f32.mrb[0].mxu0
        %v6901 = vadd.f32 %v6705, %v6900
        %v6902 = vpop.f32.mrb[0].mxu0
        %v6903 = vpop.f32.mrb[0].mxu0
        %v6904 = vadd.f32 %v6705, %v6903
        %v6905 = vpop.f32.mrb[0].mxu0
        %6906 = vmatprep.mubr.bf16.mxu0 0
        %6907 = vmatmul.mubr.bf16.gmra.mrb[0].mxu0 %v6701
        %v6908 = vpop.f32.mrb[0].mxu0
        %v6909 = vadd.f32 %v6705, %v6908
        %v6910 = vpop.f32.mrb[0].mxu0
        %v6911 = vpop.f32.mrb[0].mxu0
        %v6912 = vadd.f32 %v6705, %v6911
        %v6913 = vpop.f32.mrb[0].mxu0
        %6914 = vdwg.mxu0
        %v6915 = vlaneseq
        %v6916 = vand.u32 %v6915, 127
        %v6917 = vadd.s32 %v6916, 128
        %v6918 = vld [vmem:[%s431] sm:$0xff]
        %v6919 = vld [vmem:[%s431 + $0x8] sm:$0xff]
        %v6920 = vld [vmem:[%s431 + $0x10] sm:$0xff]
        %v6921 = vld [vmem:[%s431 + $0x18] sm:$0xff]
        %v6922 = vld [vmem:[%s431 + $0x20] sm:$0xff]
        %v6923 = vld [vmem:[%s431 + $0x28] sm:$0xff]
        %v6924 = vld [vmem:[%s431 + $0x30] sm:$0xff]
        %v6925 = vld [vmem:[%s431 + $0x38] sm:$0xff]
        %v6926 = vld [vmem:[%s431 + $0x40] sm:$0xff]
        %v6927 = vld [vmem:[%s431 + $0x48] sm:$0xff]
        %v6928 = vld [vmem:[%s431 + $0x50] sm:$0xff]
        %v6929 = vld [vmem:[%s431 + $0x58] sm:$0xff]
        %v6930 = vld [vmem:[%s431 + $0x60] sm:$0xff]
        %v6931 = vld [vmem:[%s431 + $0x68] sm:$0xff]
        %v6932 = vld [vmem:[%s431 + $0x70] sm:$0xff]
        %v6933 = vld [vmem:[%s431 + $0x78] sm:$0xff]
        %v6934 = vld [vmem:[%s431 + $0x80] sm:$0xff]
        %v6935 = vld [vmem:[%s431 + $0x88] sm:$0xff]
        %v6936 = vld [vmem:[%s431 + $0x90] sm:$0xff]
        %v6937 = vld [vmem:[%s431 + $0x98] sm:$0xff]
        %v6938 = vld [vmem:[%s431 + $0xa0] sm:$0xff]
        %v6939 = vld [vmem:[%s431 + $0xa8] sm:$0xff]
        %v6940 = vld [vmem:[%s431 + $0xb0] sm:$0xff]
        %v6941 = vld [vmem:[%s431 + $0xb8] sm:$0xff]
        %v6942 = vld [vmem:[%s431 + $0xc0] sm:$0xff]
        %v6943 = vld [vmem:[%s431 + $0xc8] sm:$0xff]
        %v6944 = vld [vmem:[%s431 + $0xd0] sm:$0xff]
        %v6945 = vld [vmem:[%s431 + $0xd8] sm:$0xff]
        %v6946 = vld [vmem:[%s431 + $0xe0] sm:$0xff]
        %v6947 = vld [vmem:[%s431 + $0xe8] sm:$0xff]
        %v6948 = vld [vmem:[%s431 + $0xf0] sm:$0xff]
        %v6949 = vld [vmem:[%s431 + $0xf8] sm:$0xff]
        %6950 = vset.pattern.permute.xlu0 0
        %6951 = vperm.xlu0 %6950, %v6918
        %v6952 = vpop.permute.xlu0 %6951
        %6953 = vset.pattern.permute.xlu0 0
        %6954 = vperm.xlu0 %6953, %v6919
        %v6955 = vpop.permute.xlu0 %6954
        %6956 = vset.pattern.permute.xlu0 0
        %6957 = vperm.xlu0 %6956, %v6920
        %v6958 = vpop.permute.xlu0 %6957
        %6959 = vset.pattern.permute.xlu0 0
        %6960 = vperm.xlu0 %6959, %v6921
        %v6961 = vpop.permute.xlu0 %6960
        %6962 = vset.pattern.permute.xlu0 0
        %6963 = vperm.xlu0 %6962, %v6922
        %v6964 = vpop.permute.xlu0 %6963
        %6965 = vset.pattern.permute.xlu0 0
        %6966 = vperm.xlu0 %6965, %v6923
        %v6967 = vpop.permute.xlu0 %6966
        %6968 = vset.pattern.permute.xlu0 0
        %6969 = vperm.xlu0 %6968, %v6924
        %v6970 = vpop.permute.xlu0 %6969
        %6971 = vset.pattern.permute.xlu0 0
        %6972 = vperm.xlu0 %6971, %v6925
        %v6973 = vpop.permute.xlu0 %6972
        %6974 = vset.pattern.permute.xlu0 0
        %6975 = vperm.xlu0 %6974, %v6926
        %v6976 = vpop.permute.xlu0 %6975
        %6977 = vset.pattern.permute.xlu0 0
        %6978 = vperm.xlu0 %6977, %v6927
        %v6979 = vpop.permute.xlu0 %6978
        %6980 = vset.pattern.permute.xlu0 0
        %6981 = vperm.xlu0 %6980, %v6928
        %v6982 = vpop.permute.xlu0 %6981
        %6983 = vset.pattern.permute.xlu0 0
        %6984 = vperm.xlu0 %6983, %v6929
        %v6985 = vpop.permute.xlu0 %6984
        %6986 = vset.pattern.permute.xlu0 0
        %6987 = vperm.xlu0 %6986, %v6930
        %v6988 = vpop.permute.xlu0 %6987
        %6989 = vset.pattern.permute.xlu0 0
        %6990 = vperm.xlu0 %6989, %v6931
        %v6991 = vpop.permute.xlu0 %6990
        %6992 = vset.pattern.permute.xlu0 0
        %6993 = vperm.xlu0 %6992, %v6932
        %v6994 = vpop.permute.xlu0 %6993
        %6995 = vset.pattern.permute.xlu0 0
        %6996 = vperm.xlu0 %6995, %v6933
        %v6997 = vpop.permute.xlu0 %6996
        %6998 = vset.pattern.permute.xlu0 0
        %6999 = vperm.xlu0 %6998, %v6934
        %v7000 = vpop.permute.xlu0 %6999
        %7001 = vset.pattern.permute.xlu0 0
        %7002 = vperm.xlu0 %7001, %v6935
        %v7003 = vpop.permute.xlu0 %7002
        %7004 = vset.pattern.permute.xlu0 0
        %7005 = vperm.xlu0 %7004, %v6936
        %v7006 = vpop.permute.xlu0 %7005
        %7007 = vset.pattern.permute.xlu0 0
        %7008 = vperm.xlu0 %7007, %v6937
        %v7009 = vpop.permute.xlu0 %7008
        %7010 = vset.pattern.permute.xlu0 0
        %7011 = vperm.xlu0 %7010, %v6938
        %v7012 = vpop.permute.xlu0 %7011
        %7013 = vset.pattern.permute.xlu0 0
        %7014 = vperm.xlu0 %7013, %v6939
        %v7015 = vpop.permute.xlu0 %7014
        %7016 = vset.pattern.permute.xlu0 0
        %7017 = vperm.xlu0 %7016, %v6940
        %v7018 = vpop.permute.xlu0 %7017
        %7019 = vset.pattern.permute.xlu0 0
        %7020 = vperm.xlu0 %7019, %v6941
        %v7021 = vpop.permute.xlu0 %7020
        %7022 = vset.pattern.permute.xlu0 0
        %7023 = vperm.xlu0 %7022, %v6942
        %v7024 = vpop.permute.xlu0 %7023
        %7025 = vset.pattern.permute.xlu0 0
        %7026 = vperm.xlu0 %7025, %v6943
        %v7027 = vpop.permute.xlu0 %7026
        %7028 = vset.pattern.permute.xlu0 0
        %7029 = vperm.xlu0 %7028, %v6944
        %v7030 = vpop.permute.xlu0 %7029
        %7031 = vset.pattern.permute.xlu0 0
        %7032 = vperm.xlu0 %7031, %v6945
        %v7033 = vpop.permute.xlu0 %7032
        %7034 = vset.pattern.permute.xlu0 0
        %7035 = vperm.xlu0 %7034, %v6946
        %v7036 = vpop.permute.xlu0 %7035
        %7037 = vset.pattern.permute.xlu0 0
        %7038 = vperm.xlu0 %7037, %v6947
        %v7039 = vpop.permute.xlu0 %7038
        %7040 = vset.pattern.permute.xlu0 0
        %7041 = vperm.xlu0 %7040, %v6948
        %v7042 = vpop.permute.xlu0 %7041
        %7043 = vset.pattern.permute.xlu0 0
        %7044 = vperm.xlu0 %7043, %v6949
        %v7045 = vpop.permute.xlu0 %7044
        %vm7046 = vcmp.eq.s32.totalorder %v6916, %v6952
        %vm7047 = vcmp.eq.s32.totalorder %v6917, %v6952
        %vm7048 = vcmp.eq.s32.totalorder %v6916, %v6955
        %vm7049 = vcmp.eq.s32.totalorder %v6917, %v6955
        %vm7050 = vcmp.eq.s32.totalorder %v6916, %v6958
        %vm7051 = vcmp.eq.s32.totalorder %v6917, %v6958
        %vm7052 = vcmp.eq.s32.totalorder %v6916, %v6961
        %vm7053 = vcmp.eq.s32.totalorder %v6917, %v6961
        %vm7054 = vcmp.eq.s32.totalorder %v6916, %v6964
        %vm7055 = vcmp.eq.s32.totalorder %v6917, %v6964
        %vm7056 = vcmp.eq.s32.totalorder %v6916, %v6967
        %vm7057 = vcmp.eq.s32.totalorder %v6917, %v6967
        %vm7058 = vcmp.eq.s32.totalorder %v6916, %v6970
        %vm7059 = vcmp.eq.s32.totalorder %v6917, %v6970
        %vm7060 = vcmp.eq.s32.totalorder %v6916, %v6973
        %vm7061 = vcmp.eq.s32.totalorder %v6917, %v6973
        %vm7062 = vcmp.eq.s32.totalorder %v6916, %v6976
        %vm7063 = vcmp.eq.s32.totalorder %v6917, %v6976
        %vm7064 = vcmp.eq.s32.totalorder %v6916, %v6979
        %vm7065 = vcmp.eq.s32.totalorder %v6917, %v6979
        %vm7066 = vcmp.eq.s32.totalorder %v6916, %v6982
        %vm7067 = vcmp.eq.s32.totalorder %v6917, %v6982
        %vm7068 = vcmp.eq.s32.totalorder %v6916, %v6985
        %vm7069 = vcmp.eq.s32.totalorder %v6917, %v6985
        %vm7070 = vcmp.eq.s32.totalorder %v6916, %v6988
        %vm7071 = vcmp.eq.s32.totalorder %v6917, %v6988
        %vm7072 = vcmp.eq.s32.totalorder %v6916, %v6991
        %vm7073 = vcmp.eq.s32.totalorder %v6917, %v6991
        %vm7074 = vcmp.eq.s32.totalorder %v6916, %v6994
        %vm7075 = vcmp.eq.s32.totalorder %v6917, %v6994
        %vm7076 = vcmp.eq.s32.totalorder %v6916, %v6997
        %vm7077 = vcmp.eq.s32.totalorder %v6917, %v6997
        %vm7078 = vcmp.eq.s32.totalorder %v6916, %v7000
        %vm7079 = vcmp.eq.s32.totalorder %v6917, %v7000
        %vm7080 = vcmp.eq.s32.totalorder %v6916, %v7003
        %vm7081 = vcmp.eq.s32.totalorder %v6917, %v7003
        %vm7082 = vcmp.eq.s32.totalorder %v6916, %v7006
        %vm7083 = vcmp.eq.s32.totalorder %v6917, %v7006
        %vm7084 = vcmp.eq.s32.totalorder %v6916, %v7009
        %vm7085 = vcmp.eq.s32.totalorder %v6917, %v7009
        %vm7086 = vcmp.eq.s32.totalorder %v6916, %v7012
        %vm7087 = vcmp.eq.s32.totalorder %v6917, %v7012
        %vm7088 = vcmp.eq.s32.totalorder %v6916, %v7015
        %vm7089 = vcmp.eq.s32.totalorder %v6917, %v7015
        %vm7090 = vcmp.eq.s32.totalorder %v6916, %v7018
        %vm7091 = vcmp.eq.s32.totalorder %v6917, %v7018
        %vm7092 = vcmp.eq.s32.totalorder %v6916, %v7021
        %vm7093 = vcmp.eq.s32.totalorder %v6917, %v7021
        %vm7094 = vcmp.eq.s32.totalorder %v6916, %v7024
        %vm7095 = vcmp.eq.s32.totalorder %v6917, %v7024
        %vm7096 = vcmp.eq.s32.totalorder %v6916, %v7027
        %vm7097 = vcmp.eq.s32.totalorder %v6917, %v7027
        %vm7098 = vcmp.eq.s32.totalorder %v6916, %v7030
        %vm7099 = vcmp.eq.s32.totalorder %v6917, %v7030
        %vm7100 = vcmp.eq.s32.totalorder %v6916, %v7033
        %vm7101 = vcmp.eq.s32.totalorder %v6917, %v7033
        %vm7102 = vcmp.eq.s32.totalorder %v6916, %v7036
        %vm7103 = vcmp.eq.s32.totalorder %v6917, %v7036
        %vm7104 = vcmp.eq.s32.totalorder %v6916, %v7039
        %vm7105 = vcmp.eq.s32.totalorder %v6917, %v7039
        %vm7106 = vcmp.eq.s32.totalorder %v6916, %v7042
        %vm7107 = vcmp.eq.s32.totalorder %v6917, %v7042
        %vm7108 = vcmp.eq.s32.totalorder %v6916, %v7045
        %vm7109 = vcmp.eq.s32.totalorder %v6917, %v7045
        %v7110 = vsel %vm7046, 1, 0
        %v7111 = vsel %vm7047, 1, 0
        %v7112 = vsel %vm7048, 1, 0
        %v7113 = vsel %vm7049, 1, 0
        %v7114 = vsel %vm7050, 1, 0
        %v7115 = vsel %vm7051, 1, 0
        %v7116 = vsel %vm7052, 1, 0
        %v7117 = vsel %vm7053, 1, 0
        %v7118 = vsel %vm7054, 1, 0
        %v7119 = vsel %vm7055, 1, 0
        %v7120 = vsel %vm7056, 1, 0
        %v7121 = vsel %vm7057, 1, 0
        %v7122 = vsel %vm7058, 1, 0
        %v7123 = vsel %vm7059, 1, 0
        %v7124 = vsel %vm7060, 1, 0
        %v7125 = vsel %vm7061, 1, 0
        %v7126 = vsel %vm7062, 1, 0
        %v7127 = vsel %vm7063, 1, 0
        %v7128 = vsel %vm7064, 1, 0
        %v7129 = vsel %vm7065, 1, 0
        %v7130 = vsel %vm7066, 1, 0
        %v7131 = vsel %vm7067, 1, 0
        %v7132 = vsel %vm7068, 1, 0
        %v7133 = vsel %vm7069, 1, 0
        %v7134 = vsel %vm7070, 1, 0
        %v7135 = vsel %vm7071, 1, 0
        %v7136 = vsel %vm7072, 1, 0
        %v7137 = vsel %vm7073, 1, 0
        %v7138 = vsel %vm7074, 1, 0
        %v7139 = vsel %vm7075, 1, 0
        %v7140 = vsel %vm7076, 1, 0
        %v7141 = vsel %vm7077, 1, 0
        %v7142 = vsel %vm7078, 1, 0
        %v7143 = vsel %vm7079, 1, 0
        %v7144 = vsel %vm7080, 1, 0
        %v7145 = vsel %vm7081, 1, 0
        %v7146 = vsel %vm7082, 1, 0
        %v7147 = vsel %vm7083, 1, 0
        %v7148 = vsel %vm7084, 1, 0
        %v7149 = vsel %vm7085, 1, 0
        %v7150 = vsel %vm7086, 1, 0
        %v7151 = vsel %vm7087, 1, 0
        %v7152 = vsel %vm7088, 1, 0
        %v7153 = vsel %vm7089, 1, 0
        %v7154 = vsel %vm7090, 1, 0
        %v7155 = vsel %vm7091, 1, 0
        %v7156 = vsel %vm7092, 1, 0
        %v7157 = vsel %vm7093, 1, 0
        %v7158 = vsel %vm7094, 1, 0
        %v7159 = vsel %vm7095, 1, 0
        %v7160 = vsel %vm7096, 1, 0
        %v7161 = vsel %vm7097, 1, 0
        %v7162 = vsel %vm7098, 1, 0
        %v7163 = vsel %vm7099, 1, 0
        %v7164 = vsel %vm7100, 1, 0
        %v7165 = vsel %vm7101, 1, 0
        %v7166 = vsel %vm7102, 1, 0
        %v7167 = vsel %vm7103, 1, 0
        %v7168 = vsel %vm7104, 1, 0
        %v7169 = vsel %vm7105, 1, 0
        %v7170 = vsel %vm7106, 1, 0
        %v7171 = vsel %vm7107, 1, 0
        %v7172 = vsel %vm7108, 1, 0
        %v7173 = vsel %vm7109, 1, 0
        %v7174 = vcvt.s32.f32 %v7110
        %v7175 = vcvt.s32.f32 %v7111
        %v7176 = vcvt.s32.f32 %v7112
        %v7177 = vcvt.s32.f32 %v7113
        %v7178 = vcvt.s32.f32 %v7114
        %v7179 = vcvt.s32.f32 %v7115
        %v7180 = vcvt.s32.f32 %v7116
        %v7181 = vcvt.s32.f32 %v7117
        %v7182 = vcvt.s32.f32 %v7118
        %v7183 = vcvt.s32.f32 %v7119
        %v7184 = vcvt.s32.f32 %v7120
        %v7185 = vcvt.s32.f32 %v7121
        %v7186 = vcvt.s32.f32 %v7122
        %v7187 = vcvt.s32.f32 %v7123
        %v7188 = vcvt.s32.f32 %v7124
        %v7189 = vcvt.s32.f32 %v7125
        %v7190 = vcvt.s32.f32 %v7126
        %v7191 = vcvt.s32.f32 %v7127
        %v7192 = vcvt.s32.f32 %v7128
        %v7193 = vcvt.s32.f32 %v7129
        %v7194 = vcvt.s32.f32 %v7130
        %v7195 = vcvt.s32.f32 %v7131
        %v7196 = vcvt.s32.f32 %v7132
        %v7197 = vcvt.s32.f32 %v7133
        %v7198 = vcvt.s32.f32 %v7134
        %v7199 = vcvt.s32.f32 %v7135
        %v7200 = vcvt.s32.f32 %v7136
        %v7201 = vcvt.s32.f32 %v7137
        %v7202 = vcvt.s32.f32 %v7138
        %v7203 = vcvt.s32.f32 %v7139
        %v7204 = vcvt.s32.f32 %v7140
        %v7205 = vcvt.s32.f32 %v7141
        %v7206 = vcvt.s32.f32 %v7142
        %v7207 = vcvt.s32.f32 %v7143
        %v7208 = vcvt.s32.f32 %v7144
        %v7209 = vcvt.s32.f32 %v7145
        %v7210 = vcvt.s32.f32 %v7146
        %v7211 = vcvt.s32.f32 %v7147
        %v7212 = vcvt.s32.f32 %v7148
        %v7213 = vcvt.s32.f32 %v7149
        %v7214 = vcvt.s32.f32 %v7150
        %v7215 = vcvt.s32.f32 %v7151
        %v7216 = vcvt.s32.f32 %v7152
        %v7217 = vcvt.s32.f32 %v7153
        %v7218 = vcvt.s32.f32 %v7154
        %v7219 = vcvt.s32.f32 %v7155
        %v7220 = vcvt.s32.f32 %v7156
        %v7221 = vcvt.s32.f32 %v7157
        %v7222 = vcvt.s32.f32 %v7158
        %v7223 = vcvt.s32.f32 %v7159
        %v7224 = vcvt.s32.f32 %v7160
        %v7225 = vcvt.s32.f32 %v7161
        %v7226 = vcvt.s32.f32 %v7162
        %v7227 = vcvt.s32.f32 %v7163
        %v7228 = vcvt.s32.f32 %v7164
        %v7229 = vcvt.s32.f32 %v7165
        %v7230 = vcvt.s32.f32 %v7166
        %v7231 = vcvt.s32.f32 %v7167
        %v7232 = vcvt.s32.f32 %v7168
        %v7233 = vcvt.s32.f32 %v7169
        %v7234 = vcvt.s32.f32 %v7170
        %v7235 = vcvt.s32.f32 %v7171
        %v7236 = vcvt.s32.f32 %v7172
        %v7237 = vcvt.s32.f32 %v7173
        %v7238 = vpack.c.bf16 %v7176, %v7174
        %v7239 = vpack.c.bf16 %v7177, %v7175
        %v7240 = vpack.c.bf16 %v7180, %v7178
        %v7241 = vpack.c.bf16 %v7181, %v7179
        %v7242 = vpack.c.bf16 %v7184, %v7182
        %v7243 = vpack.c.bf16 %v7185, %v7183
        %v7244 = vpack.c.bf16 %v7188, %v7186
        %v7245 = vpack.c.bf16 %v7189, %v7187
        %v7246 = vpack.c.bf16 %v7192, %v7190
        %v7247 = vpack.c.bf16 %v7193, %v7191
        %v7248 = vpack.c.bf16 %v7196, %v7194
        %v7249 = vpack.c.bf16 %v7197, %v7195
        %v7250 = vpack.c.bf16 %v7200, %v7198
        %v7251 = vpack.c.bf16 %v7201, %v7199
        %v7252 = vpack.c.bf16 %v7204, %v7202
        %v7253 = vpack.c.bf16 %v7205, %v7203
        %v7254 = vpack.c.bf16 %v7208, %v7206
        %v7255 = vpack.c.bf16 %v7209, %v7207
        %v7256 = vpack.c.bf16 %v7212, %v7210
        %v7257 = vpack.c.bf16 %v7213, %v7211
        %v7258 = vpack.c.bf16 %v7216, %v7214
        %v7259 = vpack.c.bf16 %v7217, %v7215
        %v7260 = vpack.c.bf16 %v7220, %v7218
        %v7261 = vpack.c.bf16 %v7221, %v7219
        %v7262 = vpack.c.bf16 %v7224, %v7222
        %v7263 = vpack.c.bf16 %v7225, %v7223
        %v7264 = vpack.c.bf16 %v7228, %v7226
        %v7265 = vpack.c.bf16 %v7229, %v7227
        %v7266 = vpack.c.bf16 %v7232, %v7230
        %v7267 = vpack.c.bf16 %v7233, %v7231
        %v7268 = vpack.c.bf16 %v7236, %v7234
        %v7269 = vpack.c.bf16 %v7237, %v7235
        %v7270 = vpack.c.bf16 %v6792, %v6789
        %v7271 = vpack.c.bf16 %v6800, %v6797
        %v7272 = vpack.c.bf16 %v6808, %v6805
        %v7273 = vpack.c.bf16 %v6816, %v6813
        %v7274 = vpack.c.bf16 %v6824, %v6821
        %v7275 = vpack.c.bf16 %v6832, %v6829
        %v7276 = vpack.c.bf16 %v6840, %v6837
        %v7277 = vpack.c.bf16 %v6848, %v6845
        %v7278 = vpack.c.bf16 %v6856, %v6853
        %v7279 = vpack.c.bf16 %v6864, %v6861
        %v7280 = vpack.c.bf16 %v6872, %v6869
        %v7281 = vpack.c.bf16 %v6880, %v6877
        %v7282 = vpack.c.bf16 %v6888, %v6885
        %v7283 = vpack.c.bf16 %v6896, %v6893
        %v7284 = vpack.c.bf16 %v6904, %v6901
        %v7285 = vpack.c.bf16 %v6912, %v6909
        %7286 = vmatprep.subr.bf16.mxu0 0
        %7287 = vmatpush1.bf16.msra.mxu0 %v7270
        %7288 = vmatprep.subr.bf16.mxu0 0
        %7289 = vmatpush1.bf16.msra.mxu0 %v7271
        %7290 = vmatprep.subr.bf16.mxu0 0
        %7291 = vmatpush1.bf16.msra.mxu0 %v7272
        %7292 = vmatprep.subr.bf16.mxu0 0
        %7293 = vmatpush1.bf16.msra.mxu0 %v7273
        %7294 = vmatprep.subr.bf16.mxu0 0
        %7295 = vmatpush1.bf16.msra.mxu0 %v7274
        %7296 = vmatprep.subr.bf16.mxu0 0
        %7297 = vmatpush1.bf16.msra.mxu0 %v7275
        %7298 = vmatprep.subr.bf16.mxu0 0
        %7299 = vmatpush1.bf16.msra.mxu0 %v7276
        %7300 = vmatprep.subr.bf16.mxu0 0
        %7301 = vmatpush1.bf16.msra.mxu0 %v7277
        %7302 = vmatprep.subr.bf16.mxu0 0
        %7303 = vmatpush1.bf16.msra.mxu0 %v7278
        %7304 = vmatprep.subr.bf16.mxu0 0
        %7305 = vmatpush1.bf16.msra.mxu0 %v7279
        %7306 = vmatprep.subr.bf16.mxu0 0
        %7307 = vmatpush1.bf16.msra.mxu0 %v7280
        %7308 = vmatprep.subr.bf16.mxu0 0
        %7309 = vmatpush1.bf16.msra.mxu0 %v7281
        %7310 = vmatprep.subr.bf16.mxu0 0
        %7311 = vmatpush1.bf16.msra.mxu0 %v7282
        %7312 = vmatprep.subr.bf16.mxu0 0
        %7313 = vmatpush1.bf16.msra.mxu0 %v7283
        %7314 = vmatprep.subr.bf16.mxu0 0
        %7315 = vmatpush1.bf16.msra.mxu0 %v7284
        %7316 = vmatprep.subr.bf16.mxu0 0
        %7317 = vmatpush1.bf16.msra.mxu0 %v7285
        %7318 = vmatprep.mubr.bf16.mxu0 %v7239
        %7319 = vmatmul.mubr.bf16.gmra.mrb[0].mxu0 %v7238
        %v7320 = vpop.f32.mrb[0].mxu0
        %v7321 = vadd.f32 0.0, %v7320
        %v7322 = vpop.f32.mrb[0].mxu0
        %v7323 = vpop.f32.mrb[0].mxu0
        %v7324 = vadd.f32 0.0, %v7323
        %v7325 = vpop.f32.mrb[0].mxu0
        %7326 = vmatprep.mubr.bf16.mxu0 %v7241
        %7327 = vmatmul.mubr.bf16.gmra.mrb[0].mxu0 %v7240
        %v7328 = vpop.f32.mrb[0].mxu0
        %v7329 = vadd.f32 0.0, %v7328
        %v7330 = vpop.f32.mrb[0].mxu0
        %v7331 = vpop.f32.mrb[0].mxu0
        %v7332 = vadd.f32 0.0, %v7331
        %v7333 = vpop.f32.mrb[0].mxu0
        %7334 = vmatprep.mubr.bf16.mxu0 %v7243
        %7335 = vmatmul.mubr.bf16.gmra.mrb[0].mxu0 %v7242
        %v7336 = vpop.f32.mrb[0].mxu0
        %v7337 = vadd.f32 0.0, %v7336
        %v7338 = vpop.f32.mrb[0].mxu0
        %v7339 = vpop.f32.mrb[0].mxu0
        %v7340 = vadd.f32 0.0, %v7339
        %v7341 = vpop.f32.mrb[0].mxu0
        %7342 = vmatprep.mubr.bf16.mxu0 %v7245
        %7343 = vmatmul.mubr.bf16.gmra.mrb[0].mxu0 %v7244
        %v7344 = vpop.f32.mrb[0].mxu0
        %v7345 = vadd.f32 0.0, %v7344
        %v7346 = vpop.f32.mrb[0].mxu0
        %v7347 = vpop.f32.mrb[0].mxu0
        %v7348 = vadd.f32 0.0, %v7347
        %v7349 = vpop.f32.mrb[0].mxu0
        %7350 = vmatprep.mubr.bf16.mxu0 %v7247
        %7351 = vmatmul.mubr.bf16.gmra.mrb[0].mxu0 %v7246
        %v7352 = vpop.f32.mrb[0].mxu0
        %v7353 = vadd.f32 0.0, %v7352
        %v7354 = vpop.f32.mrb[0].mxu0
        %v7355 = vpop.f32.mrb[0].mxu0
        %v7356 = vadd.f32 0.0, %v7355
        %v7357 = vpop.f32.mrb[0].mxu0
        %7358 = vmatprep.mubr.bf16.mxu0 %v7249
        %7359 = vmatmul.mubr.bf16.gmra.mrb[0].mxu0 %v7248
        %v7360 = vpop.f32.mrb[0].mxu0
        %v7361 = vadd.f32 0.0, %v7360
        %v7362 = vpop.f32.mrb[0].mxu0
        %v7363 = vpop.f32.mrb[0].mxu0
        %v7364 = vadd.f32 0.0, %v7363
        %v7365 = vpop.f32.mrb[0].mxu0
        %7366 = vmatprep.mubr.bf16.mxu0 %v7251
        %7367 = vmatmul.mubr.bf16.gmra.mrb[0].mxu0 %v7250
        %v7368 = vpop.f32.mrb[0].mxu0
        %v7369 = vadd.f32 0.0, %v7368
        %v7370 = vpop.f32.mrb[0].mxu0
        %v7371 = vpop.f32.mrb[0].mxu0
        %v7372 = vadd.f32 0.0, %v7371
        %v7373 = vpop.f32.mrb[0].mxu0
        %7374 = vmatprep.mubr.bf16.mxu0 %v7253
        %7375 = vmatmul.mubr.bf16.gmra.mrb[0].mxu0 %v7252
        %v7376 = vpop.f32.mrb[0].mxu0
        %v7377 = vadd.f32 0.0, %v7376
        %v7378 = vpop.f32.mrb[0].mxu0
        %v7379 = vpop.f32.mrb[0].mxu0
        %v7380 = vadd.f32 0.0, %v7379
        %v7381 = vpop.f32.mrb[0].mxu0
        %7382 = vmatprep.mubr.bf16.mxu0 %v7255
        %7383 = vmatmul.mubr.bf16.gmra.mrb[0].mxu0 %v7254
        %v7384 = vpop.f32.mrb[0].mxu0
        %v7385 = vadd.f32 0.0, %v7384
        %v7386 = vpop.f32.mrb[0].mxu0
        %v7387 = vpop.f32.mrb[0].mxu0
        %v7388 = vadd.f32 0.0, %v7387
        %v7389 = vpop.f32.mrb[0].mxu0
        %7390 = vmatprep.mubr.bf16.mxu0 %v7257
        %7391 = vmatmul.mubr.bf16.gmra.mrb[0].mxu0 %v7256
        %v7392 = vpop.f32.mrb[0].mxu0
        %v7393 = vadd.f32 0.0, %v7392
        %v7394 = vpop.f32.mrb[0].mxu0
        %v7395 = vpop.f32.mrb[0].mxu0
        %v7396 = vadd.f32 0.0, %v7395
        %v7397 = vpop.f32.mrb[0].mxu0
        %7398 = vmatprep.mubr.bf16.mxu0 %v7259
        %7399 = vmatmul.mubr.bf16.gmra.mrb[0].mxu0 %v7258
        %v7400 = vpop.f32.mrb[0].mxu0
        %v7401 = vadd.f32 0.0, %v7400
        %v7402 = vpop.f32.mrb[0].mxu0
        %v7403 = vpop.f32.mrb[0].mxu0
        %v7404 = vadd.f32 0.0, %v7403
        %v7405 = vpop.f32.mrb[0].mxu0
        %7406 = vmatprep.mubr.bf16.mxu0 %v7261
        %7407 = vmatmul.mubr.bf16.gmra.mrb[0].mxu0 %v7260
        %v7408 = vpop.f32.mrb[0].mxu0
        %v7409 = vadd.f32 0.0, %v7408
        %v7410 = vpop.f32.mrb[0].mxu0
        %v7411 = vpop.f32.mrb[0].mxu0
        %v7412 = vadd.f32 0.0, %v7411
        %v7413 = vpop.f32.mrb[0].mxu0
        %7414 = vmatprep.mubr.bf16.mxu0 %v7263
        %7415 = vmatmul.mubr.bf16.gmra.mrb[0].mxu0 %v7262
        %v7416 = vpop.f32.mrb[0].mxu0
        %v7417 = vadd.f32 0.0, %v7416
        %v7418 = vpop.f32.mrb[0].mxu0
        %v7419 = vpop.f32.mrb[0].mxu0
        %v7420 = vadd.f32 0.0, %v7419
        %v7421 = vpop.f32.mrb[0].mxu0
        %7422 = vmatprep.mubr.bf16.mxu0 %v7265
        %7423 = vmatmul.mubr.bf16.gmra.mrb[0].mxu0 %v7264
        %v7424 = vpop.f32.mrb[0].mxu0
        %v7425 = vadd.f32 0.0, %v7424
        %v7426 = vpop.f32.mrb[0].mxu0
        %v7427 = vpop.f32.mrb[0].mxu0
        %v7428 = vadd.f32 0.0, %v7427
        %v7429 = vpop.f32.mrb[0].mxu0
        %7430 = vmatprep.mubr.bf16.mxu0 %v7267
        %7431 = vmatmul.mubr.bf16.gmra.mrb[0].mxu0 %v7266
        %v7432 = vpop.f32.mrb[0].mxu0
        %v7433 = vadd.f32 0.0, %v7432
        %v7434 = vpop.f32.mrb[0].mxu0
        %v7435 = vpop.f32.mrb[0].mxu0
        %v7436 = vadd.f32 0.0, %v7435
        %v7437 = vpop.f32.mrb[0].mxu0
        %7438 = vmatprep.mubr.bf16.mxu0 %v7269
        %7439 = vmatmul.mubr.bf16.gmra.mrb[0].mxu0 %v7268
        %v7440 = vpop.f32.mrb[0].mxu0
        %v7441 = vadd.f32 0.0, %v7440
        %v7442 = vpop.f32.mrb[0].mxu0
        %v7443 = vpop.f32.mrb[0].mxu0
        %v7444 = vadd.f32 0.0, %v7443
        %v7445 = vpop.f32.mrb[0].mxu0
        %7446 = vdwg.mxu0
        %v7447 = vmul.f32 %v7321, %v7385
        %v7448 = vmul.f32 %v7324, %v7388
        %v7449 = vmul.f32 %v7329, %v7393
        %v7450 = vmul.f32 %v7332, %v7396
        %v7451 = vmul.f32 %v7337, %v7401
        %v7452 = vmul.f32 %v7340, %v7404
        %v7453 = vmul.f32 %v7345, %v7409
        %v7454 = vmul.f32 %v7348, %v7412
        %v7455 = vmul.f32 %v7353, %v7417
        %v7456 = vmul.f32 %v7356, %v7420
        %v7457 = vmul.f32 %v7361, %v7425
        %v7458 = vmul.f32 %v7364, %v7428
        %v7459 = vmul.f32 %v7369, %v7433
        %v7460 = vmul.f32 %v7372, %v7436
        %v7461 = vmul.f32 %v7377, %v7441
        %v7462 = vmul.f32 %v7380, %v7444
        %s7463 = scalar_lea.vmem %s5, 32
        %v7464 = vld [vmem:[%s7463] sm:$0xf]
        %v7465 = vld [vmem:[%s7463 + $0x4] sm:$0xf]
        %v7466 = vld [vmem:[%s7463 + $0x8] sm:$0xf]
        %v7467 = vld [vmem:[%s7463 + $0xc] sm:$0xf]
        %v7468 = vpack.c.bf16 %v7448, %v7447
        %v7469 = vpack.c.bf16 %v7450, %v7449
        %v7470 = vpack.c.bf16 %v7452, %v7451
        %v7471 = vpack.c.bf16 %v7454, %v7453
        %v7472 = vpack.c.bf16 %v7456, %v7455
        %v7473 = vpack.c.bf16 %v7458, %v7457
        %v7474 = vpack.c.bf16 %v7460, %v7459
        %v7475 = vpack.c.bf16 %v7462, %v7461
        %v7476 = vlaneseq
        %v7477 = vshrl.u32 %v7476, 7
        %v7478 = vsub.s32 0, %v7477
        %v7479 = vrot.slane %v439, %v7478
        %v7484 = vunpack.c.l.b16 %v7464
        %v7485 = vunpack.c.l.b16 %v7465
        %v7486 = vunpack.c.l.b16 %v7466
        %v7487 = vunpack.c.l.b16 %v7467
        %v7488 = vpack.c.b16 %v7485, %v7484
        %v7489 = vpack.c.b16 %v7487, %v7486
        %v7493 = vsel %vm2710, %v7468, 0
        %v7496 = vsel %vm2710, %v7469, 0
        %v7499 = vsel %vm2710, %v7470, 0
        %v7502 = vsel %vm2710, %v7471, 0
        %v7505 = vsel %vm2710, %v7472, 0
        %v7508 = vsel %vm2710, %v7473, 0
        %v7511 = vsel %vm2710, %v7474, 0
        %v7514 = vsel %vm2710, %v7475, 0
        %7516 = vmatprep.subr.bf16.mxu0 0
        %7517 = vmatpush1.bf16.msra.mxu0 %v7488
        %7518 = vmatprep.subr.bf16.mxu0 0
        %7519 = vmatpush1.bf16.msra.mxu0 %v7489
        %7520 = vmatprep.subr.bf16.mxu0 0
        %7521 = vmatpush1.bf16.msra.mxu0 0
        %7522 = vmatprep.subr.bf16.mxu0 0
        %7523 = vmatpush1.bf16.msra.mxu0 0
        %7524 = vmatprep.subr.bf16.mxu0 0
        %7525 = vmatpush1.bf16.msra.mxu0 0
        %7526 = vmatprep.subr.bf16.mxu0 0
        %7527 = vmatpush1.bf16.msra.mxu0 0
        %7528 = vmatprep.subr.bf16.mxu0 0
        %7529 = vmatpush1.bf16.msra.mxu0 0
        %7530 = vmatprep.subr.bf16.mxu0 0
        %7531 = vmatpush1.bf16.msra.mxu0 0
        %7532 = vmatprep.subr.bf16.mxu0 0
        %7533 = vmatpush1.bf16.msra.mxu0 0
        %7534 = vmatprep.subr.bf16.mxu0 0
        %7535 = vmatpush1.bf16.msra.mxu0 0
        %7536 = vmatprep.subr.bf16.mxu0 0
        %7537 = vmatpush1.bf16.msra.mxu0 0
        %7538 = vmatprep.subr.bf16.mxu0 0
        %7539 = vmatpush1.bf16.msra.mxu0 0
        %7540 = vmatprep.subr.bf16.mxu0 0
        %7541 = vmatpush1.bf16.msra.mxu0 0
        %7542 = vmatprep.subr.bf16.mxu0 0
        %7543 = vmatpush1.bf16.msra.mxu0 0
        %7544 = vmatprep.subr.bf16.mxu0 0
        %7545 = vmatpush1.bf16.msra.mxu0 0
        %7546 = vmatprep.subr.bf16.mxu0 0
        %7547 = vmatpush1.bf16.msra.mxu0 0
        %7548 = vmatprep.mubr.bf16.mxu0 0
        %7549 = vmatmul.mubr.bf16.gmra.mrb[0].mxu0 %v7493
        %v7550 = vpop.f32.mrb[0].mxu0
        %v7551 = vadd.f32 %v7479, %v7550
        %v7552 = vpop.f32.mrb[0].mxu0
        %v7553 = vpop.f32.mrb[0].mxu0
        %v7554 = vadd.f32 %v7479, %v7553
        %v7555 = vpop.f32.mrb[0].mxu0
        %7556 = vmatprep.mubr.bf16.mxu0 0
        %7557 = vmatmul.mubr.bf16.gmra.mrb[0].mxu0 %v7496
        %v7558 = vpop.f32.mrb[0].mxu0
        %v7559 = vadd.f32 %v7479, %v7558
        %v7560 = vpop.f32.mrb[0].mxu0
        %v7561 = vpop.f32.mrb[0].mxu0
        %v7562 = vadd.f32 %v7479, %v7561
        %v7563 = vpop.f32.mrb[0].mxu0
        %7564 = vmatprep.mubr.bf16.mxu0 0
        %7565 = vmatmul.mubr.bf16.gmra.mrb[0].mxu0 %v7499
        %v7566 = vpop.f32.mrb[0].mxu0
        %v7567 = vadd.f32 %v7479, %v7566
        %v7568 = vpop.f32.mrb[0].mxu0
        %v7569 = vpop.f32.mrb[0].mxu0
        %v7570 = vadd.f32 %v7479, %v7569
        %v7571 = vpop.f32.mrb[0].mxu0
        %7572 = vmatprep.mubr.bf16.mxu0 0
        %7573 = vmatmul.mubr.bf16.gmra.mrb[0].mxu0 %v7502
        %v7574 = vpop.f32.mrb[0].mxu0
        %v7575 = vadd.f32 %v7479, %v7574
        %v7576 = vpop.f32.mrb[0].mxu0
        %v7577 = vpop.f32.mrb[0].mxu0
        %v7578 = vadd.f32 %v7479, %v7577
        %v7579 = vpop.f32.mrb[0].mxu0
        %7580 = vmatprep.mubr.bf16.mxu0 0
        %7581 = vmatmul.mubr.bf16.gmra.mrb[0].mxu0 %v7505
        %v7582 = vpop.f32.mrb[0].mxu0
        %v7583 = vadd.f32 %v7479, %v7582
        %v7584 = vpop.f32.mrb[0].mxu0
        %v7585 = vpop.f32.mrb[0].mxu0
        %v7586 = vadd.f32 %v7479, %v7585
        %v7587 = vpop.f32.mrb[0].mxu0
        %7588 = vmatprep.mubr.bf16.mxu0 0
        %7589 = vmatmul.mubr.bf16.gmra.mrb[0].mxu0 %v7508
        %v7590 = vpop.f32.mrb[0].mxu0
        %v7591 = vadd.f32 %v7479, %v7590
        %v7592 = vpop.f32.mrb[0].mxu0
        %v7593 = vpop.f32.mrb[0].mxu0
        %v7594 = vadd.f32 %v7479, %v7593
        %v7595 = vpop.f32.mrb[0].mxu0
        %7596 = vmatprep.mubr.bf16.mxu0 0
        %7597 = vmatmul.mubr.bf16.gmra.mrb[0].mxu0 %v7511
        %v7598 = vpop.f32.mrb[0].mxu0
        %v7599 = vadd.f32 %v7479, %v7598
        %v7600 = vpop.f32.mrb[0].mxu0
        %v7601 = vpop.f32.mrb[0].mxu0
        %v7602 = vadd.f32 %v7479, %v7601
        %v7603 = vpop.f32.mrb[0].mxu0
        %7604 = vmatprep.mubr.bf16.mxu0 0
        %7605 = vmatmul.mubr.bf16.gmra.mrb[0].mxu0 %v7514
        %v7606 = vpop.f32.mrb[0].mxu0
        %v7607 = vadd.f32 %v7479, %v7606
        %v7608 = vpop.f32.mrb[0].mxu0
        %v7609 = vpop.f32.mrb[0].mxu0
        %v7610 = vadd.f32 %v7479, %v7609
        %v7611 = vpop.f32.mrb[0].mxu0
        %7612 = vdwg.mxu0
        %v7613 = vmax.f32 %v7551, 0.0
        %v7614 = vmax.f32 %v7554, 0.0
        %v7615 = vmax.f32 %v7559, 0.0
        %v7616 = vmax.f32 %v7562, 0.0
        %v7617 = vmax.f32 %v7567, 0.0
        %v7618 = vmax.f32 %v7570, 0.0
        %v7619 = vmax.f32 %v7575, 0.0
        %v7620 = vmax.f32 %v7578, 0.0
        %v7621 = vmax.f32 %v7583, 0.0
        %v7622 = vmax.f32 %v7586, 0.0
        %v7623 = vmax.f32 %v7591, 0.0
        %v7624 = vmax.f32 %v7594, 0.0
        %v7625 = vmax.f32 %v7599, 0.0
        %v7626 = vmax.f32 %v7602, 0.0
        %v7627 = vmax.f32 %v7607, 0.0
        %v7628 = vmax.f32 %v7610, 0.0
        %v7629 = vld [vmem:[%s10] sm:$0xf]
        %v7630 = vld [vmem:[%s10 + $0x4] sm:$0xf]
        %v7631 = vld [vmem:[%s10 + $0x8] sm:$0xf]
        %v7632 = vld [vmem:[%s10 + $0xc] sm:$0xf]
        %v7633 = vpack.c.bf16 %v7614, %v7613
        %v7634 = vpack.c.bf16 %v7616, %v7615
        %v7635 = vpack.c.bf16 %v7618, %v7617
        %v7636 = vpack.c.bf16 %v7620, %v7619
        %v7637 = vpack.c.bf16 %v7622, %v7621
        %v7638 = vpack.c.bf16 %v7624, %v7623
        %v7639 = vpack.c.bf16 %v7626, %v7625
        %v7640 = vpack.c.bf16 %v7628, %v7627
        %v7641 = vlaneseq
        %v7642 = vshrl.u32 %v7641, 7
        %v7643 = vsub.s32 0, %v7642
        %v7644 = vrot.slane %v440, %v7643
        %v7649 = vunpack.c.l.b16 %v7629
        %v7650 = vunpack.c.l.b16 %v7630
        %v7651 = vunpack.c.l.b16 %v7631
        %v7652 = vunpack.c.l.b16 %v7632
        %v7653 = vpack.c.b16 %v7650, %v7649
        %v7654 = vpack.c.b16 %v7652, %v7651
        %v7658 = vsel %vm2710, %v7633, 0
        %v7661 = vsel %vm2710, %v7634, 0
        %v7664 = vsel %vm2710, %v7635, 0
        %v7667 = vsel %vm2710, %v7636, 0
        %v7670 = vsel %vm2710, %v7637, 0
        %v7673 = vsel %vm2710, %v7638, 0
        %v7676 = vsel %vm2710, %v7639, 0
        %v7679 = vsel %vm2710, %v7640, 0
        %7681 = vmatprep.subr.bf16.mxu0 0
        %7682 = vmatpush1.bf16.msra.mxu0 %v7653
        %7683 = vmatprep.subr.bf16.mxu0 0
        %7684 = vmatpush1.bf16.msra.mxu0 %v7654
        %7685 = vmatprep.subr.bf16.mxu0 0
        %7686 = vmatpush1.bf16.msra.mxu0 0
        %7687 = vmatprep.subr.bf16.mxu0 0
        %7688 = vmatpush1.bf16.msra.mxu0 0
        %7689 = vmatprep.subr.bf16.mxu0 0
        %7690 = vmatpush1.bf16.msra.mxu0 0
        %7691 = vmatprep.subr.bf16.mxu0 0
        %7692 = vmatpush1.bf16.msra.mxu0 0
        %7693 = vmatprep.subr.bf16.mxu0 0
        %7694 = vmatpush1.bf16.msra.mxu0 0
        %7695 = vmatprep.subr.bf16.mxu0 0
        %7696 = vmatpush1.bf16.msra.mxu0 0
        %7697 = vmatprep.subr.bf16.mxu0 0
        %7698 = vmatpush1.bf16.msra.mxu0 0
        %7699 = vmatprep.subr.bf16.mxu0 0
        %7700 = vmatpush1.bf16.msra.mxu0 0
        %7701 = vmatprep.subr.bf16.mxu0 0
        %7702 = vmatpush1.bf16.msra.mxu0 0
        %7703 = vmatprep.subr.bf16.mxu0 0
        %7704 = vmatpush1.bf16.msra.mxu0 0
        %7705 = vmatprep.subr.bf16.mxu0 0
        %7706 = vmatpush1.bf16.msra.mxu0 0
        %7707 = vmatprep.subr.bf16.mxu0 0
        %7708 = vmatpush1.bf16.msra.mxu0 0
        %7709 = vmatprep.subr.bf16.mxu0 0
        %7710 = vmatpush1.bf16.msra.mxu0 0
        %7711 = vmatprep.subr.bf16.mxu0 0
        %7712 = vmatpush1.bf16.msra.mxu0 0
        %7713 = vmatprep.mubr.bf16.mxu0 0
        %7714 = vmatmul.mubr.bf16.gmra.mrb[0].mxu0 %v7658
        %v7715 = vpop.f32.mrb[0].mxu0
        %v7716 = vadd.f32 %v7644, %v7715
        %v7717 = vpop.f32.mrb[0].mxu0
        %v7718 = vpop.f32.mrb[0].mxu0
        %v7719 = vadd.f32 %v7644, %v7718
        %v7720 = vpop.f32.mrb[0].mxu0
        %7721 = vmatprep.mubr.bf16.mxu0 0
        %7722 = vmatmul.mubr.bf16.gmra.mrb[0].mxu0 %v7661
        %v7723 = vpop.f32.mrb[0].mxu0
        %v7724 = vadd.f32 %v7644, %v7723
        %v7725 = vpop.f32.mrb[0].mxu0
        %v7726 = vpop.f32.mrb[0].mxu0
        %v7727 = vadd.f32 %v7644, %v7726
        %v7728 = vpop.f32.mrb[0].mxu0
        %7729 = vmatprep.mubr.bf16.mxu0 0
        %7730 = vmatmul.mubr.bf16.gmra.mrb[0].mxu0 %v7664
        %v7731 = vpop.f32.mrb[0].mxu0
        %v7732 = vadd.f32 %v7644, %v7731
        %v7733 = vpop.f32.mrb[0].mxu0
        %v7734 = vpop.f32.mrb[0].mxu0
        %v7735 = vadd.f32 %v7644, %v7734
        %v7736 = vpop.f32.mrb[0].mxu0
        %7737 = vmatprep.mubr.bf16.mxu0 0
        %7738 = vmatmul.mubr.bf16.gmra.mrb[0].mxu0 %v7667
        %v7739 = vpop.f32.mrb[0].mxu0
        %v7740 = vadd.f32 %v7644, %v7739
        %v7741 = vpop.f32.mrb[0].mxu0
        %v7742 = vpop.f32.mrb[0].mxu0
        %v7743 = vadd.f32 %v7644, %v7742
        %v7744 = vpop.f32.mrb[0].mxu0
        %7745 = vmatprep.mubr.bf16.mxu0 0
        %7746 = vmatmul.mubr.bf16.gmra.mrb[0].mxu0 %v7670
        %v7747 = vpop.f32.mrb[0].mxu0
        %v7748 = vadd.f32 %v7644, %v7747
        %v7749 = vpop.f32.mrb[0].mxu0
        %v7750 = vpop.f32.mrb[0].mxu0
        %v7751 = vadd.f32 %v7644, %v7750
        %v7752 = vpop.f32.mrb[0].mxu0
        %7753 = vmatprep.mubr.bf16.mxu0 0
        %7754 = vmatmul.mubr.bf16.gmra.mrb[0].mxu0 %v7673
        %v7755 = vpop.f32.mrb[0].mxu0
        %v7756 = vadd.f32 %v7644, %v7755
        %v7757 = vpop.f32.mrb[0].mxu0
        %v7758 = vpop.f32.mrb[0].mxu0
        %v7759 = vadd.f32 %v7644, %v7758
        %v7760 = vpop.f32.mrb[0].mxu0
        %7761 = vmatprep.mubr.bf16.mxu0 0
        %7762 = vmatmul.mubr.bf16.gmra.mrb[0].mxu0 %v7676
        %v7763 = vpop.f32.mrb[0].mxu0
        %v7764 = vadd.f32 %v7644, %v7763
        %v7765 = vpop.f32.mrb[0].mxu0
        %v7766 = vpop.f32.mrb[0].mxu0
        %v7767 = vadd.f32 %v7644, %v7766
        %v7768 = vpop.f32.mrb[0].mxu0
        %7769 = vmatprep.mubr.bf16.mxu0 0
        %7770 = vmatmul.mubr.bf16.gmra.mrb[0].mxu0 %v7679
        %v7771 = vpop.f32.mrb[0].mxu0
        %v7772 = vadd.f32 %v7644, %v7771
        %v7773 = vpop.f32.mrb[0].mxu0
        %v7774 = vpop.f32.mrb[0].mxu0
        %v7775 = vadd.f32 %v7644, %v7774
        %v7776 = vpop.f32.mrb[0].mxu0
        %7777 = vdwg.mxu0
        %7778 = vst [vmem:[%s416] sm:$0xff] %v7716
        %7779 = vst [vmem:[%s416 + $0x8] sm:$0xff] %v7719
        %7780 = vst [vmem:[%s416 + $0x10] sm:$0xff] %v7724
        %7781 = vst [vmem:[%s416 + $0x18] sm:$0xff] %v7727
        %7782 = vst [vmem:[%s416 + $0x20] sm:$0xff] %v7732
        %7783 = vst [vmem:[%s416 + $0x28] sm:$0xff] %v7735
        %7784 = vst [vmem:[%s416 + $0x30] sm:$0xff] %v7740
        %7785 = vst [vmem:[%s416 + $0x38] sm:$0xff] %v7743
        %7786 = vst [vmem:[%s416 + $0x40] sm:$0xff] %v7748
        %7787 = vst [vmem:[%s416 + $0x48] sm:$0xff] %v7751
        %7788 = vst [vmem:[%s416 + $0x50] sm:$0xff] %v7756
        %7789 = vst [vmem:[%s416 + $0x58] sm:$0xff] %v7759
        %7790 = vst [vmem:[%s416 + $0x60] sm:$0xff] %v7764
        %7791 = vst [vmem:[%s416 + $0x68] sm:$0xff] %v7767
        %7792 = vst [vmem:[%s416 + $0x70] sm:$0xff] %v7772
        %7793 = vst [vmem:[%s416 + $0x78] sm:$0xff] %v7775
        %s7794 = sand.u32 %s286, 1
        %s7795 = scalar_lea.sflag [#allocation6], %s7794
        %s7796 = sand.u32 %s286, 1
        %s7797 = smul.addr %s7796, 128
        %s7798 = scalar_lea.vmem [#allocation5], %s7797
        // Predicated region
        $region65: #{tpu_custom_call.1} parent=63 // pred_check
          %p7799 = pneg %p296
        $region66: #{tpu_custom_call.1} parent=63 // pred_check_branch
          %7801 = sbr.rel (%p7799) target = $region68
        $region67: #{tpu_custom_call.1} parent=63 // pred_region
          %s7803 = ssub.s32 2048, 2048
          %7804 = vsyncadd %s7795, %s7803
          %s7805 = smul.addr %s32, 16
          %s7806 = smul.addr %s7805, 128
          %s7807 = scalar_lea.hbm %s12, %s7806
          %s7808 = sshll.u32 %s7798, 4
          %s7809 = int_to_ptr.vmem [resolvable:$true] %s7808
          %7814 = dma.vmem_to_hbm [thread:$0]  %s7809, 2048, %s7807, %s7795, 128, 128, 8
        $region68: #{tpu_custom_call.1} parent=63 // pred_fallthru
          _
      $region64: #{tpu_custom_call.1} parent=5 // pred_fallthru
        _
      %p7815 = scmp.le.s32.totalorder 2, %s27
      // Predicated region
      $region69: #{tpu_custom_call.1} parent=5 // pred_check
        %p7816 = pneg %p7815
      $region70: #{tpu_custom_call.1} parent=5 // pred_check_branch
        %7818 = sbr.rel (%p7816) target = $region72
      $region71: #{tpu_custom_call.1} parent=5 // pred_region
        %s7819 = ssub.s32 %s27, 2
        // Predicated region
        $region73: #{tpu_custom_call.1} parent=71 // pred_check
          %p7820 = pneg %p302
        $region74: #{tpu_custom_call.1} parent=71 // pred_check_branch
          %7822 = sbr.rel (%p7820) target = $region76
        $region75: #{tpu_custom_call.1} parent=71 // pred_region
          %s7823 = sand.u32 %s287, 1
          %s7824 = scalar_lea.sflag [#allocation6], %s7823
          %s7825 = sand.u32 %s287, 1
          %s7826 = smul.addr %s7825, 128
          %s7827 = scalar_lea.vmem [#allocation5], %s7826
          %7828 = dma.done %s7824, 2048
        $region76: #{tpu_custom_call.1} parent=71 // pred_fallthru
          _
      $region72: #{tpu_custom_call.1} parent=5 // pred_fallthru
        _
    $region6: #{tpu_custom_call.1} parent=1 // loop_footer
      %s31 = sadd.s32 1, %s27
    $region7: #{tpu_custom_call.1} parent=1 // loop_footer_branch
      %26 = sbr.rel target = $region3
    $region8: #{tpu_custom_call.1} parent=1 // loop_exit
      _
    %7829 = vsyncpa [#allocation6], 1
    %s7830 = scalar_lea.sflag [#allocation6], 1
    %7831 = vsyncpa %s7830, 1

</llo_original>
